<compile_context>
chip_gen: v7x
topology: tpu7x:2x2x1
jax: 0.10.0
libtpu: 0.0.40
codegen_flags: <defaults>
</compile_context>

<pallas_src>
import jax
import jax.numpy as jnp
from jax.experimental import pallas as pl
from jax.experimental.pallas import tpu as pltpu


# ---------------------------------------------------------------------------
# Kernel 1: conv1 + relu + conv2 + relu + 2x2 max-pool  (G images per grid step)
# ---------------------------------------------------------------------------
def _conv_pool_kernel(p_ref, w1_ref, b1_ref, w2_ref, b2_ref, o_ref, h1_ref):
    # p_ref : (G*704, 9) f32   parity-split conv1 im2col patches
    #                          row = g*704 + plane*176 + (u*13 + v), plane = rr*2+rc
    #                          -> conv1 pixel (2u+rr, 2v+rc); rows 169..175/plane zero
    # w1_ref: (9, 32)   f32    conv1 weight, row = dh*3+dw
    # b1_ref: (1, 32)   f32
    # w2_ref: (288, 64) bf16   conv2 weight, row = (dh*3+dw)*32 + cin
    # b2_ref: (1, 64)   f32
    # o_ref : (G, 156, 64) bf16  relu(conv2) max-pooled; row = s*13 + t (t==12 junk)
    # h1_ref: VMEM scratch (G*704, 32) f32 -- relu(conv1), parity planes stacked
    G = p_ref.shape[0] // 704

    # ---- conv1 + bias + relu: ONE MXU call for all G images / 4 parity planes ----
    h1 = jnp.dot(p_ref[...], w1_ref[...], preferred_element_type=jnp.float32)
    h1_ref[...] = jnp.maximum(h1 + b1_ref[...], 0.0)

    # ---- conv2 + bias + relu + 2x2 max-pool ----
    # Output pixel (2s+ph, 2t+pw) reads conv1 pixel (2s+ph+dh, 2t+pw+dw), which
    # lives in parity plane ((ph+dh)%2, (pw+dw)%2) at row (s+qr)*13 + (t+qc): a
    # contiguous 156-row window.  The 9 tap windows are lane-concatenated into a
    # (156, 288) LHS -> one K=288 MXU matmul per (image, output parity).
    # Pooling = elementwise max over the 4 output parities.
    for g in range(G):
        pooled = None
        for ph in (0, 1):
            for pw in (0, 1):
                taps = []
                for dh in range(3):
                    for dw in range(3):
                        rr, qr = (ph + dh) % 2, (ph + dh) // 2
                        rc, qc = (pw + dw) % 2, (pw + dw) // 2
                        base = g * 704 + (rr * 2 + rc) * 176 + qr * 13 + qc
                        taps.append(h1_ref[base:base + 156, :])       # (156, 32)
                lhs = jnp.concatenate(taps, axis=-1).astype(jnp.bfloat16)  # (156, 288)
                y = jnp.dot(lhs, w2_ref[...],
                            preferred_element_type=jnp.float32)        # (156, 64)
                y = jnp.maximum(y + b2_ref[...], 0.0)
                pooled = y if pooled is None else jnp.maximum(pooled, y)
        o_ref[g] = pooled.astype(o_ref.dtype)


def _pick_group(B, cap=8):
    """Largest G<=cap dividing B that still leaves >=2 grid steps (v7x dual TC)."""
    best = None
    for g in range(1, min(B, cap) + 1):
        if B % g == 0 and B // g >= 2:
            best = g
    return best if best is not None else B


def conv_pool(patches, w1, b1, w2, b2):
    B = patches.shape[0] // (4 * 176)
    G = _pick_group(B)
    return pl.pallas_call(
        _conv_pool_kernel,
        out_shape=jax.ShapeDtypeStruct((B, 156, 64), jnp.bfloat16),
        grid_spec=pltpu.PrefetchScalarGridSpec(
            num_scalar_prefetch=0,
            grid=(B // G,),
            in_specs=[
                pl.BlockSpec((G * 4 * 176, 9), lambda b: (b, 0)),
                pl.BlockSpec((9, 32), lambda b: (0, 0)),
                pl.BlockSpec((1, 32), lambda b: (0, 0)),
                pl.BlockSpec((288, 64), lambda b: (0, 0)),
                pl.BlockSpec((1, 64), lambda b: (0, 0)),
            ],
            out_specs=pl.BlockSpec((G, 156, 64), lambda b: (b, 0, 0)),
            scratch_shapes=[pltpu.VMEM((G * 4 * 176, 32), jnp.float32)],
        ),
        compiler_params=pltpu.CompilerParams(
            dimension_semantics=("parallel",)),
    )(patches, w1, b1, w2, b2)


# ---------------------------------------------------------------------------
# Kernel 2: fc1 + relu + fc2 + bias + log_softmax (full-K, M "parallel")
# ---------------------------------------------------------------------------
def _fc_head_kernel(x_ref, w1_ref, b1_ref, w2_ref, b2_ref, o_ref):
    # x_ref (tm, 9984) bf16, w1_ref (9984, 128) bf16 -> f32 accumulate on MXU.
    h = jnp.dot(x_ref[...], w1_ref[...], preferred_element_type=jnp.float32)
    h = jnp.maximum(h + b1_ref[...], 0.0)                              # (tm, 128) f32
    logits = jnp.dot(h, w2_ref[...],
                     preferred_element_type=jnp.float32) + b2_ref[...]  # (tm, 10)
    m = jnp.max(logits, axis=-1, keepdims=True)
    s = logits - m
    lse = jnp.log(jnp.sum(jnp.exp(s), axis=-1, keepdims=True))
    o_ref[...] = s - lse


def _pick_tm(B):
    """M tile: multiple of 8, <=256 (keeps (tm,9984) bf16 tiles well inside scoped
    VMEM), and >=2 M tiles whenever possible so v7x can shard across its 2 TCs."""
    best = None
    for cand in range(8, 257, 8):
        if B % cand == 0 and B // cand >= 2:
            best = cand
    return best if best is not None else B


def fc_head(x, w1, b1, w2, b2):
    B, K = x.shape
    N1 = w1.shape[1]
    N2 = w2.shape[1]
    tm = _pick_tm(B)
    return pl.pallas_call(
        _fc_head_kernel,
        out_shape=jax.ShapeDtypeStruct((B, N2), jnp.float32),
        grid_spec=pltpu.PrefetchScalarGridSpec(
            num_scalar_prefetch=0,
            grid=(B // tm,),
            in_specs=[
                pl.BlockSpec((tm, K), lambda i: (i, 0)),
                pl.BlockSpec((K, N1), lambda i: (0, 0)),   # constant -> stays resident
                pl.BlockSpec((1, N1), lambda i: (0, 0)),
                pl.BlockSpec((N1, N2), lambda i: (0, 0)),
                pl.BlockSpec((1, N2), lambda i: (0, 0)),
            ],
            out_specs=pl.BlockSpec((tm, N2), lambda i: (i, 0)),
        ),
        compiler_params=pltpu.CompilerParams(
            dimension_semantics=("parallel",),
            vmem_limit_bytes=32 * 1024 * 1024),
    )(x, w1, b1, w2, b2)


# ---------------------------------------------------------------------------
# Glue: conv1 parity patches (tiny, ~25 KB/image) + one-time weight relayout
# ---------------------------------------------------------------------------
def _conv1_parity_patches(x2):
    """x2: (B, 28, 28) -> (B, 4, 176, 9) parity-split 3x3 patches (rows 169..175 zero)."""
    # TODO(synk): fold this stride-2 patch extraction into kernel 1 (DMA the raw
    # 28x28 image and build windows in VMEM) to cut kernel-1 input HBM traffic ~9x
    # at large batch; the in-kernel stride-2 lane gather is not cleanly expressible
    # today, so it stays as host-side XLA ops.
    B = x2.shape[0]
    planes = []
    for rr in (0, 1):
        for rc in (0, 1):
            taps = []
            for dh in range(3):
                for dw in range(3):
                    taps.append(x2[:, rr + dh: rr + dh + 25: 2,
                                      rc + dw: rc + dw + 25: 2])    # (B, 13, 13)
            p = jnp.stack(taps, axis=-1).reshape(B, 169, 9)
            planes.append(jnp.pad(p, ((0, 0), (0, 7), (0, 0))))      # -> (B, 176, 9)
    return jnp.stack(planes, axis=1)                                  # (B, 4, 176, 9)


def init_torch_params(key):
    """Parameters in the exact layouts of the PyTorch module's state_dict."""
    ks = jax.random.split(key, 8)
    s = 0.05
    return {
        "conv1_w": s * jax.random.normal(ks[0], (32, 1, 3, 3), jnp.float32),
        "conv1_b": s * jax.random.normal(ks[1], (32,), jnp.float32),
        "conv2_w": s * jax.random.normal(ks[2], (64, 32, 3, 3), jnp.float32),
        "conv2_b": s * jax.random.normal(ks[3], (64,), jnp.float32),
        "fc1_w": s * jax.random.normal(ks[4], (128, 9216), jnp.float32),
        "fc1_b": s * jax.random.normal(ks[5], (128,), jnp.float32),
        "fc2_w": s * jax.random.normal(ks[6], (10, 128), jnp.float32),
        "fc2_b": s * jax.random.normal(ks[7], (10,), jnp.float32),
    }


def prepare_params(tp):
    """One-time relayout of torch-format weights into kernel-friendly layouts."""
    w1 = jnp.transpose(tp["conv1_w"].reshape(32, 9), (1, 0))            # (9, 32)
    # conv2: [O,I,H,W] -> [H,W,I,O] -> (288, 64), row = (dh*3+dw)*32 + cin
    w2 = jnp.transpose(tp["conv2_w"], (2, 3, 1, 0)).reshape(288, 64)
    # fc1: permute columns from NCHW-flatten order to the kernel's (h, w, c)
    # order and insert a zero row at every pooled-width index t == 12 (junk
    # column produced by the parity/masking trick) -> (12*13*64, 128) = (9984, 128).
    fw = tp["fc1_w"].reshape(128, 64, 12, 12)          # [o, c, h, w]
    fw = jnp.transpose(fw, (2, 3, 1, 0))               # [h, w, c, o]
    fw = jnp.pad(fw, ((0, 0), (0, 1), (0, 0), (0, 0)))  # w: 12 -> 13 (zeros)
    fc1_w = fw.reshape(12 * 13 * 64, 128)
    return {
        "conv1_w": w1, "conv1_b": tp["conv1_b"].reshape(1, 32),
        "conv2_w": w2.astype(jnp.bfloat16), "conv2_b": tp["conv2_b"].reshape(1, 64),
        "fc1_w": fc1_w.astype(jnp.bfloat16), "fc1_b": tp["fc1_b"].reshape(1, 128),
        "fc2_w": jnp.transpose(tp["fc2_w"], (1, 0)),   # (128, 10) f32
        "fc2_b": tp["fc2_b"].reshape(1, 10),
    }


def forward(params, x):
    # x: (B, 1, 28, 28) float32 (NCHW, like the torch module)
    B = x.shape[0]
    patches = _conv1_parity_patches(x[:, 0]).reshape(B * 4 * 176, 9)
    feats = conv_pool(patches, params["conv1_w"], params["conv1_b"],
                      params["conv2_w"], params["conv2_b"])        # (B, 156, 64) bf16
    feats = feats.reshape(B, 156 * 64)                             # contiguous -> free
    # dropout1 / dropout2: identity in eval mode (no RNG masking).
    return fc_head(feats, params["fc1_w"], params["fc1_b"],
                   params["fc2_w"], params["fc2_b"])               # (B, 10) log-probs


# ---------------------------------------------------------------------------
# Pure-JAX reference (torch semantics) for in-script validation
# ---------------------------------------------------------------------------
def forward_reference(tp, x):
    hp = jax.lax.Precision.HIGHEST
    y = jax.lax.conv_general_dilated(x, tp["conv1_w"], (1, 1), "VALID",
                                     dimension_numbers=("NCHW", "OIHW", "NCHW"),
                                     precision=hp)
    y = jax.nn.relu(y + tp["conv1_b"][None, :, None, None])
    y = jax.lax.conv_general_dilated(y, tp["conv2_w"], (1, 1), "VALID",
                                     dimension_numbers=("NCHW", "OIHW", "NCHW"),
                                     precision=hp)
    y = jax.nn.relu(y + tp["conv2_b"][None, :, None, None])
    b, c, h, w = y.shape
    y = y.reshape(b, c, h // 2, 2, w // 2, 2).max(axis=(3, 5))
    y = y.reshape(b, -1)
    y = jax.nn.relu(jnp.dot(y, tp["fc1_w"].T, precision=hp) + tp["fc1_b"])
    y = jnp.dot(y, tp["fc2_w"].T, precision=hp) + tp["fc2_b"]
    return jax.nn.log_softmax(y, axis=-1)


if __name__ == "__main__":
    key = jax.random.PRNGKey(0)
    pkey, xkey = jax.random.split(key)
    torch_params = init_torch_params(pkey)
    params = prepare_params(torch_params)
    # fc1 expects 9216 = 64*12*12, which forces 28x28 single-channel inputs.
    x = jax.random.normal(xkey, (2, 1, 28, 28), jnp.float32)

    out = jax.jit(forward)(params, x)
    out = jax.block_until_ready(out)

    assert out.shape == (2, 10)
    # log_softmax rows must (approximately) sum to 1 in prob space
    assert jnp.allclose(jnp.sum(jnp.exp(out), axis=1), 1.0, atol=1e-4)
    # match the pure-JAX / torch-semantics reference (bf16 MXU inputs, f32 accum)
    ref = forward_reference(torch_params, x)
    err = float(jnp.max(jnp.abs(out - ref)))
    assert err < 2e-2, err
    print("KERNEL_OK")
</pallas_src>

<mosaic_0001>
module attributes {stable_mosaic.version = 11 : i64} {
  func.func @_conv_pool_kernel(%arg0: i32, %arg1: memref<704x9xf32, #tpu.memory_space<vmem>>, %arg2: memref<9x32xf32, #tpu.memory_space<vmem>>, %arg3: memref<1x32xf32, #tpu.memory_space<vmem>>, %arg4: memref<288x64xbf16, #tpu.memory_space<vmem>>, %arg5: memref<1x64xf32, #tpu.memory_space<vmem>>, %arg6: memref<1x156x64xbf16, #tpu.memory_space<vmem>>, %arg7: memref<704x32xf32, #tpu.memory_space<vmem>>) attributes {dimension_semantics = [#tpu.dimension_semantics<parallel>], iteration_bounds = array<i64: 2>, scalar_prefetch = 0 : i64, scratch_operands = 1 : i64, tpu.core_type = #tpu.core_type<tc>, window_params = [{transform_indices = @transform_0, window_bounds = array<i64: 704, 9>}, {pipeline_mode = #tpu.pipeline_mode<synchronous>, transform_indices = @transform_1, window_bounds = array<i64: 9, 32>}, {pipeline_mode = #tpu.pipeline_mode<synchronous>, transform_indices = @transform_2, window_bounds = array<i64: 1, 32>}, {pipeline_mode = #tpu.pipeline_mode<synchronous>, transform_indices = @transform_3, window_bounds = array<i64: 288, 64>}, {pipeline_mode = #tpu.pipeline_mode<synchronous>, transform_indices = @transform_4, window_bounds = array<i64: 1, 64>}, {transform_indices = @transform_5, window_bounds = array<i64: 1, 156, 64>}]} {
    %c0 = arith.constant 0 : index
    %c0_0 = arith.constant 0 : index
    %0 = vector.load %arg1[%c0, %c0_0] : memref<704x9xf32, #tpu.memory_space<vmem>>, vector<704x9xf32>
    %c0_1 = arith.constant 0 : index
    %c0_2 = arith.constant 0 : index
    %1 = vector.load %arg2[%c0_1, %c0_2] : memref<9x32xf32, #tpu.memory_space<vmem>>, vector<9x32xf32>
    %cst = arith.constant dense<0.000000e+00> : vector<704x32xf32>
    %2 = tpu.matmul %0, %1, %cst {dimension_numbers = #tpu.dot_dimension_numbers<[1], [0], [0], [1], [0, 0, 1, 1], [], []>} : vector<704x9xf32>, vector<9x32xf32>, vector<704x32xf32> -> vector<704x32xf32>
    %c0_3 = arith.constant 0 : index
    %c0_4 = arith.constant 0 : index
    %3 = vector.load %arg3[%c0_3, %c0_4] : memref<1x32xf32, #tpu.memory_space<vmem>>, vector<1x32xf32>
    %4 = vector.broadcast %3 : vector<1x32xf32> to vector<704x32xf32>
    %5 = arith.addf %2, %4 : vector<704x32xf32>
    %cst_5 = arith.constant 0.000000e+00 : f32
    %6 = vector.broadcast %cst_5 : f32 to vector<704x32xf32>
    %7 = arith.maximumf %5, %6 : vector<704x32xf32>
    %c0_6 = arith.constant 0 : index
    %c0_7 = arith.constant 0 : index
    %8 = vector.load %arg7[%c0_6, %c0_7] : memref<704x32xf32, #tpu.memory_space<vmem>>, vector<704x32xf32>
    tpu.vector_store %arg7[%c0_6, %c0_7], %7 {strides = array<i32>} : memref<704x32xf32, #tpu.memory_space<vmem>>, vector<704x32xf32>,
    %c0_8 = arith.constant 0 : index
    %c0_9 = arith.constant 0 : index
    %9 = vector.load %arg7[%c0_8, %c0_9] : memref<704x32xf32, #tpu.memory_space<vmem>>, vector<156x32xf32>
    %c176 = arith.constant 176 : index
    %c0_10 = arith.constant 0 : index
    %10 = vector.load %arg7[%c176, %c0_10] : memref<704x32xf32, #tpu.memory_space<vmem>>, vector<156x32xf32>
    %c1 = arith.constant 1 : index
    %c0_11 = arith.constant 0 : index
    %11 = vector.load %arg7[%c1, %c0_11] : memref<704x32xf32, #tpu.memory_space<vmem>>, vector<156x32xf32>
    %c352 = arith.constant 352 : index
    %c0_12 = arith.constant 0 : index
    %12 = vector.load %arg7[%c352, %c0_12] : memref<704x32xf32, #tpu.memory_space<vmem>>, vector<156x32xf32>
    %c528 = arith.constant 528 : index
    %c0_13 = arith.constant 0 : index
    %13 = vector.load %arg7[%c528, %c0_13] : memref<704x32xf32, #tpu.memory_space<vmem>>, vector<156x32xf32>
    %c353 = arith.constant 353 : index
    %c0_14 = arith.constant 0 : index
    %14 = vector.load %arg7[%c353, %c0_14] : memref<704x32xf32, #tpu.memory_space<vmem>>, vector<156x32xf32>
    %c13 = arith.constant 13 : index
    %c0_15 = arith.constant 0 : index
    %15 = vector.load %arg7[%c13, %c0_15] : memref<704x32xf32, #tpu.memory_space<vmem>>, vector<156x32xf32>
    %c189 = arith.constant 189 : index
    %c0_16 = arith.constant 0 : index
    %16 = vector.load %arg7[%c189, %c0_16] : memref<704x32xf32, #tpu.memory_space<vmem>>, vector<156x32xf32>
    %c14 = arith.constant 14 : index
    %c0_17 = arith.constant 0 : index
    %17 = vector.load %arg7[%c14, %c0_17] : memref<704x32xf32, #tpu.memory_space<vmem>>, vector<156x32xf32>
    %18 = tpu.concatenate %9, %10, %11, %12, %13, %14, %15, %16, %17 in 1 : vector<156x32xf32>, vector<156x32xf32>, vector<156x32xf32>, vector<156x32xf32>, vector<156x32xf32>, vector<156x32xf32>, vector<156x32xf32>, vector<156x32xf32>, vector<156x32xf32> -> vector<156x288xf32>
    %19 = arith.truncf %18 : vector<156x288xf32> to vector<156x288xbf16>
    %c0_18 = arith.constant 0 : index
    %c0_19 = arith.constant 0 : index
    %20 = vector.load %arg4[%c0_18, %c0_19] : memref<288x64xbf16, #tpu.memory_space<vmem>>, vector<288x64xbf16>
    %cst_20 = arith.constant dense<0.000000e+00> : vector<156x64xf32>
    %21 = tpu.matmul %19, %20, %cst_20 {dimension_numbers = #tpu.dot_dimension_numbers<[1], [0], [0], [1], [0, 0, 1, 1], [], []>} : vector<156x288xbf16>, vector<288x64xbf16>, vector<156x64xf32> -> vector<156x64xf32>
    %c0_21 = arith.constant 0 : index
    %c0_22 = arith.constant 0 : index
    %22 = vector.load %arg5[%c0_21, %c0_22] : memref<1x64xf32, #tpu.memory_space<vmem>>, vector<1x64xf32>
    %23 = vector.broadcast %22 : vector<1x64xf32> to vector<156x64xf32>
    %24 = arith.addf %21, %23 : vector<156x64xf32>
    %cst_23 = arith.constant 0.000000e+00 : f32
    %25 = vector.broadcast %cst_23 : f32 to vector<156x64xf32>
    %26 = arith.maximumf %24, %25 : vector<156x64xf32>
    %c176_24 = arith.constant 176 : index
    %c0_25 = arith.constant 0 : index
    %27 = vector.load %arg7[%c176_24, %c0_25] : memref<704x32xf32, #tpu.memory_space<vmem>>, vector<156x32xf32>
    %c1_26 = arith.constant 1 : index
    %c0_27 = arith.constant 0 : index
    %28 = vector.load %arg7[%c1_26, %c0_27] : memref<704x32xf32, #tpu.memory_space<vmem>>, vector<156x32xf32>
    %c177 = arith.constant 177 : index
    %c0_28 = arith.constant 0 : index
    %29 = vector.load %arg7[%c177, %c0_28] : memref<704x32xf32, #tpu.memory_space<vmem>>, vector<156x32xf32>
    %c528_29 = arith.constant 528 : index
    %c0_30 = arith.constant 0 : index
    %30 = vector.load %arg7[%c528_29, %c0_30] : memref<704x32xf32, #tpu.memory_space<vmem>>, vector<156x32xf32>
    %c353_31 = arith.constant 353 : index
    %c0_32 = arith.constant 0 : index
    %31 = vector.load %arg7[%c353_31, %c0_32] : memref<704x32xf32, #tpu.memory_space<vmem>>, vector<156x32xf32>
    %c529 = arith.constant 529 : index
    %c0_33 = arith.constant 0 : index
    %32 = vector.load %arg7[%c529, %c0_33] : memref<704x32xf32, #tpu.memory_space<vmem>>, vector<156x32xf32>
    %c189_34 = arith.constant 189 : index
    %c0_35 = arith.constant 0 : index
    %33 = vector.load %arg7[%c189_34, %c0_35] : memref<704x32xf32, #tpu.memory_space<vmem>>, vector<156x32xf32>
    %c14_36 = arith.constant 14 : index
    %c0_37 = arith.constant 0 : index
    %34 = vector.load %arg7[%c14_36, %c0_37] : memref<704x32xf32, #tpu.memory_space<vmem>>, vector<156x32xf32>
    %c190 = arith.constant 190 : index
    %c0_38 = arith.constant 0 : index
    %35 = vector.load %arg7[%c190, %c0_38] : memref<704x32xf32, #tpu.memory_space<vmem>>, vector<156x32xf32>
    %36 = tpu.concatenate %27, %28, %29, %30, %31, %32, %33, %34, %35 in 1 : vector<156x32xf32>, vector<156x32xf32>, vector<156x32xf32>, vector<156x32xf32>, vector<156x32xf32>, vector<156x32xf32>, vector<156x32xf32>, vector<156x32xf32>, vector<156x32xf32> -> vector<156x288xf32>
    %37 = arith.truncf %36 : vector<156x288xf32> to vector<156x288xbf16>
    %c0_39 = arith.constant 0 : index
    %c0_40 = arith.constant 0 : index
    %38 = vector.load %arg4[%c0_39, %c0_40] : memref<288x64xbf16, #tpu.memory_space<vmem>>, vector<288x64xbf16>
    %cst_41 = arith.constant dense<0.000000e+00> : vector<156x64xf32>
    %39 = tpu.matmul %37, %38, %cst_41 {dimension_numbers = #tpu.dot_dimension_numbers<[1], [0], [0], [1], [0, 0, 1, 1], [], []>} : vector<156x288xbf16>, vector<288x64xbf16>, vector<156x64xf32> -> vector<156x64xf32>
    %c0_42 = arith.constant 0 : index
    %c0_43 = arith.constant 0 : index
    %40 = vector.load %arg5[%c0_42, %c0_43] : memref<1x64xf32, #tpu.memory_space<vmem>>, vector<1x64xf32>
    %41 = vector.broadcast %40 : vector<1x64xf32> to vector<156x64xf32>
    %42 = arith.addf %39, %41 : vector<156x64xf32>
    %cst_44 = arith.constant 0.000000e+00 : f32
    %43 = vector.broadcast %cst_44 : f32 to vector<156x64xf32>
    %44 = arith.maximumf %42, %43 : vector<156x64xf32>
    %45 = arith.maximumf %26, %44 : vector<156x64xf32>
    %c352_45 = arith.constant 352 : index
    %c0_46 = arith.constant 0 : index
    %46 = vector.load %arg7[%c352_45, %c0_46] : memref<704x32xf32, #tpu.memory_space<vmem>>, vector<156x32xf32>
    %c528_47 = arith.constant 528 : index
    %c0_48 = arith.constant 0 : index
    %47 = vector.load %arg7[%c528_47, %c0_48] : memref<704x32xf32, #tpu.memory_space<vmem>>, vector<156x32xf32>
    %c353_49 = arith.constant 353 : index
    %c0_50 = arith.constant 0 : index
    %48 = vector.load %arg7[%c353_49, %c0_50] : memref<704x32xf32, #tpu.memory_space<vmem>>, vector<156x32xf32>
    %c13_51 = arith.constant 13 : index
    %c0_52 = arith.constant 0 : index
    %49 = vector.load %arg7[%c13_51, %c0_52] : memref<704x32xf32, #tpu.memory_space<vmem>>, vector<156x32xf32>
    %c189_53 = arith.constant 189 : index
    %c0_54 = arith.constant 0 : index
    %50 = vector.load %arg7[%c189_53, %c0_54] : memref<704x32xf32, #tpu.memory_space<vmem>>, vector<156x32xf32>
    %c14_55 = arith.constant 14 : index
    %c0_56 = arith.constant 0 : index
    %51 = vector.load %arg7[%c14_55, %c0_56] : memref<704x32xf32, #tpu.memory_space<vmem>>, vector<156x32xf32>
    %c365 = arith.constant 365 : index
    %c0_57 = arith.constant 0 : index
    %52 = vector.load %arg7[%c365, %c0_57] : memref<704x32xf32, #tpu.memory_space<vmem>>, vector<156x32xf32>
    %c541 = arith.constant 541 : index
    %c0_58 = arith.constant 0 : index
    %53 = vector.load %arg7[%c541, %c0_58] : memref<704x32xf32, #tpu.memory_space<vmem>>, vector<156x32xf32>
    %c366 = arith.constant 366 : index
    %c0_59 = arith.constant 0 : index
    %54 = vector.load %arg7[%c366, %c0_59] : memref<704x32xf32, #tpu.memory_space<vmem>>, vector<156x32xf32>
    %55 = tpu.concatenate %46, %47, %48, %49, %50, %51, %52, %53, %54 in 1 : vector<156x32xf32>, vector<156x32xf32>, vector<156x32xf32>, vector<156x32xf32>, vector<156x32xf32>, vector<156x32xf32>, vector<156x32xf32>, vector<156x32xf32>, vector<156x32xf32> -> vector<156x288xf32>
    %56 = arith.truncf %55 : vector<156x288xf32> to vector<156x288xbf16>
    %c0_60 = arith.constant 0 : index
    %c0_61 = arith.constant 0 : index
    %57 = vector.load %arg4[%c0_60, %c0_61] : memref<288x64xbf16, #tpu.memory_space<vmem>>, vector<288x64xbf16>
    %cst_62 = arith.constant dense<0.000000e+00> : vector<156x64xf32>
    %58 = tpu.matmul %56, %57, %cst_62 {dimension_numbers = #tpu.dot_dimension_numbers<[1], [0], [0], [1], [0, 0, 1, 1], [], []>} : vector<156x288xbf16>, vector<288x64xbf16>, vector<156x64xf32> -> vector<156x64xf32>
    %c0_63 = arith.constant 0 : index
    %c0_64 = arith.constant 0 : index
    %59 = vector.load %arg5[%c0_63, %c0_64] : memref<1x64xf32, #tpu.memory_space<vmem>>, vector<1x64xf32>
    %60 = vector.broadcast %59 : vector<1x64xf32> to vector<156x64xf32>
    %61 = arith.addf %58, %60 : vector<156x64xf32>
    %cst_65 = arith.constant 0.000000e+00 : f32
    %62 = vector.broadcast %cst_65 : f32 to vector<156x64xf32>
    %63 = arith.maximumf %61, %62 : vector<156x64xf32>
    %64 = arith.maximumf %45, %63 : vector<156x64xf32>
    %c528_66 = arith.constant 528 : index
    %c0_67 = arith.constant 0 : index
    %65 = vector.load %arg7[%c528_66, %c0_67] : memref<704x32xf32, #tpu.memory_space<vmem>>, vector<156x32xf32>
    %c353_68 = arith.constant 353 : index
    %c0_69 = arith.constant 0 : index
    %66 = vector.load %arg7[%c353_68, %c0_69] : memref<704x32xf32, #tpu.memory_space<vmem>>, vector<156x32xf32>
    %c529_70 = arith.constant 529 : index
    %c0_71 = arith.constant 0 : index
    %67 = vector.load %arg7[%c529_70, %c0_71] : memref<704x32xf32, #tpu.memory_space<vmem>>, vector<156x32xf32>
    %c189_72 = arith.constant 189 : index
    %c0_73 = arith.constant 0 : index
    %68 = vector.load %arg7[%c189_72, %c0_73] : memref<704x32xf32, #tpu.memory_space<vmem>>, vector<156x32xf32>
    %c14_74 = arith.constant 14 : index
    %c0_75 = arith.constant 0 : index
    %69 = vector.load %arg7[%c14_74, %c0_75] : memref<704x32xf32, #tpu.memory_space<vmem>>, vector<156x32xf32>
    %c190_76 = arith.constant 190 : index
    %c0_77 = arith.constant 0 : index
    %70 = vector.load %arg7[%c190_76, %c0_77] : memref<704x32xf32, #tpu.memory_space<vmem>>, vector<156x32xf32>
    %c541_78 = arith.constant 541 : index
    %c0_79 = arith.constant 0 : index
    %71 = vector.load %arg7[%c541_78, %c0_79] : memref<704x32xf32, #tpu.memory_space<vmem>>, vector<156x32xf32>
    %c366_80 = arith.constant 366 : index
    %c0_81 = arith.constant 0 : index
    %72 = vector.load %arg7[%c366_80, %c0_81] : memref<704x32xf32, #tpu.memory_space<vmem>>, vector<156x32xf32>
    %c542 = arith.constant 542 : index
    %c0_82 = arith.constant 0 : index
    %73 = vector.load %arg7[%c542, %c0_82] : memref<704x32xf32, #tpu.memory_space<vmem>>, vector<156x32xf32>
    %74 = tpu.concatenate %65, %66, %67, %68, %69, %70, %71, %72, %73 in 1 : vector<156x32xf32>, vector<156x32xf32>, vector<156x32xf32>, vector<156x32xf32>, vector<156x32xf32>, vector<156x32xf32>, vector<156x32xf32>, vector<156x32xf32>, vector<156x32xf32> -> vector<156x288xf32>
    %75 = arith.truncf %74 : vector<156x288xf32> to vector<156x288xbf16>
    %c0_83 = arith.constant 0 : index
    %c0_84 = arith.constant 0 : index
    %76 = vector.load %arg4[%c0_83, %c0_84] : memref<288x64xbf16, #tpu.memory_space<vmem>>, vector<288x64xbf16>
    %cst_85 = arith.constant dense<0.000000e+00> : vector<156x64xf32>
    %77 = tpu.matmul %75, %76, %cst_85 {dimension_numbers = #tpu.dot_dimension_numbers<[1], [0], [0], [1], [0, 0, 1, 1], [], []>} : vector<156x288xbf16>, vector<288x64xbf16>, vector<156x64xf32> -> vector<156x64xf32>
    %c0_86 = arith.constant 0 : index
    %c0_87 = arith.constant 0 : index
    %78 = vector.load %arg5[%c0_86, %c0_87] : memref<1x64xf32, #tpu.memory_space<vmem>>, vector<1x64xf32>
    %79 = vector.broadcast %78 : vector<1x64xf32> to vector<156x64xf32>
    %80 = arith.addf %77, %79 : vector<156x64xf32>
    %cst_88 = arith.constant 0.000000e+00 : f32
    %81 = vector.broadcast %cst_88 : f32 to vector<156x64xf32>
    %82 = arith.maximumf %80, %81 : vector<156x64xf32>
    %83 = arith.maximumf %64, %82 : vector<156x64xf32>
    %84 = arith.truncf %83 : vector<156x64xf32> to vector<156x64xbf16>
    %c0_89 = arith.constant 0 : index
    %c0_90 = arith.constant 0 : index
    %c0_91 = arith.constant 0 : index
    %85 = vector.load %arg6[%c0_89, %c0_90, %c0_91] : memref<1x156x64xbf16, #tpu.memory_space<vmem>>, vector<1x156x64xbf16>
    %86 = vector.shape_cast %85 : vector<1x156x64xbf16> to vector<156x64xbf16>
    %87 = vector.shape_cast %84 : vector<156x64xbf16> to vector<1x156x64xbf16>
    tpu.vector_store %arg6[%c0_89, %c0_90, %c0_91], %87 {strides = array<i32>} : memref<1x156x64xbf16, #tpu.memory_space<vmem>>, vector<1x156x64xbf16>,
    return
  }
  func.func @transform_0(%arg0: i32) -> (i32, i32) {
    %c0_i32 = arith.constant 0 : i32
    %c0_i32_0 = arith.constant 0 : i32
    return %arg0, %c0_i32 : i32, i32
  }
  func.func @transform_1(%arg0: i32) -> (i32, i32) {
    %c0_i32 = arith.constant 0 : i32
    %c0_i32_0 = arith.constant 0 : i32
    %c0_i32_1 = arith.constant 0 : i32
    return %c0_i32, %c0_i32_0 : i32, i32
  }
  func.func @transform_2(%arg0: i32) -> (i32, i32) {
    %c0_i32 = arith.constant 0 : i32
    %c0_i32_0 = arith.constant 0 : i32
    %c0_i32_1 = arith.constant 0 : i32
    return %c0_i32, %c0_i32_0 : i32, i32
  }
  func.func @transform_3(%arg0: i32) -> (i32, i32) {
    %c0_i32 = arith.constant 0 : i32
    %c0_i32_0 = arith.constant 0 : i32
    %c0_i32_1 = arith.constant 0 : i32
    return %c0_i32, %c0_i32_0 : i32, i32
  }
  func.func @transform_4(%arg0: i32) -> (i32, i32) {
    %c0_i32 = arith.constant 0 : i32
    %c0_i32_0 = arith.constant 0 : i32
    %c0_i32_1 = arith.constant 0 : i32
    return %c0_i32, %c0_i32_0 : i32, i32
  }
  func.func @transform_5(%arg0: i32) -> (i32, i32, i32) {
    %c0_i32 = arith.constant 0 : i32
    %c0_i32_0 = arith.constant 0 : i32
    %c0_i32_1 = arith.constant 0 : i32
    return %arg0, %c0_i32, %c0_i32_0 : i32, i32, i32
  }
}

module attributes {stable_mosaic.version = 11 : i64} {
  func.func @_fc_head_kernel(%arg0: i32, %arg1: memref<2x9984xbf16, #tpu.memory_space<vmem>>, %arg2: memref<9984x128xbf16, #tpu.memory_space<vmem>>, %arg3: memref<1x128xf32, #tpu.memory_space<vmem>>, %arg4: memref<128x10xf32, #tpu.memory_space<vmem>>, %arg5: memref<1x10xf32, #tpu.memory_space<vmem>>, %arg6: memref<2x10xf32, #tpu.memory_space<vmem>>) attributes {dimension_semantics = [#tpu.dimension_semantics<parallel>], iteration_bounds = array<i64: 1>, scalar_prefetch = 0 : i64, scratch_operands = 0 : i64, tpu.core_type = #tpu.core_type<tc>, window_params = [{transform_indices = @transform_0, window_bounds = array<i64: 2, 9984>}, {pipeline_mode = #tpu.pipeline_mode<synchronous>, transform_indices = @transform_1, window_bounds = array<i64: 9984, 128>}, {pipeline_mode = #tpu.pipeline_mode<synchronous>, transform_indices = @transform_2, window_bounds = array<i64: 1, 128>}, {pipeline_mode = #tpu.pipeline_mode<synchronous>, transform_indices = @transform_3, window_bounds = array<i64: 128, 10>}, {pipeline_mode = #tpu.pipeline_mode<synchronous>, transform_indices = @transform_4, window_bounds = array<i64: 1, 10>}, {transform_indices = @transform_5, window_bounds = array<i64: 2, 10>}]} {
    %c0 = arith.constant 0 : index
    %c0_0 = arith.constant 0 : index
    %0 = vector.load %arg1[%c0, %c0_0] : memref<2x9984xbf16, #tpu.memory_space<vmem>>, vector<2x9984xbf16>
    %c0_1 = arith.constant 0 : index
    %c0_2 = arith.constant 0 : index
    %1 = vector.load %arg2[%c0_1, %c0_2] : memref<9984x128xbf16, #tpu.memory_space<vmem>>, vector<9984x128xbf16>
    %cst = arith.constant dense<0.000000e+00> : vector<2x128xf32>
    %2 = tpu.matmul %0, %1, %cst {dimension_numbers = #tpu.dot_dimension_numbers<[1], [0], [0], [1], [0, 0, 1, 1], [], []>} : vector<2x9984xbf16>, vector<9984x128xbf16>, vector<2x128xf32> -> vector<2x128xf32>
    %c0_3 = arith.constant 0 : index
    %c0_4 = arith.constant 0 : index
    %3 = vector.load %arg3[%c0_3, %c0_4] : memref<1x128xf32, #tpu.memory_space<vmem>>, vector<1x128xf32>
    %4 = vector.broadcast %3 : vector<1x128xf32> to vector<2x128xf32>
    %5 = arith.addf %2, %4 : vector<2x128xf32>
    %cst_5 = arith.constant 0.000000e+00 : f32
    %6 = vector.broadcast %cst_5 : f32 to vector<2x128xf32>
    %7 = arith.maximumf %5, %6 : vector<2x128xf32>
    %c0_6 = arith.constant 0 : index
    %c0_7 = arith.constant 0 : index
    %8 = vector.load %arg4[%c0_6, %c0_7] : memref<128x10xf32, #tpu.memory_space<vmem>>, vector<128x10xf32>
    %cst_8 = arith.constant dense<0.000000e+00> : vector<2x10xf32>
    %9 = tpu.matmul %7, %8, %cst_8 {dimension_numbers = #tpu.dot_dimension_numbers<[1], [0], [0], [1], [0, 0, 1, 1], [], []>} : vector<2x128xf32>, vector<128x10xf32>, vector<2x10xf32> -> vector<2x10xf32>
    %c0_9 = arith.constant 0 : index
    %c0_10 = arith.constant 0 : index
    %10 = vector.load %arg5[%c0_9, %c0_10] : memref<1x10xf32, #tpu.memory_space<vmem>>, vector<1x10xf32>
    %11 = vector.broadcast %10 : vector<1x10xf32> to vector<2x10xf32>
    %12 = arith.addf %9, %11 : vector<2x10xf32>
    %cst_11 = arith.constant dense<0xFF800000> : vector<2xf32>
    %13 = vector.multi_reduction <maximumf>, %12, %cst_11 [1] : vector<2x10xf32> to vector<2xf32>
    %14 = vector.shape_cast %13 : vector<2xf32> to vector<2x1xf32>
    %15 = vector.broadcast %14 : vector<2x1xf32> to vector<2x10xf32>
    %16 = arith.subf %12, %15 : vector<2x10xf32>
    %17 = math.exp %16 : vector<2x10xf32>
    %cst_12 = arith.constant dense<0.000000e+00> : vector<2xf32>
    %18 = vector.multi_reduction <add>, %17, %cst_12 [1] : vector<2x10xf32> to vector<2xf32>
    %19 = vector.shape_cast %18 : vector<2xf32> to vector<2x1xf32>
    %20 = math.log %19 : vector<2x1xf32>
    %21 = vector.broadcast %20 : vector<2x1xf32> to vector<2x10xf32>
    %22 = arith.subf %16, %21 : vector<2x10xf32>
    %c0_13 = arith.constant 0 : index
    %c0_14 = arith.constant 0 : index
    %23 = vector.load %arg6[%c0_13, %c0_14] : memref<2x10xf32, #tpu.memory_space<vmem>>, vector<2x10xf32>
    tpu.vector_store %arg6[%c0_13, %c0_14], %22 {strides = array<i32>} : memref<2x10xf32, #tpu.memory_space<vmem>>, vector<2x10xf32>,
    return
  }
  func.func @transform_0(%arg0: i32) -> (i32, i32) {
    %c0_i32 = arith.constant 0 : i32
    %c0_i32_0 = arith.constant 0 : i32
    return %arg0, %c0_i32 : i32, i32
  }
  func.func @transform_1(%arg0: i32) -> (i32, i32) {
    %c0_i32 = arith.constant 0 : i32
    %c0_i32_0 = arith.constant 0 : i32
    %c0_i32_1 = arith.constant 0 : i32
    return %c0_i32, %c0_i32_0 : i32, i32
  }
  func.func @transform_2(%arg0: i32) -> (i32, i32) {
    %c0_i32 = arith.constant 0 : i32
    %c0_i32_0 = arith.constant 0 : i32
    %c0_i32_1 = arith.constant 0 : i32
    return %c0_i32, %c0_i32_0 : i32, i32
  }
  func.func @transform_3(%arg0: i32) -> (i32, i32) {
    %c0_i32 = arith.constant 0 : i32
    %c0_i32_0 = arith.constant 0 : i32
    %c0_i32_1 = arith.constant 0 : i32
    return %c0_i32, %c0_i32_0 : i32, i32
  }
  func.func @transform_4(%arg0: i32) -> (i32, i32) {
    %c0_i32 = arith.constant 0 : i32
    %c0_i32_0 = arith.constant 0 : i32
    %c0_i32_1 = arith.constant 0 : i32
    return %c0_i32, %c0_i32_0 : i32, i32
  }
  func.func @transform_5(%arg0: i32) -> (i32, i32) {
    %c0_i32 = arith.constant 0 : i32
    %c0_i32_0 = arith.constant 0 : i32
    return %arg0, %c0_i32 : i32, i32
  }
}

</mosaic_0001>

<llo_original>
// kernel: forward.2
$region0: #{forward.2}
  #allocation0 [shape = 'u32[]', space=smem, size = 0x4, offset = 0x4, fixed_abs, tag = 'smem constant byte address 0x4 - core index']
  #allocation1 [shape = 'u32[144,128]{1,0:T(1,128)}', space=vmem, size = 0x12000, scoped, tag = 'internal scratch']
  #allocation2 [shape = 'f32[704,32]{1,0:T(8,128)}', space=vmem, size = 0x58000, scoped, tag = 'scratch operand']
  %s0 = inlined_call_operand.vmem [shape: f32[1408,9], index: 0, kind: input, shape index: {}]
  %s1 = inlined_call_operand.vmem [shape: f32[9,32], index: 1, kind: input, shape index: {}]
  %s2 = inlined_call_operand.vmem [shape: f32[1,32], index: 2, kind: input, shape index: {}]
  %s3 = inlined_call_operand.vmem [shape: bf16[288,64], index: 3, kind: input, shape index: {}]
  %s4 = inlined_call_operand.vmem [shape: f32[1,64], index: 4, kind: input, shape index: {}]
  %s5 = inlined_call_operand.vmem [shape: bf16[2,156,64], index: 5, kind: output, shape index: {}]
  %s6 = sld [smem:[#allocation0]]
  $region53: #{forward.2} parent=0
    _
  %s8 = ssub.s32 1, %s6
  %s9 = scalar_select 0, %s8, %s6
  loop: start=0, step=1, limit=4
  $region2: #{forward.2} parent=0 // loop_pre_header
    _
  $region3: #{forward.2} parent=0 // loop_header
    %s11 = sphi 0, %s15
    %p12 = scmp.ge.s32.totalorder %s11, 4
    %s21 = sphi 0, %s23
    %s24 = sphi 0, %s21
    %s25 = sphi 0, %s24
    %s41 = sphi 0, %s25
    %s45 = sphi 0, %s45
    %s47 = sphi 0, %s45
    %s48 = sphi 0, %s47
    %s62 = sphi 0, %s48
    %s66 = sphi 0, %s66
    %s68 = sphi 0, %s66
    %s69 = sphi 0, %s68
    %s83 = sphi 0, %s69
    %s87 = sphi 0, %s87
    %s89 = sphi 0, %s87
    %s90 = sphi 0, %s89
    %s104 = sphi 0, %s90
    %s108 = sphi 0, %s108
    %s110 = sphi 0, %s108
    %s111 = sphi 0, %s110
    %s125 = sphi 0, %s111
    %s131 = sphi 0, %s133
    %s134 = sphi 0, %s131
    %s135 = sphi 0, %s134
    %s151 = sphi 0, %s135
  $region4: #{forward.2} parent=0 // loop_header_branch
    %14 = sbr.rel (%p12) target = $region8
  $region5: #{forward.2} parent=0 // loop_body
    %s16 = ssub.s32 %s11, 1
    %s17 = ssub.s32 %s11, 2
    %s18 = sadd.s32 %s11, 1
    %s19 = ssub.s32 %s11, %s18
    %p20 = scmp.eq.s32.totalorder %s19, 0
    %s22 = sadd.s32 %s21, 1
    %s23 = scalar_select %p20, %s21, %s22
    %p26 = pneg %p20
    %p27 = scmp.eq.s32.totalorder %s11, 1
    %p28 = por %p26, %p27
    %p29 = scmp.ne.s32.totalorder %s21, %s24
    %p30 = scmp.eq.s32.totalorder %s11, 0
    %p31 = por %p29, %p30
    %p32 = scmp.ne.s32.totalorder %s21, %s24
    %p33 = scmp.eq.s32.totalorder %s16, 1
    %p34 = por %p32, %p33
    %p35 = scmp.ne.s32.totalorder %s24, %s25
    %p36 = scmp.eq.s32.totalorder %s16, 0
    %p37 = por %p35, %p36
    %p38 = scmp.ne.s32.totalorder %s24, %s25
    %p39 = scmp.eq.s32.totalorder %s17, 1
    %p40 = por %p38, %p39
    %p42 = scmp.ne.s32.totalorder %s25, %s41
    %p43 = scmp.eq.s32.totalorder %s17, 0
    %p44 = por %p42, %p43
    %s46 = sadd.s32 %s45, 1
    %p49 = scmp.eq.s32.totalorder %s11, 1
    %p50 = scmp.ne.s32.totalorder %s45, %s47
    %p51 = scmp.eq.s32.totalorder %s11, 0
    %p52 = por %p50, %p51
    %p53 = scmp.ne.s32.totalorder %s45, %s47
    %p54 = scmp.eq.s32.totalorder %s16, 1
    %p55 = por %p53, %p54
    %p56 = scmp.ne.s32.totalorder %s47, %s48
    %p57 = scmp.eq.s32.totalorder %s16, 0
    %p58 = por %p56, %p57
    %p59 = scmp.ne.s32.totalorder %s47, %s48
    %p60 = scmp.eq.s32.totalorder %s17, 1
    %p61 = por %p59, %p60
    %p63 = scmp.ne.s32.totalorder %s48, %s62
    %p64 = scmp.eq.s32.totalorder %s17, 0
    %p65 = por %p63, %p64
    %s67 = sadd.s32 %s66, 1
    %p70 = scmp.eq.s32.totalorder %s11, 1
    %p71 = scmp.ne.s32.totalorder %s66, %s68
    %p72 = scmp.eq.s32.totalorder %s11, 0
    %p73 = por %p71, %p72
    %p74 = scmp.ne.s32.totalorder %s66, %s68
    %p75 = scmp.eq.s32.totalorder %s16, 1
    %p76 = por %p74, %p75
    %p77 = scmp.ne.s32.totalorder %s68, %s69
    %p78 = scmp.eq.s32.totalorder %s16, 0
    %p79 = por %p77, %p78
    %p80 = scmp.ne.s32.totalorder %s68, %s69
    %p81 = scmp.eq.s32.totalorder %s17, 1
    %p82 = por %p80, %p81
    %p84 = scmp.ne.s32.totalorder %s69, %s83
    %p85 = scmp.eq.s32.totalorder %s17, 0
    %p86 = por %p84, %p85
    %s88 = sadd.s32 %s87, 1
    %p91 = scmp.eq.s32.totalorder %s11, 1
    %p92 = scmp.ne.s32.totalorder %s87, %s89
    %p93 = scmp.eq.s32.totalorder %s11, 0
    %p94 = por %p92, %p93
    %p95 = scmp.ne.s32.totalorder %s87, %s89
    %p96 = scmp.eq.s32.totalorder %s16, 1
    %p97 = por %p95, %p96
    %p98 = scmp.ne.s32.totalorder %s89, %s90
    %p99 = scmp.eq.s32.totalorder %s16, 0
    %p100 = por %p98, %p99
    %p101 = scmp.ne.s32.totalorder %s89, %s90
    %p102 = scmp.eq.s32.totalorder %s17, 1
    %p103 = por %p101, %p102
    %p105 = scmp.ne.s32.totalorder %s90, %s104
    %p106 = scmp.eq.s32.totalorder %s17, 0
    %p107 = por %p105, %p106
    %s109 = sadd.s32 %s108, 1
    %p112 = scmp.eq.s32.totalorder %s11, 1
    %p113 = scmp.ne.s32.totalorder %s108, %s110
    %p114 = scmp.eq.s32.totalorder %s11, 0
    %p115 = por %p113, %p114
    %p116 = scmp.ne.s32.totalorder %s108, %s110
    %p117 = scmp.eq.s32.totalorder %s16, 1
    %p118 = por %p116, %p117
    %p119 = scmp.ne.s32.totalorder %s110, %s111
    %p120 = scmp.eq.s32.totalorder %s16, 0
    %p121 = por %p119, %p120
    %p122 = scmp.ne.s32.totalorder %s110, %s111
    %p123 = scmp.eq.s32.totalorder %s17, 1
    %p124 = por %p122, %p123
    %p126 = scmp.ne.s32.totalorder %s111, %s125
    %p127 = scmp.eq.s32.totalorder %s17, 0
    %p128 = por %p126, %p127
    %s129 = ssub.s32 %s11, %s18
    %p130 = scmp.eq.s32.totalorder %s129, 0
    %s132 = sadd.s32 %s131, 1
    %s133 = scalar_select %p130, %s131, %s132
    %p136 = pneg %p130
    %p137 = scmp.eq.s32.totalorder %s11, 1
    %p138 = por %p136, %p137
    %p139 = scmp.ne.s32.totalorder %s131, %s134
    %p140 = scmp.eq.s32.totalorder %s11, 0
    %p141 = por %p139, %p140
    %p142 = scmp.ne.s32.totalorder %s131, %s134
    %p143 = scmp.eq.s32.totalorder %s16, 1
    %p144 = por %p142, %p143
    %p145 = scmp.ne.s32.totalorder %s134, %s135
    %p146 = scmp.eq.s32.totalorder %s16, 0
    %p147 = por %p145, %p146
    %p148 = scmp.ne.s32.totalorder %s134, %s135
    %p149 = scmp.eq.s32.totalorder %s17, 1
    %p150 = por %p148, %p149
    %p152 = scmp.ne.s32.totalorder %s135, %s151
    %p153 = scmp.eq.s32.totalorder %s17, 0
    %p154 = por %p152, %p153
    %p155 = scmp.le.s32.totalorder 1, %s11
    %p156 = scmp.lt.s32.totalorder %s11, 3
    %p157 = pnand %p155, %p156
    %p158 = pneg %p157
    // Predicated region
    $region9: #{forward.2} parent=5 // pred_check
      _
    $region10: #{forward.2} parent=5 // pred_check_branch
      %160 = sbr.rel (%p157) target = $region12
    $region11: #{forward.2} parent=5 // pred_region
      %s161 = ssub.s32 %s11, 1
      // Predicated region
      $region13: #{forward.2} parent=11 // pred_check
        %p162 = pneg %p58
      $region14: #{forward.2} parent=11 // pred_check_branch
        %164 = sbr.rel (%p162) target = $region16
      $region15: #{forward.2} parent=11 // pred_region
        _
      $region16: #{forward.2} parent=11 // pred_fallthru
        _
      // Predicated region
      $region17: #{forward.2} parent=11 // pred_check
        %p165 = pneg %p79
      $region18: #{forward.2} parent=11 // pred_check_branch
        %167 = sbr.rel (%p165) target = $region20
      $region19: #{forward.2} parent=11 // pred_region
        _
      $region20: #{forward.2} parent=11 // pred_fallthru
        _
      // Predicated region
      $region21: #{forward.2} parent=11 // pred_check
        %p168 = pneg %p100
      $region22: #{forward.2} parent=11 // pred_check_branch
        %170 = sbr.rel (%p168) target = $region24
      $region23: #{forward.2} parent=11 // pred_region
        _
      $region24: #{forward.2} parent=11 // pred_fallthru
        _
      // Predicated region
      $region25: #{forward.2} parent=11 // pred_check
        %p171 = pneg %p121
      $region26: #{forward.2} parent=11 // pred_check_branch
        %173 = sbr.rel (%p171) target = $region28
      $region27: #{forward.2} parent=11 // pred_region
        _
      $region28: #{forward.2} parent=11 // pred_fallthru
        _
    $region12: #{forward.2} parent=5 // pred_fallthru
      _
    %p174 = scmp.lt.s32.totalorder %s11, 2
    // Predicated region
    $region29: #{forward.2} parent=5 // pred_check
      %p175 = pneg %p174
    $region30: #{forward.2} parent=5 // pred_check_branch
      %177 = sbr.rel (%p175) target = $region32
    $region31: #{forward.2} parent=5 // pred_region
      // Predicated region
      $region33: #{forward.2} parent=31 // pred_check
        %p178 = pneg %p31
      $region34: #{forward.2} parent=31 // pred_check_branch
        %180 = sbr.rel (%p178) target = $region36
      $region35: #{forward.2} parent=31 // pred_region
        %s181 = smul.u32 88, %s11
        %p182 = scmp.lt.s32.totalorder %s181, 175
        %s183 = scalar_select %p182, %s181, 175
        %s184 = smul.addr %s183, 8
        %s185 = scalar_lea.vmem %s0, %s184
        %s186 = smul.u32 88, %s11
      $region36: #{forward.2} parent=31 // pred_fallthru
        _
    $region32: #{forward.2} parent=5 // pred_fallthru
      _
    %p187 = scmp.le.s32.totalorder 1, %s11
    %p188 = scmp.lt.s32.totalorder %s11, 3
    %p189 = pnand %p187, %p188
    %p190 = pneg %p189
    // Predicated region
    $region37: #{forward.2} parent=5 // pred_check
      _
    $region38: #{forward.2} parent=5 // pred_check_branch
      %192 = sbr.rel (%p189) target = $region40
    $region39: #{forward.2} parent=5 // pred_region
      %s193 = ssub.s32 %s11, 1
      %s194 = smul.u32 88, %s16
      %p195 = scmp.lt.s32.totalorder %s194, 175
      %s196 = scalar_select %p195, %s194, 175
      %s197 = smul.addr %s196, 8
      %s198 = scalar_lea.vmem %s0, %s197
      %p199 = pneg %p37
      %p200 = pneg %p34
      %p201 = pneg %p58
      %p202 = pneg %p55
      %p203 = pneg %p79
      %p204 = pneg %p76
      %p205 = pneg %p100
      %p206 = pneg %p97
      %p207 = pneg %p121
      %p208 = pneg %p118
      %p209 = pneg %p147
      %p210 = pneg %p144
      %p211 = scmp.lt.s32.totalorder %s16, 1
      %s212 = scalar_select %p211, %s16, 1
      %s213 = smul.addr %s212, 20
      %s214 = smul.addr %s213, 4
      %s215 = scalar_lea.vmem %s5, %s214
      %s216 = smul.u32 88, %s16
      %p217 = scmp.lt.s32.totalorder %s216, 175
      %s218 = scalar_select %p217, %s216, 175
      %s219 = smul.addr %s218, 8
      %s220 = scalar_lea.vmem %s0, %s219
      %s221 = smul.u32 88, %s16
      %p222 = scmp.lt.s32.totalorder %s16, 1
      %s223 = scalar_select %p222, %s16, 1
      %s224 = smul.addr %s223, 20
      %s225 = smul.addr %s224, 4
      %s226 = scalar_lea.vmem %s5, %s225
      %v228 = vld [vmem:[%s220] sm:$0xff]
      %v229 = vld [vmem:[%s220 + $0x8] sm:$0xff]
      %v230 = vld [vmem:[%s220 + $0x10] sm:$0xff]
      %v231 = vld [vmem:[%s220 + $0x18] sm:$0xff]
      %v232 = vld [vmem:[%s220 + $0x20] sm:$0xff]
      %v233 = vld [vmem:[%s220 + $0x28] sm:$0xff]
      %v234 = vld [vmem:[%s220 + $0x30] sm:$0xff]
      %v235 = vld [vmem:[%s220 + $0x38] sm:$0xff]
      %v236 = vld [vmem:[%s220 + $0x40] sm:$0xff]
      %v237 = vld [vmem:[%s220 + $0x48] sm:$0xff]
      %v238 = vld [vmem:[%s220 + $0x50] sm:$0xff]
      %v239 = vld [vmem:[%s220 + $0x58] sm:$0xff]
      %v240 = vld [vmem:[%s220 + $0x60] sm:$0xff]
      %v241 = vld [vmem:[%s220 + $0x68] sm:$0xff]
      %v242 = vld [vmem:[%s220 + $0x70] sm:$0xff]
      %v243 = vld [vmem:[%s220 + $0x78] sm:$0xff]
      %v244 = vld [vmem:[%s220 + $0x80] sm:$0xff]
      %v245 = vld [vmem:[%s220 + $0x88] sm:$0xff]
      %v246 = vld [vmem:[%s220 + $0x90] sm:$0xff]
      %v247 = vld [vmem:[%s220 + $0x98] sm:$0xff]
      %v248 = vld [vmem:[%s220 + $0xa0] sm:$0xff]
      %v249 = vld [vmem:[%s220 + $0xa8] sm:$0xff]
      %v250 = vld [vmem:[%s220 + $0xb0] sm:$0xff]
      %v251 = vld [vmem:[%s220 + $0xb8] sm:$0xff]
      %v252 = vld [vmem:[%s220 + $0xc0] sm:$0xff]
      %v253 = vld [vmem:[%s220 + $0xc8] sm:$0xff]
      %v254 = vld [vmem:[%s220 + $0xd0] sm:$0xff]
      %v255 = vld [vmem:[%s220 + $0xd8] sm:$0xff]
      %v256 = vld [vmem:[%s220 + $0xe0] sm:$0xff]
      %v257 = vld [vmem:[%s220 + $0xe8] sm:$0xff]
      %v258 = vld [vmem:[%s220 + $0xf0] sm:$0xff]
      %v259 = vld [vmem:[%s220 + $0xf8] sm:$0xff]
      %v260 = vld [vmem:[%s220 + $0x100] sm:$0xff]
      %v261 = vld [vmem:[%s220 + $0x108] sm:$0xff]
      %v262 = vld [vmem:[%s220 + $0x110] sm:$0xff]
      %v263 = vld [vmem:[%s220 + $0x118] sm:$0xff]
      %v264 = vld [vmem:[%s220 + $0x120] sm:$0xff]
      %v265 = vld [vmem:[%s220 + $0x128] sm:$0xff]
      %v266 = vld [vmem:[%s220 + $0x130] sm:$0xff]
      %v267 = vld [vmem:[%s220 + $0x138] sm:$0xff]
      %v268 = vld [vmem:[%s220 + $0x140] sm:$0xff]
      %v269 = vld [vmem:[%s220 + $0x148] sm:$0xff]
      %v270 = vld [vmem:[%s220 + $0x150] sm:$0xff]
      %v271 = vld [vmem:[%s220 + $0x158] sm:$0xff]
      %v272 = vld [vmem:[%s220 + $0x160] sm:$0xff]
      %v273 = vld [vmem:[%s220 + $0x168] sm:$0xff]
      %v274 = vld [vmem:[%s220 + $0x170] sm:$0xff]
      %v275 = vld [vmem:[%s220 + $0x178] sm:$0xff]
      %v276 = vld [vmem:[%s220 + $0x180] sm:$0xff]
      %v277 = vld [vmem:[%s220 + $0x188] sm:$0xff]
      %v278 = vld [vmem:[%s220 + $0x190] sm:$0xff]
      %v279 = vld [vmem:[%s220 + $0x198] sm:$0xff]
      %v280 = vld [vmem:[%s220 + $0x1a0] sm:$0xff]
      %v281 = vld [vmem:[%s220 + $0x1a8] sm:$0xff]
      %v282 = vld [vmem:[%s220 + $0x1b0] sm:$0xff]
      %v283 = vld [vmem:[%s220 + $0x1b8] sm:$0xff]
      %v284 = vld [vmem:[%s220 + $0x1c0] sm:$0xff]
      %v285 = vld [vmem:[%s220 + $0x1c8] sm:$0xff]
      %v286 = vld [vmem:[%s220 + $0x1d0] sm:$0xff]
      %v287 = vld [vmem:[%s220 + $0x1d8] sm:$0xff]
      %v288 = vld [vmem:[%s220 + $0x1e0] sm:$0xff]
      %v289 = vld [vmem:[%s220 + $0x1e8] sm:$0xff]
      %v290 = vld [vmem:[%s220 + $0x1f0] sm:$0xff]
      %v291 = vld [vmem:[%s220 + $0x1f8] sm:$0xff]
      %v292 = vld [vmem:[%s220 + $0x200] sm:$0xff]
      %v293 = vld [vmem:[%s220 + $0x208] sm:$0xff]
      %v294 = vld [vmem:[%s220 + $0x210] sm:$0xff]
      %v295 = vld [vmem:[%s220 + $0x218] sm:$0xff]
      %v296 = vld [vmem:[%s220 + $0x220] sm:$0xff]
      %v297 = vld [vmem:[%s220 + $0x228] sm:$0xff]
      %v298 = vld [vmem:[%s220 + $0x230] sm:$0xff]
      %v299 = vld [vmem:[%s220 + $0x238] sm:$0xff]
      %v300 = vld [vmem:[%s220 + $0x240] sm:$0xff]
      %v301 = vld [vmem:[%s220 + $0x248] sm:$0xff]
      %v302 = vld [vmem:[%s220 + $0x250] sm:$0xff]
      %v303 = vld [vmem:[%s220 + $0x258] sm:$0xff]
      %v304 = vld [vmem:[%s220 + $0x260] sm:$0xff]
      %v305 = vld [vmem:[%s220 + $0x268] sm:$0xff]
      %v306 = vld [vmem:[%s220 + $0x270] sm:$0xff]
      %v307 = vld [vmem:[%s220 + $0x278] sm:$0xff]
      %v308 = vld [vmem:[%s220 + $0x280] sm:$0xff]
      %v309 = vld [vmem:[%s220 + $0x288] sm:$0xff]
      %v310 = vld [vmem:[%s220 + $0x290] sm:$0xff]
      %v311 = vld [vmem:[%s220 + $0x298] sm:$0xff]
      %v312 = vld [vmem:[%s220 + $0x2a0] sm:$0xff]
      %v313 = vld [vmem:[%s220 + $0x2a8] sm:$0xff]
      %v314 = vld [vmem:[%s220 + $0x2b0] sm:$0xff]
      %v315 = vld [vmem:[%s220 + $0x2b8] sm:$0xff]
      %v316 = vld [vmem:[%s1] sm:$0xff]
      %v317 = vld [vmem:[%s1 + $0x8] sm:$0x1]
      %v318 = vld [vmem:[%s2] sm:$0x1]
      %v320 = vlaneseq
      %v321 = vshrl.u32 %v320, 7
      %v322 = vsub.s32 0, %v321
      %v323 = vrot.slane %v318, %v322
      %vm325 = vcmask 72704
      %v327 = vsel %vm325, %v228, 0
      %v330 = vsel %vm325, %v229, 0
      %v333 = vsel %vm325, %v230, 0
      %v336 = vsel %vm325, %v231, 0
      %v339 = vsel %vm325, %v232, 0
      %v342 = vsel %vm325, %v233, 0
      %v345 = vsel %vm325, %v234, 0
      %v348 = vsel %vm325, %v235, 0
      %v351 = vsel %vm325, %v236, 0
      %v354 = vsel %vm325, %v237, 0
      %v357 = vsel %vm325, %v238, 0
      %v360 = vsel %vm325, %v239, 0
      %v363 = vsel %vm325, %v240, 0
      %v366 = vsel %vm325, %v241, 0
      %v369 = vsel %vm325, %v242, 0
      %v372 = vsel %vm325, %v243, 0
      %v375 = vsel %vm325, %v244, 0
      %v378 = vsel %vm325, %v245, 0
      %v381 = vsel %vm325, %v246, 0
      %v384 = vsel %vm325, %v247, 0
      %v387 = vsel %vm325, %v248, 0
      %v390 = vsel %vm325, %v249, 0
      %v393 = vsel %vm325, %v250, 0
      %v396 = vsel %vm325, %v251, 0
      %v399 = vsel %vm325, %v252, 0
      %v402 = vsel %vm325, %v253, 0
      %v405 = vsel %vm325, %v254, 0
      %v408 = vsel %vm325, %v255, 0
      %v411 = vsel %vm325, %v256, 0
      %v414 = vsel %vm325, %v257, 0
      %v417 = vsel %vm325, %v258, 0
      %v420 = vsel %vm325, %v259, 0
      %v423 = vsel %vm325, %v260, 0
      %v426 = vsel %vm325, %v261, 0
      %v429 = vsel %vm325, %v262, 0
      %v432 = vsel %vm325, %v263, 0
      %v435 = vsel %vm325, %v264, 0
      %v438 = vsel %vm325, %v265, 0
      %v441 = vsel %vm325, %v266, 0
      %v444 = vsel %vm325, %v267, 0
      %v447 = vsel %vm325, %v268, 0
      %v450 = vsel %vm325, %v269, 0
      %v453 = vsel %vm325, %v270, 0
      %v456 = vsel %vm325, %v271, 0
      %v459 = vsel %vm325, %v272, 0
      %v462 = vsel %vm325, %v273, 0
      %v465 = vsel %vm325, %v274, 0
      %v468 = vsel %vm325, %v275, 0
      %v471 = vsel %vm325, %v276, 0
      %v474 = vsel %vm325, %v277, 0
      %v477 = vsel %vm325, %v278, 0
      %v480 = vsel %vm325, %v279, 0
      %v483 = vsel %vm325, %v280, 0
      %v486 = vsel %vm325, %v281, 0
      %v489 = vsel %vm325, %v282, 0
      %v492 = vsel %vm325, %v283, 0
      %v495 = vsel %vm325, %v284, 0
      %v498 = vsel %vm325, %v285, 0
      %v501 = vsel %vm325, %v286, 0
      %v504 = vsel %vm325, %v287, 0
      %v507 = vsel %vm325, %v288, 0
      %v510 = vsel %vm325, %v289, 0
      %v513 = vsel %vm325, %v290, 0
      %v516 = vsel %vm325, %v291, 0
      %v519 = vsel %vm325, %v292, 0
      %v522 = vsel %vm325, %v293, 0
      %v525 = vsel %vm325, %v294, 0
      %v528 = vsel %vm325, %v295, 0
      %v531 = vsel %vm325, %v296, 0
      %v534 = vsel %vm325, %v297, 0
      %v537 = vsel %vm325, %v298, 0
      %v540 = vsel %vm325, %v299, 0
      %v543 = vsel %vm325, %v300, 0
      %v546 = vsel %vm325, %v301, 0
      %v549 = vsel %vm325, %v302, 0
      %v552 = vsel %vm325, %v303, 0
      %v555 = vsel %vm325, %v304, 0
      %v558 = vsel %vm325, %v305, 0
      %v561 = vsel %vm325, %v306, 0
      %v564 = vsel %vm325, %v307, 0
      %v567 = vsel %vm325, %v308, 0
      %v570 = vsel %vm325, %v309, 0
      %v573 = vsel %vm325, %v310, 0
      %v576 = vsel %vm325, %v311, 0
      %v579 = vsel %vm325, %v312, 0
      %v582 = vsel %vm325, %v313, 0
      %v585 = vsel %vm325, %v314, 0
      %v588 = vsel %vm325, %v315, 0
      %vm590 = vcmask 1040384
      %v592 = vsel %vm590, %v317, 0
      %594 = vmatprep.subr.mxu0 0.0
      %595 = vmatpush1.msra.mxu0 %v316
      %596 = vmatprep.subr.mxu0 0.0
      %597 = vmatpush1.msra.mxu0 %v592
      %598 = vmatprep.subr.mxu0 0.0
      %599 = vmatpush1.msra.mxu0 0.0
      %600 = vmatprep.subr.mxu0 0.0
      %601 = vmatpush1.msra.mxu0 0.0
      %602 = vmatprep.subr.mxu0 0.0
      %603 = vmatpush1.msra.mxu0 0.0
      %604 = vmatprep.subr.mxu0 0.0
      %605 = vmatpush1.msra.mxu0 0.0
      %606 = vmatprep.subr.mxu0 0.0
      %607 = vmatpush1.msra.mxu0 0.0
      %608 = vmatprep.subr.mxu0 0.0
      %609 = vmatpush1.msra.mxu0 0.0
      %610 = vmatprep.subr.mxu0 0.0
      %611 = vmatpush1.msra.mxu0 0.0
      %612 = vmatprep.subr.mxu0 0.0
      %613 = vmatpush1.msra.mxu0 0.0
      %614 = vmatprep.subr.mxu0 0.0
      %615 = vmatpush1.msra.mxu0 0.0
      %616 = vmatprep.subr.mxu0 0.0
      %617 = vmatpush1.msra.mxu0 0.0
      %618 = vmatprep.subr.mxu0 0.0
      %619 = vmatpush1.msra.mxu0 0.0
      %620 = vmatprep.subr.mxu0 0.0
      %621 = vmatpush1.msra.mxu0 0.0
      %622 = vmatprep.subr.mxu0 0.0
      %623 = vmatpush1.msra.mxu0 0.0
      %624 = vmatprep.subr.mxu0 0.0
      %625 = vmatpush1.msra.mxu0 0.0
      %626 = vmatprep.subr.mxu0 0.0
      %627 = vmatpush1.msra.mxu0 0.0
      %628 = vmatprep.subr.mxu0 0.0
      %629 = vmatpush1.msra.mxu0 0.0
      %630 = vmatprep.subr.mxu0 0.0
      %631 = vmatpush1.msra.mxu0 0.0
      %632 = vmatprep.subr.mxu0 0.0
      %633 = vmatpush1.msra.mxu0 0.0
      %634 = vmatprep.subr.mxu0 0.0
      %635 = vmatpush1.msra.mxu0 0.0
      %636 = vmatprep.subr.mxu0 0.0
      %637 = vmatpush1.msra.mxu0 0.0
      %638 = vmatprep.subr.mxu0 0.0
      %639 = vmatpush1.msra.mxu0 0.0
      %640 = vmatprep.subr.mxu0 0.0
      %641 = vmatpush1.msra.mxu0 0.0
      %642 = vmatprep.subr.mxu0 0.0
      %643 = vmatpush1.msra.mxu0 0.0
      %644 = vmatprep.subr.mxu0 0.0
      %645 = vmatpush1.msra.mxu0 0.0
      %646 = vmatprep.subr.mxu0 0.0
      %647 = vmatpush1.msra.mxu0 0.0
      %648 = vmatprep.subr.mxu0 0.0
      %649 = vmatpush1.msra.mxu0 0.0
      %650 = vmatprep.subr.mxu0 0.0
      %651 = vmatpush1.msra.mxu0 0.0
      %652 = vmatprep.subr.mxu0 0.0
      %653 = vmatpush1.msra.mxu0 0.0
      %654 = vmatprep.subr.mxu0 0.0
      %655 = vmatpush1.msra.mxu0 0.0
      %656 = vmatprep.subr.mxu0 0.0
      %657 = vmatpush1.msra.mxu0 0.0
      %658 = vmatprep.mubr.f32.mxu0 0.0
      %659 = vmatmul.mubr.f32.gmra.mrb[0].mxu0 %v327
      %v660 = vpop.f32.mrb[0].mxu0
      %v661 = vadd.f32 %v323, %v660
      %v662 = vpop.f32.mrb[0].mxu0
      %663 = vmatprep.mubr.f32.mxu0 0.0
      %664 = vmatmul.mubr.f32.gmra.mrb[0].mxu0 %v330
      %v665 = vpop.f32.mrb[0].mxu0
      %v666 = vadd.f32 %v323, %v665
      %v667 = vpop.f32.mrb[0].mxu0
      %668 = vmatprep.mubr.f32.mxu0 0.0
      %669 = vmatmul.mubr.f32.gmra.mrb[0].mxu0 %v333
      %v670 = vpop.f32.mrb[0].mxu0
      %v671 = vadd.f32 %v323, %v670
      %v672 = vpop.f32.mrb[0].mxu0
      %673 = vmatprep.mubr.f32.mxu0 0.0
      %674 = vmatmul.mubr.f32.gmra.mrb[0].mxu0 %v336
      %v675 = vpop.f32.mrb[0].mxu0
      %v676 = vadd.f32 %v323, %v675
      %v677 = vpop.f32.mrb[0].mxu0
      %678 = vmatprep.mubr.f32.mxu0 0.0
      %679 = vmatmul.mubr.f32.gmra.mrb[0].mxu0 %v339
      %v680 = vpop.f32.mrb[0].mxu0
      %v681 = vadd.f32 %v323, %v680
      %v682 = vpop.f32.mrb[0].mxu0
      %683 = vmatprep.mubr.f32.mxu0 0.0
      %684 = vmatmul.mubr.f32.gmra.mrb[0].mxu0 %v342
      %v685 = vpop.f32.mrb[0].mxu0
      %v686 = vadd.f32 %v323, %v685
      %v687 = vpop.f32.mrb[0].mxu0
      %688 = vmatprep.mubr.f32.mxu0 0.0
      %689 = vmatmul.mubr.f32.gmra.mrb[0].mxu0 %v345
      %v690 = vpop.f32.mrb[0].mxu0
      %v691 = vadd.f32 %v323, %v690
      %v692 = vpop.f32.mrb[0].mxu0
      %693 = vmatprep.mubr.f32.mxu0 0.0
      %694 = vmatmul.mubr.f32.gmra.mrb[0].mxu0 %v348
      %v695 = vpop.f32.mrb[0].mxu0
      %v696 = vadd.f32 %v323, %v695
      %v697 = vpop.f32.mrb[0].mxu0
      %698 = vmatprep.mubr.f32.mxu0 0.0
      %699 = vmatmul.mubr.f32.gmra.mrb[0].mxu0 %v351
      %v700 = vpop.f32.mrb[0].mxu0
      %v701 = vadd.f32 %v323, %v700
      %v702 = vpop.f32.mrb[0].mxu0
      %703 = vmatprep.mubr.f32.mxu0 0.0
      %704 = vmatmul.mubr.f32.gmra.mrb[0].mxu0 %v354
      %v705 = vpop.f32.mrb[0].mxu0
      %v706 = vadd.f32 %v323, %v705
      %v707 = vpop.f32.mrb[0].mxu0
      %708 = vmatprep.mubr.f32.mxu0 0.0
      %709 = vmatmul.mubr.f32.gmra.mrb[0].mxu0 %v357
      %v710 = vpop.f32.mrb[0].mxu0
      %v711 = vadd.f32 %v323, %v710
      %v712 = vpop.f32.mrb[0].mxu0
      %713 = vmatprep.mubr.f32.mxu0 0.0
      %714 = vmatmul.mubr.f32.gmra.mrb[0].mxu0 %v360
      %v715 = vpop.f32.mrb[0].mxu0
      %v716 = vadd.f32 %v323, %v715
      %v717 = vpop.f32.mrb[0].mxu0
      %718 = vmatprep.mubr.f32.mxu0 0.0
      %719 = vmatmul.mubr.f32.gmra.mrb[0].mxu0 %v363
      %v720 = vpop.f32.mrb[0].mxu0
      %v721 = vadd.f32 %v323, %v720
      %v722 = vpop.f32.mrb[0].mxu0
      %723 = vmatprep.mubr.f32.mxu0 0.0
      %724 = vmatmul.mubr.f32.gmra.mrb[0].mxu0 %v366
      %v725 = vpop.f32.mrb[0].mxu0
      %v726 = vadd.f32 %v323, %v725
      %v727 = vpop.f32.mrb[0].mxu0
      %728 = vmatprep.mubr.f32.mxu0 0.0
      %729 = vmatmul.mubr.f32.gmra.mrb[0].mxu0 %v369
      %v730 = vpop.f32.mrb[0].mxu0
      %v731 = vadd.f32 %v323, %v730
      %v732 = vpop.f32.mrb[0].mxu0
      %733 = vmatprep.mubr.f32.mxu0 0.0
      %734 = vmatmul.mubr.f32.gmra.mrb[0].mxu0 %v372
      %v735 = vpop.f32.mrb[0].mxu0
      %v736 = vadd.f32 %v323, %v735
      %v737 = vpop.f32.mrb[0].mxu0
      %738 = vmatprep.mubr.f32.mxu0 0.0
      %739 = vmatmul.mubr.f32.gmra.mrb[0].mxu0 %v375
      %v740 = vpop.f32.mrb[0].mxu0
      %v741 = vadd.f32 %v323, %v740
      %v742 = vpop.f32.mrb[0].mxu0
      %743 = vmatprep.mubr.f32.mxu0 0.0
      %744 = vmatmul.mubr.f32.gmra.mrb[0].mxu0 %v378
      %v745 = vpop.f32.mrb[0].mxu0
      %v746 = vadd.f32 %v323, %v745
      %v747 = vpop.f32.mrb[0].mxu0
      %748 = vmatprep.mubr.f32.mxu0 0.0
      %749 = vmatmul.mubr.f32.gmra.mrb[0].mxu0 %v381
      %v750 = vpop.f32.mrb[0].mxu0
      %v751 = vadd.f32 %v323, %v750
      %v752 = vpop.f32.mrb[0].mxu0
      %753 = vmatprep.mubr.f32.mxu0 0.0
      %754 = vmatmul.mubr.f32.gmra.mrb[0].mxu0 %v384
      %v755 = vpop.f32.mrb[0].mxu0
      %v756 = vadd.f32 %v323, %v755
      %v757 = vpop.f32.mrb[0].mxu0
      %758 = vmatprep.mubr.f32.mxu0 0.0
      %759 = vmatmul.mubr.f32.gmra.mrb[0].mxu0 %v387
      %v760 = vpop.f32.mrb[0].mxu0
      %v761 = vadd.f32 %v323, %v760
      %v762 = vpop.f32.mrb[0].mxu0
      %763 = vmatprep.mubr.f32.mxu0 0.0
      %764 = vmatmul.mubr.f32.gmra.mrb[0].mxu0 %v390
      %v765 = vpop.f32.mrb[0].mxu0
      %v766 = vadd.f32 %v323, %v765
      %v767 = vpop.f32.mrb[0].mxu0
      %768 = vmatprep.mubr.f32.mxu0 0.0
      %769 = vmatmul.mubr.f32.gmra.mrb[0].mxu0 %v393
      %v770 = vpop.f32.mrb[0].mxu0
      %v771 = vadd.f32 %v323, %v770
      %v772 = vpop.f32.mrb[0].mxu0
      %773 = vmatprep.mubr.f32.mxu0 0.0
      %774 = vmatmul.mubr.f32.gmra.mrb[0].mxu0 %v396
      %v775 = vpop.f32.mrb[0].mxu0
      %v776 = vadd.f32 %v323, %v775
      %v777 = vpop.f32.mrb[0].mxu0
      %778 = vmatprep.mubr.f32.mxu0 0.0
      %779 = vmatmul.mubr.f32.gmra.mrb[0].mxu0 %v399
      %v780 = vpop.f32.mrb[0].mxu0
      %v781 = vadd.f32 %v323, %v780
      %v782 = vpop.f32.mrb[0].mxu0
      %783 = vmatprep.mubr.f32.mxu0 0.0
      %784 = vmatmul.mubr.f32.gmra.mrb[0].mxu0 %v402
      %v785 = vpop.f32.mrb[0].mxu0
      %v786 = vadd.f32 %v323, %v785
      %v787 = vpop.f32.mrb[0].mxu0
      %788 = vmatprep.mubr.f32.mxu0 0.0
      %789 = vmatmul.mubr.f32.gmra.mrb[0].mxu0 %v405
      %v790 = vpop.f32.mrb[0].mxu0
      %v791 = vadd.f32 %v323, %v790
      %v792 = vpop.f32.mrb[0].mxu0
      %793 = vmatprep.mubr.f32.mxu0 0.0
      %794 = vmatmul.mubr.f32.gmra.mrb[0].mxu0 %v408
      %v795 = vpop.f32.mrb[0].mxu0
      %v796 = vadd.f32 %v323, %v795
      %v797 = vpop.f32.mrb[0].mxu0
      %798 = vmatprep.mubr.f32.mxu0 0.0
      %799 = vmatmul.mubr.f32.gmra.mrb[0].mxu0 %v411
      %v800 = vpop.f32.mrb[0].mxu0
      %v801 = vadd.f32 %v323, %v800
      %v802 = vpop.f32.mrb[0].mxu0
      %803 = vmatprep.mubr.f32.mxu0 0.0
      %804 = vmatmul.mubr.f32.gmra.mrb[0].mxu0 %v414
      %v805 = vpop.f32.mrb[0].mxu0
      %v806 = vadd.f32 %v323, %v805
      %v807 = vpop.f32.mrb[0].mxu0
      %808 = vmatprep.mubr.f32.mxu0 0.0
      %809 = vmatmul.mubr.f32.gmra.mrb[0].mxu0 %v417
      %v810 = vpop.f32.mrb[0].mxu0
      %v811 = vadd.f32 %v323, %v810
      %v812 = vpop.f32.mrb[0].mxu0
      %813 = vmatprep.mubr.f32.mxu0 0.0
      %814 = vmatmul.mubr.f32.gmra.mrb[0].mxu0 %v420
      %v815 = vpop.f32.mrb[0].mxu0
      %v816 = vadd.f32 %v323, %v815
      %v817 = vpop.f32.mrb[0].mxu0
      %818 = vmatprep.mubr.f32.mxu0 0.0
      %819 = vmatmul.mubr.f32.gmra.mrb[0].mxu0 %v423
      %v820 = vpop.f32.mrb[0].mxu0
      %v821 = vadd.f32 %v323, %v820
      %v822 = vpop.f32.mrb[0].mxu0
      %823 = vmatprep.mubr.f32.mxu0 0.0
      %824 = vmatmul.mubr.f32.gmra.mrb[0].mxu0 %v426
      %v825 = vpop.f32.mrb[0].mxu0
      %v826 = vadd.f32 %v323, %v825
      %v827 = vpop.f32.mrb[0].mxu0
      %828 = vmatprep.mubr.f32.mxu0 0.0
      %829 = vmatmul.mubr.f32.gmra.mrb[0].mxu0 %v429
      %v830 = vpop.f32.mrb[0].mxu0
      %v831 = vadd.f32 %v323, %v830
      %v832 = vpop.f32.mrb[0].mxu0
      %833 = vmatprep.mubr.f32.mxu0 0.0
      %834 = vmatmul.mubr.f32.gmra.mrb[0].mxu0 %v432
      %v835 = vpop.f32.mrb[0].mxu0
      %v836 = vadd.f32 %v323, %v835
      %v837 = vpop.f32.mrb[0].mxu0
      %838 = vmatprep.mubr.f32.mxu0 0.0
      %839 = vmatmul.mubr.f32.gmra.mrb[0].mxu0 %v435
      %v840 = vpop.f32.mrb[0].mxu0
      %v841 = vadd.f32 %v323, %v840
      %v842 = vpop.f32.mrb[0].mxu0
      %843 = vmatprep.mubr.f32.mxu0 0.0
      %844 = vmatmul.mubr.f32.gmra.mrb[0].mxu0 %v438
      %v845 = vpop.f32.mrb[0].mxu0
      %v846 = vadd.f32 %v323, %v845
      %v847 = vpop.f32.mrb[0].mxu0
      %848 = vmatprep.mubr.f32.mxu0 0.0
      %849 = vmatmul.mubr.f32.gmra.mrb[0].mxu0 %v441
      %v850 = vpop.f32.mrb[0].mxu0
      %v851 = vadd.f32 %v323, %v850
      %v852 = vpop.f32.mrb[0].mxu0
      %853 = vmatprep.mubr.f32.mxu0 0.0
      %854 = vmatmul.mubr.f32.gmra.mrb[0].mxu0 %v444
      %v855 = vpop.f32.mrb[0].mxu0
      %v856 = vadd.f32 %v323, %v855
      %v857 = vpop.f32.mrb[0].mxu0
      %858 = vmatprep.mubr.f32.mxu0 0.0
      %859 = vmatmul.mubr.f32.gmra.mrb[0].mxu0 %v447
      %v860 = vpop.f32.mrb[0].mxu0
      %v861 = vadd.f32 %v323, %v860
      %v862 = vpop.f32.mrb[0].mxu0
      %863 = vmatprep.mubr.f32.mxu0 0.0
      %864 = vmatmul.mubr.f32.gmra.mrb[0].mxu0 %v450
      %v865 = vpop.f32.mrb[0].mxu0
      %v866 = vadd.f32 %v323, %v865
      %v867 = vpop.f32.mrb[0].mxu0
      %868 = vmatprep.mubr.f32.mxu0 0.0
      %869 = vmatmul.mubr.f32.gmra.mrb[0].mxu0 %v453
      %v870 = vpop.f32.mrb[0].mxu0
      %v871 = vadd.f32 %v323, %v870
      %v872 = vpop.f32.mrb[0].mxu0
      %873 = vmatprep.mubr.f32.mxu0 0.0
      %874 = vmatmul.mubr.f32.gmra.mrb[0].mxu0 %v456
      %v875 = vpop.f32.mrb[0].mxu0
      %v876 = vadd.f32 %v323, %v875
      %v877 = vpop.f32.mrb[0].mxu0
      %878 = vmatprep.mubr.f32.mxu0 0.0
      %879 = vmatmul.mubr.f32.gmra.mrb[0].mxu0 %v459
      %v880 = vpop.f32.mrb[0].mxu0
      %v881 = vadd.f32 %v323, %v880
      %v882 = vpop.f32.mrb[0].mxu0
      %883 = vmatprep.mubr.f32.mxu0 0.0
      %884 = vmatmul.mubr.f32.gmra.mrb[0].mxu0 %v462
      %v885 = vpop.f32.mrb[0].mxu0
      %v886 = vadd.f32 %v323, %v885
      %v887 = vpop.f32.mrb[0].mxu0
      %888 = vmatprep.mubr.f32.mxu0 0.0
      %889 = vmatmul.mubr.f32.gmra.mrb[0].mxu0 %v465
      %v890 = vpop.f32.mrb[0].mxu0
      %v891 = vadd.f32 %v323, %v890
      %v892 = vpop.f32.mrb[0].mxu0
      %893 = vmatprep.mubr.f32.mxu0 0.0
      %894 = vmatmul.mubr.f32.gmra.mrb[0].mxu0 %v468
      %v895 = vpop.f32.mrb[0].mxu0
      %v896 = vadd.f32 %v323, %v895
      %v897 = vpop.f32.mrb[0].mxu0
      %898 = vmatprep.mubr.f32.mxu0 0.0
      %899 = vmatmul.mubr.f32.gmra.mrb[0].mxu0 %v471
      %v900 = vpop.f32.mrb[0].mxu0
      %v901 = vadd.f32 %v323, %v900
      %v902 = vpop.f32.mrb[0].mxu0
      %903 = vmatprep.mubr.f32.mxu0 0.0
      %904 = vmatmul.mubr.f32.gmra.mrb[0].mxu0 %v474
      %v905 = vpop.f32.mrb[0].mxu0
      %v906 = vadd.f32 %v323, %v905
      %v907 = vpop.f32.mrb[0].mxu0
      %908 = vmatprep.mubr.f32.mxu0 0.0
      %909 = vmatmul.mubr.f32.gmra.mrb[0].mxu0 %v477
      %v910 = vpop.f32.mrb[0].mxu0
      %v911 = vadd.f32 %v323, %v910
      %v912 = vpop.f32.mrb[0].mxu0
      %913 = vmatprep.mubr.f32.mxu0 0.0
      %914 = vmatmul.mubr.f32.gmra.mrb[0].mxu0 %v480
      %v915 = vpop.f32.mrb[0].mxu0
      %v916 = vadd.f32 %v323, %v915
      %v917 = vpop.f32.mrb[0].mxu0
      %918 = vmatprep.mubr.f32.mxu0 0.0
      %919 = vmatmul.mubr.f32.gmra.mrb[0].mxu0 %v483
      %v920 = vpop.f32.mrb[0].mxu0
      %v921 = vadd.f32 %v323, %v920
      %v922 = vpop.f32.mrb[0].mxu0
      %923 = vmatprep.mubr.f32.mxu0 0.0
      %924 = vmatmul.mubr.f32.gmra.mrb[0].mxu0 %v486
      %v925 = vpop.f32.mrb[0].mxu0
      %v926 = vadd.f32 %v323, %v925
      %v927 = vpop.f32.mrb[0].mxu0
      %928 = vmatprep.mubr.f32.mxu0 0.0
      %929 = vmatmul.mubr.f32.gmra.mrb[0].mxu0 %v489
      %v930 = vpop.f32.mrb[0].mxu0
      %v931 = vadd.f32 %v323, %v930
      %v932 = vpop.f32.mrb[0].mxu0
      %933 = vmatprep.mubr.f32.mxu0 0.0
      %934 = vmatmul.mubr.f32.gmra.mrb[0].mxu0 %v492
      %v935 = vpop.f32.mrb[0].mxu0
      %v936 = vadd.f32 %v323, %v935
      %v937 = vpop.f32.mrb[0].mxu0
      %938 = vmatprep.mubr.f32.mxu0 0.0
      %939 = vmatmul.mubr.f32.gmra.mrb[0].mxu0 %v495
      %v940 = vpop.f32.mrb[0].mxu0
      %v941 = vadd.f32 %v323, %v940
      %v942 = vpop.f32.mrb[0].mxu0
      %943 = vmatprep.mubr.f32.mxu0 0.0
      %944 = vmatmul.mubr.f32.gmra.mrb[0].mxu0 %v498
      %v945 = vpop.f32.mrb[0].mxu0
      %v946 = vadd.f32 %v323, %v945
      %v947 = vpop.f32.mrb[0].mxu0
      %948 = vmatprep.mubr.f32.mxu0 0.0
      %949 = vmatmul.mubr.f32.gmra.mrb[0].mxu0 %v501
      %v950 = vpop.f32.mrb[0].mxu0
      %v951 = vadd.f32 %v323, %v950
      %v952 = vpop.f32.mrb[0].mxu0
      %953 = vmatprep.mubr.f32.mxu0 0.0
      %954 = vmatmul.mubr.f32.gmra.mrb[0].mxu0 %v504
      %v955 = vpop.f32.mrb[0].mxu0
      %v956 = vadd.f32 %v323, %v955
      %v957 = vpop.f32.mrb[0].mxu0
      %958 = vmatprep.mubr.f32.mxu0 0.0
      %959 = vmatmul.mubr.f32.gmra.mrb[0].mxu0 %v507
      %v960 = vpop.f32.mrb[0].mxu0
      %v961 = vadd.f32 %v323, %v960
      %v962 = vpop.f32.mrb[0].mxu0
      %963 = vmatprep.mubr.f32.mxu0 0.0
      %964 = vmatmul.mubr.f32.gmra.mrb[0].mxu0 %v510
      %v965 = vpop.f32.mrb[0].mxu0
      %v966 = vadd.f32 %v323, %v965
      %v967 = vpop.f32.mrb[0].mxu0
      %968 = vmatprep.mubr.f32.mxu0 0.0
      %969 = vmatmul.mubr.f32.gmra.mrb[0].mxu0 %v513
      %v970 = vpop.f32.mrb[0].mxu0
      %v971 = vadd.f32 %v323, %v970
      %v972 = vpop.f32.mrb[0].mxu0
      %973 = vmatprep.mubr.f32.mxu0 0.0
      %974 = vmatmul.mubr.f32.gmra.mrb[0].mxu0 %v516
      %v975 = vpop.f32.mrb[0].mxu0
      %v976 = vadd.f32 %v323, %v975
      %v977 = vpop.f32.mrb[0].mxu0
      %978 = vmatprep.mubr.f32.mxu0 0.0
      %979 = vmatmul.mubr.f32.gmra.mrb[0].mxu0 %v519
      %v980 = vpop.f32.mrb[0].mxu0
      %v981 = vadd.f32 %v323, %v980
      %v982 = vpop.f32.mrb[0].mxu0
      %983 = vmatprep.mubr.f32.mxu0 0.0
      %984 = vmatmul.mubr.f32.gmra.mrb[0].mxu0 %v522
      %v985 = vpop.f32.mrb[0].mxu0
      %v986 = vadd.f32 %v323, %v985
      %v987 = vpop.f32.mrb[0].mxu0
      %988 = vmatprep.mubr.f32.mxu0 0.0
      %989 = vmatmul.mubr.f32.gmra.mrb[0].mxu0 %v525
      %v990 = vpop.f32.mrb[0].mxu0
      %v991 = vadd.f32 %v323, %v990
      %v992 = vpop.f32.mrb[0].mxu0
      %993 = vmatprep.mubr.f32.mxu0 0.0
      %994 = vmatmul.mubr.f32.gmra.mrb[0].mxu0 %v528
      %v995 = vpop.f32.mrb[0].mxu0
      %v996 = vadd.f32 %v323, %v995
      %v997 = vpop.f32.mrb[0].mxu0
      %998 = vmatprep.mubr.f32.mxu0 0.0
      %999 = vmatmul.mubr.f32.gmra.mrb[0].mxu0 %v531
      %v1000 = vpop.f32.mrb[0].mxu0
      %v1001 = vadd.f32 %v323, %v1000
      %v1002 = vpop.f32.mrb[0].mxu0
      %1003 = vmatprep.mubr.f32.mxu0 0.0
      %1004 = vmatmul.mubr.f32.gmra.mrb[0].mxu0 %v534
      %v1005 = vpop.f32.mrb[0].mxu0
      %v1006 = vadd.f32 %v323, %v1005
      %v1007 = vpop.f32.mrb[0].mxu0
      %1008 = vmatprep.mubr.f32.mxu0 0.0
      %1009 = vmatmul.mubr.f32.gmra.mrb[0].mxu0 %v537
      %v1010 = vpop.f32.mrb[0].mxu0
      %v1011 = vadd.f32 %v323, %v1010
      %v1012 = vpop.f32.mrb[0].mxu0
      %1013 = vmatprep.mubr.f32.mxu0 0.0
      %1014 = vmatmul.mubr.f32.gmra.mrb[0].mxu0 %v540
      %v1015 = vpop.f32.mrb[0].mxu0
      %v1016 = vadd.f32 %v323, %v1015
      %v1017 = vpop.f32.mrb[0].mxu0
      %1018 = vmatprep.mubr.f32.mxu0 0.0
      %1019 = vmatmul.mubr.f32.gmra.mrb[0].mxu0 %v543
      %v1020 = vpop.f32.mrb[0].mxu0
      %v1021 = vadd.f32 %v323, %v1020
      %v1022 = vpop.f32.mrb[0].mxu0
      %1023 = vmatprep.mubr.f32.mxu0 0.0
      %1024 = vmatmul.mubr.f32.gmra.mrb[0].mxu0 %v546
      %v1025 = vpop.f32.mrb[0].mxu0
      %v1026 = vadd.f32 %v323, %v1025
      %v1027 = vpop.f32.mrb[0].mxu0
      %1028 = vmatprep.mubr.f32.mxu0 0.0
      %1029 = vmatmul.mubr.f32.gmra.mrb[0].mxu0 %v549
      %v1030 = vpop.f32.mrb[0].mxu0
      %v1031 = vadd.f32 %v323, %v1030
      %v1032 = vpop.f32.mrb[0].mxu0
      %1033 = vmatprep.mubr.f32.mxu0 0.0
      %1034 = vmatmul.mubr.f32.gmra.mrb[0].mxu0 %v552
      %v1035 = vpop.f32.mrb[0].mxu0
      %v1036 = vadd.f32 %v323, %v1035
      %v1037 = vpop.f32.mrb[0].mxu0
      %1038 = vmatprep.mubr.f32.mxu0 0.0
      %1039 = vmatmul.mubr.f32.gmra.mrb[0].mxu0 %v555
      %v1040 = vpop.f32.mrb[0].mxu0
      %v1041 = vadd.f32 %v323, %v1040
      %v1042 = vpop.f32.mrb[0].mxu0
      %1043 = vmatprep.mubr.f32.mxu0 0.0
      %1044 = vmatmul.mubr.f32.gmra.mrb[0].mxu0 %v558
      %v1045 = vpop.f32.mrb[0].mxu0
      %v1046 = vadd.f32 %v323, %v1045
      %v1047 = vpop.f32.mrb[0].mxu0
      %1048 = vmatprep.mubr.f32.mxu0 0.0
      %1049 = vmatmul.mubr.f32.gmra.mrb[0].mxu0 %v561
      %v1050 = vpop.f32.mrb[0].mxu0
      %v1051 = vadd.f32 %v323, %v1050
      %v1052 = vpop.f32.mrb[0].mxu0
      %1053 = vmatprep.mubr.f32.mxu0 0.0
      %1054 = vmatmul.mubr.f32.gmra.mrb[0].mxu0 %v564
      %v1055 = vpop.f32.mrb[0].mxu0
      %v1056 = vadd.f32 %v323, %v1055
      %v1057 = vpop.f32.mrb[0].mxu0
      %1058 = vmatprep.mubr.f32.mxu0 0.0
      %1059 = vmatmul.mubr.f32.gmra.mrb[0].mxu0 %v567
      %v1060 = vpop.f32.mrb[0].mxu0
      %v1061 = vadd.f32 %v323, %v1060
      %v1062 = vpop.f32.mrb[0].mxu0
      %1063 = vmatprep.mubr.f32.mxu0 0.0
      %1064 = vmatmul.mubr.f32.gmra.mrb[0].mxu0 %v570
      %v1065 = vpop.f32.mrb[0].mxu0
      %v1066 = vadd.f32 %v323, %v1065
      %v1067 = vpop.f32.mrb[0].mxu0
      %1068 = vmatprep.mubr.f32.mxu0 0.0
      %1069 = vmatmul.mubr.f32.gmra.mrb[0].mxu0 %v573
      %v1070 = vpop.f32.mrb[0].mxu0
      %v1071 = vadd.f32 %v323, %v1070
      %v1072 = vpop.f32.mrb[0].mxu0
      %1073 = vmatprep.mubr.f32.mxu0 0.0
      %1074 = vmatmul.mubr.f32.gmra.mrb[0].mxu0 %v576
      %v1075 = vpop.f32.mrb[0].mxu0
      %v1076 = vadd.f32 %v323, %v1075
      %v1077 = vpop.f32.mrb[0].mxu0
      %1078 = vmatprep.mubr.f32.mxu0 0.0
      %1079 = vmatmul.mubr.f32.gmra.mrb[0].mxu0 %v579
      %v1080 = vpop.f32.mrb[0].mxu0
      %v1081 = vadd.f32 %v323, %v1080
      %v1082 = vpop.f32.mrb[0].mxu0
      %1083 = vmatprep.mubr.f32.mxu0 0.0
      %1084 = vmatmul.mubr.f32.gmra.mrb[0].mxu0 %v582
      %v1085 = vpop.f32.mrb[0].mxu0
      %v1086 = vadd.f32 %v323, %v1085
      %v1087 = vpop.f32.mrb[0].mxu0
      %1088 = vmatprep.mubr.f32.mxu0 0.0
      %1089 = vmatmul.mubr.f32.gmra.mrb[0].mxu0 %v585
      %v1090 = vpop.f32.mrb[0].mxu0
      %v1091 = vadd.f32 %v323, %v1090
      %v1092 = vpop.f32.mrb[0].mxu0
      %1093 = vmatprep.mubr.f32.mxu0 0.0
      %1094 = vmatmul.mubr.f32.gmra.mrb[0].mxu0 %v588
      %v1095 = vpop.f32.mrb[0].mxu0
      %v1096 = vadd.f32 %v323, %v1095
      %v1097 = vpop.f32.mrb[0].mxu0
      %1098 = vdwg.mxu0
      %v1099 = vmax.f32 %v661, 0.0
      %v1100 = vmax.f32 %v666, 0.0
      %v1101 = vmax.f32 %v671, 0.0
      %v1102 = vmax.f32 %v676, 0.0
      %v1103 = vmax.f32 %v681, 0.0
      %v1104 = vmax.f32 %v686, 0.0
      %v1105 = vmax.f32 %v691, 0.0
      %v1106 = vmax.f32 %v696, 0.0
      %v1107 = vmax.f32 %v701, 0.0
      %v1108 = vmax.f32 %v706, 0.0
      %v1109 = vmax.f32 %v711, 0.0
      %v1110 = vmax.f32 %v716, 0.0
      %v1111 = vmax.f32 %v721, 0.0
      %v1112 = vmax.f32 %v726, 0.0
      %v1113 = vmax.f32 %v731, 0.0
      %v1114 = vmax.f32 %v736, 0.0
      %v1115 = vmax.f32 %v741, 0.0
      %v1116 = vmax.f32 %v746, 0.0
      %v1117 = vmax.f32 %v751, 0.0
      %v1118 = vmax.f32 %v756, 0.0
      %v1119 = vmax.f32 %v761, 0.0
      %v1120 = vmax.f32 %v766, 0.0
      %v1121 = vmax.f32 %v771, 0.0
      %v1122 = vmax.f32 %v776, 0.0
      %v1123 = vmax.f32 %v781, 0.0
      %v1124 = vmax.f32 %v786, 0.0
      %v1125 = vmax.f32 %v791, 0.0
      %v1126 = vmax.f32 %v796, 0.0
      %v1127 = vmax.f32 %v801, 0.0
      %v1128 = vmax.f32 %v806, 0.0
      %v1129 = vmax.f32 %v811, 0.0
      %v1130 = vmax.f32 %v816, 0.0
      %v1131 = vmax.f32 %v821, 0.0
      %v1132 = vmax.f32 %v826, 0.0
      %v1133 = vmax.f32 %v831, 0.0
      %v1134 = vmax.f32 %v836, 0.0
      %v1135 = vmax.f32 %v841, 0.0
      %v1136 = vmax.f32 %v846, 0.0
      %v1137 = vmax.f32 %v851, 0.0
      %v1138 = vmax.f32 %v856, 0.0
      %v1139 = vmax.f32 %v861, 0.0
      %v1140 = vmax.f32 %v866, 0.0
      %v1141 = vmax.f32 %v871, 0.0
      %v1142 = vmax.f32 %v876, 0.0
      %v1143 = vmax.f32 %v881, 0.0
      %v1144 = vmax.f32 %v886, 0.0
      %v1145 = vmax.f32 %v891, 0.0
      %v1146 = vmax.f32 %v896, 0.0
      %v1147 = vmax.f32 %v901, 0.0
      %v1148 = vmax.f32 %v906, 0.0
      %v1149 = vmax.f32 %v911, 0.0
      %v1150 = vmax.f32 %v916, 0.0
      %v1151 = vmax.f32 %v921, 0.0
      %v1152 = vmax.f32 %v926, 0.0
      %v1153 = vmax.f32 %v931, 0.0
      %v1154 = vmax.f32 %v936, 0.0
      %v1155 = vmax.f32 %v941, 0.0
      %v1156 = vmax.f32 %v946, 0.0
      %v1157 = vmax.f32 %v951, 0.0
      %v1158 = vmax.f32 %v956, 0.0
      %v1159 = vmax.f32 %v961, 0.0
      %v1160 = vmax.f32 %v966, 0.0
      %v1161 = vmax.f32 %v971, 0.0
      %v1162 = vmax.f32 %v976, 0.0
      %v1163 = vmax.f32 %v981, 0.0
      %v1164 = vmax.f32 %v986, 0.0
      %v1165 = vmax.f32 %v991, 0.0
      %v1166 = vmax.f32 %v996, 0.0
      %v1167 = vmax.f32 %v1001, 0.0
      %v1168 = vmax.f32 %v1006, 0.0
      %v1169 = vmax.f32 %v1011, 0.0
      %v1170 = vmax.f32 %v1016, 0.0
      %v1171 = vmax.f32 %v1021, 0.0
      %v1172 = vmax.f32 %v1026, 0.0
      %v1173 = vmax.f32 %v1031, 0.0
      %v1174 = vmax.f32 %v1036, 0.0
      %v1175 = vmax.f32 %v1041, 0.0
      %v1176 = vmax.f32 %v1046, 0.0
      %v1177 = vmax.f32 %v1051, 0.0
      %v1178 = vmax.f32 %v1056, 0.0
      %v1179 = vmax.f32 %v1061, 0.0
      %v1180 = vmax.f32 %v1066, 0.0
      %v1181 = vmax.f32 %v1071, 0.0
      %v1182 = vmax.f32 %v1076, 0.0
      %v1183 = vmax.f32 %v1081, 0.0
      %v1184 = vmax.f32 %v1086, 0.0
      %v1185 = vmax.f32 %v1091, 0.0
      %v1186 = vmax.f32 %v1096, 0.0
      %vm1187 = vcmask 261120
      %1188 = vst.msk [vmem:[#allocation2] sm:$0xff] %vm1187, %v1099
      %1189 = vst.msk [vmem:[#allocation2 + $0x8] sm:$0xff] %vm1187, %v1100
      %1190 = vst.msk [vmem:[#allocation2 + $0x10] sm:$0xff] %vm1187, %v1101
      %1191 = vst.msk [vmem:[#allocation2 + $0x18] sm:$0xff] %vm1187, %v1102
      %1192 = vst.msk [vmem:[#allocation2 + $0x20] sm:$0xff] %vm1187, %v1103
      %1193 = vst.msk [vmem:[#allocation2 + $0x28] sm:$0xff] %vm1187, %v1104
      %1194 = vst.msk [vmem:[#allocation2 + $0x30] sm:$0xff] %vm1187, %v1105
      %1195 = vst.msk [vmem:[#allocation2 + $0x38] sm:$0xff] %vm1187, %v1106
      %1196 = vst.msk [vmem:[#allocation2 + $0x40] sm:$0xff] %vm1187, %v1107
      %1197 = vst.msk [vmem:[#allocation2 + $0x48] sm:$0xff] %vm1187, %v1108
      %1198 = vst.msk [vmem:[#allocation2 + $0x50] sm:$0xff] %vm1187, %v1109
      %1199 = vst.msk [vmem:[#allocation2 + $0x58] sm:$0xff] %vm1187, %v1110
      %1200 = vst.msk [vmem:[#allocation2 + $0x60] sm:$0xff] %vm1187, %v1111
      %1201 = vst.msk [vmem:[#allocation2 + $0x68] sm:$0xff] %vm1187, %v1112
      %1202 = vst.msk [vmem:[#allocation2 + $0x70] sm:$0xff] %vm1187, %v1113
      %1203 = vst.msk [vmem:[#allocation2 + $0x78] sm:$0xff] %vm1187, %v1114
      %1204 = vst.msk [vmem:[#allocation2 + $0x80] sm:$0xff] %vm1187, %v1115
      %1205 = vst.msk [vmem:[#allocation2 + $0x88] sm:$0xff] %vm1187, %v1116
      %1206 = vst.msk [vmem:[#allocation2 + $0x90] sm:$0xff] %vm1187, %v1117
      %1207 = vst.msk [vmem:[#allocation2 + $0x98] sm:$0xff] %vm1187, %v1118
      %1208 = vst.msk [vmem:[#allocation2 + $0xa0] sm:$0xff] %vm1187, %v1119
      %1209 = vst.msk [vmem:[#allocation2 + $0xa8] sm:$0xff] %vm1187, %v1120
      %1210 = vst.msk [vmem:[#allocation2 + $0xb0] sm:$0xff] %vm1187, %v1121
      %1211 = vst.msk [vmem:[#allocation2 + $0xb8] sm:$0xff] %vm1187, %v1122
      %1212 = vst.msk [vmem:[#allocation2 + $0xc0] sm:$0xff] %vm1187, %v1123
      %1213 = vst.msk [vmem:[#allocation2 + $0xc8] sm:$0xff] %vm1187, %v1124
      %1214 = vst.msk [vmem:[#allocation2 + $0xd0] sm:$0xff] %vm1187, %v1125
      %1215 = vst.msk [vmem:[#allocation2 + $0xd8] sm:$0xff] %vm1187, %v1126
      %1216 = vst.msk [vmem:[#allocation2 + $0xe0] sm:$0xff] %vm1187, %v1127
      %1217 = vst.msk [vmem:[#allocation2 + $0xe8] sm:$0xff] %vm1187, %v1128
      %1218 = vst.msk [vmem:[#allocation2 + $0xf0] sm:$0xff] %vm1187, %v1129
      %1219 = vst.msk [vmem:[#allocation2 + $0xf8] sm:$0xff] %vm1187, %v1130
      %1220 = vst.msk [vmem:[#allocation2 + $0x100] sm:$0xff] %vm1187, %v1131
      %1221 = vst.msk [vmem:[#allocation2 + $0x108] sm:$0xff] %vm1187, %v1132
      %1222 = vst.msk [vmem:[#allocation2 + $0x110] sm:$0xff] %vm1187, %v1133
      %1223 = vst.msk [vmem:[#allocation2 + $0x118] sm:$0xff] %vm1187, %v1134
      %1224 = vst.msk [vmem:[#allocation2 + $0x120] sm:$0xff] %vm1187, %v1135
      %1225 = vst.msk [vmem:[#allocation2 + $0x128] sm:$0xff] %vm1187, %v1136
      %1226 = vst.msk [vmem:[#allocation2 + $0x130] sm:$0xff] %vm1187, %v1137
      %1227 = vst.msk [vmem:[#allocation2 + $0x138] sm:$0xff] %vm1187, %v1138
      %1228 = vst.msk [vmem:[#allocation2 + $0x140] sm:$0xff] %vm1187, %v1139
      %1229 = vst.msk [vmem:[#allocation2 + $0x148] sm:$0xff] %vm1187, %v1140
      %1230 = vst.msk [vmem:[#allocation2 + $0x150] sm:$0xff] %vm1187, %v1141
      %1231 = vst.msk [vmem:[#allocation2 + $0x158] sm:$0xff] %vm1187, %v1142
      %1232 = vst.msk [vmem:[#allocation2 + $0x160] sm:$0xff] %vm1187, %v1143
      %1233 = vst.msk [vmem:[#allocation2 + $0x168] sm:$0xff] %vm1187, %v1144
      %1234 = vst.msk [vmem:[#allocation2 + $0x170] sm:$0xff] %vm1187, %v1145
      %1235 = vst.msk [vmem:[#allocation2 + $0x178] sm:$0xff] %vm1187, %v1146
      %1236 = vst.msk [vmem:[#allocation2 + $0x180] sm:$0xff] %vm1187, %v1147
      %1237 = vst.msk [vmem:[#allocation2 + $0x188] sm:$0xff] %vm1187, %v1148
      %1238 = vst.msk [vmem:[#allocation2 + $0x190] sm:$0xff] %vm1187, %v1149
      %1239 = vst.msk [vmem:[#allocation2 + $0x198] sm:$0xff] %vm1187, %v1150
      %1240 = vst.msk [vmem:[#allocation2 + $0x1a0] sm:$0xff] %vm1187, %v1151
      %1241 = vst.msk [vmem:[#allocation2 + $0x1a8] sm:$0xff] %vm1187, %v1152
      %1242 = vst.msk [vmem:[#allocation2 + $0x1b0] sm:$0xff] %vm1187, %v1153
      %1243 = vst.msk [vmem:[#allocation2 + $0x1b8] sm:$0xff] %vm1187, %v1154
      %1244 = vst.msk [vmem:[#allocation2 + $0x1c0] sm:$0xff] %vm1187, %v1155
      %1245 = vst.msk [vmem:[#allocation2 + $0x1c8] sm:$0xff] %vm1187, %v1156
      %1246 = vst.msk [vmem:[#allocation2 + $0x1d0] sm:$0xff] %vm1187, %v1157
      %1247 = vst.msk [vmem:[#allocation2 + $0x1d8] sm:$0xff] %vm1187, %v1158
      %1248 = vst.msk [vmem:[#allocation2 + $0x1e0] sm:$0xff] %vm1187, %v1159
      %1249 = vst.msk [vmem:[#allocation2 + $0x1e8] sm:$0xff] %vm1187, %v1160
      %1250 = vst.msk [vmem:[#allocation2 + $0x1f0] sm:$0xff] %vm1187, %v1161
      %1251 = vst.msk [vmem:[#allocation2 + $0x1f8] sm:$0xff] %vm1187, %v1162
      %1252 = vst.msk [vmem:[#allocation2 + $0x200] sm:$0xff] %vm1187, %v1163
      %1253 = vst.msk [vmem:[#allocation2 + $0x208] sm:$0xff] %vm1187, %v1164
      %1254 = vst.msk [vmem:[#allocation2 + $0x210] sm:$0xff] %vm1187, %v1165
      %1255 = vst.msk [vmem:[#allocation2 + $0x218] sm:$0xff] %vm1187, %v1166
      %1256 = vst.msk [vmem:[#allocation2 + $0x220] sm:$0xff] %vm1187, %v1167
      %1257 = vst.msk [vmem:[#allocation2 + $0x228] sm:$0xff] %vm1187, %v1168
      %1258 = vst.msk [vmem:[#allocation2 + $0x230] sm:$0xff] %vm1187, %v1169
      %1259 = vst.msk [vmem:[#allocation2 + $0x238] sm:$0xff] %vm1187, %v1170
      %1260 = vst.msk [vmem:[#allocation2 + $0x240] sm:$0xff] %vm1187, %v1171
      %1261 = vst.msk [vmem:[#allocation2 + $0x248] sm:$0xff] %vm1187, %v1172
      %1262 = vst.msk [vmem:[#allocation2 + $0x250] sm:$0xff] %vm1187, %v1173
      %1263 = vst.msk [vmem:[#allocation2 + $0x258] sm:$0xff] %vm1187, %v1174
      %1264 = vst.msk [vmem:[#allocation2 + $0x260] sm:$0xff] %vm1187, %v1175
      %1265 = vst.msk [vmem:[#allocation2 + $0x268] sm:$0xff] %vm1187, %v1176
      %1266 = vst.msk [vmem:[#allocation2 + $0x270] sm:$0xff] %vm1187, %v1177
      %1267 = vst.msk [vmem:[#allocation2 + $0x278] sm:$0xff] %vm1187, %v1178
      %1268 = vst.msk [vmem:[#allocation2 + $0x280] sm:$0xff] %vm1187, %v1179
      %1269 = vst.msk [vmem:[#allocation2 + $0x288] sm:$0xff] %vm1187, %v1180
      %1270 = vst.msk [vmem:[#allocation2 + $0x290] sm:$0xff] %vm1187, %v1181
      %1271 = vst.msk [vmem:[#allocation2 + $0x298] sm:$0xff] %vm1187, %v1182
      %1272 = vst.msk [vmem:[#allocation2 + $0x2a0] sm:$0xff] %vm1187, %v1183
      %1273 = vst.msk [vmem:[#allocation2 + $0x2a8] sm:$0xff] %vm1187, %v1184
      %1274 = vst.msk [vmem:[#allocation2 + $0x2b0] sm:$0xff] %vm1187, %v1185
      %1275 = vst.msk [vmem:[#allocation2 + $0x2b8] sm:$0xff] %vm1187, %v1186
      %v1276 = vld [vmem:[#allocation2] sm:$0xff]
      %v1277 = vld [vmem:[#allocation2 + $0x8] sm:$0xff]
      %v1278 = vld [vmem:[#allocation2 + $0x10] sm:$0xff]
      %v1279 = vld [vmem:[#allocation2 + $0x18] sm:$0xff]
      %v1280 = vld [vmem:[#allocation2 + $0x20] sm:$0xff]
      %v1281 = vld [vmem:[#allocation2 + $0x28] sm:$0xff]
      %v1282 = vld [vmem:[#allocation2 + $0x30] sm:$0xff]
      %v1283 = vld [vmem:[#allocation2 + $0x38] sm:$0xff]
      %v1284 = vld [vmem:[#allocation2 + $0x40] sm:$0xff]
      %v1285 = vld [vmem:[#allocation2 + $0x48] sm:$0xff]
      %v1286 = vld [vmem:[#allocation2 + $0x50] sm:$0xff]
      %v1287 = vld [vmem:[#allocation2 + $0x58] sm:$0xff]
      %v1288 = vld [vmem:[#allocation2 + $0x60] sm:$0xff]
      %v1289 = vld [vmem:[#allocation2 + $0x68] sm:$0xff]
      %v1290 = vld [vmem:[#allocation2 + $0x70] sm:$0xff]
      %v1291 = vld [vmem:[#allocation2 + $0x78] sm:$0xff]
      %v1292 = vld [vmem:[#allocation2 + $0x80] sm:$0xff]
      %v1293 = vld [vmem:[#allocation2 + $0x88] sm:$0xff]
      %v1294 = vld [vmem:[#allocation2 + $0x90] sm:$0xff]
      %v1295 = vld [vmem:[#allocation2 + $0x98] sm:$0xf]
      %v1296 = vld [vmem:[#allocation2 + $0xb0] sm:$0xff]
      %v1297 = vld [vmem:[#allocation2 + $0xb8] sm:$0xff]
      %v1298 = vld [vmem:[#allocation2 + $0xc0] sm:$0xff]
      %v1299 = vld [vmem:[#allocation2 + $0xc8] sm:$0xff]
      %v1300 = vld [vmem:[#allocation2 + $0xd0] sm:$0xff]
      %v1301 = vld [vmem:[#allocation2 + $0xd8] sm:$0xff]
      %v1302 = vld [vmem:[#allocation2 + $0xe0] sm:$0xff]
      %v1303 = vld [vmem:[#allocation2 + $0xe8] sm:$0xff]
      %v1304 = vld [vmem:[#allocation2 + $0xf0] sm:$0xff]
      %v1305 = vld [vmem:[#allocation2 + $0xf8] sm:$0xff]
      %v1306 = vld [vmem:[#allocation2 + $0x100] sm:$0xff]
      %v1307 = vld [vmem:[#allocation2 + $0x108] sm:$0xff]
      %v1308 = vld [vmem:[#allocation2 + $0x110] sm:$0xff]
      %v1309 = vld [vmem:[#allocation2 + $0x118] sm:$0xff]
      %v1310 = vld [vmem:[#allocation2 + $0x120] sm:$0xff]
      %v1311 = vld [vmem:[#allocation2 + $0x128] sm:$0xff]
      %v1312 = vld [vmem:[#allocation2 + $0x130] sm:$0xff]
      %v1313 = vld [vmem:[#allocation2 + $0x138] sm:$0xff]
      %v1314 = vld [vmem:[#allocation2 + $0x140] sm:$0xff]
      %v1315 = vld [vmem:[#allocation2 + $0x148] sm:$0xf]
      %v1316 = vld [vmem:[#allocation2 + $0x1] sm:$0xff]
      %v1317 = vld [vmem:[#allocation2 + $0x9] sm:$0xff]
      %v1318 = vld [vmem:[#allocation2 + $0x11] sm:$0xff]
      %v1319 = vld [vmem:[#allocation2 + $0x19] sm:$0xff]
      %v1320 = vld [vmem:[#allocation2 + $0x21] sm:$0xff]
      %v1321 = vld [vmem:[#allocation2 + $0x29] sm:$0xff]
      %v1322 = vld [vmem:[#allocation2 + $0x31] sm:$0xff]
      %v1323 = vld [vmem:[#allocation2 + $0x39] sm:$0xff]
      %v1324 = vld [vmem:[#allocation2 + $0x41] sm:$0xff]
      %v1325 = vld [vmem:[#allocation2 + $0x49] sm:$0xff]
      %v1326 = vld [vmem:[#allocation2 + $0x51] sm:$0xff]
      %v1327 = vld [vmem:[#allocation2 + $0x59] sm:$0xff]
      %v1328 = vld [vmem:[#allocation2 + $0x61] sm:$0xff]
      %v1329 = vld [vmem:[#allocation2 + $0x69] sm:$0xff]
      %v1330 = vld [vmem:[#allocation2 + $0x71] sm:$0xff]
      %v1331 = vld [vmem:[#allocation2 + $0x79] sm:$0xff]
      %v1332 = vld [vmem:[#allocation2 + $0x81] sm:$0xff]
      %v1333 = vld [vmem:[#allocation2 + $0x89] sm:$0xff]
      %v1334 = vld [vmem:[#allocation2 + $0x91] sm:$0xff]
      %v1335 = vld [vmem:[#allocation2 + $0x99] sm:$0xf]
      %v1336 = vld [vmem:[#allocation2 + $0x160] sm:$0xff]
      %v1337 = vld [vmem:[#allocation2 + $0x168] sm:$0xff]
      %v1338 = vld [vmem:[#allocation2 + $0x170] sm:$0xff]
      %v1339 = vld [vmem:[#allocation2 + $0x178] sm:$0xff]
      %v1340 = vld [vmem:[#allocation2 + $0x180] sm:$0xff]
      %v1341 = vld [vmem:[#allocation2 + $0x188] sm:$0xff]
      %v1342 = vld [vmem:[#allocation2 + $0x190] sm:$0xff]
      %v1343 = vld [vmem:[#allocation2 + $0x198] sm:$0xff]
      %v1344 = vld [vmem:[#allocation2 + $0x1a0] sm:$0xff]
      %v1345 = vld [vmem:[#allocation2 + $0x1a8] sm:$0xff]
      %v1346 = vld [vmem:[#allocation2 + $0x1b0] sm:$0xff]
      %v1347 = vld [vmem:[#allocation2 + $0x1b8] sm:$0xff]
      %v1348 = vld [vmem:[#allocation2 + $0x1c0] sm:$0xff]
      %v1349 = vld [vmem:[#allocation2 + $0x1c8] sm:$0xff]
      %v1350 = vld [vmem:[#allocation2 + $0x1d0] sm:$0xff]
      %v1351 = vld [vmem:[#allocation2 + $0x1d8] sm:$0xff]
      %v1352 = vld [vmem:[#allocation2 + $0x1e0] sm:$0xff]
      %v1353 = vld [vmem:[#allocation2 + $0x1e8] sm:$0xff]
      %v1354 = vld [vmem:[#allocation2 + $0x1f0] sm:$0xff]
      %v1355 = vld [vmem:[#allocation2 + $0x1f8] sm:$0xf]
      %v1356 = vld [vmem:[#allocation2 + $0x210] sm:$0xff]
      %v1357 = vld [vmem:[#allocation2 + $0x218] sm:$0xff]
      %v1358 = vld [vmem:[#allocation2 + $0x220] sm:$0xff]
      %v1359 = vld [vmem:[#allocation2 + $0x228] sm:$0xff]
      %v1360 = vld [vmem:[#allocation2 + $0x230] sm:$0xff]
      %v1361 = vld [vmem:[#allocation2 + $0x238] sm:$0xff]
      %v1362 = vld [vmem:[#allocation2 + $0x240] sm:$0xff]
      %v1363 = vld [vmem:[#allocation2 + $0x248] sm:$0xff]
      %v1364 = vld [vmem:[#allocation2 + $0x250] sm:$0xff]
      %v1365 = vld [vmem:[#allocation2 + $0x258] sm:$0xff]
      %v1366 = vld [vmem:[#allocation2 + $0x260] sm:$0xff]
      %v1367 = vld [vmem:[#allocation2 + $0x268] sm:$0xff]
      %v1368 = vld [vmem:[#allocation2 + $0x270] sm:$0xff]
      %v1369 = vld [vmem:[#allocation2 + $0x278] sm:$0xff]
      %v1370 = vld [vmem:[#allocation2 + $0x280] sm:$0xff]
      %v1371 = vld [vmem:[#allocation2 + $0x288] sm:$0xff]
      %v1372 = vld [vmem:[#allocation2 + $0x290] sm:$0xff]
      %v1373 = vld [vmem:[#allocation2 + $0x298] sm:$0xff]
      %v1374 = vld [vmem:[#allocation2 + $0x2a0] sm:$0xff]
      %v1375 = vld [vmem:[#allocation2 + $0x2a8] sm:$0xf]
      %v1376 = vld [vmem:[#allocation2 + $0x161] sm:$0xff]
      %v1377 = vld [vmem:[#allocation2 + $0x169] sm:$0xff]
      %v1378 = vld [vmem:[#allocation2 + $0x171] sm:$0xff]
      %v1379 = vld [vmem:[#allocation2 + $0x179] sm:$0xff]
      %v1380 = vld [vmem:[#allocation2 + $0x181] sm:$0xff]
      %v1381 = vld [vmem:[#allocation2 + $0x189] sm:$0xff]
      %v1382 = vld [vmem:[#allocation2 + $0x191] sm:$0xff]
      %v1383 = vld [vmem:[#allocation2 + $0x199] sm:$0xff]
      %v1384 = vld [vmem:[#allocation2 + $0x1a1] sm:$0xff]
      %v1385 = vld [vmem:[#allocation2 + $0x1a9] sm:$0xff]
      %v1386 = vld [vmem:[#allocation2 + $0x1b1] sm:$0xff]
      %v1387 = vld [vmem:[#allocation2 + $0x1b9] sm:$0xff]
      %v1388 = vld [vmem:[#allocation2 + $0x1c1] sm:$0xff]
      %v1389 = vld [vmem:[#allocation2 + $0x1c9] sm:$0xff]
      %v1390 = vld [vmem:[#allocation2 + $0x1d1] sm:$0xff]
      %v1391 = vld [vmem:[#allocation2 + $0x1d9] sm:$0xff]
      %v1392 = vld [vmem:[#allocation2 + $0x1e1] sm:$0xff]
      %v1393 = vld [vmem:[#allocation2 + $0x1e9] sm:$0xff]
      %v1394 = vld [vmem:[#allocation2 + $0x1f1] sm:$0xff]
      %v1395 = vld [vmem:[#allocation2 + $0x1f9] sm:$0xf]
      %v1396 = vld [vmem:[#allocation2 + $0xd] sm:$0xff]
      %v1397 = vld [vmem:[#allocation2 + $0x15] sm:$0xff]
      %v1398 = vld [vmem:[#allocation2 + $0x1d] sm:$0xff]
      %v1399 = vld [vmem:[#allocation2 + $0x25] sm:$0xff]
      %v1400 = vld [vmem:[#allocation2 + $0x2d] sm:$0xff]
      %v1401 = vld [vmem:[#allocation2 + $0x35] sm:$0xff]
      %v1402 = vld [vmem:[#allocation2 + $0x3d] sm:$0xff]
      %v1403 = vld [vmem:[#allocation2 + $0x45] sm:$0xff]
      %v1404 = vld [vmem:[#allocation2 + $0x4d] sm:$0xff]
      %v1405 = vld [vmem:[#allocation2 + $0x55] sm:$0xff]
      %v1406 = vld [vmem:[#allocation2 + $0x5d] sm:$0xff]
      %v1407 = vld [vmem:[#allocation2 + $0x65] sm:$0xff]
      %v1408 = vld [vmem:[#allocation2 + $0x6d] sm:$0xff]
      %v1409 = vld [vmem:[#allocation2 + $0x75] sm:$0xff]
      %v1410 = vld [vmem:[#allocation2 + $0x7d] sm:$0xff]
      %v1411 = vld [vmem:[#allocation2 + $0x85] sm:$0xff]
      %v1412 = vld [vmem:[#allocation2 + $0x8d] sm:$0xff]
      %v1413 = vld [vmem:[#allocation2 + $0x95] sm:$0xff]
      %v1414 = vld [vmem:[#allocation2 + $0x9d] sm:$0xff]
      %v1415 = vld [vmem:[#allocation2 + $0xa5] sm:$0xf]
      %v1416 = vld [vmem:[#allocation2 + $0xbd] sm:$0xff]
      %v1417 = vld [vmem:[#allocation2 + $0xc5] sm:$0xff]
      %v1418 = vld [vmem:[#allocation2 + $0xcd] sm:$0xff]
      %v1419 = vld [vmem:[#allocation2 + $0xd5] sm:$0xff]
      %v1420 = vld [vmem:[#allocation2 + $0xdd] sm:$0xff]
      %v1421 = vld [vmem:[#allocation2 + $0xe5] sm:$0xff]
      %v1422 = vld [vmem:[#allocation2 + $0xed] sm:$0xff]
      %v1423 = vld [vmem:[#allocation2 + $0xf5] sm:$0xff]
      %v1424 = vld [vmem:[#allocation2 + $0xfd] sm:$0xff]
      %v1425 = vld [vmem:[#allocation2 + $0x105] sm:$0xff]
      %v1426 = vld [vmem:[#allocation2 + $0x10d] sm:$0xff]
      %v1427 = vld [vmem:[#allocation2 + $0x115] sm:$0xff]
      %v1428 = vld [vmem:[#allocation2 + $0x11d] sm:$0xff]
      %v1429 = vld [vmem:[#allocation2 + $0x125] sm:$0xff]
      %v1430 = vld [vmem:[#allocation2 + $0x12d] sm:$0xff]
      %v1431 = vld [vmem:[#allocation2 + $0x135] sm:$0xff]
      %v1432 = vld [vmem:[#allocation2 + $0x13d] sm:$0xff]
      %v1433 = vld [vmem:[#allocation2 + $0x145] sm:$0xff]
      %v1434 = vld [vmem:[#allocation2 + $0x14d] sm:$0xff]
      %v1435 = vld [vmem:[#allocation2 + $0x155] sm:$0xf]
      %v1436 = vld [vmem:[#allocation2 + $0xe] sm:$0xff]
      %v1437 = vld [vmem:[#allocation2 + $0x16] sm:$0xff]
      %v1438 = vld [vmem:[#allocation2 + $0x1e] sm:$0xff]
      %v1439 = vld [vmem:[#allocation2 + $0x26] sm:$0xff]
      %v1440 = vld [vmem:[#allocation2 + $0x2e] sm:$0xff]
      %v1441 = vld [vmem:[#allocation2 + $0x36] sm:$0xff]
      %v1442 = vld [vmem:[#allocation2 + $0x3e] sm:$0xff]
      %v1443 = vld [vmem:[#allocation2 + $0x46] sm:$0xff]
      %v1444 = vld [vmem:[#allocation2 + $0x4e] sm:$0xff]
      %v1445 = vld [vmem:[#allocation2 + $0x56] sm:$0xff]
      %v1446 = vld [vmem:[#allocation2 + $0x5e] sm:$0xff]
      %v1447 = vld [vmem:[#allocation2 + $0x66] sm:$0xff]
      %v1448 = vld [vmem:[#allocation2 + $0x6e] sm:$0xff]
      %v1449 = vld [vmem:[#allocation2 + $0x76] sm:$0xff]
      %v1450 = vld [vmem:[#allocation2 + $0x7e] sm:$0xff]
      %v1451 = vld [vmem:[#allocation2 + $0x86] sm:$0xff]
      %v1452 = vld [vmem:[#allocation2 + $0x8e] sm:$0xff]
      %v1453 = vld [vmem:[#allocation2 + $0x96] sm:$0xff]
      %v1454 = vld [vmem:[#allocation2 + $0x9e] sm:$0xff]
      %v1455 = vld [vmem:[#allocation2 + $0xa6] sm:$0xf]
      %1476 = vrot.lane.b32.xlu0 %v1296, 32
      %v1477 = vpop.permute.xlu0 %1476
      %1478 = vrot.lane.b32.xlu0 %v1297, 32
      %v1479 = vpop.permute.xlu0 %1478
      %1480 = vrot.lane.b32.xlu0 %v1298, 32
      %v1481 = vpop.permute.xlu0 %1480
      %1482 = vrot.lane.b32.xlu0 %v1299, 32
      %v1483 = vpop.permute.xlu0 %1482
      %1484 = vrot.lane.b32.xlu0 %v1300, 32
      %v1485 = vpop.permute.xlu0 %1484
      %1486 = vrot.lane.b32.xlu0 %v1301, 32
      %v1487 = vpop.permute.xlu0 %1486
      %1488 = vrot.lane.b32.xlu0 %v1302, 32
      %v1489 = vpop.permute.xlu0 %1488
      %1490 = vrot.lane.b32.xlu0 %v1303, 32
      %v1491 = vpop.permute.xlu0 %1490
      %1492 = vrot.lane.b32.xlu0 %v1304, 32
      %v1493 = vpop.permute.xlu0 %1492
      %1494 = vrot.lane.b32.xlu0 %v1305, 32
      %v1495 = vpop.permute.xlu0 %1494
      %1496 = vrot.lane.b32.xlu0 %v1306, 32
      %v1497 = vpop.permute.xlu0 %1496
      %1498 = vrot.lane.b32.xlu0 %v1307, 32
      %v1499 = vpop.permute.xlu0 %1498
      %1500 = vrot.lane.b32.xlu0 %v1308, 32
      %v1501 = vpop.permute.xlu0 %1500
      %1502 = vrot.lane.b32.xlu0 %v1309, 32
      %v1503 = vpop.permute.xlu0 %1502
      %1504 = vrot.lane.b32.xlu0 %v1310, 32
      %v1505 = vpop.permute.xlu0 %1504
      %1506 = vrot.lane.b32.xlu0 %v1311, 32
      %v1507 = vpop.permute.xlu0 %1506
      %1508 = vrot.lane.b32.xlu0 %v1312, 32
      %v1509 = vpop.permute.xlu0 %1508
      %1510 = vrot.lane.b32.xlu0 %v1313, 32
      %v1511 = vpop.permute.xlu0 %1510
      %1512 = vrot.lane.b32.xlu0 %v1314, 32
      %v1513 = vpop.permute.xlu0 %1512
      %1514 = vrot.lane.b32.xlu0 %v1315, 32
      %v1515 = vpop.permute.xlu0 %1514
      %1556 = vrot.lane.b32.xlu0 %v1316, 64
      %v1557 = vpop.permute.xlu0 %1556
      %1558 = vrot.lane.b32.xlu0 %v1317, 64
      %v1559 = vpop.permute.xlu0 %1558
      %1560 = vrot.lane.b32.xlu0 %v1318, 64
      %v1561 = vpop.permute.xlu0 %1560
      %1562 = vrot.lane.b32.xlu0 %v1319, 64
      %v1563 = vpop.permute.xlu0 %1562
      %1564 = vrot.lane.b32.xlu0 %v1320, 64
      %v1565 = vpop.permute.xlu0 %1564
      %1566 = vrot.lane.b32.xlu0 %v1321, 64
      %v1567 = vpop.permute.xlu0 %1566
      %1568 = vrot.lane.b32.xlu0 %v1322, 64
      %v1569 = vpop.permute.xlu0 %1568
      %1570 = vrot.lane.b32.xlu0 %v1323, 64
      %v1571 = vpop.permute.xlu0 %1570
      %1572 = vrot.lane.b32.xlu0 %v1324, 64
      %v1573 = vpop.permute.xlu0 %1572
      %1574 = vrot.lane.b32.xlu0 %v1325, 64
      %v1575 = vpop.permute.xlu0 %1574
      %1576 = vrot.lane.b32.xlu0 %v1326, 64
      %v1577 = vpop.permute.xlu0 %1576
      %1578 = vrot.lane.b32.xlu0 %v1327, 64
      %v1579 = vpop.permute.xlu0 %1578
      %1580 = vrot.lane.b32.xlu0 %v1328, 64
      %v1581 = vpop.permute.xlu0 %1580
      %1582 = vrot.lane.b32.xlu0 %v1329, 64
      %v1583 = vpop.permute.xlu0 %1582
      %1584 = vrot.lane.b32.xlu0 %v1330, 64
      %v1585 = vpop.permute.xlu0 %1584
      %1586 = vrot.lane.b32.xlu0 %v1331, 64
      %v1587 = vpop.permute.xlu0 %1586
      %1588 = vrot.lane.b32.xlu0 %v1332, 64
      %v1589 = vpop.permute.xlu0 %1588
      %1590 = vrot.lane.b32.xlu0 %v1333, 64
      %v1591 = vpop.permute.xlu0 %1590
      %1592 = vrot.lane.b32.xlu0 %v1334, 64
      %v1593 = vpop.permute.xlu0 %1592
      %1594 = vrot.lane.b32.xlu0 %v1335, 64
      %v1595 = vpop.permute.xlu0 %1594
      %1636 = vrot.lane.b32.xlu0 %v1336, 96
      %v1637 = vpop.permute.xlu0 %1636
      %1638 = vrot.lane.b32.xlu0 %v1337, 96
      %v1639 = vpop.permute.xlu0 %1638
      %1640 = vrot.lane.b32.xlu0 %v1338, 96
      %v1641 = vpop.permute.xlu0 %1640
      %1642 = vrot.lane.b32.xlu0 %v1339, 96
      %v1643 = vpop.permute.xlu0 %1642
      %1644 = vrot.lane.b32.xlu0 %v1340, 96
      %v1645 = vpop.permute.xlu0 %1644
      %1646 = vrot.lane.b32.xlu0 %v1341, 96
      %v1647 = vpop.permute.xlu0 %1646
      %1648 = vrot.lane.b32.xlu0 %v1342, 96
      %v1649 = vpop.permute.xlu0 %1648
      %1650 = vrot.lane.b32.xlu0 %v1343, 96
      %v1651 = vpop.permute.xlu0 %1650
      %1652 = vrot.lane.b32.xlu0 %v1344, 96
      %v1653 = vpop.permute.xlu0 %1652
      %1654 = vrot.lane.b32.xlu0 %v1345, 96
      %v1655 = vpop.permute.xlu0 %1654
      %1656 = vrot.lane.b32.xlu0 %v1346, 96
      %v1657 = vpop.permute.xlu0 %1656
      %1658 = vrot.lane.b32.xlu0 %v1347, 96
      %v1659 = vpop.permute.xlu0 %1658
      %1660 = vrot.lane.b32.xlu0 %v1348, 96
      %v1661 = vpop.permute.xlu0 %1660
      %1662 = vrot.lane.b32.xlu0 %v1349, 96
      %v1663 = vpop.permute.xlu0 %1662
      %1664 = vrot.lane.b32.xlu0 %v1350, 96
      %v1665 = vpop.permute.xlu0 %1664
      %1666 = vrot.lane.b32.xlu0 %v1351, 96
      %v1667 = vpop.permute.xlu0 %1666
      %1668 = vrot.lane.b32.xlu0 %v1352, 96
      %v1669 = vpop.permute.xlu0 %1668
      %1670 = vrot.lane.b32.xlu0 %v1353, 96
      %v1671 = vpop.permute.xlu0 %1670
      %1672 = vrot.lane.b32.xlu0 %v1354, 96
      %v1673 = vpop.permute.xlu0 %1672
      %1674 = vrot.lane.b32.xlu0 %v1355, 96
      %v1675 = vpop.permute.xlu0 %1674
      %1716 = vrot.lane.b32.xlu0 %v1376, 32
      %v1717 = vpop.permute.xlu0 %1716
      %1718 = vrot.lane.b32.xlu0 %v1377, 32
      %v1719 = vpop.permute.xlu0 %1718
      %1720 = vrot.lane.b32.xlu0 %v1378, 32
      %v1721 = vpop.permute.xlu0 %1720
      %1722 = vrot.lane.b32.xlu0 %v1379, 32
      %v1723 = vpop.permute.xlu0 %1722
      %1724 = vrot.lane.b32.xlu0 %v1380, 32
      %v1725 = vpop.permute.xlu0 %1724
      %1726 = vrot.lane.b32.xlu0 %v1381, 32
      %v1727 = vpop.permute.xlu0 %1726
      %1728 = vrot.lane.b32.xlu0 %v1382, 32
      %v1729 = vpop.permute.xlu0 %1728
      %1730 = vrot.lane.b32.xlu0 %v1383, 32
      %v1731 = vpop.permute.xlu0 %1730
      %1732 = vrot.lane.b32.xlu0 %v1384, 32
      %v1733 = vpop.permute.xlu0 %1732
      %1734 = vrot.lane.b32.xlu0 %v1385, 32
      %v1735 = vpop.permute.xlu0 %1734
      %1736 = vrot.lane.b32.xlu0 %v1386, 32
      %v1737 = vpop.permute.xlu0 %1736
      %1738 = vrot.lane.b32.xlu0 %v1387, 32
      %v1739 = vpop.permute.xlu0 %1738
      %1740 = vrot.lane.b32.xlu0 %v1388, 32
      %v1741 = vpop.permute.xlu0 %1740
      %1742 = vrot.lane.b32.xlu0 %v1389, 32
      %v1743 = vpop.permute.xlu0 %1742
      %1744 = vrot.lane.b32.xlu0 %v1390, 32
      %v1745 = vpop.permute.xlu0 %1744
      %1746 = vrot.lane.b32.xlu0 %v1391, 32
      %v1747 = vpop.permute.xlu0 %1746
      %1748 = vrot.lane.b32.xlu0 %v1392, 32
      %v1749 = vpop.permute.xlu0 %1748
      %1750 = vrot.lane.b32.xlu0 %v1393, 32
      %v1751 = vpop.permute.xlu0 %1750
      %1752 = vrot.lane.b32.xlu0 %v1394, 32
      %v1753 = vpop.permute.xlu0 %1752
      %1754 = vrot.lane.b32.xlu0 %v1395, 32
      %v1755 = vpop.permute.xlu0 %1754
      %1796 = vrot.lane.b32.xlu0 %v1396, 64
      %v1797 = vpop.permute.xlu0 %1796
      %1798 = vrot.lane.b32.xlu0 %v1397, 64
      %v1799 = vpop.permute.xlu0 %1798
      %1800 = vrot.lane.b32.xlu0 %v1398, 64
      %v1801 = vpop.permute.xlu0 %1800
      %1802 = vrot.lane.b32.xlu0 %v1399, 64
      %v1803 = vpop.permute.xlu0 %1802
      %1804 = vrot.lane.b32.xlu0 %v1400, 64
      %v1805 = vpop.permute.xlu0 %1804
      %1806 = vrot.lane.b32.xlu0 %v1401, 64
      %v1807 = vpop.permute.xlu0 %1806
      %1808 = vrot.lane.b32.xlu0 %v1402, 64
      %v1809 = vpop.permute.xlu0 %1808
      %1810 = vrot.lane.b32.xlu0 %v1403, 64
      %v1811 = vpop.permute.xlu0 %1810
      %1812 = vrot.lane.b32.xlu0 %v1404, 64
      %v1813 = vpop.permute.xlu0 %1812
      %1814 = vrot.lane.b32.xlu0 %v1405, 64
      %v1815 = vpop.permute.xlu0 %1814
      %1816 = vrot.lane.b32.xlu0 %v1406, 64
      %v1817 = vpop.permute.xlu0 %1816
      %1818 = vrot.lane.b32.xlu0 %v1407, 64
      %v1819 = vpop.permute.xlu0 %1818
      %1820 = vrot.lane.b32.xlu0 %v1408, 64
      %v1821 = vpop.permute.xlu0 %1820
      %1822 = vrot.lane.b32.xlu0 %v1409, 64
      %v1823 = vpop.permute.xlu0 %1822
      %1824 = vrot.lane.b32.xlu0 %v1410, 64
      %v1825 = vpop.permute.xlu0 %1824
      %1826 = vrot.lane.b32.xlu0 %v1411, 64
      %v1827 = vpop.permute.xlu0 %1826
      %1828 = vrot.lane.b32.xlu0 %v1412, 64
      %v1829 = vpop.permute.xlu0 %1828
      %1830 = vrot.lane.b32.xlu0 %v1413, 64
      %v1831 = vpop.permute.xlu0 %1830
      %1832 = vrot.lane.b32.xlu0 %v1414, 64
      %v1833 = vpop.permute.xlu0 %1832
      %1834 = vrot.lane.b32.xlu0 %v1415, 64
      %v1835 = vpop.permute.xlu0 %1834
      %1876 = vrot.lane.b32.xlu0 %v1416, 96
      %v1877 = vpop.permute.xlu0 %1876
      %1878 = vrot.lane.b32.xlu0 %v1417, 96
      %v1879 = vpop.permute.xlu0 %1878
      %1880 = vrot.lane.b32.xlu0 %v1418, 96
      %v1881 = vpop.permute.xlu0 %1880
      %1882 = vrot.lane.b32.xlu0 %v1419, 96
      %v1883 = vpop.permute.xlu0 %1882
      %1884 = vrot.lane.b32.xlu0 %v1420, 96
      %v1885 = vpop.permute.xlu0 %1884
      %1886 = vrot.lane.b32.xlu0 %v1421, 96
      %v1887 = vpop.permute.xlu0 %1886
      %1888 = vrot.lane.b32.xlu0 %v1422, 96
      %v1889 = vpop.permute.xlu0 %1888
      %1890 = vrot.lane.b32.xlu0 %v1423, 96
      %v1891 = vpop.permute.xlu0 %1890
      %1892 = vrot.lane.b32.xlu0 %v1424, 96
      %v1893 = vpop.permute.xlu0 %1892
      %1894 = vrot.lane.b32.xlu0 %v1425, 96
      %v1895 = vpop.permute.xlu0 %1894
      %1896 = vrot.lane.b32.xlu0 %v1426, 96
      %v1897 = vpop.permute.xlu0 %1896
      %1898 = vrot.lane.b32.xlu0 %v1427, 96
      %v1899 = vpop.permute.xlu0 %1898
      %1900 = vrot.lane.b32.xlu0 %v1428, 96
      %v1901 = vpop.permute.xlu0 %1900
      %1902 = vrot.lane.b32.xlu0 %v1429, 96
      %v1903 = vpop.permute.xlu0 %1902
      %1904 = vrot.lane.b32.xlu0 %v1430, 96
      %v1905 = vpop.permute.xlu0 %1904
      %1906 = vrot.lane.b32.xlu0 %v1431, 96
      %v1907 = vpop.permute.xlu0 %1906
      %1908 = vrot.lane.b32.xlu0 %v1432, 96
      %v1909 = vpop.permute.xlu0 %1908
      %1910 = vrot.lane.b32.xlu0 %v1433, 96
      %v1911 = vpop.permute.xlu0 %1910
      %1912 = vrot.lane.b32.xlu0 %v1434, 96
      %v1913 = vpop.permute.xlu0 %1912
      %1914 = vrot.lane.b32.xlu0 %v1435, 96
      %v1915 = vpop.permute.xlu0 %1914
      %v1936 = vsel %vm1187, %v1276, %v1477
      %v1937 = vsel %vm1187, %v1277, %v1479
      %v1938 = vsel %vm1187, %v1278, %v1481
      %v1939 = vsel %vm1187, %v1279, %v1483
      %v1940 = vsel %vm1187, %v1280, %v1485
      %v1941 = vsel %vm1187, %v1281, %v1487
      %v1942 = vsel %vm1187, %v1282, %v1489
      %v1943 = vsel %vm1187, %v1283, %v1491
      %v1944 = vsel %vm1187, %v1284, %v1493
      %v1945 = vsel %vm1187, %v1285, %v1495
      %v1946 = vsel %vm1187, %v1286, %v1497
      %v1947 = vsel %vm1187, %v1287, %v1499
      %v1948 = vsel %vm1187, %v1288, %v1501
      %v1949 = vsel %vm1187, %v1289, %v1503
      %v1950 = vsel %vm1187, %v1290, %v1505
      %v1951 = vsel %vm1187, %v1291, %v1507
      %v1952 = vsel %vm1187, %v1292, %v1509
      %v1953 = vsel %vm1187, %v1293, %v1511
      %v1954 = vsel %vm1187, %v1294, %v1513
      %v1955 = vsel %vm1187, %v1295, %v1515
      %vm1956 = vcmask 523264
      %v1957 = vsel %vm1956, %v1936, %v1557
      %v1958 = vsel %vm1956, %v1937, %v1559
      %v1959 = vsel %vm1956, %v1938, %v1561
      %v1960 = vsel %vm1956, %v1939, %v1563
      %v1961 = vsel %vm1956, %v1940, %v1565
      %v1962 = vsel %vm1956, %v1941, %v1567
      %v1963 = vsel %vm1956, %v1942, %v1569
      %v1964 = vsel %vm1956, %v1943, %v1571
      %v1965 = vsel %vm1956, %v1944, %v1573
      %v1966 = vsel %vm1956, %v1945, %v1575
      %v1967 = vsel %vm1956, %v1946, %v1577
      %v1968 = vsel %vm1956, %v1947, %v1579
      %v1969 = vsel %vm1956, %v1948, %v1581
      %v1970 = vsel %vm1956, %v1949, %v1583
      %v1971 = vsel %vm1956, %v1950, %v1585
      %v1972 = vsel %vm1956, %v1951, %v1587
      %v1973 = vsel %vm1956, %v1952, %v1589
      %v1974 = vsel %vm1956, %v1953, %v1591
      %v1975 = vsel %vm1956, %v1954, %v1593
      %v1976 = vsel %vm1956, %v1955, %v1595
      %vm1977 = vcmask 785408
      %v1978 = vsel %vm1977, %v1957, %v1637
      %v1979 = vsel %vm1977, %v1958, %v1639
      %v1980 = vsel %vm1977, %v1959, %v1641
      %v1981 = vsel %vm1977, %v1960, %v1643
      %v1982 = vsel %vm1977, %v1961, %v1645
      %v1983 = vsel %vm1977, %v1962, %v1647
      %v1984 = vsel %vm1977, %v1963, %v1649
      %v1985 = vsel %vm1977, %v1964, %v1651
      %v1986 = vsel %vm1977, %v1965, %v1653
      %v1987 = vsel %vm1977, %v1966, %v1655
      %v1988 = vsel %vm1977, %v1967, %v1657
      %v1989 = vsel %vm1977, %v1968, %v1659
      %v1990 = vsel %vm1977, %v1969, %v1661
      %v1991 = vsel %vm1977, %v1970, %v1663
      %v1992 = vsel %vm1977, %v1971, %v1665
      %v1993 = vsel %vm1977, %v1972, %v1667
      %v1994 = vsel %vm1977, %v1973, %v1669
      %v1995 = vsel %vm1977, %v1974, %v1671
      %v1996 = vsel %vm1977, %v1975, %v1673
      %v1997 = vsel %vm1977, %v1976, %v1675
      %v1998 = vsel %vm1187, %v1356, %v1717
      %v1999 = vsel %vm1187, %v1357, %v1719
      %v2000 = vsel %vm1187, %v1358, %v1721
      %v2001 = vsel %vm1187, %v1359, %v1723
      %v2002 = vsel %vm1187, %v1360, %v1725
      %v2003 = vsel %vm1187, %v1361, %v1727
      %v2004 = vsel %vm1187, %v1362, %v1729
      %v2005 = vsel %vm1187, %v1363, %v1731
      %v2006 = vsel %vm1187, %v1364, %v1733
      %v2007 = vsel %vm1187, %v1365, %v1735
      %v2008 = vsel %vm1187, %v1366, %v1737
      %v2009 = vsel %vm1187, %v1367, %v1739
      %v2010 = vsel %vm1187, %v1368, %v1741
      %v2011 = vsel %vm1187, %v1369, %v1743
      %v2012 = vsel %vm1187, %v1370, %v1745
      %v2013 = vsel %vm1187, %v1371, %v1747
      %v2014 = vsel %vm1187, %v1372, %v1749
      %v2015 = vsel %vm1187, %v1373, %v1751
      %v2016 = vsel %vm1187, %v1374, %v1753
      %v2017 = vsel %vm1187, %v1375, %v1755
      %v2018 = vsel %vm1956, %v1998, %v1797
      %v2019 = vsel %vm1956, %v1999, %v1799
      %v2020 = vsel %vm1956, %v2000, %v1801
      %v2021 = vsel %vm1956, %v2001, %v1803
      %v2022 = vsel %vm1956, %v2002, %v1805
      %v2023 = vsel %vm1956, %v2003, %v1807
      %v2024 = vsel %vm1956, %v2004, %v1809
      %v2025 = vsel %vm1956, %v2005, %v1811
      %v2026 = vsel %vm1956, %v2006, %v1813
      %v2027 = vsel %vm1956, %v2007, %v1815
      %v2028 = vsel %vm1956, %v2008, %v1817
      %v2029 = vsel %vm1956, %v2009, %v1819
      %v2030 = vsel %vm1956, %v2010, %v1821
      %v2031 = vsel %vm1956, %v2011, %v1823
      %v2032 = vsel %vm1956, %v2012, %v1825
      %v2033 = vsel %vm1956, %v2013, %v1827
      %v2034 = vsel %vm1956, %v2014, %v1829
      %v2035 = vsel %vm1956, %v2015, %v1831
      %v2036 = vsel %vm1956, %v2016, %v1833
      %v2037 = vsel %vm1956, %v2017, %v1835
      %v2038 = vsel %vm1977, %v2018, %v1877
      %v2039 = vsel %vm1977, %v2019, %v1879
      %v2040 = vsel %vm1977, %v2020, %v1881
      %v2041 = vsel %vm1977, %v2021, %v1883
      %v2042 = vsel %vm1977, %v2022, %v1885
      %v2043 = vsel %vm1977, %v2023, %v1887
      %v2044 = vsel %vm1977, %v2024, %v1889
      %v2045 = vsel %vm1977, %v2025, %v1891
      %v2046 = vsel %vm1977, %v2026, %v1893
      %v2047 = vsel %vm1977, %v2027, %v1895
      %v2048 = vsel %vm1977, %v2028, %v1897
      %v2049 = vsel %vm1977, %v2029, %v1899
      %v2050 = vsel %vm1977, %v2030, %v1901
      %v2051 = vsel %vm1977, %v2031, %v1903
      %v2052 = vsel %vm1977, %v2032, %v1905
      %v2053 = vsel %vm1977, %v2033, %v1907
      %v2054 = vsel %vm1977, %v2034, %v1909
      %v2055 = vsel %vm1977, %v2035, %v1911
      %v2056 = vsel %vm1977, %v2036, %v1913
      %v2057 = vsel %vm1977, %v2037, %v1915
      %v2058 = vpack.c.bf16 %v1979, %v1978
      %v2059 = vpack.c.bf16 %v2039, %v2038
      %v2060 = vpack.c.bf16 %v1437, %v1436
      %v2061 = vpack.c.bf16 %v1981, %v1980
      %v2062 = vpack.c.bf16 %v2041, %v2040
      %v2063 = vpack.c.bf16 %v1439, %v1438
      %v2064 = vpack.c.bf16 %v1983, %v1982
      %v2065 = vpack.c.bf16 %v2043, %v2042
      %v2066 = vpack.c.bf16 %v1441, %v1440
      %v2067 = vpack.c.bf16 %v1985, %v1984
      %v2068 = vpack.c.bf16 %v2045, %v2044
      %v2069 = vpack.c.bf16 %v1443, %v1442
      %v2070 = vpack.c.bf16 %v1987, %v1986
      %v2071 = vpack.c.bf16 %v2047, %v2046
      %v2072 = vpack.c.bf16 %v1445, %v1444
      %v2073 = vpack.c.bf16 %v1989, %v1988
      %v2074 = vpack.c.bf16 %v2049, %v2048
      %v2075 = vpack.c.bf16 %v1447, %v1446
      %v2076 = vpack.c.bf16 %v1991, %v1990
      %v2077 = vpack.c.bf16 %v2051, %v2050
      %v2078 = vpack.c.bf16 %v1449, %v1448
      %v2079 = vpack.c.bf16 %v1993, %v1992
      %v2080 = vpack.c.bf16 %v2053, %v2052
      %v2081 = vpack.c.bf16 %v1451, %v1450
      %v2082 = vpack.c.bf16 %v1995, %v1994
      %v2083 = vpack.c.bf16 %v2055, %v2054
      %v2084 = vpack.c.bf16 %v1453, %v1452
      %v2085 = vpack.c.bf16 %v1997, %v1996
      %v2086 = vpack.c.bf16 %v2057, %v2056
      %v2087 = vpack.c.bf16 %v1455, %v1454
      %v2088 = vld [vmem:[%s3] sm:$0xf]
      %v2089 = vld [vmem:[%s3 + $0x4] sm:$0xf]
      %v2090 = vld [vmem:[%s3 + $0x8] sm:$0xf]
      %v2091 = vld [vmem:[%s3 + $0xc] sm:$0xf]
      %v2092 = vld [vmem:[%s3 + $0x10] sm:$0xf]
      %v2093 = vld [vmem:[%s3 + $0x14] sm:$0xf]
      %v2094 = vld [vmem:[%s3 + $0x18] sm:$0xf]
      %v2095 = vld [vmem:[%s3 + $0x1c] sm:$0xf]
      %v2096 = vld [vmem:[%s3 + $0x20] sm:$0xf]
      %v2097 = vld [vmem:[%s3 + $0x24] sm:$0xf]
      %v2098 = vld [vmem:[%s3 + $0x28] sm:$0xf]
      %v2099 = vld [vmem:[%s3 + $0x2c] sm:$0xf]
      %v2100 = vld [vmem:[%s3 + $0x30] sm:$0xf]
      %v2101 = vld [vmem:[%s3 + $0x34] sm:$0xf]
      %v2102 = vld [vmem:[%s3 + $0x38] sm:$0xf]
      %v2103 = vld [vmem:[%s3 + $0x3c] sm:$0xf]
      %v2104 = vld [vmem:[%s3 + $0x40] sm:$0xf]
      %v2105 = vld [vmem:[%s3 + $0x44] sm:$0xf]
      %v2106 = vld [vmem:[%s3 + $0x48] sm:$0xf]
      %v2107 = vld [vmem:[%s3 + $0x4c] sm:$0xf]
      %v2108 = vld [vmem:[%s3 + $0x50] sm:$0xf]
      %v2109 = vld [vmem:[%s3 + $0x54] sm:$0xf]
      %v2110 = vld [vmem:[%s3 + $0x58] sm:$0xf]
      %v2111 = vld [vmem:[%s3 + $0x5c] sm:$0xf]
      %v2112 = vld [vmem:[%s3 + $0x60] sm:$0xf]
      %v2113 = vld [vmem:[%s3 + $0x64] sm:$0xf]
      %v2114 = vld [vmem:[%s3 + $0x68] sm:$0xf]
      %v2115 = vld [vmem:[%s3 + $0x6c] sm:$0xf]
      %v2116 = vld [vmem:[%s3 + $0x70] sm:$0xf]
      %v2117 = vld [vmem:[%s3 + $0x74] sm:$0xf]
      %v2118 = vld [vmem:[%s3 + $0x78] sm:$0xf]
      %v2119 = vld [vmem:[%s3 + $0x7c] sm:$0xf]
      %v2120 = vld [vmem:[%s3 + $0x80] sm:$0xf]
      %v2121 = vld [vmem:[%s3 + $0x84] sm:$0xf]
      %v2122 = vld [vmem:[%s3 + $0x88] sm:$0xf]
      %v2123 = vld [vmem:[%s3 + $0x8c] sm:$0xf]
      %v2124 = vld [vmem:[%s4] sm:$0x1]
      %v2126 = vlaneseq
      %v2127 = vshrl.u32 %v2126, 7
      %v2128 = vsub.s32 0, %v2127
      %v2129 = vrot.slane %v2124, %v2128
      %v2167 = vunpack.c.l.b16 %v2088
      %v2168 = vunpack.c.l.b16 %v2089
      %v2169 = vunpack.c.l.b16 %v2090
      %v2170 = vunpack.c.l.b16 %v2091
      %v2171 = vunpack.c.l.b16 %v2092
      %v2172 = vunpack.c.l.b16 %v2093
      %v2173 = vunpack.c.l.b16 %v2094
      %v2174 = vunpack.c.l.b16 %v2095
      %v2175 = vunpack.c.l.b16 %v2096
      %v2176 = vunpack.c.l.b16 %v2097
      %v2177 = vunpack.c.l.b16 %v2098
      %v2178 = vunpack.c.l.b16 %v2099
      %v2179 = vunpack.c.l.b16 %v2100
      %v2180 = vunpack.c.l.b16 %v2101
      %v2181 = vunpack.c.l.b16 %v2102
      %v2182 = vunpack.c.l.b16 %v2103
      %v2183 = vunpack.c.l.b16 %v2104
      %v2184 = vunpack.c.l.b16 %v2105
      %v2185 = vunpack.c.l.b16 %v2106
      %v2186 = vunpack.c.l.b16 %v2107
      %v2187 = vunpack.c.l.b16 %v2108
      %v2188 = vunpack.c.l.b16 %v2109
      %v2189 = vunpack.c.l.b16 %v2110
      %v2190 = vunpack.c.l.b16 %v2111
      %v2191 = vunpack.c.l.b16 %v2112
      %v2192 = vunpack.c.l.b16 %v2113
      %v2193 = vunpack.c.l.b16 %v2114
      %v2194 = vunpack.c.l.b16 %v2115
      %v2195 = vunpack.c.l.b16 %v2116
      %v2196 = vunpack.c.l.b16 %v2117
      %v2197 = vunpack.c.l.b16 %v2118
      %v2198 = vunpack.c.l.b16 %v2119
      %v2199 = vunpack.c.l.b16 %v2120
      %v2200 = vunpack.c.l.b16 %v2121
      %v2201 = vunpack.c.l.b16 %v2122
      %v2202 = vunpack.c.l.b16 %v2123
      %v2203 = vpack.c.b16 %v2168, %v2167
      %v2204 = vpack.c.b16 %v2170, %v2169
      %v2205 = vpack.c.b16 %v2172, %v2171
      %v2206 = vpack.c.b16 %v2174, %v2173
      %v2207 = vpack.c.b16 %v2176, %v2175
      %v2208 = vpack.c.b16 %v2178, %v2177
      %v2209 = vpack.c.b16 %v2180, %v2179
      %v2210 = vpack.c.b16 %v2182, %v2181
      %v2211 = vpack.c.b16 %v2184, %v2183
      %v2212 = vpack.c.b16 %v2186, %v2185
      %v2213 = vpack.c.b16 %v2188, %v2187
      %v2214 = vpack.c.b16 %v2190, %v2189
      %v2215 = vpack.c.b16 %v2192, %v2191
      %v2216 = vpack.c.b16 %v2194, %v2193
      %v2217 = vpack.c.b16 %v2196, %v2195
      %v2218 = vpack.c.b16 %v2198, %v2197
      %v2219 = vpack.c.b16 %v2200, %v2199
      %v2220 = vpack.c.b16 %v2202, %v2201
      %v2240 = vsel %vm1187, %v2060, 0
      %v2243 = vsel %vm1187, %v2063, 0
      %v2246 = vsel %vm1187, %v2066, 0
      %v2249 = vsel %vm1187, %v2069, 0
      %v2252 = vsel %vm1187, %v2072, 0
      %v2255 = vsel %vm1187, %v2075, 0
      %v2258 = vsel %vm1187, %v2078, 0
      %v2261 = vsel %vm1187, %v2081, 0
      %v2264 = vsel %vm1187, %v2084, 0
      %v2267 = vsel %vm1187, %v2087, 0
      %2269 = vmatprep.subr.bf16.mxu0 0
      %2270 = vmatpush1.bf16.msra.mxu0 %v2203
      %2271 = vmatprep.subr.bf16.mxu0 0
      %2272 = vmatpush1.bf16.msra.mxu0 %v2204
      %2273 = vmatprep.subr.bf16.mxu0 0
      %2274 = vmatpush1.bf16.msra.mxu0 %v2205
      %2275 = vmatprep.subr.bf16.mxu0 0
      %2276 = vmatpush1.bf16.msra.mxu0 %v2206
      %2277 = vmatprep.subr.bf16.mxu0 0
      %2278 = vmatpush1.bf16.msra.mxu0 %v2207
      %2279 = vmatprep.subr.bf16.mxu0 0
      %2280 = vmatpush1.bf16.msra.mxu0 %v2208
      %2281 = vmatprep.subr.bf16.mxu0 0
      %2282 = vmatpush1.bf16.msra.mxu0 %v2209
      %2283 = vmatprep.subr.bf16.mxu0 0
      %2284 = vmatpush1.bf16.msra.mxu0 %v2210
      %2285 = vmatprep.subr.bf16.mxu0 0
      %2286 = vmatpush1.bf16.msra.mxu0 %v2211
      %2287 = vmatprep.subr.bf16.mxu0 0
      %2288 = vmatpush1.bf16.msra.mxu0 %v2212
      %2289 = vmatprep.subr.bf16.mxu0 0
      %2290 = vmatpush1.bf16.msra.mxu0 %v2213
      %2291 = vmatprep.subr.bf16.mxu0 0
      %2292 = vmatpush1.bf16.msra.mxu0 %v2214
      %2293 = vmatprep.subr.bf16.mxu0 0
      %2294 = vmatpush1.bf16.msra.mxu0 %v2215
      %2295 = vmatprep.subr.bf16.mxu0 0
      %2296 = vmatpush1.bf16.msra.mxu0 %v2216
      %2297 = vmatprep.subr.bf16.mxu0 0
      %2298 = vmatpush1.bf16.msra.mxu0 %v2217
      %2299 = vmatprep.subr.bf16.mxu0 0
      %2300 = vmatpush1.bf16.msra.mxu0 %v2218
      %2301 = vmatprep.mubr.bf16.mxu0 %v2059
      %2302 = vmatmul.mubr.bf16.gmra.mrb[0].mxu0 %v2058
      %v2303 = vpop.f32.mrb[0].mxu0
      %v2304 = vadd.f32 %v2129, %v2303
      %v2305 = vpop.f32.mrb[0].mxu0
      %v2306 = vpop.f32.mrb[0].mxu0
      %v2307 = vadd.f32 %v2129, %v2306
      %v2308 = vpop.f32.mrb[0].mxu0
      %2309 = vmatprep.mubr.bf16.mxu0 %v2062
      %2310 = vmatmul.mubr.bf16.gmra.mrb[0].mxu0 %v2061
      %v2311 = vpop.f32.mrb[0].mxu0
      %v2312 = vadd.f32 %v2129, %v2311
      %v2313 = vpop.f32.mrb[0].mxu0
      %v2314 = vpop.f32.mrb[0].mxu0
      %v2315 = vadd.f32 %v2129, %v2314
      %v2316 = vpop.f32.mrb[0].mxu0
      %2317 = vmatprep.mubr.bf16.mxu0 %v2065
      %2318 = vmatmul.mubr.bf16.gmra.mrb[0].mxu0 %v2064
      %v2319 = vpop.f32.mrb[0].mxu0
      %v2320 = vadd.f32 %v2129, %v2319
      %v2321 = vpop.f32.mrb[0].mxu0
      %v2322 = vpop.f32.mrb[0].mxu0
      %v2323 = vadd.f32 %v2129, %v2322
      %v2324 = vpop.f32.mrb[0].mxu0
      %2325 = vmatprep.mubr.bf16.mxu0 %v2068
      %2326 = vmatmul.mubr.bf16.gmra.mrb[0].mxu0 %v2067
      %v2327 = vpop.f32.mrb[0].mxu0
      %v2328 = vadd.f32 %v2129, %v2327
      %v2329 = vpop.f32.mrb[0].mxu0
      %v2330 = vpop.f32.mrb[0].mxu0
      %v2331 = vadd.f32 %v2129, %v2330
      %v2332 = vpop.f32.mrb[0].mxu0
      %2333 = vmatprep.mubr.bf16.mxu0 %v2071
      %2334 = vmatmul.mubr.bf16.gmra.mrb[0].mxu0 %v2070
      %v2335 = vpop.f32.mrb[0].mxu0
      %v2336 = vadd.f32 %v2129, %v2335
      %v2337 = vpop.f32.mrb[0].mxu0
      %v2338 = vpop.f32.mrb[0].mxu0
      %v2339 = vadd.f32 %v2129, %v2338
      %v2340 = vpop.f32.mrb[0].mxu0
      %2341 = vmatprep.mubr.bf16.mxu0 %v2074
      %2342 = vmatmul.mubr.bf16.gmra.mrb[0].mxu0 %v2073
      %v2343 = vpop.f32.mrb[0].mxu0
      %v2344 = vadd.f32 %v2129, %v2343
      %v2345 = vpop.f32.mrb[0].mxu0
      %v2346 = vpop.f32.mrb[0].mxu0
      %v2347 = vadd.f32 %v2129, %v2346
      %v2348 = vpop.f32.mrb[0].mxu0
      %2349 = vmatprep.mubr.bf16.mxu0 %v2077
      %2350 = vmatmul.mubr.bf16.gmra.mrb[0].mxu0 %v2076
      %v2351 = vpop.f32.mrb[0].mxu0
      %v2352 = vadd.f32 %v2129, %v2351
      %v2353 = vpop.f32.mrb[0].mxu0
      %v2354 = vpop.f32.mrb[0].mxu0
      %v2355 = vadd.f32 %v2129, %v2354
      %v2356 = vpop.f32.mrb[0].mxu0
      %2357 = vmatprep.mubr.bf16.mxu0 %v2080
      %2358 = vmatmul.mubr.bf16.gmra.mrb[0].mxu0 %v2079
      %v2359 = vpop.f32.mrb[0].mxu0
      %v2360 = vadd.f32 %v2129, %v2359
      %v2361 = vpop.f32.mrb[0].mxu0
      %v2362 = vpop.f32.mrb[0].mxu0
      %v2363 = vadd.f32 %v2129, %v2362
      %v2364 = vpop.f32.mrb[0].mxu0
      %2365 = vmatprep.mubr.bf16.mxu0 %v2083
      %2366 = vmatmul.mubr.bf16.gmra.mrb[0].mxu0 %v2082
      %v2367 = vpop.f32.mrb[0].mxu0
      %v2368 = vadd.f32 %v2129, %v2367
      %v2369 = vpop.f32.mrb[0].mxu0
      %v2370 = vpop.f32.mrb[0].mxu0
      %v2371 = vadd.f32 %v2129, %v2370
      %v2372 = vpop.f32.mrb[0].mxu0
      %2373 = vmatprep.mubr.bf16.mxu0 %v2086
      %2374 = vmatmul.mubr.bf16.gmra.mrb[0].mxu0 %v2085
      %v2375 = vpop.f32.mrb[0].mxu0
      %v2376 = vadd.f32 %v2129, %v2375
      %v2377 = vpop.f32.mrb[0].mxu0
      %v2378 = vpop.f32.mrb[0].mxu0
      %v2379 = vadd.f32 %v2129, %v2378
      %v2380 = vpop.f32.mrb[0].mxu0
      %2381 = vdwg.mxu0
      %2382 = vmatprep.subr.bf16.mxu0 0
      %2383 = vmatpush1.bf16.msra.mxu0 %v2219
      %2384 = vmatprep.subr.bf16.mxu0 0
      %2385 = vmatpush1.bf16.msra.mxu0 %v2220
      %2386 = vmatprep.subr.bf16.mxu0 0
      %2387 = vmatpush1.bf16.msra.mxu0 0
      %2388 = vmatprep.subr.bf16.mxu0 0
      %2389 = vmatpush1.bf16.msra.mxu0 0
      %2390 = vmatprep.subr.bf16.mxu0 0
      %2391 = vmatpush1.bf16.msra.mxu0 0
      %2392 = vmatprep.subr.bf16.mxu0 0
      %2393 = vmatpush1.bf16.msra.mxu0 0
      %2394 = vmatprep.subr.bf16.mxu0 0
      %2395 = vmatpush1.bf16.msra.mxu0 0
      %2396 = vmatprep.subr.bf16.mxu0 0
      %2397 = vmatpush1.bf16.msra.mxu0 0
      %2398 = vmatprep.subr.bf16.mxu0 0
      %2399 = vmatpush1.bf16.msra.mxu0 0
      %2400 = vmatprep.subr.bf16.mxu0 0
      %2401 = vmatpush1.bf16.msra.mxu0 0
      %2402 = vmatprep.subr.bf16.mxu0 0
      %2403 = vmatpush1.bf16.msra.mxu0 0
      %2404 = vmatprep.subr.bf16.mxu0 0
      %2405 = vmatpush1.bf16.msra.mxu0 0
      %2406 = vmatprep.subr.bf16.mxu0 0
      %2407 = vmatpush1.bf16.msra.mxu0 0
      %2408 = vmatprep.subr.bf16.mxu0 0
      %2409 = vmatpush1.bf16.msra.mxu0 0
      %2410 = vmatprep.subr.bf16.mxu0 0
      %2411 = vmatpush1.bf16.msra.mxu0 0
      %2412 = vmatprep.subr.bf16.mxu0 0
      %2413 = vmatpush1.bf16.msra.mxu0 0
      %2414 = vmatprep.mubr.bf16.mxu0 0
      %2415 = vmatmul.mubr.bf16.gmra.mrb[0].mxu0 %v2240
      %v2416 = vpop.f32.mrb[0].mxu0
      %v2417 = vadd.f32 %v2304, %v2416
      %v2418 = vpop.f32.mrb[0].mxu0
      %v2419 = vpop.f32.mrb[0].mxu0
      %v2420 = vadd.f32 %v2307, %v2419
      %v2421 = vpop.f32.mrb[0].mxu0
      %2422 = vmatprep.mubr.bf16.mxu0 0
      %2423 = vmatmul.mubr.bf16.gmra.mrb[0].mxu0 %v2243
      %v2424 = vpop.f32.mrb[0].mxu0
      %v2425 = vadd.f32 %v2312, %v2424
      %v2426 = vpop.f32.mrb[0].mxu0
      %v2427 = vpop.f32.mrb[0].mxu0
      %v2428 = vadd.f32 %v2315, %v2427
      %v2429 = vpop.f32.mrb[0].mxu0
      %2430 = vmatprep.mubr.bf16.mxu0 0
      %2431 = vmatmul.mubr.bf16.gmra.mrb[0].mxu0 %v2246
      %v2432 = vpop.f32.mrb[0].mxu0
      %v2433 = vadd.f32 %v2320, %v2432
      %v2434 = vpop.f32.mrb[0].mxu0
      %v2435 = vpop.f32.mrb[0].mxu0
      %v2436 = vadd.f32 %v2323, %v2435
      %v2437 = vpop.f32.mrb[0].mxu0
      %2438 = vmatprep.mubr.bf16.mxu0 0
      %2439 = vmatmul.mubr.bf16.gmra.mrb[0].mxu0 %v2249
      %v2440 = vpop.f32.mrb[0].mxu0
      %v2441 = vadd.f32 %v2328, %v2440
      %v2442 = vpop.f32.mrb[0].mxu0
      %v2443 = vpop.f32.mrb[0].mxu0
      %v2444 = vadd.f32 %v2331, %v2443
      %v2445 = vpop.f32.mrb[0].mxu0
      %2446 = vmatprep.mubr.bf16.mxu0 0
      %2447 = vmatmul.mubr.bf16.gmra.mrb[0].mxu0 %v2252
      %v2448 = vpop.f32.mrb[0].mxu0
      %v2449 = vadd.f32 %v2336, %v2448
      %v2450 = vpop.f32.mrb[0].mxu0
      %v2451 = vpop.f32.mrb[0].mxu0
      %v2452 = vadd.f32 %v2339, %v2451
      %v2453 = vpop.f32.mrb[0].mxu0
      %2454 = vmatprep.mubr.bf16.mxu0 0
      %2455 = vmatmul.mubr.bf16.gmra.mrb[0].mxu0 %v2255
      %v2456 = vpop.f32.mrb[0].mxu0
      %v2457 = vadd.f32 %v2344, %v2456
      %v2458 = vpop.f32.mrb[0].mxu0
      %v2459 = vpop.f32.mrb[0].mxu0
      %v2460 = vadd.f32 %v2347, %v2459
      %v2461 = vpop.f32.mrb[0].mxu0
      %2462 = vmatprep.mubr.bf16.mxu0 0
      %2463 = vmatmul.mubr.bf16.gmra.mrb[0].mxu0 %v2258
      %v2464 = vpop.f32.mrb[0].mxu0
      %v2465 = vadd.f32 %v2352, %v2464
      %v2466 = vpop.f32.mrb[0].mxu0
      %v2467 = vpop.f32.mrb[0].mxu0
      %v2468 = vadd.f32 %v2355, %v2467
      %v2469 = vpop.f32.mrb[0].mxu0
      %2470 = vmatprep.mubr.bf16.mxu0 0
      %2471 = vmatmul.mubr.bf16.gmra.mrb[0].mxu0 %v2261
      %v2472 = vpop.f32.mrb[0].mxu0
      %v2473 = vadd.f32 %v2360, %v2472
      %v2474 = vpop.f32.mrb[0].mxu0
      %v2475 = vpop.f32.mrb[0].mxu0
      %v2476 = vadd.f32 %v2363, %v2475
      %v2477 = vpop.f32.mrb[0].mxu0
      %2478 = vmatprep.mubr.bf16.mxu0 0
      %2479 = vmatmul.mubr.bf16.gmra.mrb[0].mxu0 %v2264
      %v2480 = vpop.f32.mrb[0].mxu0
      %v2481 = vadd.f32 %v2368, %v2480
      %v2482 = vpop.f32.mrb[0].mxu0
      %v2483 = vpop.f32.mrb[0].mxu0
      %v2484 = vadd.f32 %v2371, %v2483
      %v2485 = vpop.f32.mrb[0].mxu0
      %2486 = vmatprep.mubr.bf16.mxu0 0
      %2487 = vmatmul.mubr.bf16.gmra.mrb[0].mxu0 %v2267
      %v2488 = vpop.f32.mrb[0].mxu0
      %v2489 = vadd.f32 %v2376, %v2488
      %v2490 = vpop.f32.mrb[0].mxu0
      %v2491 = vpop.f32.mrb[0].mxu0
      %v2492 = vadd.f32 %v2379, %v2491
      %v2493 = vpop.f32.mrb[0].mxu0
      %2494 = vdwg.mxu0
      %v2495 = vmax.f32 %v2417, 0.0
      %v2496 = vmax.f32 %v2420, 0.0
      %v2497 = vmax.f32 %v2425, 0.0
      %v2498 = vmax.f32 %v2428, 0.0
      %v2499 = vmax.f32 %v2433, 0.0
      %v2500 = vmax.f32 %v2436, 0.0
      %v2501 = vmax.f32 %v2441, 0.0
      %v2502 = vmax.f32 %v2444, 0.0
      %v2503 = vmax.f32 %v2449, 0.0
      %v2504 = vmax.f32 %v2452, 0.0
      %v2505 = vmax.f32 %v2457, 0.0
      %v2506 = vmax.f32 %v2460, 0.0
      %v2507 = vmax.f32 %v2465, 0.0
      %v2508 = vmax.f32 %v2468, 0.0
      %v2509 = vmax.f32 %v2473, 0.0
      %v2510 = vmax.f32 %v2476, 0.0
      %v2511 = vmax.f32 %v2481, 0.0
      %v2512 = vmax.f32 %v2484, 0.0
      %v2513 = vmax.f32 %v2489, 0.0
      %v2514 = vmax.f32 %v2492, 0.0
      %v2515 = vld [vmem:[#allocation2 + $0xb1] sm:$0xff]
      %v2516 = vld [vmem:[#allocation2 + $0xb9] sm:$0xff]
      %v2517 = vld [vmem:[#allocation2 + $0xc1] sm:$0xff]
      %v2518 = vld [vmem:[#allocation2 + $0xc9] sm:$0xff]
      %v2519 = vld [vmem:[#allocation2 + $0xd1] sm:$0xff]
      %v2520 = vld [vmem:[#allocation2 + $0xd9] sm:$0xff]
      %v2521 = vld [vmem:[#allocation2 + $0xe1] sm:$0xff]
      %v2522 = vld [vmem:[#allocation2 + $0xe9] sm:$0xff]
      %v2523 = vld [vmem:[#allocation2 + $0xf1] sm:$0xff]
      %v2524 = vld [vmem:[#allocation2 + $0xf9] sm:$0xff]
      %v2525 = vld [vmem:[#allocation2 + $0x101] sm:$0xff]
      %v2526 = vld [vmem:[#allocation2 + $0x109] sm:$0xff]
      %v2527 = vld [vmem:[#allocation2 + $0x111] sm:$0xff]
      %v2528 = vld [vmem:[#allocation2 + $0x119] sm:$0xff]
      %v2529 = vld [vmem:[#allocation2 + $0x121] sm:$0xff]
      %v2530 = vld [vmem:[#allocation2 + $0x129] sm:$0xff]
      %v2531 = vld [vmem:[#allocation2 + $0x131] sm:$0xff]
      %v2532 = vld [vmem:[#allocation2 + $0x139] sm:$0xff]
      %v2533 = vld [vmem:[#allocation2 + $0x141] sm:$0xff]
      %v2534 = vld [vmem:[#allocation2 + $0x149] sm:$0xf]
      %v2535 = vld [vmem:[#allocation2 + $0x211] sm:$0xff]
      %v2536 = vld [vmem:[#allocation2 + $0x219] sm:$0xff]
      %v2537 = vld [vmem:[#allocation2 + $0x221] sm:$0xff]
      %v2538 = vld [vmem:[#allocation2 + $0x229] sm:$0xff]
      %v2539 = vld [vmem:[#allocation2 + $0x231] sm:$0xff]
      %v2540 = vld [vmem:[#allocation2 + $0x239] sm:$0xff]
      %v2541 = vld [vmem:[#allocation2 + $0x241] sm:$0xff]
      %v2542 = vld [vmem:[#allocation2 + $0x249] sm:$0xff]
      %v2543 = vld [vmem:[#allocation2 + $0x251] sm:$0xff]
      %v2544 = vld [vmem:[#allocation2 + $0x259] sm:$0xff]
      %v2545 = vld [vmem:[#allocation2 + $0x261] sm:$0xff]
      %v2546 = vld [vmem:[#allocation2 + $0x269] sm:$0xff]
      %v2547 = vld [vmem:[#allocation2 + $0x271] sm:$0xff]
      %v2548 = vld [vmem:[#allocation2 + $0x279] sm:$0xff]
      %v2549 = vld [vmem:[#allocation2 + $0x281] sm:$0xff]
      %v2550 = vld [vmem:[#allocation2 + $0x289] sm:$0xff]
      %v2551 = vld [vmem:[#allocation2 + $0x291] sm:$0xff]
      %v2552 = vld [vmem:[#allocation2 + $0x299] sm:$0xff]
      %v2553 = vld [vmem:[#allocation2 + $0x2a1] sm:$0xff]
      %v2554 = vld [vmem:[#allocation2 + $0x2a9] sm:$0xf]
      %v2555 = vld [vmem:[#allocation2 + $0xbe] sm:$0xff]
      %v2556 = vld [vmem:[#allocation2 + $0xc6] sm:$0xff]
      %v2557 = vld [vmem:[#allocation2 + $0xce] sm:$0xff]
      %v2558 = vld [vmem:[#allocation2 + $0xd6] sm:$0xff]
      %v2559 = vld [vmem:[#allocation2 + $0xde] sm:$0xff]
      %v2560 = vld [vmem:[#allocation2 + $0xe6] sm:$0xff]
      %v2561 = vld [vmem:[#allocation2 + $0xee] sm:$0xff]
      %v2562 = vld [vmem:[#allocation2 + $0xf6] sm:$0xff]
      %v2563 = vld [vmem:[#allocation2 + $0xfe] sm:$0xff]
      %v2564 = vld [vmem:[#allocation2 + $0x106] sm:$0xff]
      %v2565 = vld [vmem:[#allocation2 + $0x10e] sm:$0xff]
      %v2566 = vld [vmem:[#allocation2 + $0x116] sm:$0xff]
      %v2567 = vld [vmem:[#allocation2 + $0x11e] sm:$0xff]
      %v2568 = vld [vmem:[#allocation2 + $0x126] sm:$0xff]
      %v2569 = vld [vmem:[#allocation2 + $0x12e] sm:$0xff]
      %v2570 = vld [vmem:[#allocation2 + $0x136] sm:$0xff]
      %v2571 = vld [vmem:[#allocation2 + $0x13e] sm:$0xff]
      %v2572 = vld [vmem:[#allocation2 + $0x146] sm:$0xff]
      %v2573 = vld [vmem:[#allocation2 + $0x14e] sm:$0xff]
      %v2574 = vld [vmem:[#allocation2 + $0x156] sm:$0xf]
      %2575 = vrot.lane.b32.xlu0 %v1316, 32
      %v2576 = vpop.permute.xlu0 %2575
      %2577 = vrot.lane.b32.xlu0 %v1317, 32
      %v2578 = vpop.permute.xlu0 %2577
      %2579 = vrot.lane.b32.xlu0 %v1318, 32
      %v2580 = vpop.permute.xlu0 %2579
      %2581 = vrot.lane.b32.xlu0 %v1319, 32
      %v2582 = vpop.permute.xlu0 %2581
      %2583 = vrot.lane.b32.xlu0 %v1320, 32
      %v2584 = vpop.permute.xlu0 %2583
      %2585 = vrot.lane.b32.xlu0 %v1321, 32
      %v2586 = vpop.permute.xlu0 %2585
      %2587 = vrot.lane.b32.xlu0 %v1322, 32
      %v2588 = vpop.permute.xlu0 %2587
      %2589 = vrot.lane.b32.xlu0 %v1323, 32
      %v2590 = vpop.permute.xlu0 %2589
      %2591 = vrot.lane.b32.xlu0 %v1324, 32
      %v2592 = vpop.permute.xlu0 %2591
      %2593 = vrot.lane.b32.xlu0 %v1325, 32
      %v2594 = vpop.permute.xlu0 %2593
      %2595 = vrot.lane.b32.xlu0 %v1326, 32
      %v2596 = vpop.permute.xlu0 %2595
      %2597 = vrot.lane.b32.xlu0 %v1327, 32
      %v2598 = vpop.permute.xlu0 %2597
      %2599 = vrot.lane.b32.xlu0 %v1328, 32
      %v2600 = vpop.permute.xlu0 %2599
      %2601 = vrot.lane.b32.xlu0 %v1329, 32
      %v2602 = vpop.permute.xlu0 %2601
      %2603 = vrot.lane.b32.xlu0 %v1330, 32
      %v2604 = vpop.permute.xlu0 %2603
      %2605 = vrot.lane.b32.xlu0 %v1331, 32
      %v2606 = vpop.permute.xlu0 %2605
      %2607 = vrot.lane.b32.xlu0 %v1332, 32
      %v2608 = vpop.permute.xlu0 %2607
      %2609 = vrot.lane.b32.xlu0 %v1333, 32
      %v2610 = vpop.permute.xlu0 %2609
      %2611 = vrot.lane.b32.xlu0 %v1334, 32
      %v2612 = vpop.permute.xlu0 %2611
      %2613 = vrot.lane.b32.xlu0 %v1335, 32
      %v2614 = vpop.permute.xlu0 %2613
      %2655 = vrot.lane.b32.xlu0 %v2515, 64
      %v2656 = vpop.permute.xlu0 %2655
      %2657 = vrot.lane.b32.xlu0 %v2516, 64
      %v2658 = vpop.permute.xlu0 %2657
      %2659 = vrot.lane.b32.xlu0 %v2517, 64
      %v2660 = vpop.permute.xlu0 %2659
      %2661 = vrot.lane.b32.xlu0 %v2518, 64
      %v2662 = vpop.permute.xlu0 %2661
      %2663 = vrot.lane.b32.xlu0 %v2519, 64
      %v2664 = vpop.permute.xlu0 %2663
      %2665 = vrot.lane.b32.xlu0 %v2520, 64
      %v2666 = vpop.permute.xlu0 %2665
      %2667 = vrot.lane.b32.xlu0 %v2521, 64
      %v2668 = vpop.permute.xlu0 %2667
      %2669 = vrot.lane.b32.xlu0 %v2522, 64
      %v2670 = vpop.permute.xlu0 %2669
      %2671 = vrot.lane.b32.xlu0 %v2523, 64
      %v2672 = vpop.permute.xlu0 %2671
      %2673 = vrot.lane.b32.xlu0 %v2524, 64
      %v2674 = vpop.permute.xlu0 %2673
      %2675 = vrot.lane.b32.xlu0 %v2525, 64
      %v2676 = vpop.permute.xlu0 %2675
      %2677 = vrot.lane.b32.xlu0 %v2526, 64
      %v2678 = vpop.permute.xlu0 %2677
      %2679 = vrot.lane.b32.xlu0 %v2527, 64
      %v2680 = vpop.permute.xlu0 %2679
      %2681 = vrot.lane.b32.xlu0 %v2528, 64
      %v2682 = vpop.permute.xlu0 %2681
      %2683 = vrot.lane.b32.xlu0 %v2529, 64
      %v2684 = vpop.permute.xlu0 %2683
      %2685 = vrot.lane.b32.xlu0 %v2530, 64
      %v2686 = vpop.permute.xlu0 %2685
      %2687 = vrot.lane.b32.xlu0 %v2531, 64
      %v2688 = vpop.permute.xlu0 %2687
      %2689 = vrot.lane.b32.xlu0 %v2532, 64
      %v2690 = vpop.permute.xlu0 %2689
      %2691 = vrot.lane.b32.xlu0 %v2533, 64
      %v2692 = vpop.permute.xlu0 %2691
      %2693 = vrot.lane.b32.xlu0 %v2534, 64
      %v2694 = vpop.permute.xlu0 %2693
      %2735 = vrot.lane.b32.xlu0 %v1356, 96
      %v2736 = vpop.permute.xlu0 %2735
      %2737 = vrot.lane.b32.xlu0 %v1357, 96
      %v2738 = vpop.permute.xlu0 %2737
      %2739 = vrot.lane.b32.xlu0 %v1358, 96
      %v2740 = vpop.permute.xlu0 %2739
      %2741 = vrot.lane.b32.xlu0 %v1359, 96
      %v2742 = vpop.permute.xlu0 %2741
      %2743 = vrot.lane.b32.xlu0 %v1360, 96
      %v2744 = vpop.permute.xlu0 %2743
      %2745 = vrot.lane.b32.xlu0 %v1361, 96
      %v2746 = vpop.permute.xlu0 %2745
      %2747 = vrot.lane.b32.xlu0 %v1362, 96
      %v2748 = vpop.permute.xlu0 %2747
      %2749 = vrot.lane.b32.xlu0 %v1363, 96
      %v2750 = vpop.permute.xlu0 %2749
      %2751 = vrot.lane.b32.xlu0 %v1364, 96
      %v2752 = vpop.permute.xlu0 %2751
      %2753 = vrot.lane.b32.xlu0 %v1365, 96
      %v2754 = vpop.permute.xlu0 %2753
      %2755 = vrot.lane.b32.xlu0 %v1366, 96
      %v2756 = vpop.permute.xlu0 %2755
      %2757 = vrot.lane.b32.xlu0 %v1367, 96
      %v2758 = vpop.permute.xlu0 %2757
      %2759 = vrot.lane.b32.xlu0 %v1368, 96
      %v2760 = vpop.permute.xlu0 %2759
      %2761 = vrot.lane.b32.xlu0 %v1369, 96
      %v2762 = vpop.permute.xlu0 %2761
      %2763 = vrot.lane.b32.xlu0 %v1370, 96
      %v2764 = vpop.permute.xlu0 %2763
      %2765 = vrot.lane.b32.xlu0 %v1371, 96
      %v2766 = vpop.permute.xlu0 %2765
      %2767 = vrot.lane.b32.xlu0 %v1372, 96
      %v2768 = vpop.permute.xlu0 %2767
      %2769 = vrot.lane.b32.xlu0 %v1373, 96
      %v2770 = vpop.permute.xlu0 %2769
      %2771 = vrot.lane.b32.xlu0 %v1374, 96
      %v2772 = vpop.permute.xlu0 %2771
      %2773 = vrot.lane.b32.xlu0 %v1375, 96
      %v2774 = vpop.permute.xlu0 %2773
      %2815 = vrot.lane.b32.xlu0 %v2535, 32
      %v2816 = vpop.permute.xlu0 %2815
      %2817 = vrot.lane.b32.xlu0 %v2536, 32
      %v2818 = vpop.permute.xlu0 %2817
      %2819 = vrot.lane.b32.xlu0 %v2537, 32
      %v2820 = vpop.permute.xlu0 %2819
      %2821 = vrot.lane.b32.xlu0 %v2538, 32
      %v2822 = vpop.permute.xlu0 %2821
      %2823 = vrot.lane.b32.xlu0 %v2539, 32
      %v2824 = vpop.permute.xlu0 %2823
      %2825 = vrot.lane.b32.xlu0 %v2540, 32
      %v2826 = vpop.permute.xlu0 %2825
      %2827 = vrot.lane.b32.xlu0 %v2541, 32
      %v2828 = vpop.permute.xlu0 %2827
      %2829 = vrot.lane.b32.xlu0 %v2542, 32
      %v2830 = vpop.permute.xlu0 %2829
      %2831 = vrot.lane.b32.xlu0 %v2543, 32
      %v2832 = vpop.permute.xlu0 %2831
      %2833 = vrot.lane.b32.xlu0 %v2544, 32
      %v2834 = vpop.permute.xlu0 %2833
      %2835 = vrot.lane.b32.xlu0 %v2545, 32
      %v2836 = vpop.permute.xlu0 %2835
      %2837 = vrot.lane.b32.xlu0 %v2546, 32
      %v2838 = vpop.permute.xlu0 %2837
      %2839 = vrot.lane.b32.xlu0 %v2547, 32
      %v2840 = vpop.permute.xlu0 %2839
      %2841 = vrot.lane.b32.xlu0 %v2548, 32
      %v2842 = vpop.permute.xlu0 %2841
      %2843 = vrot.lane.b32.xlu0 %v2549, 32
      %v2844 = vpop.permute.xlu0 %2843
      %2845 = vrot.lane.b32.xlu0 %v2550, 32
      %v2846 = vpop.permute.xlu0 %2845
      %2847 = vrot.lane.b32.xlu0 %v2551, 32
      %v2848 = vpop.permute.xlu0 %2847
      %2849 = vrot.lane.b32.xlu0 %v2552, 32
      %v2850 = vpop.permute.xlu0 %2849
      %2851 = vrot.lane.b32.xlu0 %v2553, 32
      %v2852 = vpop.permute.xlu0 %2851
      %2853 = vrot.lane.b32.xlu0 %v2554, 32
      %v2854 = vpop.permute.xlu0 %2853
      %2875 = vrot.lane.b32.xlu0 %v1416, 64
      %v2876 = vpop.permute.xlu0 %2875
      %2877 = vrot.lane.b32.xlu0 %v1417, 64
      %v2878 = vpop.permute.xlu0 %2877
      %2879 = vrot.lane.b32.xlu0 %v1418, 64
      %v2880 = vpop.permute.xlu0 %2879
      %2881 = vrot.lane.b32.xlu0 %v1419, 64
      %v2882 = vpop.permute.xlu0 %2881
      %2883 = vrot.lane.b32.xlu0 %v1420, 64
      %v2884 = vpop.permute.xlu0 %2883
      %2885 = vrot.lane.b32.xlu0 %v1421, 64
      %v2886 = vpop.permute.xlu0 %2885
      %2887 = vrot.lane.b32.xlu0 %v1422, 64
      %v2888 = vpop.permute.xlu0 %2887
      %2889 = vrot.lane.b32.xlu0 %v1423, 64
      %v2890 = vpop.permute.xlu0 %2889
      %2891 = vrot.lane.b32.xlu0 %v1424, 64
      %v2892 = vpop.permute.xlu0 %2891
      %2893 = vrot.lane.b32.xlu0 %v1425, 64
      %v2894 = vpop.permute.xlu0 %2893
      %2895 = vrot.lane.b32.xlu0 %v1426, 64
      %v2896 = vpop.permute.xlu0 %2895
      %2897 = vrot.lane.b32.xlu0 %v1427, 64
      %v2898 = vpop.permute.xlu0 %2897
      %2899 = vrot.lane.b32.xlu0 %v1428, 64
      %v2900 = vpop.permute.xlu0 %2899
      %2901 = vrot.lane.b32.xlu0 %v1429, 64
      %v2902 = vpop.permute.xlu0 %2901
      %2903 = vrot.lane.b32.xlu0 %v1430, 64
      %v2904 = vpop.permute.xlu0 %2903
      %2905 = vrot.lane.b32.xlu0 %v1431, 64
      %v2906 = vpop.permute.xlu0 %2905
      %2907 = vrot.lane.b32.xlu0 %v1432, 64
      %v2908 = vpop.permute.xlu0 %2907
      %2909 = vrot.lane.b32.xlu0 %v1433, 64
      %v2910 = vpop.permute.xlu0 %2909
      %2911 = vrot.lane.b32.xlu0 %v1434, 64
      %v2912 = vpop.permute.xlu0 %2911
      %2913 = vrot.lane.b32.xlu0 %v1435, 64
      %v2914 = vpop.permute.xlu0 %2913
      %2955 = vrot.lane.b32.xlu0 %v1436, 96
      %v2956 = vpop.permute.xlu0 %2955
      %2957 = vrot.lane.b32.xlu0 %v1437, 96
      %v2958 = vpop.permute.xlu0 %2957
      %2959 = vrot.lane.b32.xlu0 %v1438, 96
      %v2960 = vpop.permute.xlu0 %2959
      %2961 = vrot.lane.b32.xlu0 %v1439, 96
      %v2962 = vpop.permute.xlu0 %2961
      %2963 = vrot.lane.b32.xlu0 %v1440, 96
      %v2964 = vpop.permute.xlu0 %2963
      %2965 = vrot.lane.b32.xlu0 %v1441, 96
      %v2966 = vpop.permute.xlu0 %2965
      %2967 = vrot.lane.b32.xlu0 %v1442, 96
      %v2968 = vpop.permute.xlu0 %2967
      %2969 = vrot.lane.b32.xlu0 %v1443, 96
      %v2970 = vpop.permute.xlu0 %2969
      %2971 = vrot.lane.b32.xlu0 %v1444, 96
      %v2972 = vpop.permute.xlu0 %2971
      %2973 = vrot.lane.b32.xlu0 %v1445, 96
      %v2974 = vpop.permute.xlu0 %2973
      %2975 = vrot.lane.b32.xlu0 %v1446, 96
      %v2976 = vpop.permute.xlu0 %2975
      %2977 = vrot.lane.b32.xlu0 %v1447, 96
      %v2978 = vpop.permute.xlu0 %2977
      %2979 = vrot.lane.b32.xlu0 %v1448, 96
      %v2980 = vpop.permute.xlu0 %2979
      %2981 = vrot.lane.b32.xlu0 %v1449, 96
      %v2982 = vpop.permute.xlu0 %2981
      %2983 = vrot.lane.b32.xlu0 %v1450, 96
      %v2984 = vpop.permute.xlu0 %2983
      %2985 = vrot.lane.b32.xlu0 %v1451, 96
      %v2986 = vpop.permute.xlu0 %2985
      %2987 = vrot.lane.b32.xlu0 %v1452, 96
      %v2988 = vpop.permute.xlu0 %2987
      %2989 = vrot.lane.b32.xlu0 %v1453, 96
      %v2990 = vpop.permute.xlu0 %2989
      %2991 = vrot.lane.b32.xlu0 %v1454, 96
      %v2992 = vpop.permute.xlu0 %2991
      %2993 = vrot.lane.b32.xlu0 %v1455, 96
      %v2994 = vpop.permute.xlu0 %2993
      %v3015 = vsel %vm1187, %v1296, %v2576
      %v3016 = vsel %vm1187, %v1297, %v2578
      %v3017 = vsel %vm1187, %v1298, %v2580
      %v3018 = vsel %vm1187, %v1299, %v2582
      %v3019 = vsel %vm1187, %v1300, %v2584
      %v3020 = vsel %vm1187, %v1301, %v2586
      %v3021 = vsel %vm1187, %v1302, %v2588
      %v3022 = vsel %vm1187, %v1303, %v2590
      %v3023 = vsel %vm1187, %v1304, %v2592
      %v3024 = vsel %vm1187, %v1305, %v2594
      %v3025 = vsel %vm1187, %v1306, %v2596
      %v3026 = vsel %vm1187, %v1307, %v2598
      %v3027 = vsel %vm1187, %v1308, %v2600
      %v3028 = vsel %vm1187, %v1309, %v2602
      %v3029 = vsel %vm1187, %v1310, %v2604
      %v3030 = vsel %vm1187, %v1311, %v2606
      %v3031 = vsel %vm1187, %v1312, %v2608
      %v3032 = vsel %vm1187, %v1313, %v2610
      %v3033 = vsel %vm1187, %v1314, %v2612
      %v3034 = vsel %vm1187, %v1315, %v2614
      %v3035 = vsel %vm1956, %v3015, %v2656
      %v3036 = vsel %vm1956, %v3016, %v2658
      %v3037 = vsel %vm1956, %v3017, %v2660
      %v3038 = vsel %vm1956, %v3018, %v2662
      %v3039 = vsel %vm1956, %v3019, %v2664
      %v3040 = vsel %vm1956, %v3020, %v2666
      %v3041 = vsel %vm1956, %v3021, %v2668
      %v3042 = vsel %vm1956, %v3022, %v2670
      %v3043 = vsel %vm1956, %v3023, %v2672
      %v3044 = vsel %vm1956, %v3024, %v2674
      %v3045 = vsel %vm1956, %v3025, %v2676
      %v3046 = vsel %vm1956, %v3026, %v2678
      %v3047 = vsel %vm1956, %v3027, %v2680
      %v3048 = vsel %vm1956, %v3028, %v2682
      %v3049 = vsel %vm1956, %v3029, %v2684
      %v3050 = vsel %vm1956, %v3030, %v2686
      %v3051 = vsel %vm1956, %v3031, %v2688
      %v3052 = vsel %vm1956, %v3032, %v2690
      %v3053 = vsel %vm1956, %v3033, %v2692
      %v3054 = vsel %vm1956, %v3034, %v2694
      %v3055 = vsel %vm1977, %v3035, %v2736
      %v3056 = vsel %vm1977, %v3036, %v2738
      %v3057 = vsel %vm1977, %v3037, %v2740
      %v3058 = vsel %vm1977, %v3038, %v2742
      %v3059 = vsel %vm1977, %v3039, %v2744
      %v3060 = vsel %vm1977, %v3040, %v2746
      %v3061 = vsel %vm1977, %v3041, %v2748
      %v3062 = vsel %vm1977, %v3042, %v2750
      %v3063 = vsel %vm1977, %v3043, %v2752
      %v3064 = vsel %vm1977, %v3044, %v2754
      %v3065 = vsel %vm1977, %v3045, %v2756
      %v3066 = vsel %vm1977, %v3046, %v2758
      %v3067 = vsel %vm1977, %v3047, %v2760
      %v3068 = vsel %vm1977, %v3048, %v2762
      %v3069 = vsel %vm1977, %v3049, %v2764
      %v3070 = vsel %vm1977, %v3050, %v2766
      %v3071 = vsel %vm1977, %v3051, %v2768
      %v3072 = vsel %vm1977, %v3052, %v2770
      %v3073 = vsel %vm1977, %v3053, %v2772
      %v3074 = vsel %vm1977, %v3054, %v2774
      %v3075 = vsel %vm1187, %v1376, %v2816
      %v3076 = vsel %vm1187, %v1377, %v2818
      %v3077 = vsel %vm1187, %v1378, %v2820
      %v3078 = vsel %vm1187, %v1379, %v2822
      %v3079 = vsel %vm1187, %v1380, %v2824
      %v3080 = vsel %vm1187, %v1381, %v2826
      %v3081 = vsel %vm1187, %v1382, %v2828
      %v3082 = vsel %vm1187, %v1383, %v2830
      %v3083 = vsel %vm1187, %v1384, %v2832
      %v3084 = vsel %vm1187, %v1385, %v2834
      %v3085 = vsel %vm1187, %v1386, %v2836
      %v3086 = vsel %vm1187, %v1387, %v2838
      %v3087 = vsel %vm1187, %v1388, %v2840
      %v3088 = vsel %vm1187, %v1389, %v2842
      %v3089 = vsel %vm1187, %v1390, %v2844
      %v3090 = vsel %vm1187, %v1391, %v2846
      %v3091 = vsel %vm1187, %v1392, %v2848
      %v3092 = vsel %vm1187, %v1393, %v2850
      %v3093 = vsel %vm1187, %v1394, %v2852
      %v3094 = vsel %vm1187, %v1395, %v2854
      %v3095 = vsel %vm1956, %v3075, %v2876
      %v3096 = vsel %vm1956, %v3076, %v2878
      %v3097 = vsel %vm1956, %v3077, %v2880
      %v3098 = vsel %vm1956, %v3078, %v2882
      %v3099 = vsel %vm1956, %v3079, %v2884
      %v3100 = vsel %vm1956, %v3080, %v2886
      %v3101 = vsel %vm1956, %v3081, %v2888
      %v3102 = vsel %vm1956, %v3082, %v2890
      %v3103 = vsel %vm1956, %v3083, %v2892
      %v3104 = vsel %vm1956, %v3084, %v2894
      %v3105 = vsel %vm1956, %v3085, %v2896
      %v3106 = vsel %vm1956, %v3086, %v2898
      %v3107 = vsel %vm1956, %v3087, %v2900
      %v3108 = vsel %vm1956, %v3088, %v2902
      %v3109 = vsel %vm1956, %v3089, %v2904
      %v3110 = vsel %vm1956, %v3090, %v2906
      %v3111 = vsel %vm1956, %v3091, %v2908
      %v3112 = vsel %vm1956, %v3092, %v2910
      %v3113 = vsel %vm1956, %v3093, %v2912
      %v3114 = vsel %vm1956, %v3094, %v2914
      %v3115 = vsel %vm1977, %v3095, %v2956
      %v3116 = vsel %vm1977, %v3096, %v2958
      %v3117 = vsel %vm1977, %v3097, %v2960
      %v3118 = vsel %vm1977, %v3098, %v2962
      %v3119 = vsel %vm1977, %v3099, %v2964
      %v3120 = vsel %vm1977, %v3100, %v2966
      %v3121 = vsel %vm1977, %v3101, %v2968
      %v3122 = vsel %vm1977, %v3102, %v2970
      %v3123 = vsel %vm1977, %v3103, %v2972
      %v3124 = vsel %vm1977, %v3104, %v2974
      %v3125 = vsel %vm1977, %v3105, %v2976
      %v3126 = vsel %vm1977, %v3106, %v2978
      %v3127 = vsel %vm1977, %v3107, %v2980
      %v3128 = vsel %vm1977, %v3108, %v2982
      %v3129 = vsel %vm1977, %v3109, %v2984
      %v3130 = vsel %vm1977, %v3110, %v2986
      %v3131 = vsel %vm1977, %v3111, %v2988
      %v3132 = vsel %vm1977, %v3112, %v2990
      %v3133 = vsel %vm1977, %v3113, %v2992
      %v3134 = vsel %vm1977, %v3114, %v2994
      %v3135 = vpack.c.bf16 %v3056, %v3055
      %v3136 = vpack.c.bf16 %v3116, %v3115
      %v3137 = vpack.c.bf16 %v2556, %v2555
      %v3138 = vpack.c.bf16 %v3058, %v3057
      %v3139 = vpack.c.bf16 %v3118, %v3117
      %v3140 = vpack.c.bf16 %v2558, %v2557
      %v3141 = vpack.c.bf16 %v3060, %v3059
      %v3142 = vpack.c.bf16 %v3120, %v3119
      %v3143 = vpack.c.bf16 %v2560, %v2559
      %v3144 = vpack.c.bf16 %v3062, %v3061
      %v3145 = vpack.c.bf16 %v3122, %v3121
      %v3146 = vpack.c.bf16 %v2562, %v2561
      %v3147 = vpack.c.bf16 %v3064, %v3063
      %v3148 = vpack.c.bf16 %v3124, %v3123
      %v3149 = vpack.c.bf16 %v2564, %v2563
      %v3150 = vpack.c.bf16 %v3066, %v3065
      %v3151 = vpack.c.bf16 %v3126, %v3125
      %v3152 = vpack.c.bf16 %v2566, %v2565
      %v3153 = vpack.c.bf16 %v3068, %v3067
      %v3154 = vpack.c.bf16 %v3128, %v3127
      %v3155 = vpack.c.bf16 %v2568, %v2567
      %v3156 = vpack.c.bf16 %v3070, %v3069
      %v3157 = vpack.c.bf16 %v3130, %v3129
      %v3158 = vpack.c.bf16 %v2570, %v2569
      %v3159 = vpack.c.bf16 %v3072, %v3071
      %v3160 = vpack.c.bf16 %v3132, %v3131
      %v3161 = vpack.c.bf16 %v2572, %v2571
      %v3162 = vpack.c.bf16 %v3074, %v3073
      %v3163 = vpack.c.bf16 %v3134, %v3133
      %v3164 = vpack.c.bf16 %v2574, %v2573
      %v3166 = vsel %vm1187, %v3137, 0
      %v3169 = vsel %vm1187, %v3140, 0
      %v3172 = vsel %vm1187, %v3143, 0
      %v3175 = vsel %vm1187, %v3146, 0
      %v3178 = vsel %vm1187, %v3149, 0
      %v3181 = vsel %vm1187, %v3152, 0
      %v3184 = vsel %vm1187, %v3155, 0
      %v3187 = vsel %vm1187, %v3158, 0
      %v3190 = vsel %vm1187, %v3161, 0
      %v3193 = vsel %vm1187, %v3164, 0
      %3195 = vmatprep.subr.bf16.mxu0 0
      %3196 = vmatpush1.bf16.msra.mxu0 %v2203
      %3197 = vmatprep.subr.bf16.mxu0 0
      %3198 = vmatpush1.bf16.msra.mxu0 %v2204
      %3199 = vmatprep.subr.bf16.mxu0 0
      %3200 = vmatpush1.bf16.msra.mxu0 %v2205
      %3201 = vmatprep.subr.bf16.mxu0 0
      %3202 = vmatpush1.bf16.msra.mxu0 %v2206
      %3203 = vmatprep.subr.bf16.mxu0 0
      %3204 = vmatpush1.bf16.msra.mxu0 %v2207
      %3205 = vmatprep.subr.bf16.mxu0 0
      %3206 = vmatpush1.bf16.msra.mxu0 %v2208
      %3207 = vmatprep.subr.bf16.mxu0 0
      %3208 = vmatpush1.bf16.msra.mxu0 %v2209
      %3209 = vmatprep.subr.bf16.mxu0 0
      %3210 = vmatpush1.bf16.msra.mxu0 %v2210
      %3211 = vmatprep.subr.bf16.mxu0 0
      %3212 = vmatpush1.bf16.msra.mxu0 %v2211
      %3213 = vmatprep.subr.bf16.mxu0 0
      %3214 = vmatpush1.bf16.msra.mxu0 %v2212
      %3215 = vmatprep.subr.bf16.mxu0 0
      %3216 = vmatpush1.bf16.msra.mxu0 %v2213
      %3217 = vmatprep.subr.bf16.mxu0 0
      %3218 = vmatpush1.bf16.msra.mxu0 %v2214
      %3219 = vmatprep.subr.bf16.mxu0 0
      %3220 = vmatpush1.bf16.msra.mxu0 %v2215
      %3221 = vmatprep.subr.bf16.mxu0 0
      %3222 = vmatpush1.bf16.msra.mxu0 %v2216
      %3223 = vmatprep.subr.bf16.mxu0 0
      %3224 = vmatpush1.bf16.msra.mxu0 %v2217
      %3225 = vmatprep.subr.bf16.mxu0 0
      %3226 = vmatpush1.bf16.msra.mxu0 %v2218
      %3227 = vmatprep.mubr.bf16.mxu0 %v3136
      %3228 = vmatmul.mubr.bf16.gmra.mrb[0].mxu0 %v3135
      %v3229 = vpop.f32.mrb[0].mxu0
      %v3230 = vadd.f32 %v2129, %v3229
      %v3231 = vpop.f32.mrb[0].mxu0
      %v3232 = vpop.f32.mrb[0].mxu0
      %v3233 = vadd.f32 %v2129, %v3232
      %v3234 = vpop.f32.mrb[0].mxu0
      %3235 = vmatprep.mubr.bf16.mxu0 %v3139
      %3236 = vmatmul.mubr.bf16.gmra.mrb[0].mxu0 %v3138
      %v3237 = vpop.f32.mrb[0].mxu0
      %v3238 = vadd.f32 %v2129, %v3237
      %v3239 = vpop.f32.mrb[0].mxu0
      %v3240 = vpop.f32.mrb[0].mxu0
      %v3241 = vadd.f32 %v2129, %v3240
      %v3242 = vpop.f32.mrb[0].mxu0
      %3243 = vmatprep.mubr.bf16.mxu0 %v3142
      %3244 = vmatmul.mubr.bf16.gmra.mrb[0].mxu0 %v3141
      %v3245 = vpop.f32.mrb[0].mxu0
      %v3246 = vadd.f32 %v2129, %v3245
      %v3247 = vpop.f32.mrb[0].mxu0
      %v3248 = vpop.f32.mrb[0].mxu0
      %v3249 = vadd.f32 %v2129, %v3248
      %v3250 = vpop.f32.mrb[0].mxu0
      %3251 = vmatprep.mubr.bf16.mxu0 %v3145
      %3252 = vmatmul.mubr.bf16.gmra.mrb[0].mxu0 %v3144
      %v3253 = vpop.f32.mrb[0].mxu0
      %v3254 = vadd.f32 %v2129, %v3253
      %v3255 = vpop.f32.mrb[0].mxu0
      %v3256 = vpop.f32.mrb[0].mxu0
      %v3257 = vadd.f32 %v2129, %v3256
      %v3258 = vpop.f32.mrb[0].mxu0
      %3259 = vmatprep.mubr.bf16.mxu0 %v3148
      %3260 = vmatmul.mubr.bf16.gmra.mrb[0].mxu0 %v3147
      %v3261 = vpop.f32.mrb[0].mxu0
      %v3262 = vadd.f32 %v2129, %v3261
      %v3263 = vpop.f32.mrb[0].mxu0
      %v3264 = vpop.f32.mrb[0].mxu0
      %v3265 = vadd.f32 %v2129, %v3264
      %v3266 = vpop.f32.mrb[0].mxu0
      %3267 = vmatprep.mubr.bf16.mxu0 %v3151
      %3268 = vmatmul.mubr.bf16.gmra.mrb[0].mxu0 %v3150
      %v3269 = vpop.f32.mrb[0].mxu0
      %v3270 = vadd.f32 %v2129, %v3269
      %v3271 = vpop.f32.mrb[0].mxu0
      %v3272 = vpop.f32.mrb[0].mxu0
      %v3273 = vadd.f32 %v2129, %v3272
      %v3274 = vpop.f32.mrb[0].mxu0
      %3275 = vmatprep.mubr.bf16.mxu0 %v3154
      %3276 = vmatmul.mubr.bf16.gmra.mrb[0].mxu0 %v3153
      %v3277 = vpop.f32.mrb[0].mxu0
      %v3278 = vadd.f32 %v2129, %v3277
      %v3279 = vpop.f32.mrb[0].mxu0
      %v3280 = vpop.f32.mrb[0].mxu0
      %v3281 = vadd.f32 %v2129, %v3280
      %v3282 = vpop.f32.mrb[0].mxu0
      %3283 = vmatprep.mubr.bf16.mxu0 %v3157
      %3284 = vmatmul.mubr.bf16.gmra.mrb[0].mxu0 %v3156
      %v3285 = vpop.f32.mrb[0].mxu0
      %v3286 = vadd.f32 %v2129, %v3285
      %v3287 = vpop.f32.mrb[0].mxu0
      %v3288 = vpop.f32.mrb[0].mxu0
      %v3289 = vadd.f32 %v2129, %v3288
      %v3290 = vpop.f32.mrb[0].mxu0
      %3291 = vmatprep.mubr.bf16.mxu0 %v3160
      %3292 = vmatmul.mubr.bf16.gmra.mrb[0].mxu0 %v3159
      %v3293 = vpop.f32.mrb[0].mxu0
      %v3294 = vadd.f32 %v2129, %v3293
      %v3295 = vpop.f32.mrb[0].mxu0
      %v3296 = vpop.f32.mrb[0].mxu0
      %v3297 = vadd.f32 %v2129, %v3296
      %v3298 = vpop.f32.mrb[0].mxu0
      %3299 = vmatprep.mubr.bf16.mxu0 %v3163
      %3300 = vmatmul.mubr.bf16.gmra.mrb[0].mxu0 %v3162
      %v3301 = vpop.f32.mrb[0].mxu0
      %v3302 = vadd.f32 %v2129, %v3301
      %v3303 = vpop.f32.mrb[0].mxu0
      %v3304 = vpop.f32.mrb[0].mxu0
      %v3305 = vadd.f32 %v2129, %v3304
      %v3306 = vpop.f32.mrb[0].mxu0
      %3307 = vdwg.mxu0
      %3308 = vmatprep.subr.bf16.mxu0 0
      %3309 = vmatpush1.bf16.msra.mxu0 %v2219
      %3310 = vmatprep.subr.bf16.mxu0 0
      %3311 = vmatpush1.bf16.msra.mxu0 %v2220
      %3312 = vmatprep.subr.bf16.mxu0 0
      %3313 = vmatpush1.bf16.msra.mxu0 0
      %3314 = vmatprep.subr.bf16.mxu0 0
      %3315 = vmatpush1.bf16.msra.mxu0 0
      %3316 = vmatprep.subr.bf16.mxu0 0
      %3317 = vmatpush1.bf16.msra.mxu0 0
      %3318 = vmatprep.subr.bf16.mxu0 0
      %3319 = vmatpush1.bf16.msra.mxu0 0
      %3320 = vmatprep.subr.bf16.mxu0 0
      %3321 = vmatpush1.bf16.msra.mxu0 0
      %3322 = vmatprep.subr.bf16.mxu0 0
      %3323 = vmatpush1.bf16.msra.mxu0 0
      %3324 = vmatprep.subr.bf16.mxu0 0
      %3325 = vmatpush1.bf16.msra.mxu0 0
      %3326 = vmatprep.subr.bf16.mxu0 0
      %3327 = vmatpush1.bf16.msra.mxu0 0
      %3328 = vmatprep.subr.bf16.mxu0 0
      %3329 = vmatpush1.bf16.msra.mxu0 0
      %3330 = vmatprep.subr.bf16.mxu0 0
      %3331 = vmatpush1.bf16.msra.mxu0 0
      %3332 = vmatprep.subr.bf16.mxu0 0
      %3333 = vmatpush1.bf16.msra.mxu0 0
      %3334 = vmatprep.subr.bf16.mxu0 0
      %3335 = vmatpush1.bf16.msra.mxu0 0
      %3336 = vmatprep.subr.bf16.mxu0 0
      %3337 = vmatpush1.bf16.msra.mxu0 0
      %3338 = vmatprep.subr.bf16.mxu0 0
      %3339 = vmatpush1.bf16.msra.mxu0 0
      %3340 = vmatprep.mubr.bf16.mxu0 0
      %3341 = vmatmul.mubr.bf16.gmra.mrb[0].mxu0 %v3166
      %v3342 = vpop.f32.mrb[0].mxu0
      %v3343 = vadd.f32 %v3230, %v3342
      %v3344 = vpop.f32.mrb[0].mxu0
      %v3345 = vpop.f32.mrb[0].mxu0
      %v3346 = vadd.f32 %v3233, %v3345
      %v3347 = vpop.f32.mrb[0].mxu0
      %3348 = vmatprep.mubr.bf16.mxu0 0
      %3349 = vmatmul.mubr.bf16.gmra.mrb[0].mxu0 %v3169
      %v3350 = vpop.f32.mrb[0].mxu0
      %v3351 = vadd.f32 %v3238, %v3350
      %v3352 = vpop.f32.mrb[0].mxu0
      %v3353 = vpop.f32.mrb[0].mxu0
      %v3354 = vadd.f32 %v3241, %v3353
      %v3355 = vpop.f32.mrb[0].mxu0
      %3356 = vmatprep.mubr.bf16.mxu0 0
      %3357 = vmatmul.mubr.bf16.gmra.mrb[0].mxu0 %v3172
      %v3358 = vpop.f32.mrb[0].mxu0
      %v3359 = vadd.f32 %v3246, %v3358
      %v3360 = vpop.f32.mrb[0].mxu0
      %v3361 = vpop.f32.mrb[0].mxu0
      %v3362 = vadd.f32 %v3249, %v3361
      %v3363 = vpop.f32.mrb[0].mxu0
      %3364 = vmatprep.mubr.bf16.mxu0 0
      %3365 = vmatmul.mubr.bf16.gmra.mrb[0].mxu0 %v3175
      %v3366 = vpop.f32.mrb[0].mxu0
      %v3367 = vadd.f32 %v3254, %v3366
      %v3368 = vpop.f32.mrb[0].mxu0
      %v3369 = vpop.f32.mrb[0].mxu0
      %v3370 = vadd.f32 %v3257, %v3369
      %v3371 = vpop.f32.mrb[0].mxu0
      %3372 = vmatprep.mubr.bf16.mxu0 0
      %3373 = vmatmul.mubr.bf16.gmra.mrb[0].mxu0 %v3178
      %v3374 = vpop.f32.mrb[0].mxu0
      %v3375 = vadd.f32 %v3262, %v3374
      %v3376 = vpop.f32.mrb[0].mxu0
      %v3377 = vpop.f32.mrb[0].mxu0
      %v3378 = vadd.f32 %v3265, %v3377
      %v3379 = vpop.f32.mrb[0].mxu0
      %3380 = vmatprep.mubr.bf16.mxu0 0
      %3381 = vmatmul.mubr.bf16.gmra.mrb[0].mxu0 %v3181
      %v3382 = vpop.f32.mrb[0].mxu0
      %v3383 = vadd.f32 %v3270, %v3382
      %v3384 = vpop.f32.mrb[0].mxu0
      %v3385 = vpop.f32.mrb[0].mxu0
      %v3386 = vadd.f32 %v3273, %v3385
      %v3387 = vpop.f32.mrb[0].mxu0
      %3388 = vmatprep.mubr.bf16.mxu0 0
      %3389 = vmatmul.mubr.bf16.gmra.mrb[0].mxu0 %v3184
      %v3390 = vpop.f32.mrb[0].mxu0
      %v3391 = vadd.f32 %v3278, %v3390
      %v3392 = vpop.f32.mrb[0].mxu0
      %v3393 = vpop.f32.mrb[0].mxu0
      %v3394 = vadd.f32 %v3281, %v3393
      %v3395 = vpop.f32.mrb[0].mxu0
      %3396 = vmatprep.mubr.bf16.mxu0 0
      %3397 = vmatmul.mubr.bf16.gmra.mrb[0].mxu0 %v3187
      %v3398 = vpop.f32.mrb[0].mxu0
      %v3399 = vadd.f32 %v3286, %v3398
      %v3400 = vpop.f32.mrb[0].mxu0
      %v3401 = vpop.f32.mrb[0].mxu0
      %v3402 = vadd.f32 %v3289, %v3401
      %v3403 = vpop.f32.mrb[0].mxu0
      %3404 = vmatprep.mubr.bf16.mxu0 0
      %3405 = vmatmul.mubr.bf16.gmra.mrb[0].mxu0 %v3190
      %v3406 = vpop.f32.mrb[0].mxu0
      %v3407 = vadd.f32 %v3294, %v3406
      %v3408 = vpop.f32.mrb[0].mxu0
      %v3409 = vpop.f32.mrb[0].mxu0
      %v3410 = vadd.f32 %v3297, %v3409
      %v3411 = vpop.f32.mrb[0].mxu0
      %3412 = vmatprep.mubr.bf16.mxu0 0
      %3413 = vmatmul.mubr.bf16.gmra.mrb[0].mxu0 %v3193
      %v3414 = vpop.f32.mrb[0].mxu0
      %v3415 = vadd.f32 %v3302, %v3414
      %v3416 = vpop.f32.mrb[0].mxu0
      %v3417 = vpop.f32.mrb[0].mxu0
      %v3418 = vadd.f32 %v3305, %v3417
      %v3419 = vpop.f32.mrb[0].mxu0
      %3420 = vdwg.mxu0
      %v3421 = vmax.f32 %v3343, 0.0
      %v3422 = vmax.f32 %v3346, 0.0
      %v3423 = vmax.f32 %v3351, 0.0
      %v3424 = vmax.f32 %v3354, 0.0
      %v3425 = vmax.f32 %v3359, 0.0
      %v3426 = vmax.f32 %v3362, 0.0
      %v3427 = vmax.f32 %v3367, 0.0
      %v3428 = vmax.f32 %v3370, 0.0
      %v3429 = vmax.f32 %v3375, 0.0
      %v3430 = vmax.f32 %v3378, 0.0
      %v3431 = vmax.f32 %v3383, 0.0
      %v3432 = vmax.f32 %v3386, 0.0
      %v3433 = vmax.f32 %v3391, 0.0
      %v3434 = vmax.f32 %v3394, 0.0
      %v3435 = vmax.f32 %v3399, 0.0
      %v3436 = vmax.f32 %v3402, 0.0
      %v3437 = vmax.f32 %v3407, 0.0
      %v3438 = vmax.f32 %v3410, 0.0
      %v3439 = vmax.f32 %v3415, 0.0
      %v3440 = vmax.f32 %v3418, 0.0
      %v3441 = vmax.f32 %v2495, %v3421
      %v3442 = vmax.f32 %v2496, %v3422
      %v3443 = vmax.f32 %v2497, %v3423
      %v3444 = vmax.f32 %v2498, %v3424
      %v3445 = vmax.f32 %v2499, %v3425
      %v3446 = vmax.f32 %v2500, %v3426
      %v3447 = vmax.f32 %v2501, %v3427
      %v3448 = vmax.f32 %v2502, %v3428
      %v3449 = vmax.f32 %v2503, %v3429
      %v3450 = vmax.f32 %v2504, %v3430
      %v3451 = vmax.f32 %v2505, %v3431
      %v3452 = vmax.f32 %v2506, %v3432
      %v3453 = vmax.f32 %v2507, %v3433
      %v3454 = vmax.f32 %v2508, %v3434
      %v3455 = vmax.f32 %v2509, %v3435
      %v3456 = vmax.f32 %v2510, %v3436
      %v3457 = vmax.f32 %v2511, %v3437
      %v3458 = vmax.f32 %v2512, %v3438
      %v3459 = vmax.f32 %v2513, %v3439
      %v3460 = vmax.f32 %v2514, %v3440
      %v3461 = vld [vmem:[#allocation2 + $0x16d] sm:$0xff]
      %v3462 = vld [vmem:[#allocation2 + $0x175] sm:$0xff]
      %v3463 = vld [vmem:[#allocation2 + $0x17d] sm:$0xff]
      %v3464 = vld [vmem:[#allocation2 + $0x185] sm:$0xff]
      %v3465 = vld [vmem:[#allocation2 + $0x18d] sm:$0xff]
      %v3466 = vld [vmem:[#allocation2 + $0x195] sm:$0xff]
      %v3467 = vld [vmem:[#allocation2 + $0x19d] sm:$0xff]
      %v3468 = vld [vmem:[#allocation2 + $0x1a5] sm:$0xff]
      %v3469 = vld [vmem:[#allocation2 + $0x1ad] sm:$0xff]
      %v3470 = vld [vmem:[#allocation2 + $0x1b5] sm:$0xff]
      %v3471 = vld [vmem:[#allocation2 + $0x1bd] sm:$0xff]
      %v3472 = vld [vmem:[#allocation2 + $0x1c5] sm:$0xff]
      %v3473 = vld [vmem:[#allocation2 + $0x1cd] sm:$0xff]
      %v3474 = vld [vmem:[#allocation2 + $0x1d5] sm:$0xff]
      %v3475 = vld [vmem:[#allocation2 + $0x1dd] sm:$0xff]
      %v3476 = vld [vmem:[#allocation2 + $0x1e5] sm:$0xff]
      %v3477 = vld [vmem:[#allocation2 + $0x1ed] sm:$0xff]
      %v3478 = vld [vmem:[#allocation2 + $0x1f5] sm:$0xff]
      %v3479 = vld [vmem:[#allocation2 + $0x1fd] sm:$0xff]
      %v3480 = vld [vmem:[#allocation2 + $0x205] sm:$0xf]
      %v3481 = vld [vmem:[#allocation2 + $0x21d] sm:$0xff]
      %v3482 = vld [vmem:[#allocation2 + $0x225] sm:$0xff]
      %v3483 = vld [vmem:[#allocation2 + $0x22d] sm:$0xff]
      %v3484 = vld [vmem:[#allocation2 + $0x235] sm:$0xff]
      %v3485 = vld [vmem:[#allocation2 + $0x23d] sm:$0xff]
      %v3486 = vld [vmem:[#allocation2 + $0x245] sm:$0xff]
      %v3487 = vld [vmem:[#allocation2 + $0x24d] sm:$0xff]
      %v3488 = vld [vmem:[#allocation2 + $0x255] sm:$0xff]
      %v3489 = vld [vmem:[#allocation2 + $0x25d] sm:$0xff]
      %v3490 = vld [vmem:[#allocation2 + $0x265] sm:$0xff]
      %v3491 = vld [vmem:[#allocation2 + $0x26d] sm:$0xff]
      %v3492 = vld [vmem:[#allocation2 + $0x275] sm:$0xff]
      %v3493 = vld [vmem:[#allocation2 + $0x27d] sm:$0xff]
      %v3494 = vld [vmem:[#allocation2 + $0x285] sm:$0xff]
      %v3495 = vld [vmem:[#allocation2 + $0x28d] sm:$0xff]
      %v3496 = vld [vmem:[#allocation2 + $0x295] sm:$0xff]
      %v3497 = vld [vmem:[#allocation2 + $0x29d] sm:$0xff]
      %v3498 = vld [vmem:[#allocation2 + $0x2a5] sm:$0xff]
      %v3499 = vld [vmem:[#allocation2 + $0x2ad] sm:$0xff]
      %v3500 = vld [vmem:[#allocation2 + $0x2b5] sm:$0xf]
      %v3501 = vld [vmem:[#allocation2 + $0x16e] sm:$0xff]
      %v3502 = vld [vmem:[#allocation2 + $0x176] sm:$0xff]
      %v3503 = vld [vmem:[#allocation2 + $0x17e] sm:$0xff]
      %v3504 = vld [vmem:[#allocation2 + $0x186] sm:$0xff]
      %v3505 = vld [vmem:[#allocation2 + $0x18e] sm:$0xff]
      %v3506 = vld [vmem:[#allocation2 + $0x196] sm:$0xff]
      %v3507 = vld [vmem:[#allocation2 + $0x19e] sm:$0xff]
      %v3508 = vld [vmem:[#allocation2 + $0x1a6] sm:$0xff]
      %v3509 = vld [vmem:[#allocation2 + $0x1ae] sm:$0xff]
      %v3510 = vld [vmem:[#allocation2 + $0x1b6] sm:$0xff]
      %v3511 = vld [vmem:[#allocation2 + $0x1be] sm:$0xff]
      %v3512 = vld [vmem:[#allocation2 + $0x1c6] sm:$0xff]
      %v3513 = vld [vmem:[#allocation2 + $0x1ce] sm:$0xff]
      %v3514 = vld [vmem:[#allocation2 + $0x1d6] sm:$0xff]
      %v3515 = vld [vmem:[#allocation2 + $0x1de] sm:$0xff]
      %v3516 = vld [vmem:[#allocation2 + $0x1e6] sm:$0xff]
      %v3517 = vld [vmem:[#allocation2 + $0x1ee] sm:$0xff]
      %v3518 = vld [vmem:[#allocation2 + $0x1f6] sm:$0xff]
      %v3519 = vld [vmem:[#allocation2 + $0x1fe] sm:$0xff]
      %v3520 = vld [vmem:[#allocation2 + $0x206] sm:$0xf]
      %3521 = vrot.lane.b32.xlu0 %v1356, 32
      %v3522 = vpop.permute.xlu0 %3521
      %3523 = vrot.lane.b32.xlu0 %v1357, 32
      %v3524 = vpop.permute.xlu0 %3523
      %3525 = vrot.lane.b32.xlu0 %v1358, 32
      %v3526 = vpop.permute.xlu0 %3525
      %3527 = vrot.lane.b32.xlu0 %v1359, 32
      %v3528 = vpop.permute.xlu0 %3527
      %3529 = vrot.lane.b32.xlu0 %v1360, 32
      %v3530 = vpop.permute.xlu0 %3529
      %3531 = vrot.lane.b32.xlu0 %v1361, 32
      %v3532 = vpop.permute.xlu0 %3531
      %3533 = vrot.lane.b32.xlu0 %v1362, 32
      %v3534 = vpop.permute.xlu0 %3533
      %3535 = vrot.lane.b32.xlu0 %v1363, 32
      %v3536 = vpop.permute.xlu0 %3535
      %3537 = vrot.lane.b32.xlu0 %v1364, 32
      %v3538 = vpop.permute.xlu0 %3537
      %3539 = vrot.lane.b32.xlu0 %v1365, 32
      %v3540 = vpop.permute.xlu0 %3539
      %3541 = vrot.lane.b32.xlu0 %v1366, 32
      %v3542 = vpop.permute.xlu0 %3541
      %3543 = vrot.lane.b32.xlu0 %v1367, 32
      %v3544 = vpop.permute.xlu0 %3543
      %3545 = vrot.lane.b32.xlu0 %v1368, 32
      %v3546 = vpop.permute.xlu0 %3545
      %3547 = vrot.lane.b32.xlu0 %v1369, 32
      %v3548 = vpop.permute.xlu0 %3547
      %3549 = vrot.lane.b32.xlu0 %v1370, 32
      %v3550 = vpop.permute.xlu0 %3549
      %3551 = vrot.lane.b32.xlu0 %v1371, 32
      %v3552 = vpop.permute.xlu0 %3551
      %3553 = vrot.lane.b32.xlu0 %v1372, 32
      %v3554 = vpop.permute.xlu0 %3553
      %3555 = vrot.lane.b32.xlu0 %v1373, 32
      %v3556 = vpop.permute.xlu0 %3555
      %3557 = vrot.lane.b32.xlu0 %v1374, 32
      %v3558 = vpop.permute.xlu0 %3557
      %3559 = vrot.lane.b32.xlu0 %v1375, 32
      %v3560 = vpop.permute.xlu0 %3559
      %3581 = vrot.lane.b32.xlu0 %v1376, 64
      %v3582 = vpop.permute.xlu0 %3581
      %3583 = vrot.lane.b32.xlu0 %v1377, 64
      %v3584 = vpop.permute.xlu0 %3583
      %3585 = vrot.lane.b32.xlu0 %v1378, 64
      %v3586 = vpop.permute.xlu0 %3585
      %3587 = vrot.lane.b32.xlu0 %v1379, 64
      %v3588 = vpop.permute.xlu0 %3587
      %3589 = vrot.lane.b32.xlu0 %v1380, 64
      %v3590 = vpop.permute.xlu0 %3589
      %3591 = vrot.lane.b32.xlu0 %v1381, 64
      %v3592 = vpop.permute.xlu0 %3591
      %3593 = vrot.lane.b32.xlu0 %v1382, 64
      %v3594 = vpop.permute.xlu0 %3593
      %3595 = vrot.lane.b32.xlu0 %v1383, 64
      %v3596 = vpop.permute.xlu0 %3595
      %3597 = vrot.lane.b32.xlu0 %v1384, 64
      %v3598 = vpop.permute.xlu0 %3597
      %3599 = vrot.lane.b32.xlu0 %v1385, 64
      %v3600 = vpop.permute.xlu0 %3599
      %3601 = vrot.lane.b32.xlu0 %v1386, 64
      %v3602 = vpop.permute.xlu0 %3601
      %3603 = vrot.lane.b32.xlu0 %v1387, 64
      %v3604 = vpop.permute.xlu0 %3603
      %3605 = vrot.lane.b32.xlu0 %v1388, 64
      %v3606 = vpop.permute.xlu0 %3605
      %3607 = vrot.lane.b32.xlu0 %v1389, 64
      %v3608 = vpop.permute.xlu0 %3607
      %3609 = vrot.lane.b32.xlu0 %v1390, 64
      %v3610 = vpop.permute.xlu0 %3609
      %3611 = vrot.lane.b32.xlu0 %v1391, 64
      %v3612 = vpop.permute.xlu0 %3611
      %3613 = vrot.lane.b32.xlu0 %v1392, 64
      %v3614 = vpop.permute.xlu0 %3613
      %3615 = vrot.lane.b32.xlu0 %v1393, 64
      %v3616 = vpop.permute.xlu0 %3615
      %3617 = vrot.lane.b32.xlu0 %v1394, 64
      %v3618 = vpop.permute.xlu0 %3617
      %3619 = vrot.lane.b32.xlu0 %v1395, 64
      %v3620 = vpop.permute.xlu0 %3619
      %3641 = vrot.lane.b32.xlu0 %v1396, 96
      %v3642 = vpop.permute.xlu0 %3641
      %3643 = vrot.lane.b32.xlu0 %v1397, 96
      %v3644 = vpop.permute.xlu0 %3643
      %3645 = vrot.lane.b32.xlu0 %v1398, 96
      %v3646 = vpop.permute.xlu0 %3645
      %3647 = vrot.lane.b32.xlu0 %v1399, 96
      %v3648 = vpop.permute.xlu0 %3647
      %3649 = vrot.lane.b32.xlu0 %v1400, 96
      %v3650 = vpop.permute.xlu0 %3649
      %3651 = vrot.lane.b32.xlu0 %v1401, 96
      %v3652 = vpop.permute.xlu0 %3651
      %3653 = vrot.lane.b32.xlu0 %v1402, 96
      %v3654 = vpop.permute.xlu0 %3653
      %3655 = vrot.lane.b32.xlu0 %v1403, 96
      %v3656 = vpop.permute.xlu0 %3655
      %3657 = vrot.lane.b32.xlu0 %v1404, 96
      %v3658 = vpop.permute.xlu0 %3657
      %3659 = vrot.lane.b32.xlu0 %v1405, 96
      %v3660 = vpop.permute.xlu0 %3659
      %3661 = vrot.lane.b32.xlu0 %v1406, 96
      %v3662 = vpop.permute.xlu0 %3661
      %3663 = vrot.lane.b32.xlu0 %v1407, 96
      %v3664 = vpop.permute.xlu0 %3663
      %3665 = vrot.lane.b32.xlu0 %v1408, 96
      %v3666 = vpop.permute.xlu0 %3665
      %3667 = vrot.lane.b32.xlu0 %v1409, 96
      %v3668 = vpop.permute.xlu0 %3667
      %3669 = vrot.lane.b32.xlu0 %v1410, 96
      %v3670 = vpop.permute.xlu0 %3669
      %3671 = vrot.lane.b32.xlu0 %v1411, 96
      %v3672 = vpop.permute.xlu0 %3671
      %3673 = vrot.lane.b32.xlu0 %v1412, 96
      %v3674 = vpop.permute.xlu0 %3673
      %3675 = vrot.lane.b32.xlu0 %v1413, 96
      %v3676 = vpop.permute.xlu0 %3675
      %3677 = vrot.lane.b32.xlu0 %v1414, 96
      %v3678 = vpop.permute.xlu0 %3677
      %3679 = vrot.lane.b32.xlu0 %v1415, 96
      %v3680 = vpop.permute.xlu0 %3679
      %3701 = vrot.lane.b32.xlu0 %v1436, 32
      %v3702 = vpop.permute.xlu0 %3701
      %3703 = vrot.lane.b32.xlu0 %v1437, 32
      %v3704 = vpop.permute.xlu0 %3703
      %3705 = vrot.lane.b32.xlu0 %v1438, 32
      %v3706 = vpop.permute.xlu0 %3705
      %3707 = vrot.lane.b32.xlu0 %v1439, 32
      %v3708 = vpop.permute.xlu0 %3707
      %3709 = vrot.lane.b32.xlu0 %v1440, 32
      %v3710 = vpop.permute.xlu0 %3709
      %3711 = vrot.lane.b32.xlu0 %v1441, 32
      %v3712 = vpop.permute.xlu0 %3711
      %3713 = vrot.lane.b32.xlu0 %v1442, 32
      %v3714 = vpop.permute.xlu0 %3713
      %3715 = vrot.lane.b32.xlu0 %v1443, 32
      %v3716 = vpop.permute.xlu0 %3715
      %3717 = vrot.lane.b32.xlu0 %v1444, 32
      %v3718 = vpop.permute.xlu0 %3717
      %3719 = vrot.lane.b32.xlu0 %v1445, 32
      %v3720 = vpop.permute.xlu0 %3719
      %3721 = vrot.lane.b32.xlu0 %v1446, 32
      %v3722 = vpop.permute.xlu0 %3721
      %3723 = vrot.lane.b32.xlu0 %v1447, 32
      %v3724 = vpop.permute.xlu0 %3723
      %3725 = vrot.lane.b32.xlu0 %v1448, 32
      %v3726 = vpop.permute.xlu0 %3725
      %3727 = vrot.lane.b32.xlu0 %v1449, 32
      %v3728 = vpop.permute.xlu0 %3727
      %3729 = vrot.lane.b32.xlu0 %v1450, 32
      %v3730 = vpop.permute.xlu0 %3729
      %3731 = vrot.lane.b32.xlu0 %v1451, 32
      %v3732 = vpop.permute.xlu0 %3731
      %3733 = vrot.lane.b32.xlu0 %v1452, 32
      %v3734 = vpop.permute.xlu0 %3733
      %3735 = vrot.lane.b32.xlu0 %v1453, 32
      %v3736 = vpop.permute.xlu0 %3735
      %3737 = vrot.lane.b32.xlu0 %v1454, 32
      %v3738 = vpop.permute.xlu0 %3737
      %3739 = vrot.lane.b32.xlu0 %v1455, 32
      %v3740 = vpop.permute.xlu0 %3739
      %3781 = vrot.lane.b32.xlu0 %v3461, 64
      %v3782 = vpop.permute.xlu0 %3781
      %3783 = vrot.lane.b32.xlu0 %v3462, 64
      %v3784 = vpop.permute.xlu0 %3783
      %3785 = vrot.lane.b32.xlu0 %v3463, 64
      %v3786 = vpop.permute.xlu0 %3785
      %3787 = vrot.lane.b32.xlu0 %v3464, 64
      %v3788 = vpop.permute.xlu0 %3787
      %3789 = vrot.lane.b32.xlu0 %v3465, 64
      %v3790 = vpop.permute.xlu0 %3789
      %3791 = vrot.lane.b32.xlu0 %v3466, 64
      %v3792 = vpop.permute.xlu0 %3791
      %3793 = vrot.lane.b32.xlu0 %v3467, 64
      %v3794 = vpop.permute.xlu0 %3793
      %3795 = vrot.lane.b32.xlu0 %v3468, 64
      %v3796 = vpop.permute.xlu0 %3795
      %3797 = vrot.lane.b32.xlu0 %v3469, 64
      %v3798 = vpop.permute.xlu0 %3797
      %3799 = vrot.lane.b32.xlu0 %v3470, 64
      %v3800 = vpop.permute.xlu0 %3799
      %3801 = vrot.lane.b32.xlu0 %v3471, 64
      %v3802 = vpop.permute.xlu0 %3801
      %3803 = vrot.lane.b32.xlu0 %v3472, 64
      %v3804 = vpop.permute.xlu0 %3803
      %3805 = vrot.lane.b32.xlu0 %v3473, 64
      %v3806 = vpop.permute.xlu0 %3805
      %3807 = vrot.lane.b32.xlu0 %v3474, 64
      %v3808 = vpop.permute.xlu0 %3807
      %3809 = vrot.lane.b32.xlu0 %v3475, 64
      %v3810 = vpop.permute.xlu0 %3809
      %3811 = vrot.lane.b32.xlu0 %v3476, 64
      %v3812 = vpop.permute.xlu0 %3811
      %3813 = vrot.lane.b32.xlu0 %v3477, 64
      %v3814 = vpop.permute.xlu0 %3813
      %3815 = vrot.lane.b32.xlu0 %v3478, 64
      %v3816 = vpop.permute.xlu0 %3815
      %3817 = vrot.lane.b32.xlu0 %v3479, 64
      %v3818 = vpop.permute.xlu0 %3817
      %3819 = vrot.lane.b32.xlu0 %v3480, 64
      %v3820 = vpop.permute.xlu0 %3819
      %3861 = vrot.lane.b32.xlu0 %v3481, 96
      %v3862 = vpop.permute.xlu0 %3861
      %3863 = vrot.lane.b32.xlu0 %v3482, 96
      %v3864 = vpop.permute.xlu0 %3863
      %3865 = vrot.lane.b32.xlu0 %v3483, 96
      %v3866 = vpop.permute.xlu0 %3865
      %3867 = vrot.lane.b32.xlu0 %v3484, 96
      %v3868 = vpop.permute.xlu0 %3867
      %3869 = vrot.lane.b32.xlu0 %v3485, 96
      %v3870 = vpop.permute.xlu0 %3869
      %3871 = vrot.lane.b32.xlu0 %v3486, 96
      %v3872 = vpop.permute.xlu0 %3871
      %3873 = vrot.lane.b32.xlu0 %v3487, 96
      %v3874 = vpop.permute.xlu0 %3873
      %3875 = vrot.lane.b32.xlu0 %v3488, 96
      %v3876 = vpop.permute.xlu0 %3875
      %3877 = vrot.lane.b32.xlu0 %v3489, 96
      %v3878 = vpop.permute.xlu0 %3877
      %3879 = vrot.lane.b32.xlu0 %v3490, 96
      %v3880 = vpop.permute.xlu0 %3879
      %3881 = vrot.lane.b32.xlu0 %v3491, 96
      %v3882 = vpop.permute.xlu0 %3881
      %3883 = vrot.lane.b32.xlu0 %v3492, 96
      %v3884 = vpop.permute.xlu0 %3883
      %3885 = vrot.lane.b32.xlu0 %v3493, 96
      %v3886 = vpop.permute.xlu0 %3885
      %3887 = vrot.lane.b32.xlu0 %v3494, 96
      %v3888 = vpop.permute.xlu0 %3887
      %3889 = vrot.lane.b32.xlu0 %v3495, 96
      %v3890 = vpop.permute.xlu0 %3889
      %3891 = vrot.lane.b32.xlu0 %v3496, 96
      %v3892 = vpop.permute.xlu0 %3891
      %3893 = vrot.lane.b32.xlu0 %v3497, 96
      %v3894 = vpop.permute.xlu0 %3893
      %3895 = vrot.lane.b32.xlu0 %v3498, 96
      %v3896 = vpop.permute.xlu0 %3895
      %3897 = vrot.lane.b32.xlu0 %v3499, 96
      %v3898 = vpop.permute.xlu0 %3897
      %3899 = vrot.lane.b32.xlu0 %v3500, 96
      %v3900 = vpop.permute.xlu0 %3899
      %v3921 = vsel %vm1187, %v1336, %v3522
      %v3922 = vsel %vm1187, %v1337, %v3524
      %v3923 = vsel %vm1187, %v1338, %v3526
      %v3924 = vsel %vm1187, %v1339, %v3528
      %v3925 = vsel %vm1187, %v1340, %v3530
      %v3926 = vsel %vm1187, %v1341, %v3532
      %v3927 = vsel %vm1187, %v1342, %v3534
      %v3928 = vsel %vm1187, %v1343, %v3536
      %v3929 = vsel %vm1187, %v1344, %v3538
      %v3930 = vsel %vm1187, %v1345, %v3540
      %v3931 = vsel %vm1187, %v1346, %v3542
      %v3932 = vsel %vm1187, %v1347, %v3544
      %v3933 = vsel %vm1187, %v1348, %v3546
      %v3934 = vsel %vm1187, %v1349, %v3548
      %v3935 = vsel %vm1187, %v1350, %v3550
      %v3936 = vsel %vm1187, %v1351, %v3552
      %v3937 = vsel %vm1187, %v1352, %v3554
      %v3938 = vsel %vm1187, %v1353, %v3556
      %v3939 = vsel %vm1187, %v1354, %v3558
      %v3940 = vsel %vm1187, %v1355, %v3560
      %v3941 = vsel %vm1956, %v3921, %v3582
      %v3942 = vsel %vm1956, %v3922, %v3584
      %v3943 = vsel %vm1956, %v3923, %v3586
      %v3944 = vsel %vm1956, %v3924, %v3588
      %v3945 = vsel %vm1956, %v3925, %v3590
      %v3946 = vsel %vm1956, %v3926, %v3592
      %v3947 = vsel %vm1956, %v3927, %v3594
      %v3948 = vsel %vm1956, %v3928, %v3596
      %v3949 = vsel %vm1956, %v3929, %v3598
      %v3950 = vsel %vm1956, %v3930, %v3600
      %v3951 = vsel %vm1956, %v3931, %v3602
      %v3952 = vsel %vm1956, %v3932, %v3604
      %v3953 = vsel %vm1956, %v3933, %v3606
      %v3954 = vsel %vm1956, %v3934, %v3608
      %v3955 = vsel %vm1956, %v3935, %v3610
      %v3956 = vsel %vm1956, %v3936, %v3612
      %v3957 = vsel %vm1956, %v3937, %v3614
      %v3958 = vsel %vm1956, %v3938, %v3616
      %v3959 = vsel %vm1956, %v3939, %v3618
      %v3960 = vsel %vm1956, %v3940, %v3620
      %v3961 = vsel %vm1977, %v3941, %v3642
      %v3962 = vsel %vm1977, %v3942, %v3644
      %v3963 = vsel %vm1977, %v3943, %v3646
      %v3964 = vsel %vm1977, %v3944, %v3648
      %v3965 = vsel %vm1977, %v3945, %v3650
      %v3966 = vsel %vm1977, %v3946, %v3652
      %v3967 = vsel %vm1977, %v3947, %v3654
      %v3968 = vsel %vm1977, %v3948, %v3656
      %v3969 = vsel %vm1977, %v3949, %v3658
      %v3970 = vsel %vm1977, %v3950, %v3660
      %v3971 = vsel %vm1977, %v3951, %v3662
      %v3972 = vsel %vm1977, %v3952, %v3664
      %v3973 = vsel %vm1977, %v3953, %v3666
      %v3974 = vsel %vm1977, %v3954, %v3668
      %v3975 = vsel %vm1977, %v3955, %v3670
      %v3976 = vsel %vm1977, %v3956, %v3672
      %v3977 = vsel %vm1977, %v3957, %v3674
      %v3978 = vsel %vm1977, %v3958, %v3676
      %v3979 = vsel %vm1977, %v3959, %v3678
      %v3980 = vsel %vm1977, %v3960, %v3680
      %v3981 = vsel %vm1187, %v1416, %v3702
      %v3982 = vsel %vm1187, %v1417, %v3704
      %v3983 = vsel %vm1187, %v1418, %v3706
      %v3984 = vsel %vm1187, %v1419, %v3708
      %v3985 = vsel %vm1187, %v1420, %v3710
      %v3986 = vsel %vm1187, %v1421, %v3712
      %v3987 = vsel %vm1187, %v1422, %v3714
      %v3988 = vsel %vm1187, %v1423, %v3716
      %v3989 = vsel %vm1187, %v1424, %v3718
      %v3990 = vsel %vm1187, %v1425, %v3720
      %v3991 = vsel %vm1187, %v1426, %v3722
      %v3992 = vsel %vm1187, %v1427, %v3724
      %v3993 = vsel %vm1187, %v1428, %v3726
      %v3994 = vsel %vm1187, %v1429, %v3728
      %v3995 = vsel %vm1187, %v1430, %v3730
      %v3996 = vsel %vm1187, %v1431, %v3732
      %v3997 = vsel %vm1187, %v1432, %v3734
      %v3998 = vsel %vm1187, %v1433, %v3736
      %v3999 = vsel %vm1187, %v1434, %v3738
      %v4000 = vsel %vm1187, %v1435, %v3740
      %v4001 = vsel %vm1956, %v3981, %v3782
      %v4002 = vsel %vm1956, %v3982, %v3784
      %v4003 = vsel %vm1956, %v3983, %v3786
      %v4004 = vsel %vm1956, %v3984, %v3788
      %v4005 = vsel %vm1956, %v3985, %v3790
      %v4006 = vsel %vm1956, %v3986, %v3792
      %v4007 = vsel %vm1956, %v3987, %v3794
      %v4008 = vsel %vm1956, %v3988, %v3796
      %v4009 = vsel %vm1956, %v3989, %v3798
      %v4010 = vsel %vm1956, %v3990, %v3800
      %v4011 = vsel %vm1956, %v3991, %v3802
      %v4012 = vsel %vm1956, %v3992, %v3804
      %v4013 = vsel %vm1956, %v3993, %v3806
      %v4014 = vsel %vm1956, %v3994, %v3808
      %v4015 = vsel %vm1956, %v3995, %v3810
      %v4016 = vsel %vm1956, %v3996, %v3812
      %v4017 = vsel %vm1956, %v3997, %v3814
      %v4018 = vsel %vm1956, %v3998, %v3816
      %v4019 = vsel %vm1956, %v3999, %v3818
      %v4020 = vsel %vm1956, %v4000, %v3820
      %v4021 = vsel %vm1977, %v4001, %v3862
      %v4022 = vsel %vm1977, %v4002, %v3864
      %v4023 = vsel %vm1977, %v4003, %v3866
      %v4024 = vsel %vm1977, %v4004, %v3868
      %v4025 = vsel %vm1977, %v4005, %v3870
      %v4026 = vsel %vm1977, %v4006, %v3872
      %v4027 = vsel %vm1977, %v4007, %v3874
      %v4028 = vsel %vm1977, %v4008, %v3876
      %v4029 = vsel %vm1977, %v4009, %v3878
      %v4030 = vsel %vm1977, %v4010, %v3880
      %v4031 = vsel %vm1977, %v4011, %v3882
      %v4032 = vsel %vm1977, %v4012, %v3884
      %v4033 = vsel %vm1977, %v4013, %v3886
      %v4034 = vsel %vm1977, %v4014, %v3888
      %v4035 = vsel %vm1977, %v4015, %v3890
      %v4036 = vsel %vm1977, %v4016, %v3892
      %v4037 = vsel %vm1977, %v4017, %v3894
      %v4038 = vsel %vm1977, %v4018, %v3896
      %v4039 = vsel %vm1977, %v4019, %v3898
      %v4040 = vsel %vm1977, %v4020, %v3900
      %v4041 = vpack.c.bf16 %v3962, %v3961
      %v4042 = vpack.c.bf16 %v4022, %v4021
      %v4043 = vpack.c.bf16 %v3502, %v3501
      %v4044 = vpack.c.bf16 %v3964, %v3963
      %v4045 = vpack.c.bf16 %v4024, %v4023
      %v4046 = vpack.c.bf16 %v3504, %v3503
      %v4047 = vpack.c.bf16 %v3966, %v3965
      %v4048 = vpack.c.bf16 %v4026, %v4025
      %v4049 = vpack.c.bf16 %v3506, %v3505
      %v4050 = vpack.c.bf16 %v3968, %v3967
      %v4051 = vpack.c.bf16 %v4028, %v4027
      %v4052 = vpack.c.bf16 %v3508, %v3507
      %v4053 = vpack.c.bf16 %v3970, %v3969
      %v4054 = vpack.c.bf16 %v4030, %v4029
      %v4055 = vpack.c.bf16 %v3510, %v3509
      %v4056 = vpack.c.bf16 %v3972, %v3971
      %v4057 = vpack.c.bf16 %v4032, %v4031
      %v4058 = vpack.c.bf16 %v3512, %v3511
      %v4059 = vpack.c.bf16 %v3974, %v3973
      %v4060 = vpack.c.bf16 %v4034, %v4033
      %v4061 = vpack.c.bf16 %v3514, %v3513
      %v4062 = vpack.c.bf16 %v3976, %v3975
      %v4063 = vpack.c.bf16 %v4036, %v4035
      %v4064 = vpack.c.bf16 %v3516, %v3515
      %v4065 = vpack.c.bf16 %v3978, %v3977
      %v4066 = vpack.c.bf16 %v4038, %v4037
      %v4067 = vpack.c.bf16 %v3518, %v3517
      %v4068 = vpack.c.bf16 %v3980, %v3979
      %v4069 = vpack.c.bf16 %v4040, %v4039
      %v4070 = vpack.c.bf16 %v3520, %v3519
      %v4072 = vsel %vm1187, %v4043, 0
      %v4075 = vsel %vm1187, %v4046, 0
      %v4078 = vsel %vm1187, %v4049, 0
      %v4081 = vsel %vm1187, %v4052, 0
      %v4084 = vsel %vm1187, %v4055, 0
      %v4087 = vsel %vm1187, %v4058, 0
      %v4090 = vsel %vm1187, %v4061, 0
      %v4093 = vsel %vm1187, %v4064, 0
      %v4096 = vsel %vm1187, %v4067, 0
      %v4099 = vsel %vm1187, %v4070, 0
      %4101 = vmatprep.subr.bf16.mxu0 0
      %4102 = vmatpush1.bf16.msra.mxu0 %v2203
      %4103 = vmatprep.subr.bf16.mxu0 0
      %4104 = vmatpush1.bf16.msra.mxu0 %v2204
      %4105 = vmatprep.subr.bf16.mxu0 0
      %4106 = vmatpush1.bf16.msra.mxu0 %v2205
      %4107 = vmatprep.subr.bf16.mxu0 0
      %4108 = vmatpush1.bf16.msra.mxu0 %v2206
      %4109 = vmatprep.subr.bf16.mxu0 0
      %4110 = vmatpush1.bf16.msra.mxu0 %v2207
      %4111 = vmatprep.subr.bf16.mxu0 0
      %4112 = vmatpush1.bf16.msra.mxu0 %v2208
      %4113 = vmatprep.subr.bf16.mxu0 0
      %4114 = vmatpush1.bf16.msra.mxu0 %v2209
      %4115 = vmatprep.subr.bf16.mxu0 0
      %4116 = vmatpush1.bf16.msra.mxu0 %v2210
      %4117 = vmatprep.subr.bf16.mxu0 0
      %4118 = vmatpush1.bf16.msra.mxu0 %v2211
      %4119 = vmatprep.subr.bf16.mxu0 0
      %4120 = vmatpush1.bf16.msra.mxu0 %v2212
      %4121 = vmatprep.subr.bf16.mxu0 0
      %4122 = vmatpush1.bf16.msra.mxu0 %v2213
      %4123 = vmatprep.subr.bf16.mxu0 0
      %4124 = vmatpush1.bf16.msra.mxu0 %v2214
      %4125 = vmatprep.subr.bf16.mxu0 0
      %4126 = vmatpush1.bf16.msra.mxu0 %v2215
      %4127 = vmatprep.subr.bf16.mxu0 0
      %4128 = vmatpush1.bf16.msra.mxu0 %v2216
      %4129 = vmatprep.subr.bf16.mxu0 0
      %4130 = vmatpush1.bf16.msra.mxu0 %v2217
      %4131 = vmatprep.subr.bf16.mxu0 0
      %4132 = vmatpush1.bf16.msra.mxu0 %v2218
      %4133 = vmatprep.mubr.bf16.mxu0 %v4042
      %4134 = vmatmul.mubr.bf16.gmra.mrb[0].mxu0 %v4041
      %v4135 = vpop.f32.mrb[0].mxu0
      %v4136 = vadd.f32 %v2129, %v4135
      %v4137 = vpop.f32.mrb[0].mxu0
      %v4138 = vpop.f32.mrb[0].mxu0
      %v4139 = vadd.f32 %v2129, %v4138
      %v4140 = vpop.f32.mrb[0].mxu0
      %4141 = vmatprep.mubr.bf16.mxu0 %v4045
      %4142 = vmatmul.mubr.bf16.gmra.mrb[0].mxu0 %v4044
      %v4143 = vpop.f32.mrb[0].mxu0
      %v4144 = vadd.f32 %v2129, %v4143
      %v4145 = vpop.f32.mrb[0].mxu0
      %v4146 = vpop.f32.mrb[0].mxu0
      %v4147 = vadd.f32 %v2129, %v4146
      %v4148 = vpop.f32.mrb[0].mxu0
      %4149 = vmatprep.mubr.bf16.mxu0 %v4048
      %4150 = vmatmul.mubr.bf16.gmra.mrb[0].mxu0 %v4047
      %v4151 = vpop.f32.mrb[0].mxu0
      %v4152 = vadd.f32 %v2129, %v4151
      %v4153 = vpop.f32.mrb[0].mxu0
      %v4154 = vpop.f32.mrb[0].mxu0
      %v4155 = vadd.f32 %v2129, %v4154
      %v4156 = vpop.f32.mrb[0].mxu0
      %4157 = vmatprep.mubr.bf16.mxu0 %v4051
      %4158 = vmatmul.mubr.bf16.gmra.mrb[0].mxu0 %v4050
      %v4159 = vpop.f32.mrb[0].mxu0
      %v4160 = vadd.f32 %v2129, %v4159
      %v4161 = vpop.f32.mrb[0].mxu0
      %v4162 = vpop.f32.mrb[0].mxu0
      %v4163 = vadd.f32 %v2129, %v4162
      %v4164 = vpop.f32.mrb[0].mxu0
      %4165 = vmatprep.mubr.bf16.mxu0 %v4054
      %4166 = vmatmul.mubr.bf16.gmra.mrb[0].mxu0 %v4053
      %v4167 = vpop.f32.mrb[0].mxu0
      %v4168 = vadd.f32 %v2129, %v4167
      %v4169 = vpop.f32.mrb[0].mxu0
      %v4170 = vpop.f32.mrb[0].mxu0
      %v4171 = vadd.f32 %v2129, %v4170
      %v4172 = vpop.f32.mrb[0].mxu0
      %4173 = vmatprep.mubr.bf16.mxu0 %v4057
      %4174 = vmatmul.mubr.bf16.gmra.mrb[0].mxu0 %v4056
      %v4175 = vpop.f32.mrb[0].mxu0
      %v4176 = vadd.f32 %v2129, %v4175
      %v4177 = vpop.f32.mrb[0].mxu0
      %v4178 = vpop.f32.mrb[0].mxu0
      %v4179 = vadd.f32 %v2129, %v4178
      %v4180 = vpop.f32.mrb[0].mxu0
      %4181 = vmatprep.mubr.bf16.mxu0 %v4060
      %4182 = vmatmul.mubr.bf16.gmra.mrb[0].mxu0 %v4059
      %v4183 = vpop.f32.mrb[0].mxu0
      %v4184 = vadd.f32 %v2129, %v4183
      %v4185 = vpop.f32.mrb[0].mxu0
      %v4186 = vpop.f32.mrb[0].mxu0
      %v4187 = vadd.f32 %v2129, %v4186
      %v4188 = vpop.f32.mrb[0].mxu0
      %4189 = vmatprep.mubr.bf16.mxu0 %v4063
      %4190 = vmatmul.mubr.bf16.gmra.mrb[0].mxu0 %v4062
      %v4191 = vpop.f32.mrb[0].mxu0
      %v4192 = vadd.f32 %v2129, %v4191
      %v4193 = vpop.f32.mrb[0].mxu0
      %v4194 = vpop.f32.mrb[0].mxu0
      %v4195 = vadd.f32 %v2129, %v4194
      %v4196 = vpop.f32.mrb[0].mxu0
      %4197 = vmatprep.mubr.bf16.mxu0 %v4066
      %4198 = vmatmul.mubr.bf16.gmra.mrb[0].mxu0 %v4065
      %v4199 = vpop.f32.mrb[0].mxu0
      %v4200 = vadd.f32 %v2129, %v4199
      %v4201 = vpop.f32.mrb[0].mxu0
      %v4202 = vpop.f32.mrb[0].mxu0
      %v4203 = vadd.f32 %v2129, %v4202
      %v4204 = vpop.f32.mrb[0].mxu0
      %4205 = vmatprep.mubr.bf16.mxu0 %v4069
      %4206 = vmatmul.mubr.bf16.gmra.mrb[0].mxu0 %v4068
      %v4207 = vpop.f32.mrb[0].mxu0
      %v4208 = vadd.f32 %v2129, %v4207
      %v4209 = vpop.f32.mrb[0].mxu0
      %v4210 = vpop.f32.mrb[0].mxu0
      %v4211 = vadd.f32 %v2129, %v4210
      %v4212 = vpop.f32.mrb[0].mxu0
      %4213 = vdwg.mxu0
      %4214 = vmatprep.subr.bf16.mxu0 0
      %4215 = vmatpush1.bf16.msra.mxu0 %v2219
      %4216 = vmatprep.subr.bf16.mxu0 0
      %4217 = vmatpush1.bf16.msra.mxu0 %v2220
      %4218 = vmatprep.subr.bf16.mxu0 0
      %4219 = vmatpush1.bf16.msra.mxu0 0
      %4220 = vmatprep.subr.bf16.mxu0 0
      %4221 = vmatpush1.bf16.msra.mxu0 0
      %4222 = vmatprep.subr.bf16.mxu0 0
      %4223 = vmatpush1.bf16.msra.mxu0 0
      %4224 = vmatprep.subr.bf16.mxu0 0
      %4225 = vmatpush1.bf16.msra.mxu0 0
      %4226 = vmatprep.subr.bf16.mxu0 0
      %4227 = vmatpush1.bf16.msra.mxu0 0
      %4228 = vmatprep.subr.bf16.mxu0 0
      %4229 = vmatpush1.bf16.msra.mxu0 0
      %4230 = vmatprep.subr.bf16.mxu0 0
      %4231 = vmatpush1.bf16.msra.mxu0 0
      %4232 = vmatprep.subr.bf16.mxu0 0
      %4233 = vmatpush1.bf16.msra.mxu0 0
      %4234 = vmatprep.subr.bf16.mxu0 0
      %4235 = vmatpush1.bf16.msra.mxu0 0
      %4236 = vmatprep.subr.bf16.mxu0 0
      %4237 = vmatpush1.bf16.msra.mxu0 0
      %4238 = vmatprep.subr.bf16.mxu0 0
      %4239 = vmatpush1.bf16.msra.mxu0 0
      %4240 = vmatprep.subr.bf16.mxu0 0
      %4241 = vmatpush1.bf16.msra.mxu0 0
      %4242 = vmatprep.subr.bf16.mxu0 0
      %4243 = vmatpush1.bf16.msra.mxu0 0
      %4244 = vmatprep.subr.bf16.mxu0 0
      %4245 = vmatpush1.bf16.msra.mxu0 0
      %4246 = vmatprep.mubr.bf16.mxu0 0
      %4247 = vmatmul.mubr.bf16.gmra.mrb[0].mxu0 %v4072
      %v4248 = vpop.f32.mrb[0].mxu0
      %v4249 = vadd.f32 %v4136, %v4248
      %v4250 = vpop.f32.mrb[0].mxu0
      %v4251 = vpop.f32.mrb[0].mxu0
      %v4252 = vadd.f32 %v4139, %v4251
      %v4253 = vpop.f32.mrb[0].mxu0
      %4254 = vmatprep.mubr.bf16.mxu0 0
      %4255 = vmatmul.mubr.bf16.gmra.mrb[0].mxu0 %v4075
      %v4256 = vpop.f32.mrb[0].mxu0
      %v4257 = vadd.f32 %v4144, %v4256
      %v4258 = vpop.f32.mrb[0].mxu0
      %v4259 = vpop.f32.mrb[0].mxu0
      %v4260 = vadd.f32 %v4147, %v4259
      %v4261 = vpop.f32.mrb[0].mxu0
      %4262 = vmatprep.mubr.bf16.mxu0 0
      %4263 = vmatmul.mubr.bf16.gmra.mrb[0].mxu0 %v4078
      %v4264 = vpop.f32.mrb[0].mxu0
      %v4265 = vadd.f32 %v4152, %v4264
      %v4266 = vpop.f32.mrb[0].mxu0
      %v4267 = vpop.f32.mrb[0].mxu0
      %v4268 = vadd.f32 %v4155, %v4267
      %v4269 = vpop.f32.mrb[0].mxu0
      %4270 = vmatprep.mubr.bf16.mxu0 0
      %4271 = vmatmul.mubr.bf16.gmra.mrb[0].mxu0 %v4081
      %v4272 = vpop.f32.mrb[0].mxu0
      %v4273 = vadd.f32 %v4160, %v4272
      %v4274 = vpop.f32.mrb[0].mxu0
      %v4275 = vpop.f32.mrb[0].mxu0
      %v4276 = vadd.f32 %v4163, %v4275
      %v4277 = vpop.f32.mrb[0].mxu0
      %4278 = vmatprep.mubr.bf16.mxu0 0
      %4279 = vmatmul.mubr.bf16.gmra.mrb[0].mxu0 %v4084
      %v4280 = vpop.f32.mrb[0].mxu0
      %v4281 = vadd.f32 %v4168, %v4280
      %v4282 = vpop.f32.mrb[0].mxu0
      %v4283 = vpop.f32.mrb[0].mxu0
      %v4284 = vadd.f32 %v4171, %v4283
      %v4285 = vpop.f32.mrb[0].mxu0
      %4286 = vmatprep.mubr.bf16.mxu0 0
      %4287 = vmatmul.mubr.bf16.gmra.mrb[0].mxu0 %v4087
      %v4288 = vpop.f32.mrb[0].mxu0
      %v4289 = vadd.f32 %v4176, %v4288
      %v4290 = vpop.f32.mrb[0].mxu0
      %v4291 = vpop.f32.mrb[0].mxu0
      %v4292 = vadd.f32 %v4179, %v4291
      %v4293 = vpop.f32.mrb[0].mxu0
      %4294 = vmatprep.mubr.bf16.mxu0 0
      %4295 = vmatmul.mubr.bf16.gmra.mrb[0].mxu0 %v4090
      %v4296 = vpop.f32.mrb[0].mxu0
      %v4297 = vadd.f32 %v4184, %v4296
      %v4298 = vpop.f32.mrb[0].mxu0
      %v4299 = vpop.f32.mrb[0].mxu0
      %v4300 = vadd.f32 %v4187, %v4299
      %v4301 = vpop.f32.mrb[0].mxu0
      %4302 = vmatprep.mubr.bf16.mxu0 0
      %4303 = vmatmul.mubr.bf16.gmra.mrb[0].mxu0 %v4093
      %v4304 = vpop.f32.mrb[0].mxu0
      %v4305 = vadd.f32 %v4192, %v4304
      %v4306 = vpop.f32.mrb[0].mxu0
      %v4307 = vpop.f32.mrb[0].mxu0
      %v4308 = vadd.f32 %v4195, %v4307
      %v4309 = vpop.f32.mrb[0].mxu0
      %4310 = vmatprep.mubr.bf16.mxu0 0
      %4311 = vmatmul.mubr.bf16.gmra.mrb[0].mxu0 %v4096
      %v4312 = vpop.f32.mrb[0].mxu0
      %v4313 = vadd.f32 %v4200, %v4312
      %v4314 = vpop.f32.mrb[0].mxu0
      %v4315 = vpop.f32.mrb[0].mxu0
      %v4316 = vadd.f32 %v4203, %v4315
      %v4317 = vpop.f32.mrb[0].mxu0
      %4318 = vmatprep.mubr.bf16.mxu0 0
      %4319 = vmatmul.mubr.bf16.gmra.mrb[0].mxu0 %v4099
      %v4320 = vpop.f32.mrb[0].mxu0
      %v4321 = vadd.f32 %v4208, %v4320
      %v4322 = vpop.f32.mrb[0].mxu0
      %v4323 = vpop.f32.mrb[0].mxu0
      %v4324 = vadd.f32 %v4211, %v4323
      %v4325 = vpop.f32.mrb[0].mxu0
      %4326 = vdwg.mxu0
      %v4327 = vmax.f32 %v4249, 0.0
      %v4328 = vmax.f32 %v4252, 0.0
      %v4329 = vmax.f32 %v4257, 0.0
      %v4330 = vmax.f32 %v4260, 0.0
      %v4331 = vmax.f32 %v4265, 0.0
      %v4332 = vmax.f32 %v4268, 0.0
      %v4333 = vmax.f32 %v4273, 0.0
      %v4334 = vmax.f32 %v4276, 0.0
      %v4335 = vmax.f32 %v4281, 0.0
      %v4336 = vmax.f32 %v4284, 0.0
      %v4337 = vmax.f32 %v4289, 0.0
      %v4338 = vmax.f32 %v4292, 0.0
      %v4339 = vmax.f32 %v4297, 0.0
      %v4340 = vmax.f32 %v4300, 0.0
      %v4341 = vmax.f32 %v4305, 0.0
      %v4342 = vmax.f32 %v4308, 0.0
      %v4343 = vmax.f32 %v4313, 0.0
      %v4344 = vmax.f32 %v4316, 0.0
      %v4345 = vmax.f32 %v4321, 0.0
      %v4346 = vmax.f32 %v4324, 0.0
      %v4347 = vmax.f32 %v3441, %v4327
      %v4348 = vmax.f32 %v3442, %v4328
      %v4349 = vmax.f32 %v3443, %v4329
      %v4350 = vmax.f32 %v3444, %v4330
      %v4351 = vmax.f32 %v3445, %v4331
      %v4352 = vmax.f32 %v3446, %v4332
      %v4353 = vmax.f32 %v3447, %v4333
      %v4354 = vmax.f32 %v3448, %v4334
      %v4355 = vmax.f32 %v3449, %v4335
      %v4356 = vmax.f32 %v3450, %v4336
      %v4357 = vmax.f32 %v3451, %v4337
      %v4358 = vmax.f32 %v3452, %v4338
      %v4359 = vmax.f32 %v3453, %v4339
      %v4360 = vmax.f32 %v3454, %v4340
      %v4361 = vmax.f32 %v3455, %v4341
      %v4362 = vmax.f32 %v3456, %v4342
      %v4363 = vmax.f32 %v3457, %v4343
      %v4364 = vmax.f32 %v3458, %v4344
      %v4365 = vmax.f32 %v3459, %v4345
      %v4366 = vmax.f32 %v3460, %v4346
      %v4367 = vld [vmem:[#allocation2 + $0x21e] sm:$0xff]
      %v4368 = vld [vmem:[#allocation2 + $0x226] sm:$0xff]
      %v4369 = vld [vmem:[#allocation2 + $0x22e] sm:$0xff]
      %v4370 = vld [vmem:[#allocation2 + $0x236] sm:$0xff]
      %v4371 = vld [vmem:[#allocation2 + $0x23e] sm:$0xff]
      %v4372 = vld [vmem:[#allocation2 + $0x246] sm:$0xff]
      %v4373 = vld [vmem:[#allocation2 + $0x24e] sm:$0xff]
      %v4374 = vld [vmem:[#allocation2 + $0x256] sm:$0xff]
      %v4375 = vld [vmem:[#allocation2 + $0x25e] sm:$0xff]
      %v4376 = vld [vmem:[#allocation2 + $0x266] sm:$0xff]
      %v4377 = vld [vmem:[#allocation2 + $0x26e] sm:$0xff]
      %v4378 = vld [vmem:[#allocation2 + $0x276] sm:$0xff]
      %v4379 = vld [vmem:[#allocation2 + $0x27e] sm:$0xff]
      %v4380 = vld [vmem:[#allocation2 + $0x286] sm:$0xff]
      %v4381 = vld [vmem:[#allocation2 + $0x28e] sm:$0xff]
      %v4382 = vld [vmem:[#allocation2 + $0x296] sm:$0xff]
      %v4383 = vld [vmem:[#allocation2 + $0x29e] sm:$0xff]
      %v4384 = vld [vmem:[#allocation2 + $0x2a6] sm:$0xff]
      %v4385 = vld [vmem:[#allocation2 + $0x2ae] sm:$0xff]
      %v4386 = vld [vmem:[#allocation2 + $0x2b6] sm:$0xf]
      %4387 = vrot.lane.b32.xlu0 %v2535, 64
      %v4388 = vpop.permute.xlu0 %4387
      %4389 = vrot.lane.b32.xlu0 %v2536, 64
      %v4390 = vpop.permute.xlu0 %4389
      %4391 = vrot.lane.b32.xlu0 %v2537, 64
      %v4392 = vpop.permute.xlu0 %4391
      %4393 = vrot.lane.b32.xlu0 %v2538, 64
      %v4394 = vpop.permute.xlu0 %4393
      %4395 = vrot.lane.b32.xlu0 %v2539, 64
      %v4396 = vpop.permute.xlu0 %4395
      %4397 = vrot.lane.b32.xlu0 %v2540, 64
      %v4398 = vpop.permute.xlu0 %4397
      %4399 = vrot.lane.b32.xlu0 %v2541, 64
      %v4400 = vpop.permute.xlu0 %4399
      %4401 = vrot.lane.b32.xlu0 %v2542, 64
      %v4402 = vpop.permute.xlu0 %4401
      %4403 = vrot.lane.b32.xlu0 %v2543, 64
      %v4404 = vpop.permute.xlu0 %4403
      %4405 = vrot.lane.b32.xlu0 %v2544, 64
      %v4406 = vpop.permute.xlu0 %4405
      %4407 = vrot.lane.b32.xlu0 %v2545, 64
      %v4408 = vpop.permute.xlu0 %4407
      %4409 = vrot.lane.b32.xlu0 %v2546, 64
      %v4410 = vpop.permute.xlu0 %4409
      %4411 = vrot.lane.b32.xlu0 %v2547, 64
      %v4412 = vpop.permute.xlu0 %4411
      %4413 = vrot.lane.b32.xlu0 %v2548, 64
      %v4414 = vpop.permute.xlu0 %4413
      %4415 = vrot.lane.b32.xlu0 %v2549, 64
      %v4416 = vpop.permute.xlu0 %4415
      %4417 = vrot.lane.b32.xlu0 %v2550, 64
      %v4418 = vpop.permute.xlu0 %4417
      %4419 = vrot.lane.b32.xlu0 %v2551, 64
      %v4420 = vpop.permute.xlu0 %4419
      %4421 = vrot.lane.b32.xlu0 %v2552, 64
      %v4422 = vpop.permute.xlu0 %4421
      %4423 = vrot.lane.b32.xlu0 %v2553, 64
      %v4424 = vpop.permute.xlu0 %4423
      %4425 = vrot.lane.b32.xlu0 %v2554, 64
      %v4426 = vpop.permute.xlu0 %4425
      %4467 = vrot.lane.b32.xlu0 %v2555, 32
      %v4468 = vpop.permute.xlu0 %4467
      %4469 = vrot.lane.b32.xlu0 %v2556, 32
      %v4470 = vpop.permute.xlu0 %4469
      %4471 = vrot.lane.b32.xlu0 %v2557, 32
      %v4472 = vpop.permute.xlu0 %4471
      %4473 = vrot.lane.b32.xlu0 %v2558, 32
      %v4474 = vpop.permute.xlu0 %4473
      %4475 = vrot.lane.b32.xlu0 %v2559, 32
      %v4476 = vpop.permute.xlu0 %4475
      %4477 = vrot.lane.b32.xlu0 %v2560, 32
      %v4478 = vpop.permute.xlu0 %4477
      %4479 = vrot.lane.b32.xlu0 %v2561, 32
      %v4480 = vpop.permute.xlu0 %4479
      %4481 = vrot.lane.b32.xlu0 %v2562, 32
      %v4482 = vpop.permute.xlu0 %4481
      %4483 = vrot.lane.b32.xlu0 %v2563, 32
      %v4484 = vpop.permute.xlu0 %4483
      %4485 = vrot.lane.b32.xlu0 %v2564, 32
      %v4486 = vpop.permute.xlu0 %4485
      %4487 = vrot.lane.b32.xlu0 %v2565, 32
      %v4488 = vpop.permute.xlu0 %4487
      %4489 = vrot.lane.b32.xlu0 %v2566, 32
      %v4490 = vpop.permute.xlu0 %4489
      %4491 = vrot.lane.b32.xlu0 %v2567, 32
      %v4492 = vpop.permute.xlu0 %4491
      %4493 = vrot.lane.b32.xlu0 %v2568, 32
      %v4494 = vpop.permute.xlu0 %4493
      %4495 = vrot.lane.b32.xlu0 %v2569, 32
      %v4496 = vpop.permute.xlu0 %4495
      %4497 = vrot.lane.b32.xlu0 %v2570, 32
      %v4498 = vpop.permute.xlu0 %4497
      %4499 = vrot.lane.b32.xlu0 %v2571, 32
      %v4500 = vpop.permute.xlu0 %4499
      %4501 = vrot.lane.b32.xlu0 %v2572, 32
      %v4502 = vpop.permute.xlu0 %4501
      %4503 = vrot.lane.b32.xlu0 %v2573, 32
      %v4504 = vpop.permute.xlu0 %4503
      %4505 = vrot.lane.b32.xlu0 %v2574, 32
      %v4506 = vpop.permute.xlu0 %4505
      %4527 = vrot.lane.b32.xlu0 %v3481, 64
      %v4528 = vpop.permute.xlu0 %4527
      %4529 = vrot.lane.b32.xlu0 %v3482, 64
      %v4530 = vpop.permute.xlu0 %4529
      %4531 = vrot.lane.b32.xlu0 %v3483, 64
      %v4532 = vpop.permute.xlu0 %4531
      %4533 = vrot.lane.b32.xlu0 %v3484, 64
      %v4534 = vpop.permute.xlu0 %4533
      %4535 = vrot.lane.b32.xlu0 %v3485, 64
      %v4536 = vpop.permute.xlu0 %4535
      %4537 = vrot.lane.b32.xlu0 %v3486, 64
      %v4538 = vpop.permute.xlu0 %4537
      %4539 = vrot.lane.b32.xlu0 %v3487, 64
      %v4540 = vpop.permute.xlu0 %4539
      %4541 = vrot.lane.b32.xlu0 %v3488, 64
      %v4542 = vpop.permute.xlu0 %4541
      %4543 = vrot.lane.b32.xlu0 %v3489, 64
      %v4544 = vpop.permute.xlu0 %4543
      %4545 = vrot.lane.b32.xlu0 %v3490, 64
      %v4546 = vpop.permute.xlu0 %4545
      %4547 = vrot.lane.b32.xlu0 %v3491, 64
      %v4548 = vpop.permute.xlu0 %4547
      %4549 = vrot.lane.b32.xlu0 %v3492, 64
      %v4550 = vpop.permute.xlu0 %4549
      %4551 = vrot.lane.b32.xlu0 %v3493, 64
      %v4552 = vpop.permute.xlu0 %4551
      %4553 = vrot.lane.b32.xlu0 %v3494, 64
      %v4554 = vpop.permute.xlu0 %4553
      %4555 = vrot.lane.b32.xlu0 %v3495, 64
      %v4556 = vpop.permute.xlu0 %4555
      %4557 = vrot.lane.b32.xlu0 %v3496, 64
      %v4558 = vpop.permute.xlu0 %4557
      %4559 = vrot.lane.b32.xlu0 %v3497, 64
      %v4560 = vpop.permute.xlu0 %4559
      %4561 = vrot.lane.b32.xlu0 %v3498, 64
      %v4562 = vpop.permute.xlu0 %4561
      %4563 = vrot.lane.b32.xlu0 %v3499, 64
      %v4564 = vpop.permute.xlu0 %4563
      %4565 = vrot.lane.b32.xlu0 %v3500, 64
      %v4566 = vpop.permute.xlu0 %4565
      %4607 = vrot.lane.b32.xlu0 %v3501, 96
      %v4608 = vpop.permute.xlu0 %4607
      %4609 = vrot.lane.b32.xlu0 %v3502, 96
      %v4610 = vpop.permute.xlu0 %4609
      %4611 = vrot.lane.b32.xlu0 %v3503, 96
      %v4612 = vpop.permute.xlu0 %4611
      %4613 = vrot.lane.b32.xlu0 %v3504, 96
      %v4614 = vpop.permute.xlu0 %4613
      %4615 = vrot.lane.b32.xlu0 %v3505, 96
      %v4616 = vpop.permute.xlu0 %4615
      %4617 = vrot.lane.b32.xlu0 %v3506, 96
      %v4618 = vpop.permute.xlu0 %4617
      %4619 = vrot.lane.b32.xlu0 %v3507, 96
      %v4620 = vpop.permute.xlu0 %4619
      %4621 = vrot.lane.b32.xlu0 %v3508, 96
      %v4622 = vpop.permute.xlu0 %4621
      %4623 = vrot.lane.b32.xlu0 %v3509, 96
      %v4624 = vpop.permute.xlu0 %4623
      %4625 = vrot.lane.b32.xlu0 %v3510, 96
      %v4626 = vpop.permute.xlu0 %4625
      %4627 = vrot.lane.b32.xlu0 %v3511, 96
      %v4628 = vpop.permute.xlu0 %4627
      %4629 = vrot.lane.b32.xlu0 %v3512, 96
      %v4630 = vpop.permute.xlu0 %4629
      %4631 = vrot.lane.b32.xlu0 %v3513, 96
      %v4632 = vpop.permute.xlu0 %4631
      %4633 = vrot.lane.b32.xlu0 %v3514, 96
      %v4634 = vpop.permute.xlu0 %4633
      %4635 = vrot.lane.b32.xlu0 %v3515, 96
      %v4636 = vpop.permute.xlu0 %4635
      %4637 = vrot.lane.b32.xlu0 %v3516, 96
      %v4638 = vpop.permute.xlu0 %4637
      %4639 = vrot.lane.b32.xlu0 %v3517, 96
      %v4640 = vpop.permute.xlu0 %4639
      %4641 = vrot.lane.b32.xlu0 %v3518, 96
      %v4642 = vpop.permute.xlu0 %4641
      %4643 = vrot.lane.b32.xlu0 %v3519, 96
      %v4644 = vpop.permute.xlu0 %4643
      %4645 = vrot.lane.b32.xlu0 %v3520, 96
      %v4646 = vpop.permute.xlu0 %4645
      %v4667 = vsel %vm1956, %v1998, %v4388
      %v4668 = vsel %vm1956, %v1999, %v4390
      %v4669 = vsel %vm1956, %v2000, %v4392
      %v4670 = vsel %vm1956, %v2001, %v4394
      %v4671 = vsel %vm1956, %v2002, %v4396
      %v4672 = vsel %vm1956, %v2003, %v4398
      %v4673 = vsel %vm1956, %v2004, %v4400
      %v4674 = vsel %vm1956, %v2005, %v4402
      %v4675 = vsel %vm1956, %v2006, %v4404
      %v4676 = vsel %vm1956, %v2007, %v4406
      %v4677 = vsel %vm1956, %v2008, %v4408
      %v4678 = vsel %vm1956, %v2009, %v4410
      %v4679 = vsel %vm1956, %v2010, %v4412
      %v4680 = vsel %vm1956, %v2011, %v4414
      %v4681 = vsel %vm1956, %v2012, %v4416
      %v4682 = vsel %vm1956, %v2013, %v4418
      %v4683 = vsel %vm1956, %v2014, %v4420
      %v4684 = vsel %vm1956, %v2015, %v4422
      %v4685 = vsel %vm1956, %v2016, %v4424
      %v4686 = vsel %vm1956, %v2017, %v4426
      %v4687 = vsel %vm1977, %v4667, %v1877
      %v4688 = vsel %vm1977, %v4668, %v1879
      %v4689 = vsel %vm1977, %v4669, %v1881
      %v4690 = vsel %vm1977, %v4670, %v1883
      %v4691 = vsel %vm1977, %v4671, %v1885
      %v4692 = vsel %vm1977, %v4672, %v1887
      %v4693 = vsel %vm1977, %v4673, %v1889
      %v4694 = vsel %vm1977, %v4674, %v1891
      %v4695 = vsel %vm1977, %v4675, %v1893
      %v4696 = vsel %vm1977, %v4676, %v1895
      %v4697 = vsel %vm1977, %v4677, %v1897
      %v4698 = vsel %vm1977, %v4678, %v1899
      %v4699 = vsel %vm1977, %v4679, %v1901
      %v4700 = vsel %vm1977, %v4680, %v1903
      %v4701 = vsel %vm1977, %v4681, %v1905
      %v4702 = vsel %vm1977, %v4682, %v1907
      %v4703 = vsel %vm1977, %v4683, %v1909
      %v4704 = vsel %vm1977, %v4684, %v1911
      %v4705 = vsel %vm1977, %v4685, %v1913
      %v4706 = vsel %vm1977, %v4686, %v1915
      %v4707 = vsel %vm1187, %v1436, %v4468
      %v4708 = vsel %vm1187, %v1437, %v4470
      %v4709 = vsel %vm1187, %v1438, %v4472
      %v4710 = vsel %vm1187, %v1439, %v4474
      %v4711 = vsel %vm1187, %v1440, %v4476
      %v4712 = vsel %vm1187, %v1441, %v4478
      %v4713 = vsel %vm1187, %v1442, %v4480
      %v4714 = vsel %vm1187, %v1443, %v4482
      %v4715 = vsel %vm1187, %v1444, %v4484
      %v4716 = vsel %vm1187, %v1445, %v4486
      %v4717 = vsel %vm1187, %v1446, %v4488
      %v4718 = vsel %vm1187, %v1447, %v4490
      %v4719 = vsel %vm1187, %v1448, %v4492
      %v4720 = vsel %vm1187, %v1449, %v4494
      %v4721 = vsel %vm1187, %v1450, %v4496
      %v4722 = vsel %vm1187, %v1451, %v4498
      %v4723 = vsel %vm1187, %v1452, %v4500
      %v4724 = vsel %vm1187, %v1453, %v4502
      %v4725 = vsel %vm1187, %v1454, %v4504
      %v4726 = vsel %vm1187, %v1455, %v4506
      %v4727 = vsel %vm1956, %v4707, %v4528
      %v4728 = vsel %vm1956, %v4708, %v4530
      %v4729 = vsel %vm1956, %v4709, %v4532
      %v4730 = vsel %vm1956, %v4710, %v4534
      %v4731 = vsel %vm1956, %v4711, %v4536
      %v4732 = vsel %vm1956, %v4712, %v4538
      %v4733 = vsel %vm1956, %v4713, %v4540
      %v4734 = vsel %vm1956, %v4714, %v4542
      %v4735 = vsel %vm1956, %v4715, %v4544
      %v4736 = vsel %vm1956, %v4716, %v4546
      %v4737 = vsel %vm1956, %v4717, %v4548
      %v4738 = vsel %vm1956, %v4718, %v4550
      %v4739 = vsel %vm1956, %v4719, %v4552
      %v4740 = vsel %vm1956, %v4720, %v4554
      %v4741 = vsel %vm1956, %v4721, %v4556
      %v4742 = vsel %vm1956, %v4722, %v4558
      %v4743 = vsel %vm1956, %v4723, %v4560
      %v4744 = vsel %vm1956, %v4724, %v4562
      %v4745 = vsel %vm1956, %v4725, %v4564
      %v4746 = vsel %vm1956, %v4726, %v4566
      %v4747 = vsel %vm1977, %v4727, %v4608
      %v4748 = vsel %vm1977, %v4728, %v4610
      %v4749 = vsel %vm1977, %v4729, %v4612
      %v4750 = vsel %vm1977, %v4730, %v4614
      %v4751 = vsel %vm1977, %v4731, %v4616
      %v4752 = vsel %vm1977, %v4732, %v4618
      %v4753 = vsel %vm1977, %v4733, %v4620
      %v4754 = vsel %vm1977, %v4734, %v4622
      %v4755 = vsel %vm1977, %v4735, %v4624
      %v4756 = vsel %vm1977, %v4736, %v4626
      %v4757 = vsel %vm1977, %v4737, %v4628
      %v4758 = vsel %vm1977, %v4738, %v4630
      %v4759 = vsel %vm1977, %v4739, %v4632
      %v4760 = vsel %vm1977, %v4740, %v4634
      %v4761 = vsel %vm1977, %v4741, %v4636
      %v4762 = vsel %vm1977, %v4742, %v4638
      %v4763 = vsel %vm1977, %v4743, %v4640
      %v4764 = vsel %vm1977, %v4744, %v4642
      %v4765 = vsel %vm1977, %v4745, %v4644
      %v4766 = vsel %vm1977, %v4746, %v4646
      %v4767 = vpack.c.bf16 %v4688, %v4687
      %v4768 = vpack.c.bf16 %v4748, %v4747
      %v4769 = vpack.c.bf16 %v4368, %v4367
      %v4770 = vpack.c.bf16 %v4690, %v4689
      %v4771 = vpack.c.bf16 %v4750, %v4749
      %v4772 = vpack.c.bf16 %v4370, %v4369
      %v4773 = vpack.c.bf16 %v4692, %v4691
      %v4774 = vpack.c.bf16 %v4752, %v4751
      %v4775 = vpack.c.bf16 %v4372, %v4371
      %v4776 = vpack.c.bf16 %v4694, %v4693
      %v4777 = vpack.c.bf16 %v4754, %v4753
      %v4778 = vpack.c.bf16 %v4374, %v4373
      %v4779 = vpack.c.bf16 %v4696, %v4695
      %v4780 = vpack.c.bf16 %v4756, %v4755
      %v4781 = vpack.c.bf16 %v4376, %v4375
      %v4782 = vpack.c.bf16 %v4698, %v4697
      %v4783 = vpack.c.bf16 %v4758, %v4757
      %v4784 = vpack.c.bf16 %v4378, %v4377
      %v4785 = vpack.c.bf16 %v4700, %v4699
      %v4786 = vpack.c.bf16 %v4760, %v4759
      %v4787 = vpack.c.bf16 %v4380, %v4379
      %v4788 = vpack.c.bf16 %v4702, %v4701
      %v4789 = vpack.c.bf16 %v4762, %v4761
      %v4790 = vpack.c.bf16 %v4382, %v4381
      %v4791 = vpack.c.bf16 %v4704, %v4703
      %v4792 = vpack.c.bf16 %v4764, %v4763
      %v4793 = vpack.c.bf16 %v4384, %v4383
      %v4794 = vpack.c.bf16 %v4706, %v4705
      %v4795 = vpack.c.bf16 %v4766, %v4765
      %v4796 = vpack.c.bf16 %v4386, %v4385
      %v4798 = vsel %vm1187, %v4769, 0
      %v4801 = vsel %vm1187, %v4772, 0
      %v4804 = vsel %vm1187, %v4775, 0
      %v4807 = vsel %vm1187, %v4778, 0
      %v4810 = vsel %vm1187, %v4781, 0
      %v4813 = vsel %vm1187, %v4784, 0
      %v4816 = vsel %vm1187, %v4787, 0
      %v4819 = vsel %vm1187, %v4790, 0
      %v4822 = vsel %vm1187, %v4793, 0
      %v4825 = vsel %vm1187, %v4796, 0
      %4827 = vmatprep.subr.bf16.mxu0 0
      %4828 = vmatpush1.bf16.msra.mxu0 %v2203
      %4829 = vmatprep.subr.bf16.mxu0 0
      %4830 = vmatpush1.bf16.msra.mxu0 %v2204
      %4831 = vmatprep.subr.bf16.mxu0 0
      %4832 = vmatpush1.bf16.msra.mxu0 %v2205
      %4833 = vmatprep.subr.bf16.mxu0 0
      %4834 = vmatpush1.bf16.msra.mxu0 %v2206
      %4835 = vmatprep.subr.bf16.mxu0 0
      %4836 = vmatpush1.bf16.msra.mxu0 %v2207
      %4837 = vmatprep.subr.bf16.mxu0 0
      %4838 = vmatpush1.bf16.msra.mxu0 %v2208
      %4839 = vmatprep.subr.bf16.mxu0 0
      %4840 = vmatpush1.bf16.msra.mxu0 %v2209
      %4841 = vmatprep.subr.bf16.mxu0 0
      %4842 = vmatpush1.bf16.msra.mxu0 %v2210
      %4843 = vmatprep.subr.bf16.mxu0 0
      %4844 = vmatpush1.bf16.msra.mxu0 %v2211
      %4845 = vmatprep.subr.bf16.mxu0 0
      %4846 = vmatpush1.bf16.msra.mxu0 %v2212
      %4847 = vmatprep.subr.bf16.mxu0 0
      %4848 = vmatpush1.bf16.msra.mxu0 %v2213
      %4849 = vmatprep.subr.bf16.mxu0 0
      %4850 = vmatpush1.bf16.msra.mxu0 %v2214
      %4851 = vmatprep.subr.bf16.mxu0 0
      %4852 = vmatpush1.bf16.msra.mxu0 %v2215
      %4853 = vmatprep.subr.bf16.mxu0 0
      %4854 = vmatpush1.bf16.msra.mxu0 %v2216
      %4855 = vmatprep.subr.bf16.mxu0 0
      %4856 = vmatpush1.bf16.msra.mxu0 %v2217
      %4857 = vmatprep.subr.bf16.mxu0 0
      %4858 = vmatpush1.bf16.msra.mxu0 %v2218
      %4859 = vmatprep.mubr.bf16.mxu0 %v4768
      %4860 = vmatmul.mubr.bf16.gmra.mrb[0].mxu0 %v4767
      %v4861 = vpop.f32.mrb[0].mxu0
      %v4862 = vadd.f32 %v2129, %v4861
      %v4863 = vpop.f32.mrb[0].mxu0
      %v4864 = vpop.f32.mrb[0].mxu0
      %v4865 = vadd.f32 %v2129, %v4864
      %v4866 = vpop.f32.mrb[0].mxu0
      %4867 = vmatprep.mubr.bf16.mxu0 %v4771
      %4868 = vmatmul.mubr.bf16.gmra.mrb[0].mxu0 %v4770
      %v4869 = vpop.f32.mrb[0].mxu0
      %v4870 = vadd.f32 %v2129, %v4869
      %v4871 = vpop.f32.mrb[0].mxu0
      %v4872 = vpop.f32.mrb[0].mxu0
      %v4873 = vadd.f32 %v2129, %v4872
      %v4874 = vpop.f32.mrb[0].mxu0
      %4875 = vmatprep.mubr.bf16.mxu0 %v4774
      %4876 = vmatmul.mubr.bf16.gmra.mrb[0].mxu0 %v4773
      %v4877 = vpop.f32.mrb[0].mxu0
      %v4878 = vadd.f32 %v2129, %v4877
      %v4879 = vpop.f32.mrb[0].mxu0
      %v4880 = vpop.f32.mrb[0].mxu0
      %v4881 = vadd.f32 %v2129, %v4880
      %v4882 = vpop.f32.mrb[0].mxu0
      %4883 = vmatprep.mubr.bf16.mxu0 %v4777
      %4884 = vmatmul.mubr.bf16.gmra.mrb[0].mxu0 %v4776
      %v4885 = vpop.f32.mrb[0].mxu0
      %v4886 = vadd.f32 %v2129, %v4885
      %v4887 = vpop.f32.mrb[0].mxu0
      %v4888 = vpop.f32.mrb[0].mxu0
      %v4889 = vadd.f32 %v2129, %v4888
      %v4890 = vpop.f32.mrb[0].mxu0
      %4891 = vmatprep.mubr.bf16.mxu0 %v4780
      %4892 = vmatmul.mubr.bf16.gmra.mrb[0].mxu0 %v4779
      %v4893 = vpop.f32.mrb[0].mxu0
      %v4894 = vadd.f32 %v2129, %v4893
      %v4895 = vpop.f32.mrb[0].mxu0
      %v4896 = vpop.f32.mrb[0].mxu0
      %v4897 = vadd.f32 %v2129, %v4896
      %v4898 = vpop.f32.mrb[0].mxu0
      %4899 = vmatprep.mubr.bf16.mxu0 %v4783
      %4900 = vmatmul.mubr.bf16.gmra.mrb[0].mxu0 %v4782
      %v4901 = vpop.f32.mrb[0].mxu0
      %v4902 = vadd.f32 %v2129, %v4901
      %v4903 = vpop.f32.mrb[0].mxu0
      %v4904 = vpop.f32.mrb[0].mxu0
      %v4905 = vadd.f32 %v2129, %v4904
      %v4906 = vpop.f32.mrb[0].mxu0
      %4907 = vmatprep.mubr.bf16.mxu0 %v4786
      %4908 = vmatmul.mubr.bf16.gmra.mrb[0].mxu0 %v4785
      %v4909 = vpop.f32.mrb[0].mxu0
      %v4910 = vadd.f32 %v2129, %v4909
      %v4911 = vpop.f32.mrb[0].mxu0
      %v4912 = vpop.f32.mrb[0].mxu0
      %v4913 = vadd.f32 %v2129, %v4912
      %v4914 = vpop.f32.mrb[0].mxu0
      %4915 = vmatprep.mubr.bf16.mxu0 %v4789
      %4916 = vmatmul.mubr.bf16.gmra.mrb[0].mxu0 %v4788
      %v4917 = vpop.f32.mrb[0].mxu0
      %v4918 = vadd.f32 %v2129, %v4917
      %v4919 = vpop.f32.mrb[0].mxu0
      %v4920 = vpop.f32.mrb[0].mxu0
      %v4921 = vadd.f32 %v2129, %v4920
      %v4922 = vpop.f32.mrb[0].mxu0
      %4923 = vmatprep.mubr.bf16.mxu0 %v4792
      %4924 = vmatmul.mubr.bf16.gmra.mrb[0].mxu0 %v4791
      %v4925 = vpop.f32.mrb[0].mxu0
      %v4926 = vadd.f32 %v2129, %v4925
      %v4927 = vpop.f32.mrb[0].mxu0
      %v4928 = vpop.f32.mrb[0].mxu0
      %v4929 = vadd.f32 %v2129, %v4928
      %v4930 = vpop.f32.mrb[0].mxu0
      %4931 = vmatprep.mubr.bf16.mxu0 %v4795
      %4932 = vmatmul.mubr.bf16.gmra.mrb[0].mxu0 %v4794
      %v4933 = vpop.f32.mrb[0].mxu0
      %v4934 = vadd.f32 %v2129, %v4933
      %v4935 = vpop.f32.mrb[0].mxu0
      %v4936 = vpop.f32.mrb[0].mxu0
      %v4937 = vadd.f32 %v2129, %v4936
      %v4938 = vpop.f32.mrb[0].mxu0
      %4939 = vdwg.mxu0
      %4940 = vmatprep.subr.bf16.mxu0 0
      %4941 = vmatpush1.bf16.msra.mxu0 %v2219
      %4942 = vmatprep.subr.bf16.mxu0 0
      %4943 = vmatpush1.bf16.msra.mxu0 %v2220
      %4944 = vmatprep.subr.bf16.mxu0 0
      %4945 = vmatpush1.bf16.msra.mxu0 0
      %4946 = vmatprep.subr.bf16.mxu0 0
      %4947 = vmatpush1.bf16.msra.mxu0 0
      %4948 = vmatprep.subr.bf16.mxu0 0
      %4949 = vmatpush1.bf16.msra.mxu0 0
      %4950 = vmatprep.subr.bf16.mxu0 0
      %4951 = vmatpush1.bf16.msra.mxu0 0
      %4952 = vmatprep.subr.bf16.mxu0 0
      %4953 = vmatpush1.bf16.msra.mxu0 0
      %4954 = vmatprep.subr.bf16.mxu0 0
      %4955 = vmatpush1.bf16.msra.mxu0 0
      %4956 = vmatprep.subr.bf16.mxu0 0
      %4957 = vmatpush1.bf16.msra.mxu0 0
      %4958 = vmatprep.subr.bf16.mxu0 0
      %4959 = vmatpush1.bf16.msra.mxu0 0
      %4960 = vmatprep.subr.bf16.mxu0 0
      %4961 = vmatpush1.bf16.msra.mxu0 0
      %4962 = vmatprep.subr.bf16.mxu0 0
      %4963 = vmatpush1.bf16.msra.mxu0 0
      %4964 = vmatprep.subr.bf16.mxu0 0
      %4965 = vmatpush1.bf16.msra.mxu0 0
      %4966 = vmatprep.subr.bf16.mxu0 0
      %4967 = vmatpush1.bf16.msra.mxu0 0
      %4968 = vmatprep.subr.bf16.mxu0 0
      %4969 = vmatpush1.bf16.msra.mxu0 0
      %4970 = vmatprep.subr.bf16.mxu0 0
      %4971 = vmatpush1.bf16.msra.mxu0 0
      %4972 = vmatprep.mubr.bf16.mxu0 0
      %4973 = vmatmul.mubr.bf16.gmra.mrb[0].mxu0 %v4798
      %v4974 = vpop.f32.mrb[0].mxu0
      %v4975 = vadd.f32 %v4862, %v4974
      %v4976 = vpop.f32.mrb[0].mxu0
      %v4977 = vpop.f32.mrb[0].mxu0
      %v4978 = vadd.f32 %v4865, %v4977
      %v4979 = vpop.f32.mrb[0].mxu0
      %4980 = vmatprep.mubr.bf16.mxu0 0
      %4981 = vmatmul.mubr.bf16.gmra.mrb[0].mxu0 %v4801
      %v4982 = vpop.f32.mrb[0].mxu0
      %v4983 = vadd.f32 %v4870, %v4982
      %v4984 = vpop.f32.mrb[0].mxu0
      %v4985 = vpop.f32.mrb[0].mxu0
      %v4986 = vadd.f32 %v4873, %v4985
      %v4987 = vpop.f32.mrb[0].mxu0
      %4988 = vmatprep.mubr.bf16.mxu0 0
      %4989 = vmatmul.mubr.bf16.gmra.mrb[0].mxu0 %v4804
      %v4990 = vpop.f32.mrb[0].mxu0
      %v4991 = vadd.f32 %v4878, %v4990
      %v4992 = vpop.f32.mrb[0].mxu0
      %v4993 = vpop.f32.mrb[0].mxu0
      %v4994 = vadd.f32 %v4881, %v4993
      %v4995 = vpop.f32.mrb[0].mxu0
      %4996 = vmatprep.mubr.bf16.mxu0 0
      %4997 = vmatmul.mubr.bf16.gmra.mrb[0].mxu0 %v4807
      %v4998 = vpop.f32.mrb[0].mxu0
      %v4999 = vadd.f32 %v4886, %v4998
      %v5000 = vpop.f32.mrb[0].mxu0
      %v5001 = vpop.f32.mrb[0].mxu0
      %v5002 = vadd.f32 %v4889, %v5001
      %v5003 = vpop.f32.mrb[0].mxu0
      %5004 = vmatprep.mubr.bf16.mxu0 0
      %5005 = vmatmul.mubr.bf16.gmra.mrb[0].mxu0 %v4810
      %v5006 = vpop.f32.mrb[0].mxu0
      %v5007 = vadd.f32 %v4894, %v5006
      %v5008 = vpop.f32.mrb[0].mxu0
      %v5009 = vpop.f32.mrb[0].mxu0
      %v5010 = vadd.f32 %v4897, %v5009
      %v5011 = vpop.f32.mrb[0].mxu0
      %5012 = vmatprep.mubr.bf16.mxu0 0
      %5013 = vmatmul.mubr.bf16.gmra.mrb[0].mxu0 %v4813
      %v5014 = vpop.f32.mrb[0].mxu0
      %v5015 = vadd.f32 %v4902, %v5014
      %v5016 = vpop.f32.mrb[0].mxu0
      %v5017 = vpop.f32.mrb[0].mxu0
      %v5018 = vadd.f32 %v4905, %v5017
      %v5019 = vpop.f32.mrb[0].mxu0
      %5020 = vmatprep.mubr.bf16.mxu0 0
      %5021 = vmatmul.mubr.bf16.gmra.mrb[0].mxu0 %v4816
      %v5022 = vpop.f32.mrb[0].mxu0
      %v5023 = vadd.f32 %v4910, %v5022
      %v5024 = vpop.f32.mrb[0].mxu0
      %v5025 = vpop.f32.mrb[0].mxu0
      %v5026 = vadd.f32 %v4913, %v5025
      %v5027 = vpop.f32.mrb[0].mxu0
      %5028 = vmatprep.mubr.bf16.mxu0 0
      %5029 = vmatmul.mubr.bf16.gmra.mrb[0].mxu0 %v4819
      %v5030 = vpop.f32.mrb[0].mxu0
      %v5031 = vadd.f32 %v4918, %v5030
      %v5032 = vpop.f32.mrb[0].mxu0
      %v5033 = vpop.f32.mrb[0].mxu0
      %v5034 = vadd.f32 %v4921, %v5033
      %v5035 = vpop.f32.mrb[0].mxu0
      %5036 = vmatprep.mubr.bf16.mxu0 0
      %5037 = vmatmul.mubr.bf16.gmra.mrb[0].mxu0 %v4822
      %v5038 = vpop.f32.mrb[0].mxu0
      %v5039 = vadd.f32 %v4926, %v5038
      %v5040 = vpop.f32.mrb[0].mxu0
      %v5041 = vpop.f32.mrb[0].mxu0
      %v5042 = vadd.f32 %v4929, %v5041
      %v5043 = vpop.f32.mrb[0].mxu0
      %5044 = vmatprep.mubr.bf16.mxu0 0
      %5045 = vmatmul.mubr.bf16.gmra.mrb[0].mxu0 %v4825
      %v5046 = vpop.f32.mrb[0].mxu0
      %v5047 = vadd.f32 %v4934, %v5046
      %v5048 = vpop.f32.mrb[0].mxu0
      %v5049 = vpop.f32.mrb[0].mxu0
      %v5050 = vadd.f32 %v4937, %v5049
      %v5051 = vpop.f32.mrb[0].mxu0
      %5052 = vdwg.mxu0
      %v5053 = vmax.f32 %v4975, 0.0
      %v5054 = vmax.f32 %v4978, 0.0
      %v5055 = vmax.f32 %v4983, 0.0
      %v5056 = vmax.f32 %v4986, 0.0
      %v5057 = vmax.f32 %v4991, 0.0
      %v5058 = vmax.f32 %v4994, 0.0
      %v5059 = vmax.f32 %v4999, 0.0
      %v5060 = vmax.f32 %v5002, 0.0
      %v5061 = vmax.f32 %v5007, 0.0
      %v5062 = vmax.f32 %v5010, 0.0
      %v5063 = vmax.f32 %v5015, 0.0
      %v5064 = vmax.f32 %v5018, 0.0
      %v5065 = vmax.f32 %v5023, 0.0
      %v5066 = vmax.f32 %v5026, 0.0
      %v5067 = vmax.f32 %v5031, 0.0
      %v5068 = vmax.f32 %v5034, 0.0
      %v5069 = vmax.f32 %v5039, 0.0
      %v5070 = vmax.f32 %v5042, 0.0
      %v5071 = vmax.f32 %v5047, 0.0
      %v5072 = vmax.f32 %v5050, 0.0
      %v5073 = vmax.f32 %v4347, %v5053
      %v5074 = vmax.f32 %v4348, %v5054
      %v5075 = vmax.f32 %v4349, %v5055
      %v5076 = vmax.f32 %v4350, %v5056
      %v5077 = vmax.f32 %v4351, %v5057
      %v5078 = vmax.f32 %v4352, %v5058
      %v5079 = vmax.f32 %v4353, %v5059
      %v5080 = vmax.f32 %v4354, %v5060
      %v5081 = vmax.f32 %v4355, %v5061
      %v5082 = vmax.f32 %v4356, %v5062
      %v5083 = vmax.f32 %v4357, %v5063
      %v5084 = vmax.f32 %v4358, %v5064
      %v5085 = vmax.f32 %v4359, %v5065
      %v5086 = vmax.f32 %v4360, %v5066
      %v5087 = vmax.f32 %v4361, %v5067
      %v5088 = vmax.f32 %v4362, %v5068
      %v5089 = vmax.f32 %v4363, %v5069
      %v5090 = vmax.f32 %v4364, %v5070
      %v5091 = vmax.f32 %v4365, %v5071
      %v5092 = vmax.f32 %v4366, %v5072
      %v5093 = vpack.c.bf16 %v5074, %v5073
      %v5094 = vpack.c.bf16 %v5076, %v5075
      %v5095 = vpack.c.bf16 %v5078, %v5077
      %v5096 = vpack.c.bf16 %v5080, %v5079
      %v5097 = vpack.c.bf16 %v5082, %v5081
      %v5098 = vpack.c.bf16 %v5084, %v5083
      %v5099 = vpack.c.bf16 %v5086, %v5085
      %v5100 = vpack.c.bf16 %v5088, %v5087
      %v5101 = vpack.c.bf16 %v5090, %v5089
      %v5102 = vpack.c.bf16 %v5092, %v5091
      %v5113 = vunpack.c.l.b16 %v5093
      %v5114 = vunpack.c.h.b16 %v5093
      %v5115 = vunpack.c.l.b16 %v5094
      %v5116 = vunpack.c.h.b16 %v5094
      %v5117 = vunpack.c.l.b16 %v5095
      %v5118 = vunpack.c.h.b16 %v5095
      %v5119 = vunpack.c.l.b16 %v5096
      %v5120 = vunpack.c.h.b16 %v5096
      %v5121 = vunpack.c.l.b16 %v5097
      %v5122 = vunpack.c.h.b16 %v5097
      %v5123 = vunpack.c.l.b16 %v5098
      %v5124 = vunpack.c.h.b16 %v5098
      %v5125 = vunpack.c.l.b16 %v5099
      %v5126 = vunpack.c.h.b16 %v5099
      %v5127 = vunpack.c.l.b16 %v5100
      %v5128 = vunpack.c.h.b16 %v5100
      %v5129 = vunpack.c.l.b16 %v5101
      %v5130 = vunpack.c.h.b16 %v5101
      %v5131 = vunpack.c.l.b16 %v5102
      %v5132 = vunpack.c.h.b16 %v5102
      %v5133 = vpack.c.b16 %v5113, %v5113
      %v5134 = vpack.c.b16 %v5114, %v5114
      %v5135 = vpack.c.b16 %v5115, %v5115
      %v5136 = vpack.c.b16 %v5116, %v5116
      %v5137 = vpack.c.b16 %v5117, %v5117
      %v5138 = vpack.c.b16 %v5118, %v5118
      %v5139 = vpack.c.b16 %v5119, %v5119
      %v5140 = vpack.c.b16 %v5120, %v5120
      %v5141 = vpack.c.b16 %v5121, %v5121
      %v5142 = vpack.c.b16 %v5122, %v5122
      %v5143 = vpack.c.b16 %v5123, %v5123
      %v5144 = vpack.c.b16 %v5124, %v5124
      %v5145 = vpack.c.b16 %v5125, %v5125
      %v5146 = vpack.c.b16 %v5126, %v5126
      %v5147 = vpack.c.b16 %v5127, %v5127
      %v5148 = vpack.c.b16 %v5128, %v5128
      %v5149 = vpack.c.b16 %v5129, %v5129
      %v5150 = vpack.c.b16 %v5130, %v5130
      %v5151 = vpack.c.b16 %v5131, %v5131
      %v5152 = vpack.c.b16 %v5132, %v5132
      %vm5173 = vcmask 519168
      %5174 = vst.msk [vmem:[%s226] sm:$0xf] %vm5173, %v5133
      %5175 = vst.msk [vmem:[%s226 + $0x4] sm:$0xf] %vm5173, %v5134
      %5176 = vst.msk [vmem:[%s226 + $0x8] sm:$0xf] %vm5173, %v5135
      %5177 = vst.msk [vmem:[%s226 + $0xc] sm:$0xf] %vm5173, %v5136
      %5178 = vst.msk [vmem:[%s226 + $0x10] sm:$0xf] %vm5173, %v5137
      %5179 = vst.msk [vmem:[%s226 + $0x14] sm:$0xf] %vm5173, %v5138
      %5180 = vst.msk [vmem:[%s226 + $0x18] sm:$0xf] %vm5173, %v5139
      %5181 = vst.msk [vmem:[%s226 + $0x1c] sm:$0xf] %vm5173, %v5140
      %5182 = vst.msk [vmem:[%s226 + $0x20] sm:$0xf] %vm5173, %v5141
      %5183 = vst.msk [vmem:[%s226 + $0x24] sm:$0xf] %vm5173, %v5142
      %5184 = vst.msk [vmem:[%s226 + $0x28] sm:$0xf] %vm5173, %v5143
      %5185 = vst.msk [vmem:[%s226 + $0x2c] sm:$0xf] %vm5173, %v5144
      %5186 = vst.msk [vmem:[%s226 + $0x30] sm:$0xf] %vm5173, %v5145
      %5187 = vst.msk [vmem:[%s226 + $0x34] sm:$0xf] %vm5173, %v5146
      %5188 = vst.msk [vmem:[%s226 + $0x38] sm:$0xf] %vm5173, %v5147
      %5189 = vst.msk [vmem:[%s226 + $0x3c] sm:$0xf] %vm5173, %v5148
      %5190 = vst.msk [vmem:[%s226 + $0x40] sm:$0xf] %vm5173, %v5149
      %5191 = vst.msk [vmem:[%s226 + $0x44] sm:$0xf] %vm5173, %v5150
      %5192 = vst.msk [vmem:[%s226 + $0x48] sm:$0xf] %vm5173, %v5151
      %vm5193 = vcmask 517120
      %5194 = vst.msk [vmem:[%s226 + $0x4c] sm:$0x3] %vm5193, %v5152
      %p5195 = scmp.lt.s32.totalorder %s16, 1
      %s5196 = scalar_select %p5195, %s16, 1
      %s5197 = smul.addr %s5196, 20
      %s5198 = smul.addr %s5197, 4
      %s5199 = scalar_lea.vmem %s5, %s5198
      // Predicated region
      $region41: #{forward.2} parent=39 // pred_check
        %p5200 = pneg %p144
      $region42: #{forward.2} parent=39 // pred_check_branch
        %5202 = sbr.rel (%p5200) target = $region44
      $region43: #{forward.2} parent=39 // pred_region
        _
      $region44: #{forward.2} parent=39 // pred_fallthru
        _
    $region40: #{forward.2} parent=5 // pred_fallthru
      _
    %p5203 = scmp.le.s32.totalorder 2, %s11
    // Predicated region
    $region45: #{forward.2} parent=5 // pred_check
      %p5204 = pneg %p5203
    $region46: #{forward.2} parent=5 // pred_check_branch
      %5206 = sbr.rel (%p5204) target = $region48
    $region47: #{forward.2} parent=5 // pred_region
      %s5207 = ssub.s32 %s11, 2
      // Predicated region
      $region49: #{forward.2} parent=47 // pred_check
        %p5208 = pneg %p150
      $region50: #{forward.2} parent=47 // pred_check_branch
        %5210 = sbr.rel (%p5208) target = $region52
      $region51: #{forward.2} parent=47 // pred_region
        %p5211 = scmp.lt.s32.totalorder %s17, 1
        %s5212 = scalar_select %p5211, %s17, 1
        %s5213 = smul.addr %s5212, 20
        %s5214 = smul.addr %s5213, 4
        %s5215 = scalar_lea.vmem %s5, %s5214
      $region52: #{forward.2} parent=47 // pred_fallthru
        _
    $region48: #{forward.2} parent=5 // pred_fallthru
      _
  $region6: #{forward.2} parent=0 // loop_footer
    %s15 = sadd.s32 1, %s11
  $region7: #{forward.2} parent=0 // loop_footer_branch
    %10 = sbr.rel target = $region3
  $region8: #{forward.2} parent=0 // loop_exit
    _

// kernel: forward.3
$region0: #{forward.3}
  #allocation0 [shape = 'u32[]', space=smem, size = 0x4, offset = 0x4, fixed_abs, tag = 'smem constant byte address 0x4 - core index']
  #allocation1 [shape = 'u32[144,128]{1,0:T(1,128)}', space=vmem, size = 0x12000, scoped, tag = 'internal scratch']
  %s0 = inlined_call_operand.vmem [shape: bf16[2,9984], index: 0, kind: input, shape index: {}]
  %s1 = inlined_call_operand.vmem [shape: bf16[9984,128], index: 1, kind: input, shape index: {}]
  %s2 = inlined_call_operand.vmem [shape: f32[1,128], index: 2, kind: input, shape index: {}]
  %s3 = inlined_call_operand.vmem [shape: f32[128,10], index: 3, kind: input, shape index: {}]
  %s4 = inlined_call_operand.vmem [shape: f32[1,10], index: 4, kind: input, shape index: {}]
  %s5 = inlined_call_operand.hbm [shape: f32[2,10], index: 5, kind: output, shape index: {}]
  %s6 = sld [smem:[#allocation0]]
  $region30: #{forward.3} parent=0
    _
  %s8 = ssub.s32 1, %s6
  %s9 = scalar_select 0, %s8, %s6
  $region1: #{forward.3} parent=0
    #allocation2 [shape = 'u8[1024]{0}', space=vmem, size = 0x400, scoped, tag = 'output window, operand 0, single buffered']
    #allocation3 [shape = 's32[1]{0}', space=sflag, size = 0x4, scoped, tag = 'scoped memory for forward.3']
    %10 = vsyncpa [#allocation3], 0
    // Predicated region
    $region2: #{forward.3} parent=1 // pred_check
      _
    $region3: #{forward.3} parent=1 // pred_check_branch
      %12 = sbr.rel (0) target = $region5
    $region4: #{forward.3} parent=1 // pred_region
      _
    $region5: #{forward.3} parent=1 // pred_fallthru
      _
    // Predicated region
    $region6: #{forward.3} parent=1 // pred_check
      _
    $region7: #{forward.3} parent=1 // pred_check_branch
      %14 = sbr.rel (0) target = $region9
    $region8: #{forward.3} parent=1 // pred_region
      _
    $region9: #{forward.3} parent=1 // pred_fallthru
      _
    // Predicated region
    $region10: #{forward.3} parent=1 // pred_check
      _
    $region11: #{forward.3} parent=1 // pred_check_branch
      %16 = sbr.rel (0) target = $region13
    $region12: #{forward.3} parent=1 // pred_region
      _
    $region13: #{forward.3} parent=1 // pred_fallthru
      _
    // Predicated region
    $region14: #{forward.3} parent=1 // pred_check
      _
    $region15: #{forward.3} parent=1 // pred_check_branch
      %18 = sbr.rel (0) target = $region17
    $region16: #{forward.3} parent=1 // pred_region
      _
    $region17: #{forward.3} parent=1 // pred_fallthru
      _
    // Predicated region
    $region18: #{forward.3} parent=1 // pred_check
      _
    $region19: #{forward.3} parent=1 // pred_check_branch
      %20 = sbr.rel (0) target = $region21
    $region20: #{forward.3} parent=1 // pred_region
      _
    $region21: #{forward.3} parent=1 // pred_fallthru
      _
    %v22 = vld [vmem:[%s0] sm:$0xff]
    %v23 = vld [vmem:[%s0 + $0x8] sm:$0xff]
    %v24 = vld [vmem:[%s0 + $0x10] sm:$0xff]
    %v25 = vld [vmem:[%s0 + $0x18] sm:$0xff]
    %v26 = vld [vmem:[%s0 + $0x20] sm:$0xff]
    %v27 = vld [vmem:[%s0 + $0x28] sm:$0xff]
    %v28 = vld [vmem:[%s0 + $0x30] sm:$0xff]
    %v29 = vld [vmem:[%s0 + $0x38] sm:$0xff]
    %v30 = vld [vmem:[%s0 + $0x40] sm:$0xff]
    %v31 = vld [vmem:[%s0 + $0x48] sm:$0x3f]
    %v32 = vld [vmem:[%s1] sm:$0xf]
    %v33 = vld [vmem:[%s1 + $0x4] sm:$0xf]
    %v34 = vld [vmem:[%s1 + $0x8] sm:$0xf]
    %v35 = vld [vmem:[%s1 + $0xc] sm:$0xf]
    %v36 = vld [vmem:[%s1 + $0x10] sm:$0xf]
    %v37 = vld [vmem:[%s1 + $0x14] sm:$0xf]
    %v38 = vld [vmem:[%s1 + $0x18] sm:$0xf]
    %v39 = vld [vmem:[%s1 + $0x1c] sm:$0xf]
    %v40 = vld [vmem:[%s1 + $0x20] sm:$0xf]
    %v41 = vld [vmem:[%s1 + $0x24] sm:$0xf]
    %v42 = vld [vmem:[%s1 + $0x28] sm:$0xf]
    %v43 = vld [vmem:[%s1 + $0x2c] sm:$0xf]
    %v44 = vld [vmem:[%s1 + $0x30] sm:$0xf]
    %v45 = vld [vmem:[%s1 + $0x34] sm:$0xf]
    %v46 = vld [vmem:[%s1 + $0x38] sm:$0xf]
    %v47 = vld [vmem:[%s1 + $0x3c] sm:$0xf]
    %v48 = vld [vmem:[%s1 + $0x40] sm:$0xf]
    %v49 = vld [vmem:[%s1 + $0x44] sm:$0xf]
    %v50 = vld [vmem:[%s1 + $0x48] sm:$0xf]
    %v51 = vld [vmem:[%s1 + $0x4c] sm:$0xf]
    %v52 = vld [vmem:[%s1 + $0x50] sm:$0xf]
    %v53 = vld [vmem:[%s1 + $0x54] sm:$0xf]
    %v54 = vld [vmem:[%s1 + $0x58] sm:$0xf]
    %v55 = vld [vmem:[%s1 + $0x5c] sm:$0xf]
    %v56 = vld [vmem:[%s1 + $0x60] sm:$0xf]
    %v57 = vld [vmem:[%s1 + $0x64] sm:$0xf]
    %v58 = vld [vmem:[%s1 + $0x68] sm:$0xf]
    %v59 = vld [vmem:[%s1 + $0x6c] sm:$0xf]
    %v60 = vld [vmem:[%s1 + $0x70] sm:$0xf]
    %v61 = vld [vmem:[%s1 + $0x74] sm:$0xf]
    %v62 = vld [vmem:[%s1 + $0x78] sm:$0xf]
    %v63 = vld [vmem:[%s1 + $0x7c] sm:$0xf]
    %v64 = vld [vmem:[%s1 + $0x80] sm:$0xf]
    %v65 = vld [vmem:[%s1 + $0x84] sm:$0xf]
    %v66 = vld [vmem:[%s1 + $0x88] sm:$0xf]
    %v67 = vld [vmem:[%s1 + $0x8c] sm:$0xf]
    %v68 = vld [vmem:[%s1 + $0x90] sm:$0xf]
    %v69 = vld [vmem:[%s1 + $0x94] sm:$0xf]
    %v70 = vld [vmem:[%s1 + $0x98] sm:$0xf]
    %v71 = vld [vmem:[%s1 + $0x9c] sm:$0xf]
    %v72 = vld [vmem:[%s1 + $0xa0] sm:$0xf]
    %v73 = vld [vmem:[%s1 + $0xa4] sm:$0xf]
    %v74 = vld [vmem:[%s1 + $0xa8] sm:$0xf]
    %v75 = vld [vmem:[%s1 + $0xac] sm:$0xf]
    %v76 = vld [vmem:[%s1 + $0xb0] sm:$0xf]
    %v77 = vld [vmem:[%s1 + $0xb4] sm:$0xf]
    %v78 = vld [vmem:[%s1 + $0xb8] sm:$0xf]
    %v79 = vld [vmem:[%s1 + $0xbc] sm:$0xf]
    %v80 = vld [vmem:[%s1 + $0xc0] sm:$0xf]
    %v81 = vld [vmem:[%s1 + $0xc4] sm:$0xf]
    %v82 = vld [vmem:[%s1 + $0xc8] sm:$0xf]
    %v83 = vld [vmem:[%s1 + $0xcc] sm:$0xf]
    %v84 = vld [vmem:[%s1 + $0xd0] sm:$0xf]
    %v85 = vld [vmem:[%s1 + $0xd4] sm:$0xf]
    %v86 = vld [vmem:[%s1 + $0xd8] sm:$0xf]
    %v87 = vld [vmem:[%s1 + $0xdc] sm:$0xf]
    %v88 = vld [vmem:[%s1 + $0xe0] sm:$0xf]
    %v89 = vld [vmem:[%s1 + $0xe4] sm:$0xf]
    %v90 = vld [vmem:[%s1 + $0xe8] sm:$0xf]
    %v91 = vld [vmem:[%s1 + $0xec] sm:$0xf]
    %v92 = vld [vmem:[%s1 + $0xf0] sm:$0xf]
    %v93 = vld [vmem:[%s1 + $0xf4] sm:$0xf]
    %v94 = vld [vmem:[%s1 + $0xf8] sm:$0xf]
    %v95 = vld [vmem:[%s1 + $0xfc] sm:$0xf]
    %v96 = vld [vmem:[%s1 + $0x100] sm:$0xf]
    %v97 = vld [vmem:[%s1 + $0x104] sm:$0xf]
    %v98 = vld [vmem:[%s1 + $0x108] sm:$0xf]
    %v99 = vld [vmem:[%s1 + $0x10c] sm:$0xf]
    %v100 = vld [vmem:[%s1 + $0x110] sm:$0xf]
    %v101 = vld [vmem:[%s1 + $0x114] sm:$0xf]
    %v102 = vld [vmem:[%s1 + $0x118] sm:$0xf]
    %v103 = vld [vmem:[%s1 + $0x11c] sm:$0xf]
    %v104 = vld [vmem:[%s1 + $0x120] sm:$0xf]
    %v105 = vld [vmem:[%s1 + $0x124] sm:$0xf]
    %v106 = vld [vmem:[%s1 + $0x128] sm:$0xf]
    %v107 = vld [vmem:[%s1 + $0x12c] sm:$0xf]
    %v108 = vld [vmem:[%s1 + $0x130] sm:$0xf]
    %v109 = vld [vmem:[%s1 + $0x134] sm:$0xf]
    %v110 = vld [vmem:[%s1 + $0x138] sm:$0xf]
    %v111 = vld [vmem:[%s1 + $0x13c] sm:$0xf]
    %v112 = vld [vmem:[%s1 + $0x140] sm:$0xf]
    %v113 = vld [vmem:[%s1 + $0x144] sm:$0xf]
    %v114 = vld [vmem:[%s1 + $0x148] sm:$0xf]
    %v115 = vld [vmem:[%s1 + $0x14c] sm:$0xf]
    %v116 = vld [vmem:[%s1 + $0x150] sm:$0xf]
    %v117 = vld [vmem:[%s1 + $0x154] sm:$0xf]
    %v118 = vld [vmem:[%s1 + $0x158] sm:$0xf]
    %v119 = vld [vmem:[%s1 + $0x15c] sm:$0xf]
    %v120 = vld [vmem:[%s1 + $0x160] sm:$0xf]
    %v121 = vld [vmem:[%s1 + $0x164] sm:$0xf]
    %v122 = vld [vmem:[%s1 + $0x168] sm:$0xf]
    %v123 = vld [vmem:[%s1 + $0x16c] sm:$0xf]
    %v124 = vld [vmem:[%s1 + $0x170] sm:$0xf]
    %v125 = vld [vmem:[%s1 + $0x174] sm:$0xf]
    %v126 = vld [vmem:[%s1 + $0x178] sm:$0xf]
    %v127 = vld [vmem:[%s1 + $0x17c] sm:$0xf]
    %v128 = vld [vmem:[%s1 + $0x180] sm:$0xf]
    %v129 = vld [vmem:[%s1 + $0x184] sm:$0xf]
    %v130 = vld [vmem:[%s1 + $0x188] sm:$0xf]
    %v131 = vld [vmem:[%s1 + $0x18c] sm:$0xf]
    %v132 = vld [vmem:[%s1 + $0x190] sm:$0xf]
    %v133 = vld [vmem:[%s1 + $0x194] sm:$0xf]
    %v134 = vld [vmem:[%s1 + $0x198] sm:$0xf]
    %v135 = vld [vmem:[%s1 + $0x19c] sm:$0xf]
    %v136 = vld [vmem:[%s1 + $0x1a0] sm:$0xf]
    %v137 = vld [vmem:[%s1 + $0x1a4] sm:$0xf]
    %v138 = vld [vmem:[%s1 + $0x1a8] sm:$0xf]
    %v139 = vld [vmem:[%s1 + $0x1ac] sm:$0xf]
    %v140 = vld [vmem:[%s1 + $0x1b0] sm:$0xf]
    %v141 = vld [vmem:[%s1 + $0x1b4] sm:$0xf]
    %v142 = vld [vmem:[%s1 + $0x1b8] sm:$0xf]
    %v143 = vld [vmem:[%s1 + $0x1bc] sm:$0xf]
    %v144 = vld [vmem:[%s1 + $0x1c0] sm:$0xf]
    %v145 = vld [vmem:[%s1 + $0x1c4] sm:$0xf]
    %v146 = vld [vmem:[%s1 + $0x1c8] sm:$0xf]
    %v147 = vld [vmem:[%s1 + $0x1cc] sm:$0xf]
    %v148 = vld [vmem:[%s1 + $0x1d0] sm:$0xf]
    %v149 = vld [vmem:[%s1 + $0x1d4] sm:$0xf]
    %v150 = vld [vmem:[%s1 + $0x1d8] sm:$0xf]
    %v151 = vld [vmem:[%s1 + $0x1dc] sm:$0xf]
    %v152 = vld [vmem:[%s1 + $0x1e0] sm:$0xf]
    %v153 = vld [vmem:[%s1 + $0x1e4] sm:$0xf]
    %v154 = vld [vmem:[%s1 + $0x1e8] sm:$0xf]
    %v155 = vld [vmem:[%s1 + $0x1ec] sm:$0xf]
    %v156 = vld [vmem:[%s1 + $0x1f0] sm:$0xf]
    %v157 = vld [vmem:[%s1 + $0x1f4] sm:$0xf]
    %v158 = vld [vmem:[%s1 + $0x1f8] sm:$0xf]
    %v159 = vld [vmem:[%s1 + $0x1fc] sm:$0xf]
    %v160 = vld [vmem:[%s1 + $0x200] sm:$0xf]
    %v161 = vld [vmem:[%s1 + $0x204] sm:$0xf]
    %v162 = vld [vmem:[%s1 + $0x208] sm:$0xf]
    %v163 = vld [vmem:[%s1 + $0x20c] sm:$0xf]
    %v164 = vld [vmem:[%s1 + $0x210] sm:$0xf]
    %v165 = vld [vmem:[%s1 + $0x214] sm:$0xf]
    %v166 = vld [vmem:[%s1 + $0x218] sm:$0xf]
    %v167 = vld [vmem:[%s1 + $0x21c] sm:$0xf]
    %v168 = vld [vmem:[%s1 + $0x220] sm:$0xf]
    %v169 = vld [vmem:[%s1 + $0x224] sm:$0xf]
    %v170 = vld [vmem:[%s1 + $0x228] sm:$0xf]
    %v171 = vld [vmem:[%s1 + $0x22c] sm:$0xf]
    %v172 = vld [vmem:[%s1 + $0x230] sm:$0xf]
    %v173 = vld [vmem:[%s1 + $0x234] sm:$0xf]
    %v174 = vld [vmem:[%s1 + $0x238] sm:$0xf]
    %v175 = vld [vmem:[%s1 + $0x23c] sm:$0xf]
    %v176 = vld [vmem:[%s1 + $0x240] sm:$0xf]
    %v177 = vld [vmem:[%s1 + $0x244] sm:$0xf]
    %v178 = vld [vmem:[%s1 + $0x248] sm:$0xf]
    %v179 = vld [vmem:[%s1 + $0x24c] sm:$0xf]
    %v180 = vld [vmem:[%s1 + $0x250] sm:$0xf]
    %v181 = vld [vmem:[%s1 + $0x254] sm:$0xf]
    %v182 = vld [vmem:[%s1 + $0x258] sm:$0xf]
    %v183 = vld [vmem:[%s1 + $0x25c] sm:$0xf]
    %v184 = vld [vmem:[%s1 + $0x260] sm:$0xf]
    %v185 = vld [vmem:[%s1 + $0x264] sm:$0xf]
    %v186 = vld [vmem:[%s1 + $0x268] sm:$0xf]
    %v187 = vld [vmem:[%s1 + $0x26c] sm:$0xf]
    %v188 = vld [vmem:[%s1 + $0x270] sm:$0xf]
    %v189 = vld [vmem:[%s1 + $0x274] sm:$0xf]
    %v190 = vld [vmem:[%s1 + $0x278] sm:$0xf]
    %v191 = vld [vmem:[%s1 + $0x27c] sm:$0xf]
    %v192 = vld [vmem:[%s1 + $0x280] sm:$0xf]
    %v193 = vld [vmem:[%s1 + $0x284] sm:$0xf]
    %v194 = vld [vmem:[%s1 + $0x288] sm:$0xf]
    %v195 = vld [vmem:[%s1 + $0x28c] sm:$0xf]
    %v196 = vld [vmem:[%s1 + $0x290] sm:$0xf]
    %v197 = vld [vmem:[%s1 + $0x294] sm:$0xf]
    %v198 = vld [vmem:[%s1 + $0x298] sm:$0xf]
    %v199 = vld [vmem:[%s1 + $0x29c] sm:$0xf]
    %v200 = vld [vmem:[%s1 + $0x2a0] sm:$0xf]
    %v201 = vld [vmem:[%s1 + $0x2a4] sm:$0xf]
    %v202 = vld [vmem:[%s1 + $0x2a8] sm:$0xf]
    %v203 = vld [vmem:[%s1 + $0x2ac] sm:$0xf]
    %v204 = vld [vmem:[%s1 + $0x2b0] sm:$0xf]
    %v205 = vld [vmem:[%s1 + $0x2b4] sm:$0xf]
    %v206 = vld [vmem:[%s1 + $0x2b8] sm:$0xf]
    %v207 = vld [vmem:[%s1 + $0x2bc] sm:$0xf]
    %v208 = vld [vmem:[%s1 + $0x2c0] sm:$0xf]
    %v209 = vld [vmem:[%s1 + $0x2c4] sm:$0xf]
    %v210 = vld [vmem:[%s1 + $0x2c8] sm:$0xf]
    %v211 = vld [vmem:[%s1 + $0x2cc] sm:$0xf]
    %v212 = vld [vmem:[%s1 + $0x2d0] sm:$0xf]
    %v213 = vld [vmem:[%s1 + $0x2d4] sm:$0xf]
    %v214 = vld [vmem:[%s1 + $0x2d8] sm:$0xf]
    %v215 = vld [vmem:[%s1 + $0x2dc] sm:$0xf]
    %v216 = vld [vmem:[%s1 + $0x2e0] sm:$0xf]
    %v217 = vld [vmem:[%s1 + $0x2e4] sm:$0xf]
    %v218 = vld [vmem:[%s1 + $0x2e8] sm:$0xf]
    %v219 = vld [vmem:[%s1 + $0x2ec] sm:$0xf]
    %v220 = vld [vmem:[%s1 + $0x2f0] sm:$0xf]
    %v221 = vld [vmem:[%s1 + $0x2f4] sm:$0xf]
    %v222 = vld [vmem:[%s1 + $0x2f8] sm:$0xf]
    %v223 = vld [vmem:[%s1 + $0x2fc] sm:$0xf]
    %v224 = vld [vmem:[%s1 + $0x300] sm:$0xf]
    %v225 = vld [vmem:[%s1 + $0x304] sm:$0xf]
    %v226 = vld [vmem:[%s1 + $0x308] sm:$0xf]
    %v227 = vld [vmem:[%s1 + $0x30c] sm:$0xf]
    %v228 = vld [vmem:[%s1 + $0x310] sm:$0xf]
    %v229 = vld [vmem:[%s1 + $0x314] sm:$0xf]
    %v230 = vld [vmem:[%s1 + $0x318] sm:$0xf]
    %v231 = vld [vmem:[%s1 + $0x31c] sm:$0xf]
    %v232 = vld [vmem:[%s1 + $0x320] sm:$0xf]
    %v233 = vld [vmem:[%s1 + $0x324] sm:$0xf]
    %v234 = vld [vmem:[%s1 + $0x328] sm:$0xf]
    %v235 = vld [vmem:[%s1 + $0x32c] sm:$0xf]
    %v236 = vld [vmem:[%s1 + $0x330] sm:$0xf]
    %v237 = vld [vmem:[%s1 + $0x334] sm:$0xf]
    %v238 = vld [vmem:[%s1 + $0x338] sm:$0xf]
    %v239 = vld [vmem:[%s1 + $0x33c] sm:$0xf]
    %v240 = vld [vmem:[%s1 + $0x340] sm:$0xf]
    %v241 = vld [vmem:[%s1 + $0x344] sm:$0xf]
    %v242 = vld [vmem:[%s1 + $0x348] sm:$0xf]
    %v243 = vld [vmem:[%s1 + $0x34c] sm:$0xf]
    %v244 = vld [vmem:[%s1 + $0x350] sm:$0xf]
    %v245 = vld [vmem:[%s1 + $0x354] sm:$0xf]
    %v246 = vld [vmem:[%s1 + $0x358] sm:$0xf]
    %v247 = vld [vmem:[%s1 + $0x35c] sm:$0xf]
    %v248 = vld [vmem:[%s1 + $0x360] sm:$0xf]
    %v249 = vld [vmem:[%s1 + $0x364] sm:$0xf]
    %v250 = vld [vmem:[%s1 + $0x368] sm:$0xf]
    %v251 = vld [vmem:[%s1 + $0x36c] sm:$0xf]
    %v252 = vld [vmem:[%s1 + $0x370] sm:$0xf]
    %v253 = vld [vmem:[%s1 + $0x374] sm:$0xf]
    %v254 = vld [vmem:[%s1 + $0x378] sm:$0xf]
    %v255 = vld [vmem:[%s1 + $0x37c] sm:$0xf]
    %v256 = vld [vmem:[%s1 + $0x380] sm:$0xf]
    %v257 = vld [vmem:[%s1 + $0x384] sm:$0xf]
    %v258 = vld [vmem:[%s1 + $0x388] sm:$0xf]
    %v259 = vld [vmem:[%s1 + $0x38c] sm:$0xf]
    %v260 = vld [vmem:[%s1 + $0x390] sm:$0xf]
    %v261 = vld [vmem:[%s1 + $0x394] sm:$0xf]
    %v262 = vld [vmem:[%s1 + $0x398] sm:$0xf]
    %v263 = vld [vmem:[%s1 + $0x39c] sm:$0xf]
    %v264 = vld [vmem:[%s1 + $0x3a0] sm:$0xf]
    %v265 = vld [vmem:[%s1 + $0x3a4] sm:$0xf]
    %v266 = vld [vmem:[%s1 + $0x3a8] sm:$0xf]
    %v267 = vld [vmem:[%s1 + $0x3ac] sm:$0xf]
    %v268 = vld [vmem:[%s1 + $0x3b0] sm:$0xf]
    %v269 = vld [vmem:[%s1 + $0x3b4] sm:$0xf]
    %v270 = vld [vmem:[%s1 + $0x3b8] sm:$0xf]
    %v271 = vld [vmem:[%s1 + $0x3bc] sm:$0xf]
    %v272 = vld [vmem:[%s1 + $0x3c0] sm:$0xf]
    %v273 = vld [vmem:[%s1 + $0x3c4] sm:$0xf]
    %v274 = vld [vmem:[%s1 + $0x3c8] sm:$0xf]
    %v275 = vld [vmem:[%s1 + $0x3cc] sm:$0xf]
    %v276 = vld [vmem:[%s1 + $0x3d0] sm:$0xf]
    %v277 = vld [vmem:[%s1 + $0x3d4] sm:$0xf]
    %v278 = vld [vmem:[%s1 + $0x3d8] sm:$0xf]
    %v279 = vld [vmem:[%s1 + $0x3dc] sm:$0xf]
    %v280 = vld [vmem:[%s1 + $0x3e0] sm:$0xf]
    %v281 = vld [vmem:[%s1 + $0x3e4] sm:$0xf]
    %v282 = vld [vmem:[%s1 + $0x3e8] sm:$0xf]
    %v283 = vld [vmem:[%s1 + $0x3ec] sm:$0xf]
    %v284 = vld [vmem:[%s1 + $0x3f0] sm:$0xf]
    %v285 = vld [vmem:[%s1 + $0x3f4] sm:$0xf]
    %v286 = vld [vmem:[%s1 + $0x3f8] sm:$0xf]
    %v287 = vld [vmem:[%s1 + $0x3fc] sm:$0xf]
    %v288 = vld [vmem:[%s1 + $0x400] sm:$0xf]
    %v289 = vld [vmem:[%s1 + $0x404] sm:$0xf]
    %v290 = vld [vmem:[%s1 + $0x408] sm:$0xf]
    %v291 = vld [vmem:[%s1 + $0x40c] sm:$0xf]
    %v292 = vld [vmem:[%s1 + $0x410] sm:$0xf]
    %v293 = vld [vmem:[%s1 + $0x414] sm:$0xf]
    %v294 = vld [vmem:[%s1 + $0x418] sm:$0xf]
    %v295 = vld [vmem:[%s1 + $0x41c] sm:$0xf]
    %v296 = vld [vmem:[%s1 + $0x420] sm:$0xf]
    %v297 = vld [vmem:[%s1 + $0x424] sm:$0xf]
    %v298 = vld [vmem:[%s1 + $0x428] sm:$0xf]
    %v299 = vld [vmem:[%s1 + $0x42c] sm:$0xf]
    %v300 = vld [vmem:[%s1 + $0x430] sm:$0xf]
    %v301 = vld [vmem:[%s1 + $0x434] sm:$0xf]
    %v302 = vld [vmem:[%s1 + $0x438] sm:$0xf]
    %v303 = vld [vmem:[%s1 + $0x43c] sm:$0xf]
    %v304 = vld [vmem:[%s1 + $0x440] sm:$0xf]
    %v305 = vld [vmem:[%s1 + $0x444] sm:$0xf]
    %v306 = vld [vmem:[%s1 + $0x448] sm:$0xf]
    %v307 = vld [vmem:[%s1 + $0x44c] sm:$0xf]
    %v308 = vld [vmem:[%s1 + $0x450] sm:$0xf]
    %v309 = vld [vmem:[%s1 + $0x454] sm:$0xf]
    %v310 = vld [vmem:[%s1 + $0x458] sm:$0xf]
    %v311 = vld [vmem:[%s1 + $0x45c] sm:$0xf]
    %v312 = vld [vmem:[%s1 + $0x460] sm:$0xf]
    %v313 = vld [vmem:[%s1 + $0x464] sm:$0xf]
    %v314 = vld [vmem:[%s1 + $0x468] sm:$0xf]
    %v315 = vld [vmem:[%s1 + $0x46c] sm:$0xf]
    %v316 = vld [vmem:[%s1 + $0x470] sm:$0xf]
    %v317 = vld [vmem:[%s1 + $0x474] sm:$0xf]
    %v318 = vld [vmem:[%s1 + $0x478] sm:$0xf]
    %v319 = vld [vmem:[%s1 + $0x47c] sm:$0xf]
    %v320 = vld [vmem:[%s1 + $0x480] sm:$0xf]
    %v321 = vld [vmem:[%s1 + $0x484] sm:$0xf]
    %v322 = vld [vmem:[%s1 + $0x488] sm:$0xf]
    %v323 = vld [vmem:[%s1 + $0x48c] sm:$0xf]
    %v324 = vld [vmem:[%s1 + $0x490] sm:$0xf]
    %v325 = vld [vmem:[%s1 + $0x494] sm:$0xf]
    %v326 = vld [vmem:[%s1 + $0x498] sm:$0xf]
    %v327 = vld [vmem:[%s1 + $0x49c] sm:$0xf]
    %v328 = vld [vmem:[%s1 + $0x4a0] sm:$0xf]
    %v329 = vld [vmem:[%s1 + $0x4a4] sm:$0xf]
    %v330 = vld [vmem:[%s1 + $0x4a8] sm:$0xf]
    %v331 = vld [vmem:[%s1 + $0x4ac] sm:$0xf]
    %v332 = vld [vmem:[%s1 + $0x4b0] sm:$0xf]
    %v333 = vld [vmem:[%s1 + $0x4b4] sm:$0xf]
    %v334 = vld [vmem:[%s1 + $0x4b8] sm:$0xf]
    %v335 = vld [vmem:[%s1 + $0x4bc] sm:$0xf]
    %v336 = vld [vmem:[%s1 + $0x4c0] sm:$0xf]
    %v337 = vld [vmem:[%s1 + $0x4c4] sm:$0xf]
    %v338 = vld [vmem:[%s1 + $0x4c8] sm:$0xf]
    %v339 = vld [vmem:[%s1 + $0x4cc] sm:$0xf]
    %v340 = vld [vmem:[%s1 + $0x4d0] sm:$0xf]
    %v341 = vld [vmem:[%s1 + $0x4d4] sm:$0xf]
    %v342 = vld [vmem:[%s1 + $0x4d8] sm:$0xf]
    %v343 = vld [vmem:[%s1 + $0x4dc] sm:$0xf]
    %v344 = vld [vmem:[%s1 + $0x4e0] sm:$0xf]
    %v345 = vld [vmem:[%s1 + $0x4e4] sm:$0xf]
    %v346 = vld [vmem:[%s1 + $0x4e8] sm:$0xf]
    %v347 = vld [vmem:[%s1 + $0x4ec] sm:$0xf]
    %v348 = vld [vmem:[%s1 + $0x4f0] sm:$0xf]
    %v349 = vld [vmem:[%s1 + $0x4f4] sm:$0xf]
    %v350 = vld [vmem:[%s1 + $0x4f8] sm:$0xf]
    %v351 = vld [vmem:[%s1 + $0x4fc] sm:$0xf]
    %v352 = vld [vmem:[%s1 + $0x500] sm:$0xf]
    %v353 = vld [vmem:[%s1 + $0x504] sm:$0xf]
    %v354 = vld [vmem:[%s1 + $0x508] sm:$0xf]
    %v355 = vld [vmem:[%s1 + $0x50c] sm:$0xf]
    %v356 = vld [vmem:[%s1 + $0x510] sm:$0xf]
    %v357 = vld [vmem:[%s1 + $0x514] sm:$0xf]
    %v358 = vld [vmem:[%s1 + $0x518] sm:$0xf]
    %v359 = vld [vmem:[%s1 + $0x51c] sm:$0xf]
    %v360 = vld [vmem:[%s1 + $0x520] sm:$0xf]
    %v361 = vld [vmem:[%s1 + $0x524] sm:$0xf]
    %v362 = vld [vmem:[%s1 + $0x528] sm:$0xf]
    %v363 = vld [vmem:[%s1 + $0x52c] sm:$0xf]
    %v364 = vld [vmem:[%s1 + $0x530] sm:$0xf]
    %v365 = vld [vmem:[%s1 + $0x534] sm:$0xf]
    %v366 = vld [vmem:[%s1 + $0x538] sm:$0xf]
    %v367 = vld [vmem:[%s1 + $0x53c] sm:$0xf]
    %v368 = vld [vmem:[%s1 + $0x540] sm:$0xf]
    %v369 = vld [vmem:[%s1 + $0x544] sm:$0xf]
    %v370 = vld [vmem:[%s1 + $0x548] sm:$0xf]
    %v371 = vld [vmem:[%s1 + $0x54c] sm:$0xf]
    %v372 = vld [vmem:[%s1 + $0x550] sm:$0xf]
    %v373 = vld [vmem:[%s1 + $0x554] sm:$0xf]
    %v374 = vld [vmem:[%s1 + $0x558] sm:$0xf]
    %v375 = vld [vmem:[%s1 + $0x55c] sm:$0xf]
    %v376 = vld [vmem:[%s1 + $0x560] sm:$0xf]
    %v377 = vld [vmem:[%s1 + $0x564] sm:$0xf]
    %v378 = vld [vmem:[%s1 + $0x568] sm:$0xf]
    %v379 = vld [vmem:[%s1 + $0x56c] sm:$0xf]
    %v380 = vld [vmem:[%s1 + $0x570] sm:$0xf]
    %v381 = vld [vmem:[%s1 + $0x574] sm:$0xf]
    %v382 = vld [vmem:[%s1 + $0x578] sm:$0xf]
    %v383 = vld [vmem:[%s1 + $0x57c] sm:$0xf]
    %v384 = vld [vmem:[%s1 + $0x580] sm:$0xf]
    %v385 = vld [vmem:[%s1 + $0x584] sm:$0xf]
    %v386 = vld [vmem:[%s1 + $0x588] sm:$0xf]
    %v387 = vld [vmem:[%s1 + $0x58c] sm:$0xf]
    %v388 = vld [vmem:[%s1 + $0x590] sm:$0xf]
    %v389 = vld [vmem:[%s1 + $0x594] sm:$0xf]
    %v390 = vld [vmem:[%s1 + $0x598] sm:$0xf]
    %v391 = vld [vmem:[%s1 + $0x59c] sm:$0xf]
    %v392 = vld [vmem:[%s1 + $0x5a0] sm:$0xf]
    %v393 = vld [vmem:[%s1 + $0x5a4] sm:$0xf]
    %v394 = vld [vmem:[%s1 + $0x5a8] sm:$0xf]
    %v395 = vld [vmem:[%s1 + $0x5ac] sm:$0xf]
    %v396 = vld [vmem:[%s1 + $0x5b0] sm:$0xf]
    %v397 = vld [vmem:[%s1 + $0x5b4] sm:$0xf]
    %v398 = vld [vmem:[%s1 + $0x5b8] sm:$0xf]
    %v399 = vld [vmem:[%s1 + $0x5bc] sm:$0xf]
    %v400 = vld [vmem:[%s1 + $0x5c0] sm:$0xf]
    %v401 = vld [vmem:[%s1 + $0x5c4] sm:$0xf]
    %v402 = vld [vmem:[%s1 + $0x5c8] sm:$0xf]
    %v403 = vld [vmem:[%s1 + $0x5cc] sm:$0xf]
    %v404 = vld [vmem:[%s1 + $0x5d0] sm:$0xf]
    %v405 = vld [vmem:[%s1 + $0x5d4] sm:$0xf]
    %v406 = vld [vmem:[%s1 + $0x5d8] sm:$0xf]
    %v407 = vld [vmem:[%s1 + $0x5dc] sm:$0xf]
    %v408 = vld [vmem:[%s1 + $0x5e0] sm:$0xf]
    %v409 = vld [vmem:[%s1 + $0x5e4] sm:$0xf]
    %v410 = vld [vmem:[%s1 + $0x5e8] sm:$0xf]
    %v411 = vld [vmem:[%s1 + $0x5ec] sm:$0xf]
    %v412 = vld [vmem:[%s1 + $0x5f0] sm:$0xf]
    %v413 = vld [vmem:[%s1 + $0x5f4] sm:$0xf]
    %v414 = vld [vmem:[%s1 + $0x5f8] sm:$0xf]
    %v415 = vld [vmem:[%s1 + $0x5fc] sm:$0xf]
    %v416 = vld [vmem:[%s1 + $0x600] sm:$0xf]
    %v417 = vld [vmem:[%s1 + $0x604] sm:$0xf]
    %v418 = vld [vmem:[%s1 + $0x608] sm:$0xf]
    %v419 = vld [vmem:[%s1 + $0x60c] sm:$0xf]
    %v420 = vld [vmem:[%s1 + $0x610] sm:$0xf]
    %v421 = vld [vmem:[%s1 + $0x614] sm:$0xf]
    %v422 = vld [vmem:[%s1 + $0x618] sm:$0xf]
    %v423 = vld [vmem:[%s1 + $0x61c] sm:$0xf]
    %v424 = vld [vmem:[%s1 + $0x620] sm:$0xf]
    %v425 = vld [vmem:[%s1 + $0x624] sm:$0xf]
    %v426 = vld [vmem:[%s1 + $0x628] sm:$0xf]
    %v427 = vld [vmem:[%s1 + $0x62c] sm:$0xf]
    %v428 = vld [vmem:[%s1 + $0x630] sm:$0xf]
    %v429 = vld [vmem:[%s1 + $0x634] sm:$0xf]
    %v430 = vld [vmem:[%s1 + $0x638] sm:$0xf]
    %v431 = vld [vmem:[%s1 + $0x63c] sm:$0xf]
    %v432 = vld [vmem:[%s1 + $0x640] sm:$0xf]
    %v433 = vld [vmem:[%s1 + $0x644] sm:$0xf]
    %v434 = vld [vmem:[%s1 + $0x648] sm:$0xf]
    %v435 = vld [vmem:[%s1 + $0x64c] sm:$0xf]
    %v436 = vld [vmem:[%s1 + $0x650] sm:$0xf]
    %v437 = vld [vmem:[%s1 + $0x654] sm:$0xf]
    %v438 = vld [vmem:[%s1 + $0x658] sm:$0xf]
    %v439 = vld [vmem:[%s1 + $0x65c] sm:$0xf]
    %v440 = vld [vmem:[%s1 + $0x660] sm:$0xf]
    %v441 = vld [vmem:[%s1 + $0x664] sm:$0xf]
    %v442 = vld [vmem:[%s1 + $0x668] sm:$0xf]
    %v443 = vld [vmem:[%s1 + $0x66c] sm:$0xf]
    %v444 = vld [vmem:[%s1 + $0x670] sm:$0xf]
    %v445 = vld [vmem:[%s1 + $0x674] sm:$0xf]
    %v446 = vld [vmem:[%s1 + $0x678] sm:$0xf]
    %v447 = vld [vmem:[%s1 + $0x67c] sm:$0xf]
    %v448 = vld [vmem:[%s1 + $0x680] sm:$0xf]
    %v449 = vld [vmem:[%s1 + $0x684] sm:$0xf]
    %v450 = vld [vmem:[%s1 + $0x688] sm:$0xf]
    %v451 = vld [vmem:[%s1 + $0x68c] sm:$0xf]
    %v452 = vld [vmem:[%s1 + $0x690] sm:$0xf]
    %v453 = vld [vmem:[%s1 + $0x694] sm:$0xf]
    %v454 = vld [vmem:[%s1 + $0x698] sm:$0xf]
    %v455 = vld [vmem:[%s1 + $0x69c] sm:$0xf]
    %v456 = vld [vmem:[%s1 + $0x6a0] sm:$0xf]
    %v457 = vld [vmem:[%s1 + $0x6a4] sm:$0xf]
    %v458 = vld [vmem:[%s1 + $0x6a8] sm:$0xf]
    %v459 = vld [vmem:[%s1 + $0x6ac] sm:$0xf]
    %v460 = vld [vmem:[%s1 + $0x6b0] sm:$0xf]
    %v461 = vld [vmem:[%s1 + $0x6b4] sm:$0xf]
    %v462 = vld [vmem:[%s1 + $0x6b8] sm:$0xf]
    %v463 = vld [vmem:[%s1 + $0x6bc] sm:$0xf]
    %v464 = vld [vmem:[%s1 + $0x6c0] sm:$0xf]
    %v465 = vld [vmem:[%s1 + $0x6c4] sm:$0xf]
    %v466 = vld [vmem:[%s1 + $0x6c8] sm:$0xf]
    %v467 = vld [vmem:[%s1 + $0x6cc] sm:$0xf]
    %v468 = vld [vmem:[%s1 + $0x6d0] sm:$0xf]
    %v469 = vld [vmem:[%s1 + $0x6d4] sm:$0xf]
    %v470 = vld [vmem:[%s1 + $0x6d8] sm:$0xf]
    %v471 = vld [vmem:[%s1 + $0x6dc] sm:$0xf]
    %v472 = vld [vmem:[%s1 + $0x6e0] sm:$0xf]
    %v473 = vld [vmem:[%s1 + $0x6e4] sm:$0xf]
    %v474 = vld [vmem:[%s1 + $0x6e8] sm:$0xf]
    %v475 = vld [vmem:[%s1 + $0x6ec] sm:$0xf]
    %v476 = vld [vmem:[%s1 + $0x6f0] sm:$0xf]
    %v477 = vld [vmem:[%s1 + $0x6f4] sm:$0xf]
    %v478 = vld [vmem:[%s1 + $0x6f8] sm:$0xf]
    %v479 = vld [vmem:[%s1 + $0x6fc] sm:$0xf]
    %v480 = vld [vmem:[%s1 + $0x700] sm:$0xf]
    %v481 = vld [vmem:[%s1 + $0x704] sm:$0xf]
    %v482 = vld [vmem:[%s1 + $0x708] sm:$0xf]
    %v483 = vld [vmem:[%s1 + $0x70c] sm:$0xf]
    %v484 = vld [vmem:[%s1 + $0x710] sm:$0xf]
    %v485 = vld [vmem:[%s1 + $0x714] sm:$0xf]
    %v486 = vld [vmem:[%s1 + $0x718] sm:$0xf]
    %v487 = vld [vmem:[%s1 + $0x71c] sm:$0xf]
    %v488 = vld [vmem:[%s1 + $0x720] sm:$0xf]
    %v489 = vld [vmem:[%s1 + $0x724] sm:$0xf]
    %v490 = vld [vmem:[%s1 + $0x728] sm:$0xf]
    %v491 = vld [vmem:[%s1 + $0x72c] sm:$0xf]
    %v492 = vld [vmem:[%s1 + $0x730] sm:$0xf]
    %v493 = vld [vmem:[%s1 + $0x734] sm:$0xf]
    %v494 = vld [vmem:[%s1 + $0x738] sm:$0xf]
    %v495 = vld [vmem:[%s1 + $0x73c] sm:$0xf]
    %v496 = vld [vmem:[%s1 + $0x740] sm:$0xf]
    %v497 = vld [vmem:[%s1 + $0x744] sm:$0xf]
    %v498 = vld [vmem:[%s1 + $0x748] sm:$0xf]
    %v499 = vld [vmem:[%s1 + $0x74c] sm:$0xf]
    %v500 = vld [vmem:[%s1 + $0x750] sm:$0xf]
    %v501 = vld [vmem:[%s1 + $0x754] sm:$0xf]
    %v502 = vld [vmem:[%s1 + $0x758] sm:$0xf]
    %v503 = vld [vmem:[%s1 + $0x75c] sm:$0xf]
    %v504 = vld [vmem:[%s1 + $0x760] sm:$0xf]
    %v505 = vld [vmem:[%s1 + $0x764] sm:$0xf]
    %v506 = vld [vmem:[%s1 + $0x768] sm:$0xf]
    %v507 = vld [vmem:[%s1 + $0x76c] sm:$0xf]
    %v508 = vld [vmem:[%s1 + $0x770] sm:$0xf]
    %v509 = vld [vmem:[%s1 + $0x774] sm:$0xf]
    %v510 = vld [vmem:[%s1 + $0x778] sm:$0xf]
    %v511 = vld [vmem:[%s1 + $0x77c] sm:$0xf]
    %v512 = vld [vmem:[%s1 + $0x780] sm:$0xf]
    %v513 = vld [vmem:[%s1 + $0x784] sm:$0xf]
    %v514 = vld [vmem:[%s1 + $0x788] sm:$0xf]
    %v515 = vld [vmem:[%s1 + $0x78c] sm:$0xf]
    %v516 = vld [vmem:[%s1 + $0x790] sm:$0xf]
    %v517 = vld [vmem:[%s1 + $0x794] sm:$0xf]
    %v518 = vld [vmem:[%s1 + $0x798] sm:$0xf]
    %v519 = vld [vmem:[%s1 + $0x79c] sm:$0xf]
    %v520 = vld [vmem:[%s1 + $0x7a0] sm:$0xf]
    %v521 = vld [vmem:[%s1 + $0x7a4] sm:$0xf]
    %v522 = vld [vmem:[%s1 + $0x7a8] sm:$0xf]
    %v523 = vld [vmem:[%s1 + $0x7ac] sm:$0xf]
    %v524 = vld [vmem:[%s1 + $0x7b0] sm:$0xf]
    %v525 = vld [vmem:[%s1 + $0x7b4] sm:$0xf]
    %v526 = vld [vmem:[%s1 + $0x7b8] sm:$0xf]
    %v527 = vld [vmem:[%s1 + $0x7bc] sm:$0xf]
    %v528 = vld [vmem:[%s1 + $0x7c0] sm:$0xf]
    %v529 = vld [vmem:[%s1 + $0x7c4] sm:$0xf]
    %v530 = vld [vmem:[%s1 + $0x7c8] sm:$0xf]
    %v531 = vld [vmem:[%s1 + $0x7cc] sm:$0xf]
    %v532 = vld [vmem:[%s1 + $0x7d0] sm:$0xf]
    %v533 = vld [vmem:[%s1 + $0x7d4] sm:$0xf]
    %v534 = vld [vmem:[%s1 + $0x7d8] sm:$0xf]
    %v535 = vld [vmem:[%s1 + $0x7dc] sm:$0xf]
    %v536 = vld [vmem:[%s1 + $0x7e0] sm:$0xf]
    %v537 = vld [vmem:[%s1 + $0x7e4] sm:$0xf]
    %v538 = vld [vmem:[%s1 + $0x7e8] sm:$0xf]
    %v539 = vld [vmem:[%s1 + $0x7ec] sm:$0xf]
    %v540 = vld [vmem:[%s1 + $0x7f0] sm:$0xf]
    %v541 = vld [vmem:[%s1 + $0x7f4] sm:$0xf]
    %v542 = vld [vmem:[%s1 + $0x7f8] sm:$0xf]
    %v543 = vld [vmem:[%s1 + $0x7fc] sm:$0xf]
    %v544 = vld [vmem:[%s1 + $0x800] sm:$0xf]
    %v545 = vld [vmem:[%s1 + $0x804] sm:$0xf]
    %v546 = vld [vmem:[%s1 + $0x808] sm:$0xf]
    %v547 = vld [vmem:[%s1 + $0x80c] sm:$0xf]
    %v548 = vld [vmem:[%s1 + $0x810] sm:$0xf]
    %v549 = vld [vmem:[%s1 + $0x814] sm:$0xf]
    %v550 = vld [vmem:[%s1 + $0x818] sm:$0xf]
    %v551 = vld [vmem:[%s1 + $0x81c] sm:$0xf]
    %v552 = vld [vmem:[%s1 + $0x820] sm:$0xf]
    %v553 = vld [vmem:[%s1 + $0x824] sm:$0xf]
    %v554 = vld [vmem:[%s1 + $0x828] sm:$0xf]
    %v555 = vld [vmem:[%s1 + $0x82c] sm:$0xf]
    %v556 = vld [vmem:[%s1 + $0x830] sm:$0xf]
    %v557 = vld [vmem:[%s1 + $0x834] sm:$0xf]
    %v558 = vld [vmem:[%s1 + $0x838] sm:$0xf]
    %v559 = vld [vmem:[%s1 + $0x83c] sm:$0xf]
    %v560 = vld [vmem:[%s1 + $0x840] sm:$0xf]
    %v561 = vld [vmem:[%s1 + $0x844] sm:$0xf]
    %v562 = vld [vmem:[%s1 + $0x848] sm:$0xf]
    %v563 = vld [vmem:[%s1 + $0x84c] sm:$0xf]
    %v564 = vld [vmem:[%s1 + $0x850] sm:$0xf]
    %v565 = vld [vmem:[%s1 + $0x854] sm:$0xf]
    %v566 = vld [vmem:[%s1 + $0x858] sm:$0xf]
    %v567 = vld [vmem:[%s1 + $0x85c] sm:$0xf]
    %v568 = vld [vmem:[%s1 + $0x860] sm:$0xf]
    %v569 = vld [vmem:[%s1 + $0x864] sm:$0xf]
    %v570 = vld [vmem:[%s1 + $0x868] sm:$0xf]
    %v571 = vld [vmem:[%s1 + $0x86c] sm:$0xf]
    %v572 = vld [vmem:[%s1 + $0x870] sm:$0xf]
    %v573 = vld [vmem:[%s1 + $0x874] sm:$0xf]
    %v574 = vld [vmem:[%s1 + $0x878] sm:$0xf]
    %v575 = vld [vmem:[%s1 + $0x87c] sm:$0xf]
    %v576 = vld [vmem:[%s1 + $0x880] sm:$0xf]
    %v577 = vld [vmem:[%s1 + $0x884] sm:$0xf]
    %v578 = vld [vmem:[%s1 + $0x888] sm:$0xf]
    %v579 = vld [vmem:[%s1 + $0x88c] sm:$0xf]
    %v580 = vld [vmem:[%s1 + $0x890] sm:$0xf]
    %v581 = vld [vmem:[%s1 + $0x894] sm:$0xf]
    %v582 = vld [vmem:[%s1 + $0x898] sm:$0xf]
    %v583 = vld [vmem:[%s1 + $0x89c] sm:$0xf]
    %v584 = vld [vmem:[%s1 + $0x8a0] sm:$0xf]
    %v585 = vld [vmem:[%s1 + $0x8a4] sm:$0xf]
    %v586 = vld [vmem:[%s1 + $0x8a8] sm:$0xf]
    %v587 = vld [vmem:[%s1 + $0x8ac] sm:$0xf]
    %v588 = vld [vmem:[%s1 + $0x8b0] sm:$0xf]
    %v589 = vld [vmem:[%s1 + $0x8b4] sm:$0xf]
    %v590 = vld [vmem:[%s1 + $0x8b8] sm:$0xf]
    %v591 = vld [vmem:[%s1 + $0x8bc] sm:$0xf]
    %v592 = vld [vmem:[%s1 + $0x8c0] sm:$0xf]
    %v593 = vld [vmem:[%s1 + $0x8c4] sm:$0xf]
    %v594 = vld [vmem:[%s1 + $0x8c8] sm:$0xf]
    %v595 = vld [vmem:[%s1 + $0x8cc] sm:$0xf]
    %v596 = vld [vmem:[%s1 + $0x8d0] sm:$0xf]
    %v597 = vld [vmem:[%s1 + $0x8d4] sm:$0xf]
    %v598 = vld [vmem:[%s1 + $0x8d8] sm:$0xf]
    %v599 = vld [vmem:[%s1 + $0x8dc] sm:$0xf]
    %v600 = vld [vmem:[%s1 + $0x8e0] sm:$0xf]
    %v601 = vld [vmem:[%s1 + $0x8e4] sm:$0xf]
    %v602 = vld [vmem:[%s1 + $0x8e8] sm:$0xf]
    %v603 = vld [vmem:[%s1 + $0x8ec] sm:$0xf]
    %v604 = vld [vmem:[%s1 + $0x8f0] sm:$0xf]
    %v605 = vld [vmem:[%s1 + $0x8f4] sm:$0xf]
    %v606 = vld [vmem:[%s1 + $0x8f8] sm:$0xf]
    %v607 = vld [vmem:[%s1 + $0x8fc] sm:$0xf]
    %v608 = vld [vmem:[%s1 + $0x900] sm:$0xf]
    %v609 = vld [vmem:[%s1 + $0x904] sm:$0xf]
    %v610 = vld [vmem:[%s1 + $0x908] sm:$0xf]
    %v611 = vld [vmem:[%s1 + $0x90c] sm:$0xf]
    %v612 = vld [vmem:[%s1 + $0x910] sm:$0xf]
    %v613 = vld [vmem:[%s1 + $0x914] sm:$0xf]
    %v614 = vld [vmem:[%s1 + $0x918] sm:$0xf]
    %v615 = vld [vmem:[%s1 + $0x91c] sm:$0xf]
    %v616 = vld [vmem:[%s1 + $0x920] sm:$0xf]
    %v617 = vld [vmem:[%s1 + $0x924] sm:$0xf]
    %v618 = vld [vmem:[%s1 + $0x928] sm:$0xf]
    %v619 = vld [vmem:[%s1 + $0x92c] sm:$0xf]
    %v620 = vld [vmem:[%s1 + $0x930] sm:$0xf]
    %v621 = vld [vmem:[%s1 + $0x934] sm:$0xf]
    %v622 = vld [vmem:[%s1 + $0x938] sm:$0xf]
    %v623 = vld [vmem:[%s1 + $0x93c] sm:$0xf]
    %v624 = vld [vmem:[%s1 + $0x940] sm:$0xf]
    %v625 = vld [vmem:[%s1 + $0x944] sm:$0xf]
    %v626 = vld [vmem:[%s1 + $0x948] sm:$0xf]
    %v627 = vld [vmem:[%s1 + $0x94c] sm:$0xf]
    %v628 = vld [vmem:[%s1 + $0x950] sm:$0xf]
    %v629 = vld [vmem:[%s1 + $0x954] sm:$0xf]
    %v630 = vld [vmem:[%s1 + $0x958] sm:$0xf]
    %v631 = vld [vmem:[%s1 + $0x95c] sm:$0xf]
    %v632 = vld [vmem:[%s1 + $0x960] sm:$0xf]
    %v633 = vld [vmem:[%s1 + $0x964] sm:$0xf]
    %v634 = vld [vmem:[%s1 + $0x968] sm:$0xf]
    %v635 = vld [vmem:[%s1 + $0x96c] sm:$0xf]
    %v636 = vld [vmem:[%s1 + $0x970] sm:$0xf]
    %v637 = vld [vmem:[%s1 + $0x974] sm:$0xf]
    %v638 = vld [vmem:[%s1 + $0x978] sm:$0xf]
    %v639 = vld [vmem:[%s1 + $0x97c] sm:$0xf]
    %v640 = vld [vmem:[%s1 + $0x980] sm:$0xf]
    %v641 = vld [vmem:[%s1 + $0x984] sm:$0xf]
    %v642 = vld [vmem:[%s1 + $0x988] sm:$0xf]
    %v643 = vld [vmem:[%s1 + $0x98c] sm:$0xf]
    %v644 = vld [vmem:[%s1 + $0x990] sm:$0xf]
    %v645 = vld [vmem:[%s1 + $0x994] sm:$0xf]
    %v646 = vld [vmem:[%s1 + $0x998] sm:$0xf]
    %v647 = vld [vmem:[%s1 + $0x99c] sm:$0xf]
    %v648 = vld [vmem:[%s1 + $0x9a0] sm:$0xf]
    %v649 = vld [vmem:[%s1 + $0x9a4] sm:$0xf]
    %v650 = vld [vmem:[%s1 + $0x9a8] sm:$0xf]
    %v651 = vld [vmem:[%s1 + $0x9ac] sm:$0xf]
    %v652 = vld [vmem:[%s1 + $0x9b0] sm:$0xf]
    %v653 = vld [vmem:[%s1 + $0x9b4] sm:$0xf]
    %v654 = vld [vmem:[%s1 + $0x9b8] sm:$0xf]
    %v655 = vld [vmem:[%s1 + $0x9bc] sm:$0xf]
    %v656 = vld [vmem:[%s1 + $0x9c0] sm:$0xf]
    %v657 = vld [vmem:[%s1 + $0x9c4] sm:$0xf]
    %v658 = vld [vmem:[%s1 + $0x9c8] sm:$0xf]
    %v659 = vld [vmem:[%s1 + $0x9cc] sm:$0xf]
    %v660 = vld [vmem:[%s1 + $0x9d0] sm:$0xf]
    %v661 = vld [vmem:[%s1 + $0x9d4] sm:$0xf]
    %v662 = vld [vmem:[%s1 + $0x9d8] sm:$0xf]
    %v663 = vld [vmem:[%s1 + $0x9dc] sm:$0xf]
    %v664 = vld [vmem:[%s1 + $0x9e0] sm:$0xf]
    %v665 = vld [vmem:[%s1 + $0x9e4] sm:$0xf]
    %v666 = vld [vmem:[%s1 + $0x9e8] sm:$0xf]
    %v667 = vld [vmem:[%s1 + $0x9ec] sm:$0xf]
    %v668 = vld [vmem:[%s1 + $0x9f0] sm:$0xf]
    %v669 = vld [vmem:[%s1 + $0x9f4] sm:$0xf]
    %v670 = vld [vmem:[%s1 + $0x9f8] sm:$0xf]
    %v671 = vld [vmem:[%s1 + $0x9fc] sm:$0xf]
    %v672 = vld [vmem:[%s1 + $0xa00] sm:$0xf]
    %v673 = vld [vmem:[%s1 + $0xa04] sm:$0xf]
    %v674 = vld [vmem:[%s1 + $0xa08] sm:$0xf]
    %v675 = vld [vmem:[%s1 + $0xa0c] sm:$0xf]
    %v676 = vld [vmem:[%s1 + $0xa10] sm:$0xf]
    %v677 = vld [vmem:[%s1 + $0xa14] sm:$0xf]
    %v678 = vld [vmem:[%s1 + $0xa18] sm:$0xf]
    %v679 = vld [vmem:[%s1 + $0xa1c] sm:$0xf]
    %v680 = vld [vmem:[%s1 + $0xa20] sm:$0xf]
    %v681 = vld [vmem:[%s1 + $0xa24] sm:$0xf]
    %v682 = vld [vmem:[%s1 + $0xa28] sm:$0xf]
    %v683 = vld [vmem:[%s1 + $0xa2c] sm:$0xf]
    %v684 = vld [vmem:[%s1 + $0xa30] sm:$0xf]
    %v685 = vld [vmem:[%s1 + $0xa34] sm:$0xf]
    %v686 = vld [vmem:[%s1 + $0xa38] sm:$0xf]
    %v687 = vld [vmem:[%s1 + $0xa3c] sm:$0xf]
    %v688 = vld [vmem:[%s1 + $0xa40] sm:$0xf]
    %v689 = vld [vmem:[%s1 + $0xa44] sm:$0xf]
    %v690 = vld [vmem:[%s1 + $0xa48] sm:$0xf]
    %v691 = vld [vmem:[%s1 + $0xa4c] sm:$0xf]
    %v692 = vld [vmem:[%s1 + $0xa50] sm:$0xf]
    %v693 = vld [vmem:[%s1 + $0xa54] sm:$0xf]
    %v694 = vld [vmem:[%s1 + $0xa58] sm:$0xf]
    %v695 = vld [vmem:[%s1 + $0xa5c] sm:$0xf]
    %v696 = vld [vmem:[%s1 + $0xa60] sm:$0xf]
    %v697 = vld [vmem:[%s1 + $0xa64] sm:$0xf]
    %v698 = vld [vmem:[%s1 + $0xa68] sm:$0xf]
    %v699 = vld [vmem:[%s1 + $0xa6c] sm:$0xf]
    %v700 = vld [vmem:[%s1 + $0xa70] sm:$0xf]
    %v701 = vld [vmem:[%s1 + $0xa74] sm:$0xf]
    %v702 = vld [vmem:[%s1 + $0xa78] sm:$0xf]
    %v703 = vld [vmem:[%s1 + $0xa7c] sm:$0xf]
    %v704 = vld [vmem:[%s1 + $0xa80] sm:$0xf]
    %v705 = vld [vmem:[%s1 + $0xa84] sm:$0xf]
    %v706 = vld [vmem:[%s1 + $0xa88] sm:$0xf]
    %v707 = vld [vmem:[%s1 + $0xa8c] sm:$0xf]
    %v708 = vld [vmem:[%s1 + $0xa90] sm:$0xf]
    %v709 = vld [vmem:[%s1 + $0xa94] sm:$0xf]
    %v710 = vld [vmem:[%s1 + $0xa98] sm:$0xf]
    %v711 = vld [vmem:[%s1 + $0xa9c] sm:$0xf]
    %v712 = vld [vmem:[%s1 + $0xaa0] sm:$0xf]
    %v713 = vld [vmem:[%s1 + $0xaa4] sm:$0xf]
    %v714 = vld [vmem:[%s1 + $0xaa8] sm:$0xf]
    %v715 = vld [vmem:[%s1 + $0xaac] sm:$0xf]
    %v716 = vld [vmem:[%s1 + $0xab0] sm:$0xf]
    %v717 = vld [vmem:[%s1 + $0xab4] sm:$0xf]
    %v718 = vld [vmem:[%s1 + $0xab8] sm:$0xf]
    %v719 = vld [vmem:[%s1 + $0xabc] sm:$0xf]
    %v720 = vld [vmem:[%s1 + $0xac0] sm:$0xf]
    %v721 = vld [vmem:[%s1 + $0xac4] sm:$0xf]
    %v722 = vld [vmem:[%s1 + $0xac8] sm:$0xf]
    %v723 = vld [vmem:[%s1 + $0xacc] sm:$0xf]
    %v724 = vld [vmem:[%s1 + $0xad0] sm:$0xf]
    %v725 = vld [vmem:[%s1 + $0xad4] sm:$0xf]
    %v726 = vld [vmem:[%s1 + $0xad8] sm:$0xf]
    %v727 = vld [vmem:[%s1 + $0xadc] sm:$0xf]
    %v728 = vld [vmem:[%s1 + $0xae0] sm:$0xf]
    %v729 = vld [vmem:[%s1 + $0xae4] sm:$0xf]
    %v730 = vld [vmem:[%s1 + $0xae8] sm:$0xf]
    %v731 = vld [vmem:[%s1 + $0xaec] sm:$0xf]
    %v732 = vld [vmem:[%s1 + $0xaf0] sm:$0xf]
    %v733 = vld [vmem:[%s1 + $0xaf4] sm:$0xf]
    %v734 = vld [vmem:[%s1 + $0xaf8] sm:$0xf]
    %v735 = vld [vmem:[%s1 + $0xafc] sm:$0xf]
    %v736 = vld [vmem:[%s1 + $0xb00] sm:$0xf]
    %v737 = vld [vmem:[%s1 + $0xb04] sm:$0xf]
    %v738 = vld [vmem:[%s1 + $0xb08] sm:$0xf]
    %v739 = vld [vmem:[%s1 + $0xb0c] sm:$0xf]
    %v740 = vld [vmem:[%s1 + $0xb10] sm:$0xf]
    %v741 = vld [vmem:[%s1 + $0xb14] sm:$0xf]
    %v742 = vld [vmem:[%s1 + $0xb18] sm:$0xf]
    %v743 = vld [vmem:[%s1 + $0xb1c] sm:$0xf]
    %v744 = vld [vmem:[%s1 + $0xb20] sm:$0xf]
    %v745 = vld [vmem:[%s1 + $0xb24] sm:$0xf]
    %v746 = vld [vmem:[%s1 + $0xb28] sm:$0xf]
    %v747 = vld [vmem:[%s1 + $0xb2c] sm:$0xf]
    %v748 = vld [vmem:[%s1 + $0xb30] sm:$0xf]
    %v749 = vld [vmem:[%s1 + $0xb34] sm:$0xf]
    %v750 = vld [vmem:[%s1 + $0xb38] sm:$0xf]
    %v751 = vld [vmem:[%s1 + $0xb3c] sm:$0xf]
    %v752 = vld [vmem:[%s1 + $0xb40] sm:$0xf]
    %v753 = vld [vmem:[%s1 + $0xb44] sm:$0xf]
    %v754 = vld [vmem:[%s1 + $0xb48] sm:$0xf]
    %v755 = vld [vmem:[%s1 + $0xb4c] sm:$0xf]
    %v756 = vld [vmem:[%s1 + $0xb50] sm:$0xf]
    %v757 = vld [vmem:[%s1 + $0xb54] sm:$0xf]
    %v758 = vld [vmem:[%s1 + $0xb58] sm:$0xf]
    %v759 = vld [vmem:[%s1 + $0xb5c] sm:$0xf]
    %v760 = vld [vmem:[%s1 + $0xb60] sm:$0xf]
    %v761 = vld [vmem:[%s1 + $0xb64] sm:$0xf]
    %v762 = vld [vmem:[%s1 + $0xb68] sm:$0xf]
    %v763 = vld [vmem:[%s1 + $0xb6c] sm:$0xf]
    %v764 = vld [vmem:[%s1 + $0xb70] sm:$0xf]
    %v765 = vld [vmem:[%s1 + $0xb74] sm:$0xf]
    %v766 = vld [vmem:[%s1 + $0xb78] sm:$0xf]
    %v767 = vld [vmem:[%s1 + $0xb7c] sm:$0xf]
    %v768 = vld [vmem:[%s1 + $0xb80] sm:$0xf]
    %v769 = vld [vmem:[%s1 + $0xb84] sm:$0xf]
    %v770 = vld [vmem:[%s1 + $0xb88] sm:$0xf]
    %v771 = vld [vmem:[%s1 + $0xb8c] sm:$0xf]
    %v772 = vld [vmem:[%s1 + $0xb90] sm:$0xf]
    %v773 = vld [vmem:[%s1 + $0xb94] sm:$0xf]
    %v774 = vld [vmem:[%s1 + $0xb98] sm:$0xf]
    %v775 = vld [vmem:[%s1 + $0xb9c] sm:$0xf]
    %v776 = vld [vmem:[%s1 + $0xba0] sm:$0xf]
    %v777 = vld [vmem:[%s1 + $0xba4] sm:$0xf]
    %v778 = vld [vmem:[%s1 + $0xba8] sm:$0xf]
    %v779 = vld [vmem:[%s1 + $0xbac] sm:$0xf]
    %v780 = vld [vmem:[%s1 + $0xbb0] sm:$0xf]
    %v781 = vld [vmem:[%s1 + $0xbb4] sm:$0xf]
    %v782 = vld [vmem:[%s1 + $0xbb8] sm:$0xf]
    %v783 = vld [vmem:[%s1 + $0xbbc] sm:$0xf]
    %v784 = vld [vmem:[%s1 + $0xbc0] sm:$0xf]
    %v785 = vld [vmem:[%s1 + $0xbc4] sm:$0xf]
    %v786 = vld [vmem:[%s1 + $0xbc8] sm:$0xf]
    %v787 = vld [vmem:[%s1 + $0xbcc] sm:$0xf]
    %v788 = vld [vmem:[%s1 + $0xbd0] sm:$0xf]
    %v789 = vld [vmem:[%s1 + $0xbd4] sm:$0xf]
    %v790 = vld [vmem:[%s1 + $0xbd8] sm:$0xf]
    %v791 = vld [vmem:[%s1 + $0xbdc] sm:$0xf]
    %v792 = vld [vmem:[%s1 + $0xbe0] sm:$0xf]
    %v793 = vld [vmem:[%s1 + $0xbe4] sm:$0xf]
    %v794 = vld [vmem:[%s1 + $0xbe8] sm:$0xf]
    %v795 = vld [vmem:[%s1 + $0xbec] sm:$0xf]
    %v796 = vld [vmem:[%s1 + $0xbf0] sm:$0xf]
    %v797 = vld [vmem:[%s1 + $0xbf4] sm:$0xf]
    %v798 = vld [vmem:[%s1 + $0xbf8] sm:$0xf]
    %v799 = vld [vmem:[%s1 + $0xbfc] sm:$0xf]
    %v800 = vld [vmem:[%s1 + $0xc00] sm:$0xf]
    %v801 = vld [vmem:[%s1 + $0xc04] sm:$0xf]
    %v802 = vld [vmem:[%s1 + $0xc08] sm:$0xf]
    %v803 = vld [vmem:[%s1 + $0xc0c] sm:$0xf]
    %v804 = vld [vmem:[%s1 + $0xc10] sm:$0xf]
    %v805 = vld [vmem:[%s1 + $0xc14] sm:$0xf]
    %v806 = vld [vmem:[%s1 + $0xc18] sm:$0xf]
    %v807 = vld [vmem:[%s1 + $0xc1c] sm:$0xf]
    %v808 = vld [vmem:[%s1 + $0xc20] sm:$0xf]
    %v809 = vld [vmem:[%s1 + $0xc24] sm:$0xf]
    %v810 = vld [vmem:[%s1 + $0xc28] sm:$0xf]
    %v811 = vld [vmem:[%s1 + $0xc2c] sm:$0xf]
    %v812 = vld [vmem:[%s1 + $0xc30] sm:$0xf]
    %v813 = vld [vmem:[%s1 + $0xc34] sm:$0xf]
    %v814 = vld [vmem:[%s1 + $0xc38] sm:$0xf]
    %v815 = vld [vmem:[%s1 + $0xc3c] sm:$0xf]
    %v816 = vld [vmem:[%s1 + $0xc40] sm:$0xf]
    %v817 = vld [vmem:[%s1 + $0xc44] sm:$0xf]
    %v818 = vld [vmem:[%s1 + $0xc48] sm:$0xf]
    %v819 = vld [vmem:[%s1 + $0xc4c] sm:$0xf]
    %v820 = vld [vmem:[%s1 + $0xc50] sm:$0xf]
    %v821 = vld [vmem:[%s1 + $0xc54] sm:$0xf]
    %v822 = vld [vmem:[%s1 + $0xc58] sm:$0xf]
    %v823 = vld [vmem:[%s1 + $0xc5c] sm:$0xf]
    %v824 = vld [vmem:[%s1 + $0xc60] sm:$0xf]
    %v825 = vld [vmem:[%s1 + $0xc64] sm:$0xf]
    %v826 = vld [vmem:[%s1 + $0xc68] sm:$0xf]
    %v827 = vld [vmem:[%s1 + $0xc6c] sm:$0xf]
    %v828 = vld [vmem:[%s1 + $0xc70] sm:$0xf]
    %v829 = vld [vmem:[%s1 + $0xc74] sm:$0xf]
    %v830 = vld [vmem:[%s1 + $0xc78] sm:$0xf]
    %v831 = vld [vmem:[%s1 + $0xc7c] sm:$0xf]
    %v832 = vld [vmem:[%s1 + $0xc80] sm:$0xf]
    %v833 = vld [vmem:[%s1 + $0xc84] sm:$0xf]
    %v834 = vld [vmem:[%s1 + $0xc88] sm:$0xf]
    %v835 = vld [vmem:[%s1 + $0xc8c] sm:$0xf]
    %v836 = vld [vmem:[%s1 + $0xc90] sm:$0xf]
    %v837 = vld [vmem:[%s1 + $0xc94] sm:$0xf]
    %v838 = vld [vmem:[%s1 + $0xc98] sm:$0xf]
    %v839 = vld [vmem:[%s1 + $0xc9c] sm:$0xf]
    %v840 = vld [vmem:[%s1 + $0xca0] sm:$0xf]
    %v841 = vld [vmem:[%s1 + $0xca4] sm:$0xf]
    %v842 = vld [vmem:[%s1 + $0xca8] sm:$0xf]
    %v843 = vld [vmem:[%s1 + $0xcac] sm:$0xf]
    %v844 = vld [vmem:[%s1 + $0xcb0] sm:$0xf]
    %v845 = vld [vmem:[%s1 + $0xcb4] sm:$0xf]
    %v846 = vld [vmem:[%s1 + $0xcb8] sm:$0xf]
    %v847 = vld [vmem:[%s1 + $0xcbc] sm:$0xf]
    %v848 = vld [vmem:[%s1 + $0xcc0] sm:$0xf]
    %v849 = vld [vmem:[%s1 + $0xcc4] sm:$0xf]
    %v850 = vld [vmem:[%s1 + $0xcc8] sm:$0xf]
    %v851 = vld [vmem:[%s1 + $0xccc] sm:$0xf]
    %v852 = vld [vmem:[%s1 + $0xcd0] sm:$0xf]
    %v853 = vld [vmem:[%s1 + $0xcd4] sm:$0xf]
    %v854 = vld [vmem:[%s1 + $0xcd8] sm:$0xf]
    %v855 = vld [vmem:[%s1 + $0xcdc] sm:$0xf]
    %v856 = vld [vmem:[%s1 + $0xce0] sm:$0xf]
    %v857 = vld [vmem:[%s1 + $0xce4] sm:$0xf]
    %v858 = vld [vmem:[%s1 + $0xce8] sm:$0xf]
    %v859 = vld [vmem:[%s1 + $0xcec] sm:$0xf]
    %v860 = vld [vmem:[%s1 + $0xcf0] sm:$0xf]
    %v861 = vld [vmem:[%s1 + $0xcf4] sm:$0xf]
    %v862 = vld [vmem:[%s1 + $0xcf8] sm:$0xf]
    %v863 = vld [vmem:[%s1 + $0xcfc] sm:$0xf]
    %v864 = vld [vmem:[%s1 + $0xd00] sm:$0xf]
    %v865 = vld [vmem:[%s1 + $0xd04] sm:$0xf]
    %v866 = vld [vmem:[%s1 + $0xd08] sm:$0xf]
    %v867 = vld [vmem:[%s1 + $0xd0c] sm:$0xf]
    %v868 = vld [vmem:[%s1 + $0xd10] sm:$0xf]
    %v869 = vld [vmem:[%s1 + $0xd14] sm:$0xf]
    %v870 = vld [vmem:[%s1 + $0xd18] sm:$0xf]
    %v871 = vld [vmem:[%s1 + $0xd1c] sm:$0xf]
    %v872 = vld [vmem:[%s1 + $0xd20] sm:$0xf]
    %v873 = vld [vmem:[%s1 + $0xd24] sm:$0xf]
    %v874 = vld [vmem:[%s1 + $0xd28] sm:$0xf]
    %v875 = vld [vmem:[%s1 + $0xd2c] sm:$0xf]
    %v876 = vld [vmem:[%s1 + $0xd30] sm:$0xf]
    %v877 = vld [vmem:[%s1 + $0xd34] sm:$0xf]
    %v878 = vld [vmem:[%s1 + $0xd38] sm:$0xf]
    %v879 = vld [vmem:[%s1 + $0xd3c] sm:$0xf]
    %v880 = vld [vmem:[%s1 + $0xd40] sm:$0xf]
    %v881 = vld [vmem:[%s1 + $0xd44] sm:$0xf]
    %v882 = vld [vmem:[%s1 + $0xd48] sm:$0xf]
    %v883 = vld [vmem:[%s1 + $0xd4c] sm:$0xf]
    %v884 = vld [vmem:[%s1 + $0xd50] sm:$0xf]
    %v885 = vld [vmem:[%s1 + $0xd54] sm:$0xf]
    %v886 = vld [vmem:[%s1 + $0xd58] sm:$0xf]
    %v887 = vld [vmem:[%s1 + $0xd5c] sm:$0xf]
    %v888 = vld [vmem:[%s1 + $0xd60] sm:$0xf]
    %v889 = vld [vmem:[%s1 + $0xd64] sm:$0xf]
    %v890 = vld [vmem:[%s1 + $0xd68] sm:$0xf]
    %v891 = vld [vmem:[%s1 + $0xd6c] sm:$0xf]
    %v892 = vld [vmem:[%s1 + $0xd70] sm:$0xf]
    %v893 = vld [vmem:[%s1 + $0xd74] sm:$0xf]
    %v894 = vld [vmem:[%s1 + $0xd78] sm:$0xf]
    %v895 = vld [vmem:[%s1 + $0xd7c] sm:$0xf]
    %v896 = vld [vmem:[%s1 + $0xd80] sm:$0xf]
    %v897 = vld [vmem:[%s1 + $0xd84] sm:$0xf]
    %v898 = vld [vmem:[%s1 + $0xd88] sm:$0xf]
    %v899 = vld [vmem:[%s1 + $0xd8c] sm:$0xf]
    %v900 = vld [vmem:[%s1 + $0xd90] sm:$0xf]
    %v901 = vld [vmem:[%s1 + $0xd94] sm:$0xf]
    %v902 = vld [vmem:[%s1 + $0xd98] sm:$0xf]
    %v903 = vld [vmem:[%s1 + $0xd9c] sm:$0xf]
    %v904 = vld [vmem:[%s1 + $0xda0] sm:$0xf]
    %v905 = vld [vmem:[%s1 + $0xda4] sm:$0xf]
    %v906 = vld [vmem:[%s1 + $0xda8] sm:$0xf]
    %v907 = vld [vmem:[%s1 + $0xdac] sm:$0xf]
    %v908 = vld [vmem:[%s1 + $0xdb0] sm:$0xf]
    %v909 = vld [vmem:[%s1 + $0xdb4] sm:$0xf]
    %v910 = vld [vmem:[%s1 + $0xdb8] sm:$0xf]
    %v911 = vld [vmem:[%s1 + $0xdbc] sm:$0xf]
    %v912 = vld [vmem:[%s1 + $0xdc0] sm:$0xf]
    %v913 = vld [vmem:[%s1 + $0xdc4] sm:$0xf]
    %v914 = vld [vmem:[%s1 + $0xdc8] sm:$0xf]
    %v915 = vld [vmem:[%s1 + $0xdcc] sm:$0xf]
    %v916 = vld [vmem:[%s1 + $0xdd0] sm:$0xf]
    %v917 = vld [vmem:[%s1 + $0xdd4] sm:$0xf]
    %v918 = vld [vmem:[%s1 + $0xdd8] sm:$0xf]
    %v919 = vld [vmem:[%s1 + $0xddc] sm:$0xf]
    %v920 = vld [vmem:[%s1 + $0xde0] sm:$0xf]
    %v921 = vld [vmem:[%s1 + $0xde4] sm:$0xf]
    %v922 = vld [vmem:[%s1 + $0xde8] sm:$0xf]
    %v923 = vld [vmem:[%s1 + $0xdec] sm:$0xf]
    %v924 = vld [vmem:[%s1 + $0xdf0] sm:$0xf]
    %v925 = vld [vmem:[%s1 + $0xdf4] sm:$0xf]
    %v926 = vld [vmem:[%s1 + $0xdf8] sm:$0xf]
    %v927 = vld [vmem:[%s1 + $0xdfc] sm:$0xf]
    %v928 = vld [vmem:[%s1 + $0xe00] sm:$0xf]
    %v929 = vld [vmem:[%s1 + $0xe04] sm:$0xf]
    %v930 = vld [vmem:[%s1 + $0xe08] sm:$0xf]
    %v931 = vld [vmem:[%s1 + $0xe0c] sm:$0xf]
    %v932 = vld [vmem:[%s1 + $0xe10] sm:$0xf]
    %v933 = vld [vmem:[%s1 + $0xe14] sm:$0xf]
    %v934 = vld [vmem:[%s1 + $0xe18] sm:$0xf]
    %v935 = vld [vmem:[%s1 + $0xe1c] sm:$0xf]
    %v936 = vld [vmem:[%s1 + $0xe20] sm:$0xf]
    %v937 = vld [vmem:[%s1 + $0xe24] sm:$0xf]
    %v938 = vld [vmem:[%s1 + $0xe28] sm:$0xf]
    %v939 = vld [vmem:[%s1 + $0xe2c] sm:$0xf]
    %v940 = vld [vmem:[%s1 + $0xe30] sm:$0xf]
    %v941 = vld [vmem:[%s1 + $0xe34] sm:$0xf]
    %v942 = vld [vmem:[%s1 + $0xe38] sm:$0xf]
    %v943 = vld [vmem:[%s1 + $0xe3c] sm:$0xf]
    %v944 = vld [vmem:[%s1 + $0xe40] sm:$0xf]
    %v945 = vld [vmem:[%s1 + $0xe44] sm:$0xf]
    %v946 = vld [vmem:[%s1 + $0xe48] sm:$0xf]
    %v947 = vld [vmem:[%s1 + $0xe4c] sm:$0xf]
    %v948 = vld [vmem:[%s1 + $0xe50] sm:$0xf]
    %v949 = vld [vmem:[%s1 + $0xe54] sm:$0xf]
    %v950 = vld [vmem:[%s1 + $0xe58] sm:$0xf]
    %v951 = vld [vmem:[%s1 + $0xe5c] sm:$0xf]
    %v952 = vld [vmem:[%s1 + $0xe60] sm:$0xf]
    %v953 = vld [vmem:[%s1 + $0xe64] sm:$0xf]
    %v954 = vld [vmem:[%s1 + $0xe68] sm:$0xf]
    %v955 = vld [vmem:[%s1 + $0xe6c] sm:$0xf]
    %v956 = vld [vmem:[%s1 + $0xe70] sm:$0xf]
    %v957 = vld [vmem:[%s1 + $0xe74] sm:$0xf]
    %v958 = vld [vmem:[%s1 + $0xe78] sm:$0xf]
    %v959 = vld [vmem:[%s1 + $0xe7c] sm:$0xf]
    %v960 = vld [vmem:[%s1 + $0xe80] sm:$0xf]
    %v961 = vld [vmem:[%s1 + $0xe84] sm:$0xf]
    %v962 = vld [vmem:[%s1 + $0xe88] sm:$0xf]
    %v963 = vld [vmem:[%s1 + $0xe8c] sm:$0xf]
    %v964 = vld [vmem:[%s1 + $0xe90] sm:$0xf]
    %v965 = vld [vmem:[%s1 + $0xe94] sm:$0xf]
    %v966 = vld [vmem:[%s1 + $0xe98] sm:$0xf]
    %v967 = vld [vmem:[%s1 + $0xe9c] sm:$0xf]
    %v968 = vld [vmem:[%s1 + $0xea0] sm:$0xf]
    %v969 = vld [vmem:[%s1 + $0xea4] sm:$0xf]
    %v970 = vld [vmem:[%s1 + $0xea8] sm:$0xf]
    %v971 = vld [vmem:[%s1 + $0xeac] sm:$0xf]
    %v972 = vld [vmem:[%s1 + $0xeb0] sm:$0xf]
    %v973 = vld [vmem:[%s1 + $0xeb4] sm:$0xf]
    %v974 = vld [vmem:[%s1 + $0xeb8] sm:$0xf]
    %v975 = vld [vmem:[%s1 + $0xebc] sm:$0xf]
    %v976 = vld [vmem:[%s1 + $0xec0] sm:$0xf]
    %v977 = vld [vmem:[%s1 + $0xec4] sm:$0xf]
    %v978 = vld [vmem:[%s1 + $0xec8] sm:$0xf]
    %v979 = vld [vmem:[%s1 + $0xecc] sm:$0xf]
    %v980 = vld [vmem:[%s1 + $0xed0] sm:$0xf]
    %v981 = vld [vmem:[%s1 + $0xed4] sm:$0xf]
    %v982 = vld [vmem:[%s1 + $0xed8] sm:$0xf]
    %v983 = vld [vmem:[%s1 + $0xedc] sm:$0xf]
    %v984 = vld [vmem:[%s1 + $0xee0] sm:$0xf]
    %v985 = vld [vmem:[%s1 + $0xee4] sm:$0xf]
    %v986 = vld [vmem:[%s1 + $0xee8] sm:$0xf]
    %v987 = vld [vmem:[%s1 + $0xeec] sm:$0xf]
    %v988 = vld [vmem:[%s1 + $0xef0] sm:$0xf]
    %v989 = vld [vmem:[%s1 + $0xef4] sm:$0xf]
    %v990 = vld [vmem:[%s1 + $0xef8] sm:$0xf]
    %v991 = vld [vmem:[%s1 + $0xefc] sm:$0xf]
    %v992 = vld [vmem:[%s1 + $0xf00] sm:$0xf]
    %v993 = vld [vmem:[%s1 + $0xf04] sm:$0xf]
    %v994 = vld [vmem:[%s1 + $0xf08] sm:$0xf]
    %v995 = vld [vmem:[%s1 + $0xf0c] sm:$0xf]
    %v996 = vld [vmem:[%s1 + $0xf10] sm:$0xf]
    %v997 = vld [vmem:[%s1 + $0xf14] sm:$0xf]
    %v998 = vld [vmem:[%s1 + $0xf18] sm:$0xf]
    %v999 = vld [vmem:[%s1 + $0xf1c] sm:$0xf]
    %v1000 = vld [vmem:[%s1 + $0xf20] sm:$0xf]
    %v1001 = vld [vmem:[%s1 + $0xf24] sm:$0xf]
    %v1002 = vld [vmem:[%s1 + $0xf28] sm:$0xf]
    %v1003 = vld [vmem:[%s1 + $0xf2c] sm:$0xf]
    %v1004 = vld [vmem:[%s1 + $0xf30] sm:$0xf]
    %v1005 = vld [vmem:[%s1 + $0xf34] sm:$0xf]
    %v1006 = vld [vmem:[%s1 + $0xf38] sm:$0xf]
    %v1007 = vld [vmem:[%s1 + $0xf3c] sm:$0xf]
    %v1008 = vld [vmem:[%s1 + $0xf40] sm:$0xf]
    %v1009 = vld [vmem:[%s1 + $0xf44] sm:$0xf]
    %v1010 = vld [vmem:[%s1 + $0xf48] sm:$0xf]
    %v1011 = vld [vmem:[%s1 + $0xf4c] sm:$0xf]
    %v1012 = vld [vmem:[%s1 + $0xf50] sm:$0xf]
    %v1013 = vld [vmem:[%s1 + $0xf54] sm:$0xf]
    %v1014 = vld [vmem:[%s1 + $0xf58] sm:$0xf]
    %v1015 = vld [vmem:[%s1 + $0xf5c] sm:$0xf]
    %v1016 = vld [vmem:[%s1 + $0xf60] sm:$0xf]
    %v1017 = vld [vmem:[%s1 + $0xf64] sm:$0xf]
    %v1018 = vld [vmem:[%s1 + $0xf68] sm:$0xf]
    %v1019 = vld [vmem:[%s1 + $0xf6c] sm:$0xf]
    %v1020 = vld [vmem:[%s1 + $0xf70] sm:$0xf]
    %v1021 = vld [vmem:[%s1 + $0xf74] sm:$0xf]
    %v1022 = vld [vmem:[%s1 + $0xf78] sm:$0xf]
    %v1023 = vld [vmem:[%s1 + $0xf7c] sm:$0xf]
    %v1024 = vld [vmem:[%s1 + $0xf80] sm:$0xf]
    %v1025 = vld [vmem:[%s1 + $0xf84] sm:$0xf]
    %v1026 = vld [vmem:[%s1 + $0xf88] sm:$0xf]
    %v1027 = vld [vmem:[%s1 + $0xf8c] sm:$0xf]
    %v1028 = vld [vmem:[%s1 + $0xf90] sm:$0xf]
    %v1029 = vld [vmem:[%s1 + $0xf94] sm:$0xf]
    %v1030 = vld [vmem:[%s1 + $0xf98] sm:$0xf]
    %v1031 = vld [vmem:[%s1 + $0xf9c] sm:$0xf]
    %v1032 = vld [vmem:[%s1 + $0xfa0] sm:$0xf]
    %v1033 = vld [vmem:[%s1 + $0xfa4] sm:$0xf]
    %v1034 = vld [vmem:[%s1 + $0xfa8] sm:$0xf]
    %v1035 = vld [vmem:[%s1 + $0xfac] sm:$0xf]
    %v1036 = vld [vmem:[%s1 + $0xfb0] sm:$0xf]
    %v1037 = vld [vmem:[%s1 + $0xfb4] sm:$0xf]
    %v1038 = vld [vmem:[%s1 + $0xfb8] sm:$0xf]
    %v1039 = vld [vmem:[%s1 + $0xfbc] sm:$0xf]
    %v1040 = vld [vmem:[%s1 + $0xfc0] sm:$0xf]
    %v1041 = vld [vmem:[%s1 + $0xfc4] sm:$0xf]
    %v1042 = vld [vmem:[%s1 + $0xfc8] sm:$0xf]
    %v1043 = vld [vmem:[%s1 + $0xfcc] sm:$0xf]
    %v1044 = vld [vmem:[%s1 + $0xfd0] sm:$0xf]
    %v1045 = vld [vmem:[%s1 + $0xfd4] sm:$0xf]
    %v1046 = vld [vmem:[%s1 + $0xfd8] sm:$0xf]
    %v1047 = vld [vmem:[%s1 + $0xfdc] sm:$0xf]
    %v1048 = vld [vmem:[%s1 + $0xfe0] sm:$0xf]
    %v1049 = vld [vmem:[%s1 + $0xfe4] sm:$0xf]
    %v1050 = vld [vmem:[%s1 + $0xfe8] sm:$0xf]
    %v1051 = vld [vmem:[%s1 + $0xfec] sm:$0xf]
    %v1052 = vld [vmem:[%s1 + $0xff0] sm:$0xf]
    %v1053 = vld [vmem:[%s1 + $0xff4] sm:$0xf]
    %v1054 = vld [vmem:[%s1 + $0xff8] sm:$0xf]
    %v1055 = vld [vmem:[%s1 + $0xffc] sm:$0xf]
    %v1056 = vld [vmem:[%s1 + $0x1000] sm:$0xf]
    %v1057 = vld [vmem:[%s1 + $0x1004] sm:$0xf]
    %v1058 = vld [vmem:[%s1 + $0x1008] sm:$0xf]
    %v1059 = vld [vmem:[%s1 + $0x100c] sm:$0xf]
    %v1060 = vld [vmem:[%s1 + $0x1010] sm:$0xf]
    %v1061 = vld [vmem:[%s1 + $0x1014] sm:$0xf]
    %v1062 = vld [vmem:[%s1 + $0x1018] sm:$0xf]
    %v1063 = vld [vmem:[%s1 + $0x101c] sm:$0xf]
    %v1064 = vld [vmem:[%s1 + $0x1020] sm:$0xf]
    %v1065 = vld [vmem:[%s1 + $0x1024] sm:$0xf]
    %v1066 = vld [vmem:[%s1 + $0x1028] sm:$0xf]
    %v1067 = vld [vmem:[%s1 + $0x102c] sm:$0xf]
    %v1068 = vld [vmem:[%s1 + $0x1030] sm:$0xf]
    %v1069 = vld [vmem:[%s1 + $0x1034] sm:$0xf]
    %v1070 = vld [vmem:[%s1 + $0x1038] sm:$0xf]
    %v1071 = vld [vmem:[%s1 + $0x103c] sm:$0xf]
    %v1072 = vld [vmem:[%s1 + $0x1040] sm:$0xf]
    %v1073 = vld [vmem:[%s1 + $0x1044] sm:$0xf]
    %v1074 = vld [vmem:[%s1 + $0x1048] sm:$0xf]
    %v1075 = vld [vmem:[%s1 + $0x104c] sm:$0xf]
    %v1076 = vld [vmem:[%s1 + $0x1050] sm:$0xf]
    %v1077 = vld [vmem:[%s1 + $0x1054] sm:$0xf]
    %v1078 = vld [vmem:[%s1 + $0x1058] sm:$0xf]
    %v1079 = vld [vmem:[%s1 + $0x105c] sm:$0xf]
    %v1080 = vld [vmem:[%s1 + $0x1060] sm:$0xf]
    %v1081 = vld [vmem:[%s1 + $0x1064] sm:$0xf]
    %v1082 = vld [vmem:[%s1 + $0x1068] sm:$0xf]
    %v1083 = vld [vmem:[%s1 + $0x106c] sm:$0xf]
    %v1084 = vld [vmem:[%s1 + $0x1070] sm:$0xf]
    %v1085 = vld [vmem:[%s1 + $0x1074] sm:$0xf]
    %v1086 = vld [vmem:[%s1 + $0x1078] sm:$0xf]
    %v1087 = vld [vmem:[%s1 + $0x107c] sm:$0xf]
    %v1088 = vld [vmem:[%s1 + $0x1080] sm:$0xf]
    %v1089 = vld [vmem:[%s1 + $0x1084] sm:$0xf]
    %v1090 = vld [vmem:[%s1 + $0x1088] sm:$0xf]
    %v1091 = vld [vmem:[%s1 + $0x108c] sm:$0xf]
    %v1092 = vld [vmem:[%s1 + $0x1090] sm:$0xf]
    %v1093 = vld [vmem:[%s1 + $0x1094] sm:$0xf]
    %v1094 = vld [vmem:[%s1 + $0x1098] sm:$0xf]
    %v1095 = vld [vmem:[%s1 + $0x109c] sm:$0xf]
    %v1096 = vld [vmem:[%s1 + $0x10a0] sm:$0xf]
    %v1097 = vld [vmem:[%s1 + $0x10a4] sm:$0xf]
    %v1098 = vld [vmem:[%s1 + $0x10a8] sm:$0xf]
    %v1099 = vld [vmem:[%s1 + $0x10ac] sm:$0xf]
    %v1100 = vld [vmem:[%s1 + $0x10b0] sm:$0xf]
    %v1101 = vld [vmem:[%s1 + $0x10b4] sm:$0xf]
    %v1102 = vld [vmem:[%s1 + $0x10b8] sm:$0xf]
    %v1103 = vld [vmem:[%s1 + $0x10bc] sm:$0xf]
    %v1104 = vld [vmem:[%s1 + $0x10c0] sm:$0xf]
    %v1105 = vld [vmem:[%s1 + $0x10c4] sm:$0xf]
    %v1106 = vld [vmem:[%s1 + $0x10c8] sm:$0xf]
    %v1107 = vld [vmem:[%s1 + $0x10cc] sm:$0xf]
    %v1108 = vld [vmem:[%s1 + $0x10d0] sm:$0xf]
    %v1109 = vld [vmem:[%s1 + $0x10d4] sm:$0xf]
    %v1110 = vld [vmem:[%s1 + $0x10d8] sm:$0xf]
    %v1111 = vld [vmem:[%s1 + $0x10dc] sm:$0xf]
    %v1112 = vld [vmem:[%s1 + $0x10e0] sm:$0xf]
    %v1113 = vld [vmem:[%s1 + $0x10e4] sm:$0xf]
    %v1114 = vld [vmem:[%s1 + $0x10e8] sm:$0xf]
    %v1115 = vld [vmem:[%s1 + $0x10ec] sm:$0xf]
    %v1116 = vld [vmem:[%s1 + $0x10f0] sm:$0xf]
    %v1117 = vld [vmem:[%s1 + $0x10f4] sm:$0xf]
    %v1118 = vld [vmem:[%s1 + $0x10f8] sm:$0xf]
    %v1119 = vld [vmem:[%s1 + $0x10fc] sm:$0xf]
    %v1120 = vld [vmem:[%s1 + $0x1100] sm:$0xf]
    %v1121 = vld [vmem:[%s1 + $0x1104] sm:$0xf]
    %v1122 = vld [vmem:[%s1 + $0x1108] sm:$0xf]
    %v1123 = vld [vmem:[%s1 + $0x110c] sm:$0xf]
    %v1124 = vld [vmem:[%s1 + $0x1110] sm:$0xf]
    %v1125 = vld [vmem:[%s1 + $0x1114] sm:$0xf]
    %v1126 = vld [vmem:[%s1 + $0x1118] sm:$0xf]
    %v1127 = vld [vmem:[%s1 + $0x111c] sm:$0xf]
    %v1128 = vld [vmem:[%s1 + $0x1120] sm:$0xf]
    %v1129 = vld [vmem:[%s1 + $0x1124] sm:$0xf]
    %v1130 = vld [vmem:[%s1 + $0x1128] sm:$0xf]
    %v1131 = vld [vmem:[%s1 + $0x112c] sm:$0xf]
    %v1132 = vld [vmem:[%s1 + $0x1130] sm:$0xf]
    %v1133 = vld [vmem:[%s1 + $0x1134] sm:$0xf]
    %v1134 = vld [vmem:[%s1 + $0x1138] sm:$0xf]
    %v1135 = vld [vmem:[%s1 + $0x113c] sm:$0xf]
    %v1136 = vld [vmem:[%s1 + $0x1140] sm:$0xf]
    %v1137 = vld [vmem:[%s1 + $0x1144] sm:$0xf]
    %v1138 = vld [vmem:[%s1 + $0x1148] sm:$0xf]
    %v1139 = vld [vmem:[%s1 + $0x114c] sm:$0xf]
    %v1140 = vld [vmem:[%s1 + $0x1150] sm:$0xf]
    %v1141 = vld [vmem:[%s1 + $0x1154] sm:$0xf]
    %v1142 = vld [vmem:[%s1 + $0x1158] sm:$0xf]
    %v1143 = vld [vmem:[%s1 + $0x115c] sm:$0xf]
    %v1144 = vld [vmem:[%s1 + $0x1160] sm:$0xf]
    %v1145 = vld [vmem:[%s1 + $0x1164] sm:$0xf]
    %v1146 = vld [vmem:[%s1 + $0x1168] sm:$0xf]
    %v1147 = vld [vmem:[%s1 + $0x116c] sm:$0xf]
    %v1148 = vld [vmem:[%s1 + $0x1170] sm:$0xf]
    %v1149 = vld [vmem:[%s1 + $0x1174] sm:$0xf]
    %v1150 = vld [vmem:[%s1 + $0x1178] sm:$0xf]
    %v1151 = vld [vmem:[%s1 + $0x117c] sm:$0xf]
    %v1152 = vld [vmem:[%s1 + $0x1180] sm:$0xf]
    %v1153 = vld [vmem:[%s1 + $0x1184] sm:$0xf]
    %v1154 = vld [vmem:[%s1 + $0x1188] sm:$0xf]
    %v1155 = vld [vmem:[%s1 + $0x118c] sm:$0xf]
    %v1156 = vld [vmem:[%s1 + $0x1190] sm:$0xf]
    %v1157 = vld [vmem:[%s1 + $0x1194] sm:$0xf]
    %v1158 = vld [vmem:[%s1 + $0x1198] sm:$0xf]
    %v1159 = vld [vmem:[%s1 + $0x119c] sm:$0xf]
    %v1160 = vld [vmem:[%s1 + $0x11a0] sm:$0xf]
    %v1161 = vld [vmem:[%s1 + $0x11a4] sm:$0xf]
    %v1162 = vld [vmem:[%s1 + $0x11a8] sm:$0xf]
    %v1163 = vld [vmem:[%s1 + $0x11ac] sm:$0xf]
    %v1164 = vld [vmem:[%s1 + $0x11b0] sm:$0xf]
    %v1165 = vld [vmem:[%s1 + $0x11b4] sm:$0xf]
    %v1166 = vld [vmem:[%s1 + $0x11b8] sm:$0xf]
    %v1167 = vld [vmem:[%s1 + $0x11bc] sm:$0xf]
    %v1168 = vld [vmem:[%s1 + $0x11c0] sm:$0xf]
    %v1169 = vld [vmem:[%s1 + $0x11c4] sm:$0xf]
    %v1170 = vld [vmem:[%s1 + $0x11c8] sm:$0xf]
    %v1171 = vld [vmem:[%s1 + $0x11cc] sm:$0xf]
    %v1172 = vld [vmem:[%s1 + $0x11d0] sm:$0xf]
    %v1173 = vld [vmem:[%s1 + $0x11d4] sm:$0xf]
    %v1174 = vld [vmem:[%s1 + $0x11d8] sm:$0xf]
    %v1175 = vld [vmem:[%s1 + $0x11dc] sm:$0xf]
    %v1176 = vld [vmem:[%s1 + $0x11e0] sm:$0xf]
    %v1177 = vld [vmem:[%s1 + $0x11e4] sm:$0xf]
    %v1178 = vld [vmem:[%s1 + $0x11e8] sm:$0xf]
    %v1179 = vld [vmem:[%s1 + $0x11ec] sm:$0xf]
    %v1180 = vld [vmem:[%s1 + $0x11f0] sm:$0xf]
    %v1181 = vld [vmem:[%s1 + $0x11f4] sm:$0xf]
    %v1182 = vld [vmem:[%s1 + $0x11f8] sm:$0xf]
    %v1183 = vld [vmem:[%s1 + $0x11fc] sm:$0xf]
    %v1184 = vld [vmem:[%s1 + $0x1200] sm:$0xf]
    %v1185 = vld [vmem:[%s1 + $0x1204] sm:$0xf]
    %v1186 = vld [vmem:[%s1 + $0x1208] sm:$0xf]
    %v1187 = vld [vmem:[%s1 + $0x120c] sm:$0xf]
    %v1188 = vld [vmem:[%s1 + $0x1210] sm:$0xf]
    %v1189 = vld [vmem:[%s1 + $0x1214] sm:$0xf]
    %v1190 = vld [vmem:[%s1 + $0x1218] sm:$0xf]
    %v1191 = vld [vmem:[%s1 + $0x121c] sm:$0xf]
    %v1192 = vld [vmem:[%s1 + $0x1220] sm:$0xf]
    %v1193 = vld [vmem:[%s1 + $0x1224] sm:$0xf]
    %v1194 = vld [vmem:[%s1 + $0x1228] sm:$0xf]
    %v1195 = vld [vmem:[%s1 + $0x122c] sm:$0xf]
    %v1196 = vld [vmem:[%s1 + $0x1230] sm:$0xf]
    %v1197 = vld [vmem:[%s1 + $0x1234] sm:$0xf]
    %v1198 = vld [vmem:[%s1 + $0x1238] sm:$0xf]
    %v1199 = vld [vmem:[%s1 + $0x123c] sm:$0xf]
    %v1200 = vld [vmem:[%s1 + $0x1240] sm:$0xf]
    %v1201 = vld [vmem:[%s1 + $0x1244] sm:$0xf]
    %v1202 = vld [vmem:[%s1 + $0x1248] sm:$0xf]
    %v1203 = vld [vmem:[%s1 + $0x124c] sm:$0xf]
    %v1204 = vld [vmem:[%s1 + $0x1250] sm:$0xf]
    %v1205 = vld [vmem:[%s1 + $0x1254] sm:$0xf]
    %v1206 = vld [vmem:[%s1 + $0x1258] sm:$0xf]
    %v1207 = vld [vmem:[%s1 + $0x125c] sm:$0xf]
    %v1208 = vld [vmem:[%s1 + $0x1260] sm:$0xf]
    %v1209 = vld [vmem:[%s1 + $0x1264] sm:$0xf]
    %v1210 = vld [vmem:[%s1 + $0x1268] sm:$0xf]
    %v1211 = vld [vmem:[%s1 + $0x126c] sm:$0xf]
    %v1212 = vld [vmem:[%s1 + $0x1270] sm:$0xf]
    %v1213 = vld [vmem:[%s1 + $0x1274] sm:$0xf]
    %v1214 = vld [vmem:[%s1 + $0x1278] sm:$0xf]
    %v1215 = vld [vmem:[%s1 + $0x127c] sm:$0xf]
    %v1216 = vld [vmem:[%s1 + $0x1280] sm:$0xf]
    %v1217 = vld [vmem:[%s1 + $0x1284] sm:$0xf]
    %v1218 = vld [vmem:[%s1 + $0x1288] sm:$0xf]
    %v1219 = vld [vmem:[%s1 + $0x128c] sm:$0xf]
    %v1220 = vld [vmem:[%s1 + $0x1290] sm:$0xf]
    %v1221 = vld [vmem:[%s1 + $0x1294] sm:$0xf]
    %v1222 = vld [vmem:[%s1 + $0x1298] sm:$0xf]
    %v1223 = vld [vmem:[%s1 + $0x129c] sm:$0xf]
    %v1224 = vld [vmem:[%s1 + $0x12a0] sm:$0xf]
    %v1225 = vld [vmem:[%s1 + $0x12a4] sm:$0xf]
    %v1226 = vld [vmem:[%s1 + $0x12a8] sm:$0xf]
    %v1227 = vld [vmem:[%s1 + $0x12ac] sm:$0xf]
    %v1228 = vld [vmem:[%s1 + $0x12b0] sm:$0xf]
    %v1229 = vld [vmem:[%s1 + $0x12b4] sm:$0xf]
    %v1230 = vld [vmem:[%s1 + $0x12b8] sm:$0xf]
    %v1231 = vld [vmem:[%s1 + $0x12bc] sm:$0xf]
    %v1232 = vld [vmem:[%s1 + $0x12c0] sm:$0xf]
    %v1233 = vld [vmem:[%s1 + $0x12c4] sm:$0xf]
    %v1234 = vld [vmem:[%s1 + $0x12c8] sm:$0xf]
    %v1235 = vld [vmem:[%s1 + $0x12cc] sm:$0xf]
    %v1236 = vld [vmem:[%s1 + $0x12d0] sm:$0xf]
    %v1237 = vld [vmem:[%s1 + $0x12d4] sm:$0xf]
    %v1238 = vld [vmem:[%s1 + $0x12d8] sm:$0xf]
    %v1239 = vld [vmem:[%s1 + $0x12dc] sm:$0xf]
    %v1240 = vld [vmem:[%s1 + $0x12e0] sm:$0xf]
    %v1241 = vld [vmem:[%s1 + $0x12e4] sm:$0xf]
    %v1242 = vld [vmem:[%s1 + $0x12e8] sm:$0xf]
    %v1243 = vld [vmem:[%s1 + $0x12ec] sm:$0xf]
    %v1244 = vld [vmem:[%s1 + $0x12f0] sm:$0xf]
    %v1245 = vld [vmem:[%s1 + $0x12f4] sm:$0xf]
    %v1246 = vld [vmem:[%s1 + $0x12f8] sm:$0xf]
    %v1247 = vld [vmem:[%s1 + $0x12fc] sm:$0xf]
    %v1248 = vld [vmem:[%s1 + $0x1300] sm:$0xf]
    %v1249 = vld [vmem:[%s1 + $0x1304] sm:$0xf]
    %v1250 = vld [vmem:[%s1 + $0x1308] sm:$0xf]
    %v1251 = vld [vmem:[%s1 + $0x130c] sm:$0xf]
    %v1252 = vld [vmem:[%s1 + $0x1310] sm:$0xf]
    %v1253 = vld [vmem:[%s1 + $0x1314] sm:$0xf]
    %v1254 = vld [vmem:[%s1 + $0x1318] sm:$0xf]
    %v1255 = vld [vmem:[%s1 + $0x131c] sm:$0xf]
    %v1256 = vld [vmem:[%s1 + $0x1320] sm:$0xf]
    %v1257 = vld [vmem:[%s1 + $0x1324] sm:$0xf]
    %v1258 = vld [vmem:[%s1 + $0x1328] sm:$0xf]
    %v1259 = vld [vmem:[%s1 + $0x132c] sm:$0xf]
    %v1260 = vld [vmem:[%s1 + $0x1330] sm:$0xf]
    %v1261 = vld [vmem:[%s1 + $0x1334] sm:$0xf]
    %v1262 = vld [vmem:[%s1 + $0x1338] sm:$0xf]
    %v1263 = vld [vmem:[%s1 + $0x133c] sm:$0xf]
    %v1264 = vld [vmem:[%s1 + $0x1340] sm:$0xf]
    %v1265 = vld [vmem:[%s1 + $0x1344] sm:$0xf]
    %v1266 = vld [vmem:[%s1 + $0x1348] sm:$0xf]
    %v1267 = vld [vmem:[%s1 + $0x134c] sm:$0xf]
    %v1268 = vld [vmem:[%s1 + $0x1350] sm:$0xf]
    %v1269 = vld [vmem:[%s1 + $0x1354] sm:$0xf]
    %v1270 = vld [vmem:[%s1 + $0x1358] sm:$0xf]
    %v1271 = vld [vmem:[%s1 + $0x135c] sm:$0xf]
    %v1272 = vld [vmem:[%s1 + $0x1360] sm:$0xf]
    %v1273 = vld [vmem:[%s1 + $0x1364] sm:$0xf]
    %v1274 = vld [vmem:[%s1 + $0x1368] sm:$0xf]
    %v1275 = vld [vmem:[%s1 + $0x136c] sm:$0xf]
    %v1276 = vld [vmem:[%s1 + $0x1370] sm:$0xf]
    %v1277 = vld [vmem:[%s1 + $0x1374] sm:$0xf]
    %v1278 = vld [vmem:[%s1 + $0x1378] sm:$0xf]
    %v1279 = vld [vmem:[%s1 + $0x137c] sm:$0xf]
    %v1280 = vld [vmem:[%s2] sm:$0x1]
    %v1282 = vlaneseq
    %v1283 = vshrl.u32 %v1282, 7
    %v1284 = vsub.s32 0, %v1283
    %v1285 = vrot.slane %v1280, %v1284
    %v1297 = vcombine.high %v22, %v22
    %v1299 = vunpack.c.l.s4 1966171168
    %v1300 = vunpack.c.0.s8 %v1299
    %v1301 = vlaneseq
    %v1302 = vshrl.u32 %v1301, 7
    %v1303 = vsub.s32 %v1300, %v1302
    %v1304 = vrot.slane %v22, %v1303
    %v1306 = vunpack.c.l.s4 1966171168
    %v1307 = vunpack.c.0.s8 %v1306
    %v1308 = vlaneseq
    %v1309 = vshrl.u32 %v1308, 7
    %v1310 = vsub.s32 %v1307, %v1309
    %v1311 = vrot.slane %v1297, %v1310
    %v1312 = vcombine.high %v1304, %v1304
    %v1313 = vcombine.high %v1311, %v1311
    %v1315 = vunpack.c.l.s4 1966171168
    %v1316 = vunpack.c.0.s8 %v1315
    %v1317 = vlaneseq
    %v1318 = vshrl.u32 %v1317, 7
    %v1319 = vsub.s32 %v1316, %v1318
    %v1320 = vrot.slane %v1304, %v1319
    %v1322 = vunpack.c.l.s4 1966171168
    %v1323 = vunpack.c.0.s8 %v1322
    %v1324 = vlaneseq
    %v1325 = vshrl.u32 %v1324, 7
    %v1326 = vsub.s32 %v1323, %v1325
    %v1327 = vrot.slane %v1311, %v1326
    %v1329 = vunpack.c.l.s4 1966171168
    %v1330 = vunpack.c.0.s8 %v1329
    %v1331 = vlaneseq
    %v1332 = vshrl.u32 %v1331, 7
    %v1333 = vsub.s32 %v1330, %v1332
    %v1334 = vrot.slane %v1312, %v1333
    %v1336 = vunpack.c.l.s4 1966171168
    %v1337 = vunpack.c.0.s8 %v1336
    %v1338 = vlaneseq
    %v1339 = vshrl.u32 %v1338, 7
    %v1340 = vsub.s32 %v1337, %v1339
    %v1341 = vrot.slane %v1313, %v1340
    %v1342 = vcombine.high %v1320, %v1320
    %v1343 = vcombine.high %v1327, %v1327
    %v1344 = vcombine.high %v1334, %v1334
    %v1345 = vcombine.high %v1341, %v1341
    %v1346 = vcombine.high %v23, %v23
    %v1348 = vunpack.c.l.s4 1966171168
    %v1349 = vunpack.c.0.s8 %v1348
    %v1350 = vlaneseq
    %v1351 = vshrl.u32 %v1350, 7
    %v1352 = vsub.s32 %v1349, %v1351
    %v1353 = vrot.slane %v23, %v1352
    %v1355 = vunpack.c.l.s4 1966171168
    %v1356 = vunpack.c.0.s8 %v1355
    %v1357 = vlaneseq
    %v1358 = vshrl.u32 %v1357, 7
    %v1359 = vsub.s32 %v1356, %v1358
    %v1360 = vrot.slane %v1346, %v1359
    %v1361 = vcombine.high %v1353, %v1353
    %v1362 = vcombine.high %v1360, %v1360
    %v1364 = vunpack.c.l.s4 1966171168
    %v1365 = vunpack.c.0.s8 %v1364
    %v1366 = vlaneseq
    %v1367 = vshrl.u32 %v1366, 7
    %v1368 = vsub.s32 %v1365, %v1367
    %v1369 = vrot.slane %v1353, %v1368
    %v1371 = vunpack.c.l.s4 1966171168
    %v1372 = vunpack.c.0.s8 %v1371
    %v1373 = vlaneseq
    %v1374 = vshrl.u32 %v1373, 7
    %v1375 = vsub.s32 %v1372, %v1374
    %v1376 = vrot.slane %v1360, %v1375
    %v1378 = vunpack.c.l.s4 1966171168
    %v1379 = vunpack.c.0.s8 %v1378
    %v1380 = vlaneseq
    %v1381 = vshrl.u32 %v1380, 7
    %v1382 = vsub.s32 %v1379, %v1381
    %v1383 = vrot.slane %v1361, %v1382
    %v1385 = vunpack.c.l.s4 1966171168
    %v1386 = vunpack.c.0.s8 %v1385
    %v1387 = vlaneseq
    %v1388 = vshrl.u32 %v1387, 7
    %v1389 = vsub.s32 %v1386, %v1388
    %v1390 = vrot.slane %v1362, %v1389
    %v1391 = vcombine.high %v1369, %v1369
    %v1392 = vcombine.high %v1376, %v1376
    %v1393 = vcombine.high %v1383, %v1383
    %v1394 = vcombine.high %v1390, %v1390
    %v1395 = vcombine.high %v24, %v24
    %v1397 = vunpack.c.l.s4 1966171168
    %v1398 = vunpack.c.0.s8 %v1397
    %v1399 = vlaneseq
    %v1400 = vshrl.u32 %v1399, 7
    %v1401 = vsub.s32 %v1398, %v1400
    %v1402 = vrot.slane %v24, %v1401
    %v1404 = vunpack.c.l.s4 1966171168
    %v1405 = vunpack.c.0.s8 %v1404
    %v1406 = vlaneseq
    %v1407 = vshrl.u32 %v1406, 7
    %v1408 = vsub.s32 %v1405, %v1407
    %v1409 = vrot.slane %v1395, %v1408
    %v1410 = vcombine.high %v1402, %v1402
    %v1411 = vcombine.high %v1409, %v1409
    %v1413 = vunpack.c.l.s4 1966171168
    %v1414 = vunpack.c.0.s8 %v1413
    %v1415 = vlaneseq
    %v1416 = vshrl.u32 %v1415, 7
    %v1417 = vsub.s32 %v1414, %v1416
    %v1418 = vrot.slane %v1402, %v1417
    %v1420 = vunpack.c.l.s4 1966171168
    %v1421 = vunpack.c.0.s8 %v1420
    %v1422 = vlaneseq
    %v1423 = vshrl.u32 %v1422, 7
    %v1424 = vsub.s32 %v1421, %v1423
    %v1425 = vrot.slane %v1409, %v1424
    %v1427 = vunpack.c.l.s4 1966171168
    %v1428 = vunpack.c.0.s8 %v1427
    %v1429 = vlaneseq
    %v1430 = vshrl.u32 %v1429, 7
    %v1431 = vsub.s32 %v1428, %v1430
    %v1432 = vrot.slane %v1410, %v1431
    %v1434 = vunpack.c.l.s4 1966171168
    %v1435 = vunpack.c.0.s8 %v1434
    %v1436 = vlaneseq
    %v1437 = vshrl.u32 %v1436, 7
    %v1438 = vsub.s32 %v1435, %v1437
    %v1439 = vrot.slane %v1411, %v1438
    %v1440 = vcombine.high %v1418, %v1418
    %v1441 = vcombine.high %v1425, %v1425
    %v1442 = vcombine.high %v1432, %v1432
    %v1443 = vcombine.high %v1439, %v1439
    %v1444 = vcombine.high %v25, %v25
    %v1446 = vunpack.c.l.s4 1966171168
    %v1447 = vunpack.c.0.s8 %v1446
    %v1448 = vlaneseq
    %v1449 = vshrl.u32 %v1448, 7
    %v1450 = vsub.s32 %v1447, %v1449
    %v1451 = vrot.slane %v25, %v1450
    %v1453 = vunpack.c.l.s4 1966171168
    %v1454 = vunpack.c.0.s8 %v1453
    %v1455 = vlaneseq
    %v1456 = vshrl.u32 %v1455, 7
    %v1457 = vsub.s32 %v1454, %v1456
    %v1458 = vrot.slane %v1444, %v1457
    %v1459 = vcombine.high %v1451, %v1451
    %v1460 = vcombine.high %v1458, %v1458
    %v1462 = vunpack.c.l.s4 1966171168
    %v1463 = vunpack.c.0.s8 %v1462
    %v1464 = vlaneseq
    %v1465 = vshrl.u32 %v1464, 7
    %v1466 = vsub.s32 %v1463, %v1465
    %v1467 = vrot.slane %v1451, %v1466
    %v1469 = vunpack.c.l.s4 1966171168
    %v1470 = vunpack.c.0.s8 %v1469
    %v1471 = vlaneseq
    %v1472 = vshrl.u32 %v1471, 7
    %v1473 = vsub.s32 %v1470, %v1472
    %v1474 = vrot.slane %v1458, %v1473
    %v1476 = vunpack.c.l.s4 1966171168
    %v1477 = vunpack.c.0.s8 %v1476
    %v1478 = vlaneseq
    %v1479 = vshrl.u32 %v1478, 7
    %v1480 = vsub.s32 %v1477, %v1479
    %v1481 = vrot.slane %v1459, %v1480
    %v1483 = vunpack.c.l.s4 1966171168
    %v1484 = vunpack.c.0.s8 %v1483
    %v1485 = vlaneseq
    %v1486 = vshrl.u32 %v1485, 7
    %v1487 = vsub.s32 %v1484, %v1486
    %v1488 = vrot.slane %v1460, %v1487
    %v1489 = vcombine.high %v1467, %v1467
    %v1490 = vcombine.high %v1474, %v1474
    %v1491 = vcombine.high %v1481, %v1481
    %v1492 = vcombine.high %v1488, %v1488
    %v1493 = vcombine.high %v26, %v26
    %v1495 = vunpack.c.l.s4 1966171168
    %v1496 = vunpack.c.0.s8 %v1495
    %v1497 = vlaneseq
    %v1498 = vshrl.u32 %v1497, 7
    %v1499 = vsub.s32 %v1496, %v1498
    %v1500 = vrot.slane %v26, %v1499
    %v1502 = vunpack.c.l.s4 1966171168
    %v1503 = vunpack.c.0.s8 %v1502
    %v1504 = vlaneseq
    %v1505 = vshrl.u32 %v1504, 7
    %v1506 = vsub.s32 %v1503, %v1505
    %v1507 = vrot.slane %v1493, %v1506
    %v1508 = vcombine.high %v1500, %v1500
    %v1509 = vcombine.high %v1507, %v1507
    %v1511 = vunpack.c.l.s4 1966171168
    %v1512 = vunpack.c.0.s8 %v1511
    %v1513 = vlaneseq
    %v1514 = vshrl.u32 %v1513, 7
    %v1515 = vsub.s32 %v1512, %v1514
    %v1516 = vrot.slane %v1500, %v1515
    %v1518 = vunpack.c.l.s4 1966171168
    %v1519 = vunpack.c.0.s8 %v1518
    %v1520 = vlaneseq
    %v1521 = vshrl.u32 %v1520, 7
    %v1522 = vsub.s32 %v1519, %v1521
    %v1523 = vrot.slane %v1507, %v1522
    %v1525 = vunpack.c.l.s4 1966171168
    %v1526 = vunpack.c.0.s8 %v1525
    %v1527 = vlaneseq
    %v1528 = vshrl.u32 %v1527, 7
    %v1529 = vsub.s32 %v1526, %v1528
    %v1530 = vrot.slane %v1508, %v1529
    %v1532 = vunpack.c.l.s4 1966171168
    %v1533 = vunpack.c.0.s8 %v1532
    %v1534 = vlaneseq
    %v1535 = vshrl.u32 %v1534, 7
    %v1536 = vsub.s32 %v1533, %v1535
    %v1537 = vrot.slane %v1509, %v1536
    %v1538 = vcombine.high %v1516, %v1516
    %v1539 = vcombine.high %v1523, %v1523
    %v1540 = vcombine.high %v1530, %v1530
    %v1541 = vcombine.high %v1537, %v1537
    %v1542 = vcombine.high %v27, %v27
    %v1544 = vunpack.c.l.s4 1966171168
    %v1545 = vunpack.c.0.s8 %v1544
    %v1546 = vlaneseq
    %v1547 = vshrl.u32 %v1546, 7
    %v1548 = vsub.s32 %v1545, %v1547
    %v1549 = vrot.slane %v27, %v1548
    %v1551 = vunpack.c.l.s4 1966171168
    %v1552 = vunpack.c.0.s8 %v1551
    %v1553 = vlaneseq
    %v1554 = vshrl.u32 %v1553, 7
    %v1555 = vsub.s32 %v1552, %v1554
    %v1556 = vrot.slane %v1542, %v1555
    %v1557 = vcombine.high %v1549, %v1549
    %v1558 = vcombine.high %v1556, %v1556
    %v1560 = vunpack.c.l.s4 1966171168
    %v1561 = vunpack.c.0.s8 %v1560
    %v1562 = vlaneseq
    %v1563 = vshrl.u32 %v1562, 7
    %v1564 = vsub.s32 %v1561, %v1563
    %v1565 = vrot.slane %v1549, %v1564
    %v1567 = vunpack.c.l.s4 1966171168
    %v1568 = vunpack.c.0.s8 %v1567
    %v1569 = vlaneseq
    %v1570 = vshrl.u32 %v1569, 7
    %v1571 = vsub.s32 %v1568, %v1570
    %v1572 = vrot.slane %v1556, %v1571
    %v1574 = vunpack.c.l.s4 1966171168
    %v1575 = vunpack.c.0.s8 %v1574
    %v1576 = vlaneseq
    %v1577 = vshrl.u32 %v1576, 7
    %v1578 = vsub.s32 %v1575, %v1577
    %v1579 = vrot.slane %v1557, %v1578
    %v1581 = vunpack.c.l.s4 1966171168
    %v1582 = vunpack.c.0.s8 %v1581
    %v1583 = vlaneseq
    %v1584 = vshrl.u32 %v1583, 7
    %v1585 = vsub.s32 %v1582, %v1584
    %v1586 = vrot.slane %v1558, %v1585
    %v1587 = vcombine.high %v1565, %v1565
    %v1588 = vcombine.high %v1572, %v1572
    %v1589 = vcombine.high %v1579, %v1579
    %v1590 = vcombine.high %v1586, %v1586
    %v1591 = vcombine.high %v28, %v28
    %v1593 = vunpack.c.l.s4 1966171168
    %v1594 = vunpack.c.0.s8 %v1593
    %v1595 = vlaneseq
    %v1596 = vshrl.u32 %v1595, 7
    %v1597 = vsub.s32 %v1594, %v1596
    %v1598 = vrot.slane %v28, %v1597
    %v1600 = vunpack.c.l.s4 1966171168
    %v1601 = vunpack.c.0.s8 %v1600
    %v1602 = vlaneseq
    %v1603 = vshrl.u32 %v1602, 7
    %v1604 = vsub.s32 %v1601, %v1603
    %v1605 = vrot.slane %v1591, %v1604
    %v1606 = vcombine.high %v1598, %v1598
    %v1607 = vcombine.high %v1605, %v1605
    %v1609 = vunpack.c.l.s4 1966171168
    %v1610 = vunpack.c.0.s8 %v1609
    %v1611 = vlaneseq
    %v1612 = vshrl.u32 %v1611, 7
    %v1613 = vsub.s32 %v1610, %v1612
    %v1614 = vrot.slane %v1598, %v1613
    %v1616 = vunpack.c.l.s4 1966171168
    %v1617 = vunpack.c.0.s8 %v1616
    %v1618 = vlaneseq
    %v1619 = vshrl.u32 %v1618, 7
    %v1620 = vsub.s32 %v1617, %v1619
    %v1621 = vrot.slane %v1605, %v1620
    %v1623 = vunpack.c.l.s4 1966171168
    %v1624 = vunpack.c.0.s8 %v1623
    %v1625 = vlaneseq
    %v1626 = vshrl.u32 %v1625, 7
    %v1627 = vsub.s32 %v1624, %v1626
    %v1628 = vrot.slane %v1606, %v1627
    %v1630 = vunpack.c.l.s4 1966171168
    %v1631 = vunpack.c.0.s8 %v1630
    %v1632 = vlaneseq
    %v1633 = vshrl.u32 %v1632, 7
    %v1634 = vsub.s32 %v1631, %v1633
    %v1635 = vrot.slane %v1607, %v1634
    %v1636 = vcombine.high %v1614, %v1614
    %v1637 = vcombine.high %v1621, %v1621
    %v1638 = vcombine.high %v1628, %v1628
    %v1639 = vcombine.high %v1635, %v1635
    %v1640 = vcombine.high %v29, %v29
    %v1642 = vunpack.c.l.s4 1966171168
    %v1643 = vunpack.c.0.s8 %v1642
    %v1644 = vlaneseq
    %v1645 = vshrl.u32 %v1644, 7
    %v1646 = vsub.s32 %v1643, %v1645
    %v1647 = vrot.slane %v29, %v1646
    %v1649 = vunpack.c.l.s4 1966171168
    %v1650 = vunpack.c.0.s8 %v1649
    %v1651 = vlaneseq
    %v1652 = vshrl.u32 %v1651, 7
    %v1653 = vsub.s32 %v1650, %v1652
    %v1654 = vrot.slane %v1640, %v1653
    %v1655 = vcombine.high %v1647, %v1647
    %v1656 = vcombine.high %v1654, %v1654
    %v1658 = vunpack.c.l.s4 1966171168
    %v1659 = vunpack.c.0.s8 %v1658
    %v1660 = vlaneseq
    %v1661 = vshrl.u32 %v1660, 7
    %v1662 = vsub.s32 %v1659, %v1661
    %v1663 = vrot.slane %v1647, %v1662
    %v1665 = vunpack.c.l.s4 1966171168
    %v1666 = vunpack.c.0.s8 %v1665
    %v1667 = vlaneseq
    %v1668 = vshrl.u32 %v1667, 7
    %v1669 = vsub.s32 %v1666, %v1668
    %v1670 = vrot.slane %v1654, %v1669
    %v1672 = vunpack.c.l.s4 1966171168
    %v1673 = vunpack.c.0.s8 %v1672
    %v1674 = vlaneseq
    %v1675 = vshrl.u32 %v1674, 7
    %v1676 = vsub.s32 %v1673, %v1675
    %v1677 = vrot.slane %v1655, %v1676
    %v1679 = vunpack.c.l.s4 1966171168
    %v1680 = vunpack.c.0.s8 %v1679
    %v1681 = vlaneseq
    %v1682 = vshrl.u32 %v1681, 7
    %v1683 = vsub.s32 %v1680, %v1682
    %v1684 = vrot.slane %v1656, %v1683
    %v1685 = vcombine.high %v1663, %v1663
    %v1686 = vcombine.high %v1670, %v1670
    %v1687 = vcombine.high %v1677, %v1677
    %v1688 = vcombine.high %v1684, %v1684
    %v1689 = vcombine.high %v30, %v30
    %v1691 = vunpack.c.l.s4 1966171168
    %v1692 = vunpack.c.0.s8 %v1691
    %v1693 = vlaneseq
    %v1694 = vshrl.u32 %v1693, 7
    %v1695 = vsub.s32 %v1692, %v1694
    %v1696 = vrot.slane %v30, %v1695
    %v1698 = vunpack.c.l.s4 1966171168
    %v1699 = vunpack.c.0.s8 %v1698
    %v1700 = vlaneseq
    %v1701 = vshrl.u32 %v1700, 7
    %v1702 = vsub.s32 %v1699, %v1701
    %v1703 = vrot.slane %v1689, %v1702
    %v1704 = vcombine.high %v1696, %v1696
    %v1705 = vcombine.high %v1703, %v1703
    %v1707 = vunpack.c.l.s4 1966171168
    %v1708 = vunpack.c.0.s8 %v1707
    %v1709 = vlaneseq
    %v1710 = vshrl.u32 %v1709, 7
    %v1711 = vsub.s32 %v1708, %v1710
    %v1712 = vrot.slane %v1696, %v1711
    %v1714 = vunpack.c.l.s4 1966171168
    %v1715 = vunpack.c.0.s8 %v1714
    %v1716 = vlaneseq
    %v1717 = vshrl.u32 %v1716, 7
    %v1718 = vsub.s32 %v1715, %v1717
    %v1719 = vrot.slane %v1703, %v1718
    %v1721 = vunpack.c.l.s4 1966171168
    %v1722 = vunpack.c.0.s8 %v1721
    %v1723 = vlaneseq
    %v1724 = vshrl.u32 %v1723, 7
    %v1725 = vsub.s32 %v1722, %v1724
    %v1726 = vrot.slane %v1704, %v1725
    %v1728 = vunpack.c.l.s4 1966171168
    %v1729 = vunpack.c.0.s8 %v1728
    %v1730 = vlaneseq
    %v1731 = vshrl.u32 %v1730, 7
    %v1732 = vsub.s32 %v1729, %v1731
    %v1733 = vrot.slane %v1705, %v1732
    %v1734 = vcombine.high %v1712, %v1712
    %v1735 = vcombine.high %v1719, %v1719
    %v1736 = vcombine.high %v1726, %v1726
    %v1737 = vcombine.high %v1733, %v1733
    %v1738 = vcombine.high %v31, %v31
    %v1740 = vunpack.c.l.s4 1966171168
    %v1741 = vunpack.c.0.s8 %v1740
    %v1742 = vlaneseq
    %v1743 = vshrl.u32 %v1742, 7
    %v1744 = vsub.s32 %v1741, %v1743
    %v1745 = vrot.slane %v31, %v1744
    %v1747 = vunpack.c.l.s4 1966171168
    %v1748 = vunpack.c.0.s8 %v1747
    %v1749 = vlaneseq
    %v1750 = vshrl.u32 %v1749, 7
    %v1751 = vsub.s32 %v1748, %v1750
    %v1752 = vrot.slane %v1738, %v1751
    %v1753 = vcombine.high %v1745, %v1745
    %v1754 = vcombine.high %v1752, %v1752
    %v1756 = vunpack.c.l.s4 1966171168
    %v1757 = vunpack.c.0.s8 %v1756
    %v1758 = vlaneseq
    %v1759 = vshrl.u32 %v1758, 7
    %v1760 = vsub.s32 %v1757, %v1759
    %v1761 = vrot.slane %v1745, %v1760
    %v1763 = vunpack.c.l.s4 1966171168
    %v1764 = vunpack.c.0.s8 %v1763
    %v1765 = vlaneseq
    %v1766 = vshrl.u32 %v1765, 7
    %v1767 = vsub.s32 %v1764, %v1766
    %v1768 = vrot.slane %v1752, %v1767
    %v1770 = vunpack.c.l.s4 1966171168
    %v1771 = vunpack.c.0.s8 %v1770
    %v1772 = vlaneseq
    %v1773 = vshrl.u32 %v1772, 7
    %v1774 = vsub.s32 %v1771, %v1773
    %v1775 = vrot.slane %v1753, %v1774
    %v1777 = vunpack.c.l.s4 1966171168
    %v1778 = vunpack.c.0.s8 %v1777
    %v1779 = vlaneseq
    %v1780 = vshrl.u32 %v1779, 7
    %v1781 = vsub.s32 %v1778, %v1780
    %v1782 = vrot.slane %v1754, %v1781
    %v1783 = vcombine.high %v1761, %v1761
    %v1784 = vcombine.high %v1775, %v1775
    %v3111 = vunpack.c.l.b16 %v32
    %v3112 = vunpack.c.l.b16 %v33
    %v3113 = vunpack.c.l.b16 %v34
    %v3114 = vunpack.c.l.b16 %v35
    %v3115 = vunpack.c.l.b16 %v36
    %v3116 = vunpack.c.l.b16 %v37
    %v3117 = vunpack.c.l.b16 %v38
    %v3118 = vunpack.c.l.b16 %v39
    %v3119 = vunpack.c.l.b16 %v40
    %v3120 = vunpack.c.l.b16 %v41
    %v3121 = vunpack.c.l.b16 %v42
    %v3122 = vunpack.c.l.b16 %v43
    %v3123 = vunpack.c.l.b16 %v44
    %v3124 = vunpack.c.l.b16 %v45
    %v3125 = vunpack.c.l.b16 %v46
    %v3126 = vunpack.c.l.b16 %v47
    %v3127 = vunpack.c.l.b16 %v48
    %v3128 = vunpack.c.l.b16 %v49
    %v3129 = vunpack.c.l.b16 %v50
    %v3130 = vunpack.c.l.b16 %v51
    %v3131 = vunpack.c.l.b16 %v52
    %v3132 = vunpack.c.l.b16 %v53
    %v3133 = vunpack.c.l.b16 %v54
    %v3134 = vunpack.c.l.b16 %v55
    %v3135 = vunpack.c.l.b16 %v56
    %v3136 = vunpack.c.l.b16 %v57
    %v3137 = vunpack.c.l.b16 %v58
    %v3138 = vunpack.c.l.b16 %v59
    %v3139 = vunpack.c.l.b16 %v60
    %v3140 = vunpack.c.l.b16 %v61
    %v3141 = vunpack.c.l.b16 %v62
    %v3142 = vunpack.c.l.b16 %v63
    %v3143 = vunpack.c.l.b16 %v64
    %v3144 = vunpack.c.l.b16 %v65
    %v3145 = vunpack.c.l.b16 %v66
    %v3146 = vunpack.c.l.b16 %v67
    %v3147 = vunpack.c.l.b16 %v68
    %v3148 = vunpack.c.l.b16 %v69
    %v3149 = vunpack.c.l.b16 %v70
    %v3150 = vunpack.c.l.b16 %v71
    %v3151 = vunpack.c.l.b16 %v72
    %v3152 = vunpack.c.l.b16 %v73
    %v3153 = vunpack.c.l.b16 %v74
    %v3154 = vunpack.c.l.b16 %v75
    %v3155 = vunpack.c.l.b16 %v76
    %v3156 = vunpack.c.l.b16 %v77
    %v3157 = vunpack.c.l.b16 %v78
    %v3158 = vunpack.c.l.b16 %v79
    %v3159 = vunpack.c.l.b16 %v80
    %v3160 = vunpack.c.l.b16 %v81
    %v3161 = vunpack.c.l.b16 %v82
    %v3162 = vunpack.c.l.b16 %v83
    %v3163 = vunpack.c.l.b16 %v84
    %v3164 = vunpack.c.l.b16 %v85
    %v3165 = vunpack.c.l.b16 %v86
    %v3166 = vunpack.c.l.b16 %v87
    %v3167 = vunpack.c.l.b16 %v88
    %v3168 = vunpack.c.l.b16 %v89
    %v3169 = vunpack.c.l.b16 %v90
    %v3170 = vunpack.c.l.b16 %v91
    %v3171 = vunpack.c.l.b16 %v92
    %v3172 = vunpack.c.l.b16 %v93
    %v3173 = vunpack.c.l.b16 %v94
    %v3174 = vunpack.c.l.b16 %v95
    %v3175 = vunpack.c.l.b16 %v96
    %v3176 = vunpack.c.l.b16 %v97
    %v3177 = vunpack.c.l.b16 %v98
    %v3178 = vunpack.c.l.b16 %v99
    %v3179 = vunpack.c.l.b16 %v100
    %v3180 = vunpack.c.l.b16 %v101
    %v3181 = vunpack.c.l.b16 %v102
    %v3182 = vunpack.c.l.b16 %v103
    %v3183 = vunpack.c.l.b16 %v104
    %v3184 = vunpack.c.l.b16 %v105
    %v3185 = vunpack.c.l.b16 %v106
    %v3186 = vunpack.c.l.b16 %v107
    %v3187 = vunpack.c.l.b16 %v108
    %v3188 = vunpack.c.l.b16 %v109
    %v3189 = vunpack.c.l.b16 %v110
    %v3190 = vunpack.c.l.b16 %v111
    %v3191 = vunpack.c.l.b16 %v112
    %v3192 = vunpack.c.l.b16 %v113
    %v3193 = vunpack.c.l.b16 %v114
    %v3194 = vunpack.c.l.b16 %v115
    %v3195 = vunpack.c.l.b16 %v116
    %v3196 = vunpack.c.l.b16 %v117
    %v3197 = vunpack.c.l.b16 %v118
    %v3198 = vunpack.c.l.b16 %v119
    %v3199 = vunpack.c.l.b16 %v120
    %v3200 = vunpack.c.l.b16 %v121
    %v3201 = vunpack.c.l.b16 %v122
    %v3202 = vunpack.c.l.b16 %v123
    %v3203 = vunpack.c.l.b16 %v124
    %v3204 = vunpack.c.l.b16 %v125
    %v3205 = vunpack.c.l.b16 %v126
    %v3206 = vunpack.c.l.b16 %v127
    %v3207 = vunpack.c.l.b16 %v128
    %v3208 = vunpack.c.l.b16 %v129
    %v3209 = vunpack.c.l.b16 %v130
    %v3210 = vunpack.c.l.b16 %v131
    %v3211 = vunpack.c.l.b16 %v132
    %v3212 = vunpack.c.l.b16 %v133
    %v3213 = vunpack.c.l.b16 %v134
    %v3214 = vunpack.c.l.b16 %v135
    %v3215 = vunpack.c.l.b16 %v136
    %v3216 = vunpack.c.l.b16 %v137
    %v3217 = vunpack.c.l.b16 %v138
    %v3218 = vunpack.c.l.b16 %v139
    %v3219 = vunpack.c.l.b16 %v140
    %v3220 = vunpack.c.l.b16 %v141
    %v3221 = vunpack.c.l.b16 %v142
    %v3222 = vunpack.c.l.b16 %v143
    %v3223 = vunpack.c.l.b16 %v144
    %v3224 = vunpack.c.l.b16 %v145
    %v3225 = vunpack.c.l.b16 %v146
    %v3226 = vunpack.c.l.b16 %v147
    %v3227 = vunpack.c.l.b16 %v148
    %v3228 = vunpack.c.l.b16 %v149
    %v3229 = vunpack.c.l.b16 %v150
    %v3230 = vunpack.c.l.b16 %v151
    %v3231 = vunpack.c.l.b16 %v152
    %v3232 = vunpack.c.l.b16 %v153
    %v3233 = vunpack.c.l.b16 %v154
    %v3234 = vunpack.c.l.b16 %v155
    %v3235 = vunpack.c.l.b16 %v156
    %v3236 = vunpack.c.l.b16 %v157
    %v3237 = vunpack.c.l.b16 %v158
    %v3238 = vunpack.c.l.b16 %v159
    %v3239 = vunpack.c.l.b16 %v160
    %v3240 = vunpack.c.l.b16 %v161
    %v3241 = vunpack.c.l.b16 %v162
    %v3242 = vunpack.c.l.b16 %v163
    %v3243 = vunpack.c.l.b16 %v164
    %v3244 = vunpack.c.l.b16 %v165
    %v3245 = vunpack.c.l.b16 %v166
    %v3246 = vunpack.c.l.b16 %v167
    %v3247 = vunpack.c.l.b16 %v168
    %v3248 = vunpack.c.l.b16 %v169
    %v3249 = vunpack.c.l.b16 %v170
    %v3250 = vunpack.c.l.b16 %v171
    %v3251 = vunpack.c.l.b16 %v172
    %v3252 = vunpack.c.l.b16 %v173
    %v3253 = vunpack.c.l.b16 %v174
    %v3254 = vunpack.c.l.b16 %v175
    %v3255 = vunpack.c.l.b16 %v176
    %v3256 = vunpack.c.l.b16 %v177
    %v3257 = vunpack.c.l.b16 %v178
    %v3258 = vunpack.c.l.b16 %v179
    %v3259 = vunpack.c.l.b16 %v180
    %v3260 = vunpack.c.l.b16 %v181
    %v3261 = vunpack.c.l.b16 %v182
    %v3262 = vunpack.c.l.b16 %v183
    %v3263 = vunpack.c.l.b16 %v184
    %v3264 = vunpack.c.l.b16 %v185
    %v3265 = vunpack.c.l.b16 %v186
    %v3266 = vunpack.c.l.b16 %v187
    %v3267 = vunpack.c.l.b16 %v188
    %v3268 = vunpack.c.l.b16 %v189
    %v3269 = vunpack.c.l.b16 %v190
    %v3270 = vunpack.c.l.b16 %v191
    %v3271 = vunpack.c.l.b16 %v192
    %v3272 = vunpack.c.l.b16 %v193
    %v3273 = vunpack.c.l.b16 %v194
    %v3274 = vunpack.c.l.b16 %v195
    %v3275 = vunpack.c.l.b16 %v196
    %v3276 = vunpack.c.l.b16 %v197
    %v3277 = vunpack.c.l.b16 %v198
    %v3278 = vunpack.c.l.b16 %v199
    %v3279 = vunpack.c.l.b16 %v200
    %v3280 = vunpack.c.l.b16 %v201
    %v3281 = vunpack.c.l.b16 %v202
    %v3282 = vunpack.c.l.b16 %v203
    %v3283 = vunpack.c.l.b16 %v204
    %v3284 = vunpack.c.l.b16 %v205
    %v3285 = vunpack.c.l.b16 %v206
    %v3286 = vunpack.c.l.b16 %v207
    %v3287 = vunpack.c.l.b16 %v208
    %v3288 = vunpack.c.l.b16 %v209
    %v3289 = vunpack.c.l.b16 %v210
    %v3290 = vunpack.c.l.b16 %v211
    %v3291 = vunpack.c.l.b16 %v212
    %v3292 = vunpack.c.l.b16 %v213
    %v3293 = vunpack.c.l.b16 %v214
    %v3294 = vunpack.c.l.b16 %v215
    %v3295 = vunpack.c.l.b16 %v216
    %v3296 = vunpack.c.l.b16 %v217
    %v3297 = vunpack.c.l.b16 %v218
    %v3298 = vunpack.c.l.b16 %v219
    %v3299 = vunpack.c.l.b16 %v220
    %v3300 = vunpack.c.l.b16 %v221
    %v3301 = vunpack.c.l.b16 %v222
    %v3302 = vunpack.c.l.b16 %v223
    %v3303 = vunpack.c.l.b16 %v224
    %v3304 = vunpack.c.l.b16 %v225
    %v3305 = vunpack.c.l.b16 %v226
    %v3306 = vunpack.c.l.b16 %v227
    %v3307 = vunpack.c.l.b16 %v228
    %v3308 = vunpack.c.l.b16 %v229
    %v3309 = vunpack.c.l.b16 %v230
    %v3310 = vunpack.c.l.b16 %v231
    %v3311 = vunpack.c.l.b16 %v232
    %v3312 = vunpack.c.l.b16 %v233
    %v3313 = vunpack.c.l.b16 %v234
    %v3314 = vunpack.c.l.b16 %v235
    %v3315 = vunpack.c.l.b16 %v236
    %v3316 = vunpack.c.l.b16 %v237
    %v3317 = vunpack.c.l.b16 %v238
    %v3318 = vunpack.c.l.b16 %v239
    %v3319 = vunpack.c.l.b16 %v240
    %v3320 = vunpack.c.l.b16 %v241
    %v3321 = vunpack.c.l.b16 %v242
    %v3322 = vunpack.c.l.b16 %v243
    %v3323 = vunpack.c.l.b16 %v244
    %v3324 = vunpack.c.l.b16 %v245
    %v3325 = vunpack.c.l.b16 %v246
    %v3326 = vunpack.c.l.b16 %v247
    %v3327 = vunpack.c.l.b16 %v248
    %v3328 = vunpack.c.l.b16 %v249
    %v3329 = vunpack.c.l.b16 %v250
    %v3330 = vunpack.c.l.b16 %v251
    %v3331 = vunpack.c.l.b16 %v252
    %v3332 = vunpack.c.l.b16 %v253
    %v3333 = vunpack.c.l.b16 %v254
    %v3334 = vunpack.c.l.b16 %v255
    %v3335 = vunpack.c.l.b16 %v256
    %v3336 = vunpack.c.l.b16 %v257
    %v3337 = vunpack.c.l.b16 %v258
    %v3338 = vunpack.c.l.b16 %v259
    %v3339 = vunpack.c.l.b16 %v260
    %v3340 = vunpack.c.l.b16 %v261
    %v3341 = vunpack.c.l.b16 %v262
    %v3342 = vunpack.c.l.b16 %v263
    %v3343 = vunpack.c.l.b16 %v264
    %v3344 = vunpack.c.l.b16 %v265
    %v3345 = vunpack.c.l.b16 %v266
    %v3346 = vunpack.c.l.b16 %v267
    %v3347 = vunpack.c.l.b16 %v268
    %v3348 = vunpack.c.l.b16 %v269
    %v3349 = vunpack.c.l.b16 %v270
    %v3350 = vunpack.c.l.b16 %v271
    %v3351 = vunpack.c.l.b16 %v272
    %v3352 = vunpack.c.l.b16 %v273
    %v3353 = vunpack.c.l.b16 %v274
    %v3354 = vunpack.c.l.b16 %v275
    %v3355 = vunpack.c.l.b16 %v276
    %v3356 = vunpack.c.l.b16 %v277
    %v3357 = vunpack.c.l.b16 %v278
    %v3358 = vunpack.c.l.b16 %v279
    %v3359 = vunpack.c.l.b16 %v280
    %v3360 = vunpack.c.l.b16 %v281
    %v3361 = vunpack.c.l.b16 %v282
    %v3362 = vunpack.c.l.b16 %v283
    %v3363 = vunpack.c.l.b16 %v284
    %v3364 = vunpack.c.l.b16 %v285
    %v3365 = vunpack.c.l.b16 %v286
    %v3366 = vunpack.c.l.b16 %v287
    %v3367 = vunpack.c.l.b16 %v288
    %v3368 = vunpack.c.l.b16 %v289
    %v3369 = vunpack.c.l.b16 %v290
    %v3370 = vunpack.c.l.b16 %v291
    %v3371 = vunpack.c.l.b16 %v292
    %v3372 = vunpack.c.l.b16 %v293
    %v3373 = vunpack.c.l.b16 %v294
    %v3374 = vunpack.c.l.b16 %v295
    %v3375 = vunpack.c.l.b16 %v296
    %v3376 = vunpack.c.l.b16 %v297
    %v3377 = vunpack.c.l.b16 %v298
    %v3378 = vunpack.c.l.b16 %v299
    %v3379 = vunpack.c.l.b16 %v300
    %v3380 = vunpack.c.l.b16 %v301
    %v3381 = vunpack.c.l.b16 %v302
    %v3382 = vunpack.c.l.b16 %v303
    %v3383 = vunpack.c.l.b16 %v304
    %v3384 = vunpack.c.l.b16 %v305
    %v3385 = vunpack.c.l.b16 %v306
    %v3386 = vunpack.c.l.b16 %v307
    %v3387 = vunpack.c.l.b16 %v308
    %v3388 = vunpack.c.l.b16 %v309
    %v3389 = vunpack.c.l.b16 %v310
    %v3390 = vunpack.c.l.b16 %v311
    %v3391 = vunpack.c.l.b16 %v312
    %v3392 = vunpack.c.l.b16 %v313
    %v3393 = vunpack.c.l.b16 %v314
    %v3394 = vunpack.c.l.b16 %v315
    %v3395 = vunpack.c.l.b16 %v316
    %v3396 = vunpack.c.l.b16 %v317
    %v3397 = vunpack.c.l.b16 %v318
    %v3398 = vunpack.c.l.b16 %v319
    %v3399 = vunpack.c.l.b16 %v320
    %v3400 = vunpack.c.l.b16 %v321
    %v3401 = vunpack.c.l.b16 %v322
    %v3402 = vunpack.c.l.b16 %v323
    %v3403 = vunpack.c.l.b16 %v324
    %v3404 = vunpack.c.l.b16 %v325
    %v3405 = vunpack.c.l.b16 %v326
    %v3406 = vunpack.c.l.b16 %v327
    %v3407 = vunpack.c.l.b16 %v328
    %v3408 = vunpack.c.l.b16 %v329
    %v3409 = vunpack.c.l.b16 %v330
    %v3410 = vunpack.c.l.b16 %v331
    %v3411 = vunpack.c.l.b16 %v332
    %v3412 = vunpack.c.l.b16 %v333
    %v3413 = vunpack.c.l.b16 %v334
    %v3414 = vunpack.c.l.b16 %v335
    %v3415 = vunpack.c.l.b16 %v336
    %v3416 = vunpack.c.l.b16 %v337
    %v3417 = vunpack.c.l.b16 %v338
    %v3418 = vunpack.c.l.b16 %v339
    %v3419 = vunpack.c.l.b16 %v340
    %v3420 = vunpack.c.l.b16 %v341
    %v3421 = vunpack.c.l.b16 %v342
    %v3422 = vunpack.c.l.b16 %v343
    %v3423 = vunpack.c.l.b16 %v344
    %v3424 = vunpack.c.l.b16 %v345
    %v3425 = vunpack.c.l.b16 %v346
    %v3426 = vunpack.c.l.b16 %v347
    %v3427 = vunpack.c.l.b16 %v348
    %v3428 = vunpack.c.l.b16 %v349
    %v3429 = vunpack.c.l.b16 %v350
    %v3430 = vunpack.c.l.b16 %v351
    %v3431 = vunpack.c.l.b16 %v352
    %v3432 = vunpack.c.l.b16 %v353
    %v3433 = vunpack.c.l.b16 %v354
    %v3434 = vunpack.c.l.b16 %v355
    %v3435 = vunpack.c.l.b16 %v356
    %v3436 = vunpack.c.l.b16 %v357
    %v3437 = vunpack.c.l.b16 %v358
    %v3438 = vunpack.c.l.b16 %v359
    %v3439 = vunpack.c.l.b16 %v360
    %v3440 = vunpack.c.l.b16 %v361
    %v3441 = vunpack.c.l.b16 %v362
    %v3442 = vunpack.c.l.b16 %v363
    %v3443 = vunpack.c.l.b16 %v364
    %v3444 = vunpack.c.l.b16 %v365
    %v3445 = vunpack.c.l.b16 %v366
    %v3446 = vunpack.c.l.b16 %v367
    %v3447 = vunpack.c.l.b16 %v368
    %v3448 = vunpack.c.l.b16 %v369
    %v3449 = vunpack.c.l.b16 %v370
    %v3450 = vunpack.c.l.b16 %v371
    %v3451 = vunpack.c.l.b16 %v372
    %v3452 = vunpack.c.l.b16 %v373
    %v3453 = vunpack.c.l.b16 %v374
    %v3454 = vunpack.c.l.b16 %v375
    %v3455 = vunpack.c.l.b16 %v376
    %v3456 = vunpack.c.l.b16 %v377
    %v3457 = vunpack.c.l.b16 %v378
    %v3458 = vunpack.c.l.b16 %v379
    %v3459 = vunpack.c.l.b16 %v380
    %v3460 = vunpack.c.l.b16 %v381
    %v3461 = vunpack.c.l.b16 %v382
    %v3462 = vunpack.c.l.b16 %v383
    %v3463 = vunpack.c.l.b16 %v384
    %v3464 = vunpack.c.l.b16 %v385
    %v3465 = vunpack.c.l.b16 %v386
    %v3466 = vunpack.c.l.b16 %v387
    %v3467 = vunpack.c.l.b16 %v388
    %v3468 = vunpack.c.l.b16 %v389
    %v3469 = vunpack.c.l.b16 %v390
    %v3470 = vunpack.c.l.b16 %v391
    %v3471 = vunpack.c.l.b16 %v392
    %v3472 = vunpack.c.l.b16 %v393
    %v3473 = vunpack.c.l.b16 %v394
    %v3474 = vunpack.c.l.b16 %v395
    %v3475 = vunpack.c.l.b16 %v396
    %v3476 = vunpack.c.l.b16 %v397
    %v3477 = vunpack.c.l.b16 %v398
    %v3478 = vunpack.c.l.b16 %v399
    %v3479 = vunpack.c.l.b16 %v400
    %v3480 = vunpack.c.l.b16 %v401
    %v3481 = vunpack.c.l.b16 %v402
    %v3482 = vunpack.c.l.b16 %v403
    %v3483 = vunpack.c.l.b16 %v404
    %v3484 = vunpack.c.l.b16 %v405
    %v3485 = vunpack.c.l.b16 %v406
    %v3486 = vunpack.c.l.b16 %v407
    %v3487 = vunpack.c.l.b16 %v408
    %v3488 = vunpack.c.l.b16 %v409
    %v3489 = vunpack.c.l.b16 %v410
    %v3490 = vunpack.c.l.b16 %v411
    %v3491 = vunpack.c.l.b16 %v412
    %v3492 = vunpack.c.l.b16 %v413
    %v3493 = vunpack.c.l.b16 %v414
    %v3494 = vunpack.c.l.b16 %v415
    %v3495 = vunpack.c.l.b16 %v416
    %v3496 = vunpack.c.l.b16 %v417
    %v3497 = vunpack.c.l.b16 %v418
    %v3498 = vunpack.c.l.b16 %v419
    %v3499 = vunpack.c.l.b16 %v420
    %v3500 = vunpack.c.l.b16 %v421
    %v3501 = vunpack.c.l.b16 %v422
    %v3502 = vunpack.c.l.b16 %v423
    %v3503 = vunpack.c.l.b16 %v424
    %v3504 = vunpack.c.l.b16 %v425
    %v3505 = vunpack.c.l.b16 %v426
    %v3506 = vunpack.c.l.b16 %v427
    %v3507 = vunpack.c.l.b16 %v428
    %v3508 = vunpack.c.l.b16 %v429
    %v3509 = vunpack.c.l.b16 %v430
    %v3510 = vunpack.c.l.b16 %v431
    %v3511 = vunpack.c.l.b16 %v432
    %v3512 = vunpack.c.l.b16 %v433
    %v3513 = vunpack.c.l.b16 %v434
    %v3514 = vunpack.c.l.b16 %v435
    %v3515 = vunpack.c.l.b16 %v436
    %v3516 = vunpack.c.l.b16 %v437
    %v3517 = vunpack.c.l.b16 %v438
    %v3518 = vunpack.c.l.b16 %v439
    %v3519 = vunpack.c.l.b16 %v440
    %v3520 = vunpack.c.l.b16 %v441
    %v3521 = vunpack.c.l.b16 %v442
    %v3522 = vunpack.c.l.b16 %v443
    %v3523 = vunpack.c.l.b16 %v444
    %v3524 = vunpack.c.l.b16 %v445
    %v3525 = vunpack.c.l.b16 %v446
    %v3526 = vunpack.c.l.b16 %v447
    %v3527 = vunpack.c.l.b16 %v448
    %v3528 = vunpack.c.l.b16 %v449
    %v3529 = vunpack.c.l.b16 %v450
    %v3530 = vunpack.c.l.b16 %v451
    %v3531 = vunpack.c.l.b16 %v452
    %v3532 = vunpack.c.l.b16 %v453
    %v3533 = vunpack.c.l.b16 %v454
    %v3534 = vunpack.c.l.b16 %v455
    %v3535 = vunpack.c.l.b16 %v456
    %v3536 = vunpack.c.l.b16 %v457
    %v3537 = vunpack.c.l.b16 %v458
    %v3538 = vunpack.c.l.b16 %v459
    %v3539 = vunpack.c.l.b16 %v460
    %v3540 = vunpack.c.l.b16 %v461
    %v3541 = vunpack.c.l.b16 %v462
    %v3542 = vunpack.c.l.b16 %v463
    %v3543 = vunpack.c.l.b16 %v464
    %v3544 = vunpack.c.l.b16 %v465
    %v3545 = vunpack.c.l.b16 %v466
    %v3546 = vunpack.c.l.b16 %v467
    %v3547 = vunpack.c.l.b16 %v468
    %v3548 = vunpack.c.l.b16 %v469
    %v3549 = vunpack.c.l.b16 %v470
    %v3550 = vunpack.c.l.b16 %v471
    %v3551 = vunpack.c.l.b16 %v472
    %v3552 = vunpack.c.l.b16 %v473
    %v3553 = vunpack.c.l.b16 %v474
    %v3554 = vunpack.c.l.b16 %v475
    %v3555 = vunpack.c.l.b16 %v476
    %v3556 = vunpack.c.l.b16 %v477
    %v3557 = vunpack.c.l.b16 %v478
    %v3558 = vunpack.c.l.b16 %v479
    %v3559 = vunpack.c.l.b16 %v480
    %v3560 = vunpack.c.l.b16 %v481
    %v3561 = vunpack.c.l.b16 %v482
    %v3562 = vunpack.c.l.b16 %v483
    %v3563 = vunpack.c.l.b16 %v484
    %v3564 = vunpack.c.l.b16 %v485
    %v3565 = vunpack.c.l.b16 %v486
    %v3566 = vunpack.c.l.b16 %v487
    %v3567 = vunpack.c.l.b16 %v488
    %v3568 = vunpack.c.l.b16 %v489
    %v3569 = vunpack.c.l.b16 %v490
    %v3570 = vunpack.c.l.b16 %v491
    %v3571 = vunpack.c.l.b16 %v492
    %v3572 = vunpack.c.l.b16 %v493
    %v3573 = vunpack.c.l.b16 %v494
    %v3574 = vunpack.c.l.b16 %v495
    %v3575 = vunpack.c.l.b16 %v496
    %v3576 = vunpack.c.l.b16 %v497
    %v3577 = vunpack.c.l.b16 %v498
    %v3578 = vunpack.c.l.b16 %v499
    %v3579 = vunpack.c.l.b16 %v500
    %v3580 = vunpack.c.l.b16 %v501
    %v3581 = vunpack.c.l.b16 %v502
    %v3582 = vunpack.c.l.b16 %v503
    %v3583 = vunpack.c.l.b16 %v504
    %v3584 = vunpack.c.l.b16 %v505
    %v3585 = vunpack.c.l.b16 %v506
    %v3586 = vunpack.c.l.b16 %v507
    %v3587 = vunpack.c.l.b16 %v508
    %v3588 = vunpack.c.l.b16 %v509
    %v3589 = vunpack.c.l.b16 %v510
    %v3590 = vunpack.c.l.b16 %v511
    %v3591 = vunpack.c.l.b16 %v512
    %v3592 = vunpack.c.l.b16 %v513
    %v3593 = vunpack.c.l.b16 %v514
    %v3594 = vunpack.c.l.b16 %v515
    %v3595 = vunpack.c.l.b16 %v516
    %v3596 = vunpack.c.l.b16 %v517
    %v3597 = vunpack.c.l.b16 %v518
    %v3598 = vunpack.c.l.b16 %v519
    %v3599 = vunpack.c.l.b16 %v520
    %v3600 = vunpack.c.l.b16 %v521
    %v3601 = vunpack.c.l.b16 %v522
    %v3602 = vunpack.c.l.b16 %v523
    %v3603 = vunpack.c.l.b16 %v524
    %v3604 = vunpack.c.l.b16 %v525
    %v3605 = vunpack.c.l.b16 %v526
    %v3606 = vunpack.c.l.b16 %v527
    %v3607 = vunpack.c.l.b16 %v528
    %v3608 = vunpack.c.l.b16 %v529
    %v3609 = vunpack.c.l.b16 %v530
    %v3610 = vunpack.c.l.b16 %v531
    %v3611 = vunpack.c.l.b16 %v532
    %v3612 = vunpack.c.l.b16 %v533
    %v3613 = vunpack.c.l.b16 %v534
    %v3614 = vunpack.c.l.b16 %v535
    %v3615 = vunpack.c.l.b16 %v536
    %v3616 = vunpack.c.l.b16 %v537
    %v3617 = vunpack.c.l.b16 %v538
    %v3618 = vunpack.c.l.b16 %v539
    %v3619 = vunpack.c.l.b16 %v540
    %v3620 = vunpack.c.l.b16 %v541
    %v3621 = vunpack.c.l.b16 %v542
    %v3622 = vunpack.c.l.b16 %v543
    %v3623 = vunpack.c.l.b16 %v544
    %v3624 = vunpack.c.l.b16 %v545
    %v3625 = vunpack.c.l.b16 %v546
    %v3626 = vunpack.c.l.b16 %v547
    %v3627 = vunpack.c.l.b16 %v548
    %v3628 = vunpack.c.l.b16 %v549
    %v3629 = vunpack.c.l.b16 %v550
    %v3630 = vunpack.c.l.b16 %v551
    %v3631 = vunpack.c.l.b16 %v552
    %v3632 = vunpack.c.l.b16 %v553
    %v3633 = vunpack.c.l.b16 %v554
    %v3634 = vunpack.c.l.b16 %v555
    %v3635 = vunpack.c.l.b16 %v556
    %v3636 = vunpack.c.l.b16 %v557
    %v3637 = vunpack.c.l.b16 %v558
    %v3638 = vunpack.c.l.b16 %v559
    %v3639 = vunpack.c.l.b16 %v560
    %v3640 = vunpack.c.l.b16 %v561
    %v3641 = vunpack.c.l.b16 %v562
    %v3642 = vunpack.c.l.b16 %v563
    %v3643 = vunpack.c.l.b16 %v564
    %v3644 = vunpack.c.l.b16 %v565
    %v3645 = vunpack.c.l.b16 %v566
    %v3646 = vunpack.c.l.b16 %v567
    %v3647 = vunpack.c.l.b16 %v568
    %v3648 = vunpack.c.l.b16 %v569
    %v3649 = vunpack.c.l.b16 %v570
    %v3650 = vunpack.c.l.b16 %v571
    %v3651 = vunpack.c.l.b16 %v572
    %v3652 = vunpack.c.l.b16 %v573
    %v3653 = vunpack.c.l.b16 %v574
    %v3654 = vunpack.c.l.b16 %v575
    %v3655 = vunpack.c.l.b16 %v576
    %v3656 = vunpack.c.l.b16 %v577
    %v3657 = vunpack.c.l.b16 %v578
    %v3658 = vunpack.c.l.b16 %v579
    %v3659 = vunpack.c.l.b16 %v580
    %v3660 = vunpack.c.l.b16 %v581
    %v3661 = vunpack.c.l.b16 %v582
    %v3662 = vunpack.c.l.b16 %v583
    %v3663 = vunpack.c.l.b16 %v584
    %v3664 = vunpack.c.l.b16 %v585
    %v3665 = vunpack.c.l.b16 %v586
    %v3666 = vunpack.c.l.b16 %v587
    %v3667 = vunpack.c.l.b16 %v588
    %v3668 = vunpack.c.l.b16 %v589
    %v3669 = vunpack.c.l.b16 %v590
    %v3670 = vunpack.c.l.b16 %v591
    %v3671 = vunpack.c.l.b16 %v592
    %v3672 = vunpack.c.l.b16 %v593
    %v3673 = vunpack.c.l.b16 %v594
    %v3674 = vunpack.c.l.b16 %v595
    %v3675 = vunpack.c.l.b16 %v596
    %v3676 = vunpack.c.l.b16 %v597
    %v3677 = vunpack.c.l.b16 %v598
    %v3678 = vunpack.c.l.b16 %v599
    %v3679 = vunpack.c.l.b16 %v600
    %v3680 = vunpack.c.l.b16 %v601
    %v3681 = vunpack.c.l.b16 %v602
    %v3682 = vunpack.c.l.b16 %v603
    %v3683 = vunpack.c.l.b16 %v604
    %v3684 = vunpack.c.l.b16 %v605
    %v3685 = vunpack.c.l.b16 %v606
    %v3686 = vunpack.c.l.b16 %v607
    %v3687 = vunpack.c.l.b16 %v608
    %v3688 = vunpack.c.l.b16 %v609
    %v3689 = vunpack.c.l.b16 %v610
    %v3690 = vunpack.c.l.b16 %v611
    %v3691 = vunpack.c.l.b16 %v612
    %v3692 = vunpack.c.l.b16 %v613
    %v3693 = vunpack.c.l.b16 %v614
    %v3694 = vunpack.c.l.b16 %v615
    %v3695 = vunpack.c.l.b16 %v616
    %v3696 = vunpack.c.l.b16 %v617
    %v3697 = vunpack.c.l.b16 %v618
    %v3698 = vunpack.c.l.b16 %v619
    %v3699 = vunpack.c.l.b16 %v620
    %v3700 = vunpack.c.l.b16 %v621
    %v3701 = vunpack.c.l.b16 %v622
    %v3702 = vunpack.c.l.b16 %v623
    %v3703 = vunpack.c.l.b16 %v624
    %v3704 = vunpack.c.l.b16 %v625
    %v3705 = vunpack.c.l.b16 %v626
    %v3706 = vunpack.c.l.b16 %v627
    %v3707 = vunpack.c.l.b16 %v628
    %v3708 = vunpack.c.l.b16 %v629
    %v3709 = vunpack.c.l.b16 %v630
    %v3710 = vunpack.c.l.b16 %v631
    %v3711 = vunpack.c.l.b16 %v632
    %v3712 = vunpack.c.l.b16 %v633
    %v3713 = vunpack.c.l.b16 %v634
    %v3714 = vunpack.c.l.b16 %v635
    %v3715 = vunpack.c.l.b16 %v636
    %v3716 = vunpack.c.l.b16 %v637
    %v3717 = vunpack.c.l.b16 %v638
    %v3718 = vunpack.c.l.b16 %v639
    %v3719 = vunpack.c.l.b16 %v640
    %v3720 = vunpack.c.l.b16 %v641
    %v3721 = vunpack.c.l.b16 %v642
    %v3722 = vunpack.c.l.b16 %v643
    %v3723 = vunpack.c.l.b16 %v644
    %v3724 = vunpack.c.l.b16 %v645
    %v3725 = vunpack.c.l.b16 %v646
    %v3726 = vunpack.c.l.b16 %v647
    %v3727 = vunpack.c.l.b16 %v648
    %v3728 = vunpack.c.l.b16 %v649
    %v3729 = vunpack.c.l.b16 %v650
    %v3730 = vunpack.c.l.b16 %v651
    %v3731 = vunpack.c.l.b16 %v652
    %v3732 = vunpack.c.l.b16 %v653
    %v3733 = vunpack.c.l.b16 %v654
    %v3734 = vunpack.c.l.b16 %v655
    %v3735 = vunpack.c.l.b16 %v656
    %v3736 = vunpack.c.l.b16 %v657
    %v3737 = vunpack.c.l.b16 %v658
    %v3738 = vunpack.c.l.b16 %v659
    %v3739 = vunpack.c.l.b16 %v660
    %v3740 = vunpack.c.l.b16 %v661
    %v3741 = vunpack.c.l.b16 %v662
    %v3742 = vunpack.c.l.b16 %v663
    %v3743 = vunpack.c.l.b16 %v664
    %v3744 = vunpack.c.l.b16 %v665
    %v3745 = vunpack.c.l.b16 %v666
    %v3746 = vunpack.c.l.b16 %v667
    %v3747 = vunpack.c.l.b16 %v668
    %v3748 = vunpack.c.l.b16 %v669
    %v3749 = vunpack.c.l.b16 %v670
    %v3750 = vunpack.c.l.b16 %v671
    %v3751 = vunpack.c.l.b16 %v672
    %v3752 = vunpack.c.l.b16 %v673
    %v3753 = vunpack.c.l.b16 %v674
    %v3754 = vunpack.c.l.b16 %v675
    %v3755 = vunpack.c.l.b16 %v676
    %v3756 = vunpack.c.l.b16 %v677
    %v3757 = vunpack.c.l.b16 %v678
    %v3758 = vunpack.c.l.b16 %v679
    %v3759 = vunpack.c.l.b16 %v680
    %v3760 = vunpack.c.l.b16 %v681
    %v3761 = vunpack.c.l.b16 %v682
    %v3762 = vunpack.c.l.b16 %v683
    %v3763 = vunpack.c.l.b16 %v684
    %v3764 = vunpack.c.l.b16 %v685
    %v3765 = vunpack.c.l.b16 %v686
    %v3766 = vunpack.c.l.b16 %v687
    %v3767 = vunpack.c.l.b16 %v688
    %v3768 = vunpack.c.l.b16 %v689
    %v3769 = vunpack.c.l.b16 %v690
    %v3770 = vunpack.c.l.b16 %v691
    %v3771 = vunpack.c.l.b16 %v692
    %v3772 = vunpack.c.l.b16 %v693
    %v3773 = vunpack.c.l.b16 %v694
    %v3774 = vunpack.c.l.b16 %v695
    %v3775 = vunpack.c.l.b16 %v696
    %v3776 = vunpack.c.l.b16 %v697
    %v3777 = vunpack.c.l.b16 %v698
    %v3778 = vunpack.c.l.b16 %v699
    %v3779 = vunpack.c.l.b16 %v700
    %v3780 = vunpack.c.l.b16 %v701
    %v3781 = vunpack.c.l.b16 %v702
    %v3782 = vunpack.c.l.b16 %v703
    %v3783 = vunpack.c.l.b16 %v704
    %v3784 = vunpack.c.l.b16 %v705
    %v3785 = vunpack.c.l.b16 %v706
    %v3786 = vunpack.c.l.b16 %v707
    %v3787 = vunpack.c.l.b16 %v708
    %v3788 = vunpack.c.l.b16 %v709
    %v3789 = vunpack.c.l.b16 %v710
    %v3790 = vunpack.c.l.b16 %v711
    %v3791 = vunpack.c.l.b16 %v712
    %v3792 = vunpack.c.l.b16 %v713
    %v3793 = vunpack.c.l.b16 %v714
    %v3794 = vunpack.c.l.b16 %v715
    %v3795 = vunpack.c.l.b16 %v716
    %v3796 = vunpack.c.l.b16 %v717
    %v3797 = vunpack.c.l.b16 %v718
    %v3798 = vunpack.c.l.b16 %v719
    %v3799 = vunpack.c.l.b16 %v720
    %v3800 = vunpack.c.l.b16 %v721
    %v3801 = vunpack.c.l.b16 %v722
    %v3802 = vunpack.c.l.b16 %v723
    %v3803 = vunpack.c.l.b16 %v724
    %v3804 = vunpack.c.l.b16 %v725
    %v3805 = vunpack.c.l.b16 %v726
    %v3806 = vunpack.c.l.b16 %v727
    %v3807 = vunpack.c.l.b16 %v728
    %v3808 = vunpack.c.l.b16 %v729
    %v3809 = vunpack.c.l.b16 %v730
    %v3810 = vunpack.c.l.b16 %v731
    %v3811 = vunpack.c.l.b16 %v732
    %v3812 = vunpack.c.l.b16 %v733
    %v3813 = vunpack.c.l.b16 %v734
    %v3814 = vunpack.c.l.b16 %v735
    %v3815 = vunpack.c.l.b16 %v736
    %v3816 = vunpack.c.l.b16 %v737
    %v3817 = vunpack.c.l.b16 %v738
    %v3818 = vunpack.c.l.b16 %v739
    %v3819 = vunpack.c.l.b16 %v740
    %v3820 = vunpack.c.l.b16 %v741
    %v3821 = vunpack.c.l.b16 %v742
    %v3822 = vunpack.c.l.b16 %v743
    %v3823 = vunpack.c.l.b16 %v744
    %v3824 = vunpack.c.l.b16 %v745
    %v3825 = vunpack.c.l.b16 %v746
    %v3826 = vunpack.c.l.b16 %v747
    %v3827 = vunpack.c.l.b16 %v748
    %v3828 = vunpack.c.l.b16 %v749
    %v3829 = vunpack.c.l.b16 %v750
    %v3830 = vunpack.c.l.b16 %v751
    %v3831 = vunpack.c.l.b16 %v752
    %v3832 = vunpack.c.l.b16 %v753
    %v3833 = vunpack.c.l.b16 %v754
    %v3834 = vunpack.c.l.b16 %v755
    %v3835 = vunpack.c.l.b16 %v756
    %v3836 = vunpack.c.l.b16 %v757
    %v3837 = vunpack.c.l.b16 %v758
    %v3838 = vunpack.c.l.b16 %v759
    %v3839 = vunpack.c.l.b16 %v760
    %v3840 = vunpack.c.l.b16 %v761
    %v3841 = vunpack.c.l.b16 %v762
    %v3842 = vunpack.c.l.b16 %v763
    %v3843 = vunpack.c.l.b16 %v764
    %v3844 = vunpack.c.l.b16 %v765
    %v3845 = vunpack.c.l.b16 %v766
    %v3846 = vunpack.c.l.b16 %v767
    %v3847 = vunpack.c.l.b16 %v768
    %v3848 = vunpack.c.l.b16 %v769
    %v3849 = vunpack.c.l.b16 %v770
    %v3850 = vunpack.c.l.b16 %v771
    %v3851 = vunpack.c.l.b16 %v772
    %v3852 = vunpack.c.l.b16 %v773
    %v3853 = vunpack.c.l.b16 %v774
    %v3854 = vunpack.c.l.b16 %v775
    %v3855 = vunpack.c.l.b16 %v776
    %v3856 = vunpack.c.l.b16 %v777
    %v3857 = vunpack.c.l.b16 %v778
    %v3858 = vunpack.c.l.b16 %v779
    %v3859 = vunpack.c.l.b16 %v780
    %v3860 = vunpack.c.l.b16 %v781
    %v3861 = vunpack.c.l.b16 %v782
    %v3862 = vunpack.c.l.b16 %v783
    %v3863 = vunpack.c.l.b16 %v784
    %v3864 = vunpack.c.l.b16 %v785
    %v3865 = vunpack.c.l.b16 %v786
    %v3866 = vunpack.c.l.b16 %v787
    %v3867 = vunpack.c.l.b16 %v788
    %v3868 = vunpack.c.l.b16 %v789
    %v3869 = vunpack.c.l.b16 %v790
    %v3870 = vunpack.c.l.b16 %v791
    %v3871 = vunpack.c.l.b16 %v792
    %v3872 = vunpack.c.l.b16 %v793
    %v3873 = vunpack.c.l.b16 %v794
    %v3874 = vunpack.c.l.b16 %v795
    %v3875 = vunpack.c.l.b16 %v796
    %v3876 = vunpack.c.l.b16 %v797
    %v3877 = vunpack.c.l.b16 %v798
    %v3878 = vunpack.c.l.b16 %v799
    %v3879 = vunpack.c.l.b16 %v800
    %v3880 = vunpack.c.l.b16 %v801
    %v3881 = vunpack.c.l.b16 %v802
    %v3882 = vunpack.c.l.b16 %v803
    %v3883 = vunpack.c.l.b16 %v804
    %v3884 = vunpack.c.l.b16 %v805
    %v3885 = vunpack.c.l.b16 %v806
    %v3886 = vunpack.c.l.b16 %v807
    %v3887 = vunpack.c.l.b16 %v808
    %v3888 = vunpack.c.l.b16 %v809
    %v3889 = vunpack.c.l.b16 %v810
    %v3890 = vunpack.c.l.b16 %v811
    %v3891 = vunpack.c.l.b16 %v812
    %v3892 = vunpack.c.l.b16 %v813
    %v3893 = vunpack.c.l.b16 %v814
    %v3894 = vunpack.c.l.b16 %v815
    %v3895 = vunpack.c.l.b16 %v816
    %v3896 = vunpack.c.l.b16 %v817
    %v3897 = vunpack.c.l.b16 %v818
    %v3898 = vunpack.c.l.b16 %v819
    %v3899 = vunpack.c.l.b16 %v820
    %v3900 = vunpack.c.l.b16 %v821
    %v3901 = vunpack.c.l.b16 %v822
    %v3902 = vunpack.c.l.b16 %v823
    %v3903 = vunpack.c.l.b16 %v824
    %v3904 = vunpack.c.l.b16 %v825
    %v3905 = vunpack.c.l.b16 %v826
    %v3906 = vunpack.c.l.b16 %v827
    %v3907 = vunpack.c.l.b16 %v828
    %v3908 = vunpack.c.l.b16 %v829
    %v3909 = vunpack.c.l.b16 %v830
    %v3910 = vunpack.c.l.b16 %v831
    %v3911 = vunpack.c.l.b16 %v832
    %v3912 = vunpack.c.l.b16 %v833
    %v3913 = vunpack.c.l.b16 %v834
    %v3914 = vunpack.c.l.b16 %v835
    %v3915 = vunpack.c.l.b16 %v836
    %v3916 = vunpack.c.l.b16 %v837
    %v3917 = vunpack.c.l.b16 %v838
    %v3918 = vunpack.c.l.b16 %v839
    %v3919 = vunpack.c.l.b16 %v840
    %v3920 = vunpack.c.l.b16 %v841
    %v3921 = vunpack.c.l.b16 %v842
    %v3922 = vunpack.c.l.b16 %v843
    %v3923 = vunpack.c.l.b16 %v844
    %v3924 = vunpack.c.l.b16 %v845
    %v3925 = vunpack.c.l.b16 %v846
    %v3926 = vunpack.c.l.b16 %v847
    %v3927 = vunpack.c.l.b16 %v848
    %v3928 = vunpack.c.l.b16 %v849
    %v3929 = vunpack.c.l.b16 %v850
    %v3930 = vunpack.c.l.b16 %v851
    %v3931 = vunpack.c.l.b16 %v852
    %v3932 = vunpack.c.l.b16 %v853
    %v3933 = vunpack.c.l.b16 %v854
    %v3934 = vunpack.c.l.b16 %v855
    %v3935 = vunpack.c.l.b16 %v856
    %v3936 = vunpack.c.l.b16 %v857
    %v3937 = vunpack.c.l.b16 %v858
    %v3938 = vunpack.c.l.b16 %v859
    %v3939 = vunpack.c.l.b16 %v860
    %v3940 = vunpack.c.l.b16 %v861
    %v3941 = vunpack.c.l.b16 %v862
    %v3942 = vunpack.c.l.b16 %v863
    %v3943 = vunpack.c.l.b16 %v864
    %v3944 = vunpack.c.l.b16 %v865
    %v3945 = vunpack.c.l.b16 %v866
    %v3946 = vunpack.c.l.b16 %v867
    %v3947 = vunpack.c.l.b16 %v868
    %v3948 = vunpack.c.l.b16 %v869
    %v3949 = vunpack.c.l.b16 %v870
    %v3950 = vunpack.c.l.b16 %v871
    %v3951 = vunpack.c.l.b16 %v872
    %v3952 = vunpack.c.l.b16 %v873
    %v3953 = vunpack.c.l.b16 %v874
    %v3954 = vunpack.c.l.b16 %v875
    %v3955 = vunpack.c.l.b16 %v876
    %v3956 = vunpack.c.l.b16 %v877
    %v3957 = vunpack.c.l.b16 %v878
    %v3958 = vunpack.c.l.b16 %v879
    %v3959 = vunpack.c.l.b16 %v880
    %v3960 = vunpack.c.l.b16 %v881
    %v3961 = vunpack.c.l.b16 %v882
    %v3962 = vunpack.c.l.b16 %v883
    %v3963 = vunpack.c.l.b16 %v884
    %v3964 = vunpack.c.l.b16 %v885
    %v3965 = vunpack.c.l.b16 %v886
    %v3966 = vunpack.c.l.b16 %v887
    %v3967 = vunpack.c.l.b16 %v888
    %v3968 = vunpack.c.l.b16 %v889
    %v3969 = vunpack.c.l.b16 %v890
    %v3970 = vunpack.c.l.b16 %v891
    %v3971 = vunpack.c.l.b16 %v892
    %v3972 = vunpack.c.l.b16 %v893
    %v3973 = vunpack.c.l.b16 %v894
    %v3974 = vunpack.c.l.b16 %v895
    %v3975 = vunpack.c.l.b16 %v896
    %v3976 = vunpack.c.l.b16 %v897
    %v3977 = vunpack.c.l.b16 %v898
    %v3978 = vunpack.c.l.b16 %v899
    %v3979 = vunpack.c.l.b16 %v900
    %v3980 = vunpack.c.l.b16 %v901
    %v3981 = vunpack.c.l.b16 %v902
    %v3982 = vunpack.c.l.b16 %v903
    %v3983 = vunpack.c.l.b16 %v904
    %v3984 = vunpack.c.l.b16 %v905
    %v3985 = vunpack.c.l.b16 %v906
    %v3986 = vunpack.c.l.b16 %v907
    %v3987 = vunpack.c.l.b16 %v908
    %v3988 = vunpack.c.l.b16 %v909
    %v3989 = vunpack.c.l.b16 %v910
    %v3990 = vunpack.c.l.b16 %v911
    %v3991 = vunpack.c.l.b16 %v912
    %v3992 = vunpack.c.l.b16 %v913
    %v3993 = vunpack.c.l.b16 %v914
    %v3994 = vunpack.c.l.b16 %v915
    %v3995 = vunpack.c.l.b16 %v916
    %v3996 = vunpack.c.l.b16 %v917
    %v3997 = vunpack.c.l.b16 %v918
    %v3998 = vunpack.c.l.b16 %v919
    %v3999 = vunpack.c.l.b16 %v920
    %v4000 = vunpack.c.l.b16 %v921
    %v4001 = vunpack.c.l.b16 %v922
    %v4002 = vunpack.c.l.b16 %v923
    %v4003 = vunpack.c.l.b16 %v924
    %v4004 = vunpack.c.l.b16 %v925
    %v4005 = vunpack.c.l.b16 %v926
    %v4006 = vunpack.c.l.b16 %v927
    %v4007 = vunpack.c.l.b16 %v928
    %v4008 = vunpack.c.l.b16 %v929
    %v4009 = vunpack.c.l.b16 %v930
    %v4010 = vunpack.c.l.b16 %v931
    %v4011 = vunpack.c.l.b16 %v932
    %v4012 = vunpack.c.l.b16 %v933
    %v4013 = vunpack.c.l.b16 %v934
    %v4014 = vunpack.c.l.b16 %v935
    %v4015 = vunpack.c.l.b16 %v936
    %v4016 = vunpack.c.l.b16 %v937
    %v4017 = vunpack.c.l.b16 %v938
    %v4018 = vunpack.c.l.b16 %v939
    %v4019 = vunpack.c.l.b16 %v940
    %v4020 = vunpack.c.l.b16 %v941
    %v4021 = vunpack.c.l.b16 %v942
    %v4022 = vunpack.c.l.b16 %v943
    %v4023 = vunpack.c.l.b16 %v944
    %v4024 = vunpack.c.l.b16 %v945
    %v4025 = vunpack.c.l.b16 %v946
    %v4026 = vunpack.c.l.b16 %v947
    %v4027 = vunpack.c.l.b16 %v948
    %v4028 = vunpack.c.l.b16 %v949
    %v4029 = vunpack.c.l.b16 %v950
    %v4030 = vunpack.c.l.b16 %v951
    %v4031 = vunpack.c.l.b16 %v952
    %v4032 = vunpack.c.l.b16 %v953
    %v4033 = vunpack.c.l.b16 %v954
    %v4034 = vunpack.c.l.b16 %v955
    %v4035 = vunpack.c.l.b16 %v956
    %v4036 = vunpack.c.l.b16 %v957
    %v4037 = vunpack.c.l.b16 %v958
    %v4038 = vunpack.c.l.b16 %v959
    %v4039 = vunpack.c.l.b16 %v960
    %v4040 = vunpack.c.l.b16 %v961
    %v4041 = vunpack.c.l.b16 %v962
    %v4042 = vunpack.c.l.b16 %v963
    %v4043 = vunpack.c.l.b16 %v964
    %v4044 = vunpack.c.l.b16 %v965
    %v4045 = vunpack.c.l.b16 %v966
    %v4046 = vunpack.c.l.b16 %v967
    %v4047 = vunpack.c.l.b16 %v968
    %v4048 = vunpack.c.l.b16 %v969
    %v4049 = vunpack.c.l.b16 %v970
    %v4050 = vunpack.c.l.b16 %v971
    %v4051 = vunpack.c.l.b16 %v972
    %v4052 = vunpack.c.l.b16 %v973
    %v4053 = vunpack.c.l.b16 %v974
    %v4054 = vunpack.c.l.b16 %v975
    %v4055 = vunpack.c.l.b16 %v976
    %v4056 = vunpack.c.l.b16 %v977
    %v4057 = vunpack.c.l.b16 %v978
    %v4058 = vunpack.c.l.b16 %v979
    %v4059 = vunpack.c.l.b16 %v980
    %v4060 = vunpack.c.l.b16 %v981
    %v4061 = vunpack.c.l.b16 %v982
    %v4062 = vunpack.c.l.b16 %v983
    %v4063 = vunpack.c.l.b16 %v984
    %v4064 = vunpack.c.l.b16 %v985
    %v4065 = vunpack.c.l.b16 %v986
    %v4066 = vunpack.c.l.b16 %v987
    %v4067 = vunpack.c.l.b16 %v988
    %v4068 = vunpack.c.l.b16 %v989
    %v4069 = vunpack.c.l.b16 %v990
    %v4070 = vunpack.c.l.b16 %v991
    %v4071 = vunpack.c.l.b16 %v992
    %v4072 = vunpack.c.l.b16 %v993
    %v4073 = vunpack.c.l.b16 %v994
    %v4074 = vunpack.c.l.b16 %v995
    %v4075 = vunpack.c.l.b16 %v996
    %v4076 = vunpack.c.l.b16 %v997
    %v4077 = vunpack.c.l.b16 %v998
    %v4078 = vunpack.c.l.b16 %v999
    %v4079 = vunpack.c.l.b16 %v1000
    %v4080 = vunpack.c.l.b16 %v1001
    %v4081 = vunpack.c.l.b16 %v1002
    %v4082 = vunpack.c.l.b16 %v1003
    %v4083 = vunpack.c.l.b16 %v1004
    %v4084 = vunpack.c.l.b16 %v1005
    %v4085 = vunpack.c.l.b16 %v1006
    %v4086 = vunpack.c.l.b16 %v1007
    %v4087 = vunpack.c.l.b16 %v1008
    %v4088 = vunpack.c.l.b16 %v1009
    %v4089 = vunpack.c.l.b16 %v1010
    %v4090 = vunpack.c.l.b16 %v1011
    %v4091 = vunpack.c.l.b16 %v1012
    %v4092 = vunpack.c.l.b16 %v1013
    %v4093 = vunpack.c.l.b16 %v1014
    %v4094 = vunpack.c.l.b16 %v1015
    %v4095 = vunpack.c.l.b16 %v1016
    %v4096 = vunpack.c.l.b16 %v1017
    %v4097 = vunpack.c.l.b16 %v1018
    %v4098 = vunpack.c.l.b16 %v1019
    %v4099 = vunpack.c.l.b16 %v1020
    %v4100 = vunpack.c.l.b16 %v1021
    %v4101 = vunpack.c.l.b16 %v1022
    %v4102 = vunpack.c.l.b16 %v1023
    %v4103 = vunpack.c.l.b16 %v1024
    %v4104 = vunpack.c.l.b16 %v1025
    %v4105 = vunpack.c.l.b16 %v1026
    %v4106 = vunpack.c.l.b16 %v1027
    %v4107 = vunpack.c.l.b16 %v1028
    %v4108 = vunpack.c.l.b16 %v1029
    %v4109 = vunpack.c.l.b16 %v1030
    %v4110 = vunpack.c.l.b16 %v1031
    %v4111 = vunpack.c.l.b16 %v1032
    %v4112 = vunpack.c.l.b16 %v1033
    %v4113 = vunpack.c.l.b16 %v1034
    %v4114 = vunpack.c.l.b16 %v1035
    %v4115 = vunpack.c.l.b16 %v1036
    %v4116 = vunpack.c.l.b16 %v1037
    %v4117 = vunpack.c.l.b16 %v1038
    %v4118 = vunpack.c.l.b16 %v1039
    %v4119 = vunpack.c.l.b16 %v1040
    %v4120 = vunpack.c.l.b16 %v1041
    %v4121 = vunpack.c.l.b16 %v1042
    %v4122 = vunpack.c.l.b16 %v1043
    %v4123 = vunpack.c.l.b16 %v1044
    %v4124 = vunpack.c.l.b16 %v1045
    %v4125 = vunpack.c.l.b16 %v1046
    %v4126 = vunpack.c.l.b16 %v1047
    %v4127 = vunpack.c.l.b16 %v1048
    %v4128 = vunpack.c.l.b16 %v1049
    %v4129 = vunpack.c.l.b16 %v1050
    %v4130 = vunpack.c.l.b16 %v1051
    %v4131 = vunpack.c.l.b16 %v1052
    %v4132 = vunpack.c.l.b16 %v1053
    %v4133 = vunpack.c.l.b16 %v1054
    %v4134 = vunpack.c.l.b16 %v1055
    %v4135 = vunpack.c.l.b16 %v1056
    %v4136 = vunpack.c.l.b16 %v1057
    %v4137 = vunpack.c.l.b16 %v1058
    %v4138 = vunpack.c.l.b16 %v1059
    %v4139 = vunpack.c.l.b16 %v1060
    %v4140 = vunpack.c.l.b16 %v1061
    %v4141 = vunpack.c.l.b16 %v1062
    %v4142 = vunpack.c.l.b16 %v1063
    %v4143 = vunpack.c.l.b16 %v1064
    %v4144 = vunpack.c.l.b16 %v1065
    %v4145 = vunpack.c.l.b16 %v1066
    %v4146 = vunpack.c.l.b16 %v1067
    %v4147 = vunpack.c.l.b16 %v1068
    %v4148 = vunpack.c.l.b16 %v1069
    %v4149 = vunpack.c.l.b16 %v1070
    %v4150 = vunpack.c.l.b16 %v1071
    %v4151 = vunpack.c.l.b16 %v1072
    %v4152 = vunpack.c.l.b16 %v1073
    %v4153 = vunpack.c.l.b16 %v1074
    %v4154 = vunpack.c.l.b16 %v1075
    %v4155 = vunpack.c.l.b16 %v1076
    %v4156 = vunpack.c.l.b16 %v1077
    %v4157 = vunpack.c.l.b16 %v1078
    %v4158 = vunpack.c.l.b16 %v1079
    %v4159 = vunpack.c.l.b16 %v1080
    %v4160 = vunpack.c.l.b16 %v1081
    %v4161 = vunpack.c.l.b16 %v1082
    %v4162 = vunpack.c.l.b16 %v1083
    %v4163 = vunpack.c.l.b16 %v1084
    %v4164 = vunpack.c.l.b16 %v1085
    %v4165 = vunpack.c.l.b16 %v1086
    %v4166 = vunpack.c.l.b16 %v1087
    %v4167 = vunpack.c.l.b16 %v1088
    %v4168 = vunpack.c.l.b16 %v1089
    %v4169 = vunpack.c.l.b16 %v1090
    %v4170 = vunpack.c.l.b16 %v1091
    %v4171 = vunpack.c.l.b16 %v1092
    %v4172 = vunpack.c.l.b16 %v1093
    %v4173 = vunpack.c.l.b16 %v1094
    %v4174 = vunpack.c.l.b16 %v1095
    %v4175 = vunpack.c.l.b16 %v1096
    %v4176 = vunpack.c.l.b16 %v1097
    %v4177 = vunpack.c.l.b16 %v1098
    %v4178 = vunpack.c.l.b16 %v1099
    %v4179 = vunpack.c.l.b16 %v1100
    %v4180 = vunpack.c.l.b16 %v1101
    %v4181 = vunpack.c.l.b16 %v1102
    %v4182 = vunpack.c.l.b16 %v1103
    %v4183 = vunpack.c.l.b16 %v1104
    %v4184 = vunpack.c.l.b16 %v1105
    %v4185 = vunpack.c.l.b16 %v1106
    %v4186 = vunpack.c.l.b16 %v1107
    %v4187 = vunpack.c.l.b16 %v1108
    %v4188 = vunpack.c.l.b16 %v1109
    %v4189 = vunpack.c.l.b16 %v1110
    %v4190 = vunpack.c.l.b16 %v1111
    %v4191 = vunpack.c.l.b16 %v1112
    %v4192 = vunpack.c.l.b16 %v1113
    %v4193 = vunpack.c.l.b16 %v1114
    %v4194 = vunpack.c.l.b16 %v1115
    %v4195 = vunpack.c.l.b16 %v1116
    %v4196 = vunpack.c.l.b16 %v1117
    %v4197 = vunpack.c.l.b16 %v1118
    %v4198 = vunpack.c.l.b16 %v1119
    %v4199 = vunpack.c.l.b16 %v1120
    %v4200 = vunpack.c.l.b16 %v1121
    %v4201 = vunpack.c.l.b16 %v1122
    %v4202 = vunpack.c.l.b16 %v1123
    %v4203 = vunpack.c.l.b16 %v1124
    %v4204 = vunpack.c.l.b16 %v1125
    %v4205 = vunpack.c.l.b16 %v1126
    %v4206 = vunpack.c.l.b16 %v1127
    %v4207 = vunpack.c.l.b16 %v1128
    %v4208 = vunpack.c.l.b16 %v1129
    %v4209 = vunpack.c.l.b16 %v1130
    %v4210 = vunpack.c.l.b16 %v1131
    %v4211 = vunpack.c.l.b16 %v1132
    %v4212 = vunpack.c.l.b16 %v1133
    %v4213 = vunpack.c.l.b16 %v1134
    %v4214 = vunpack.c.l.b16 %v1135
    %v4215 = vunpack.c.l.b16 %v1136
    %v4216 = vunpack.c.l.b16 %v1137
    %v4217 = vunpack.c.l.b16 %v1138
    %v4218 = vunpack.c.l.b16 %v1139
    %v4219 = vunpack.c.l.b16 %v1140
    %v4220 = vunpack.c.l.b16 %v1141
    %v4221 = vunpack.c.l.b16 %v1142
    %v4222 = vunpack.c.l.b16 %v1143
    %v4223 = vunpack.c.l.b16 %v1144
    %v4224 = vunpack.c.l.b16 %v1145
    %v4225 = vunpack.c.l.b16 %v1146
    %v4226 = vunpack.c.l.b16 %v1147
    %v4227 = vunpack.c.l.b16 %v1148
    %v4228 = vunpack.c.l.b16 %v1149
    %v4229 = vunpack.c.l.b16 %v1150
    %v4230 = vunpack.c.l.b16 %v1151
    %v4231 = vunpack.c.l.b16 %v1152
    %v4232 = vunpack.c.l.b16 %v1153
    %v4233 = vunpack.c.l.b16 %v1154
    %v4234 = vunpack.c.l.b16 %v1155
    %v4235 = vunpack.c.l.b16 %v1156
    %v4236 = vunpack.c.l.b16 %v1157
    %v4237 = vunpack.c.l.b16 %v1158
    %v4238 = vunpack.c.l.b16 %v1159
    %v4239 = vunpack.c.l.b16 %v1160
    %v4240 = vunpack.c.l.b16 %v1161
    %v4241 = vunpack.c.l.b16 %v1162
    %v4242 = vunpack.c.l.b16 %v1163
    %v4243 = vunpack.c.l.b16 %v1164
    %v4244 = vunpack.c.l.b16 %v1165
    %v4245 = vunpack.c.l.b16 %v1166
    %v4246 = vunpack.c.l.b16 %v1167
    %v4247 = vunpack.c.l.b16 %v1168
    %v4248 = vunpack.c.l.b16 %v1169
    %v4249 = vunpack.c.l.b16 %v1170
    %v4250 = vunpack.c.l.b16 %v1171
    %v4251 = vunpack.c.l.b16 %v1172
    %v4252 = vunpack.c.l.b16 %v1173
    %v4253 = vunpack.c.l.b16 %v1174
    %v4254 = vunpack.c.l.b16 %v1175
    %v4255 = vunpack.c.l.b16 %v1176
    %v4256 = vunpack.c.l.b16 %v1177
    %v4257 = vunpack.c.l.b16 %v1178
    %v4258 = vunpack.c.l.b16 %v1179
    %v4259 = vunpack.c.l.b16 %v1180
    %v4260 = vunpack.c.l.b16 %v1181
    %v4261 = vunpack.c.l.b16 %v1182
    %v4262 = vunpack.c.l.b16 %v1183
    %v4263 = vunpack.c.l.b16 %v1184
    %v4264 = vunpack.c.l.b16 %v1185
    %v4265 = vunpack.c.l.b16 %v1186
    %v4266 = vunpack.c.l.b16 %v1187
    %v4267 = vunpack.c.l.b16 %v1188
    %v4268 = vunpack.c.l.b16 %v1189
    %v4269 = vunpack.c.l.b16 %v1190
    %v4270 = vunpack.c.l.b16 %v1191
    %v4271 = vunpack.c.l.b16 %v1192
    %v4272 = vunpack.c.l.b16 %v1193
    %v4273 = vunpack.c.l.b16 %v1194
    %v4274 = vunpack.c.l.b16 %v1195
    %v4275 = vunpack.c.l.b16 %v1196
    %v4276 = vunpack.c.l.b16 %v1197
    %v4277 = vunpack.c.l.b16 %v1198
    %v4278 = vunpack.c.l.b16 %v1199
    %v4279 = vunpack.c.l.b16 %v1200
    %v4280 = vunpack.c.l.b16 %v1201
    %v4281 = vunpack.c.l.b16 %v1202
    %v4282 = vunpack.c.l.b16 %v1203
    %v4283 = vunpack.c.l.b16 %v1204
    %v4284 = vunpack.c.l.b16 %v1205
    %v4285 = vunpack.c.l.b16 %v1206
    %v4286 = vunpack.c.l.b16 %v1207
    %v4287 = vunpack.c.l.b16 %v1208
    %v4288 = vunpack.c.l.b16 %v1209
    %v4289 = vunpack.c.l.b16 %v1210
    %v4290 = vunpack.c.l.b16 %v1211
    %v4291 = vunpack.c.l.b16 %v1212
    %v4292 = vunpack.c.l.b16 %v1213
    %v4293 = vunpack.c.l.b16 %v1214
    %v4294 = vunpack.c.l.b16 %v1215
    %v4295 = vunpack.c.l.b16 %v1216
    %v4296 = vunpack.c.l.b16 %v1217
    %v4297 = vunpack.c.l.b16 %v1218
    %v4298 = vunpack.c.l.b16 %v1219
    %v4299 = vunpack.c.l.b16 %v1220
    %v4300 = vunpack.c.l.b16 %v1221
    %v4301 = vunpack.c.l.b16 %v1222
    %v4302 = vunpack.c.l.b16 %v1223
    %v4303 = vunpack.c.l.b16 %v1224
    %v4304 = vunpack.c.l.b16 %v1225
    %v4305 = vunpack.c.l.b16 %v1226
    %v4306 = vunpack.c.l.b16 %v1227
    %v4307 = vunpack.c.l.b16 %v1228
    %v4308 = vunpack.c.l.b16 %v1229
    %v4309 = vunpack.c.l.b16 %v1230
    %v4310 = vunpack.c.l.b16 %v1231
    %v4311 = vunpack.c.l.b16 %v1232
    %v4312 = vunpack.c.l.b16 %v1233
    %v4313 = vunpack.c.l.b16 %v1234
    %v4314 = vunpack.c.l.b16 %v1235
    %v4315 = vunpack.c.l.b16 %v1236
    %v4316 = vunpack.c.l.b16 %v1237
    %v4317 = vunpack.c.l.b16 %v1238
    %v4318 = vunpack.c.l.b16 %v1239
    %v4319 = vunpack.c.l.b16 %v1240
    %v4320 = vunpack.c.l.b16 %v1241
    %v4321 = vunpack.c.l.b16 %v1242
    %v4322 = vunpack.c.l.b16 %v1243
    %v4323 = vunpack.c.l.b16 %v1244
    %v4324 = vunpack.c.l.b16 %v1245
    %v4325 = vunpack.c.l.b16 %v1246
    %v4326 = vunpack.c.l.b16 %v1247
    %v4327 = vunpack.c.l.b16 %v1248
    %v4328 = vunpack.c.l.b16 %v1249
    %v4329 = vunpack.c.l.b16 %v1250
    %v4330 = vunpack.c.l.b16 %v1251
    %v4331 = vunpack.c.l.b16 %v1252
    %v4332 = vunpack.c.l.b16 %v1253
    %v4333 = vunpack.c.l.b16 %v1254
    %v4334 = vunpack.c.l.b16 %v1255
    %v4335 = vunpack.c.l.b16 %v1256
    %v4336 = vunpack.c.l.b16 %v1257
    %v4337 = vunpack.c.l.b16 %v1258
    %v4338 = vunpack.c.l.b16 %v1259
    %v4339 = vunpack.c.l.b16 %v1260
    %v4340 = vunpack.c.l.b16 %v1261
    %v4341 = vunpack.c.l.b16 %v1262
    %v4342 = vunpack.c.l.b16 %v1263
    %v4343 = vunpack.c.l.b16 %v1264
    %v4344 = vunpack.c.l.b16 %v1265
    %v4345 = vunpack.c.l.b16 %v1266
    %v4346 = vunpack.c.l.b16 %v1267
    %v4347 = vunpack.c.l.b16 %v1268
    %v4348 = vunpack.c.l.b16 %v1269
    %v4349 = vunpack.c.l.b16 %v1270
    %v4350 = vunpack.c.l.b16 %v1271
    %v4351 = vunpack.c.l.b16 %v1272
    %v4352 = vunpack.c.l.b16 %v1273
    %v4353 = vunpack.c.l.b16 %v1274
    %v4354 = vunpack.c.l.b16 %v1275
    %v4355 = vunpack.c.l.b16 %v1276
    %v4356 = vunpack.c.l.b16 %v1277
    %v4357 = vunpack.c.l.b16 %v1278
    %v4358 = vunpack.c.l.b16 %v1279
    %v4359 = vpack.c.b16 %v3112, %v3111
    %v4360 = vpack.c.b16 %v3114, %v3113
    %v4361 = vpack.c.b16 %v3116, %v3115
    %v4362 = vpack.c.b16 %v3118, %v3117
    %v4363 = vpack.c.b16 %v3120, %v3119
    %v4364 = vpack.c.b16 %v3122, %v3121
    %v4365 = vpack.c.b16 %v3124, %v3123
    %v4366 = vpack.c.b16 %v3126, %v3125
    %v4367 = vpack.c.b16 %v3128, %v3127
    %v4368 = vpack.c.b16 %v3130, %v3129
    %v4369 = vpack.c.b16 %v3132, %v3131
    %v4370 = vpack.c.b16 %v3134, %v3133
    %v4371 = vpack.c.b16 %v3136, %v3135
    %v4372 = vpack.c.b16 %v3138, %v3137
    %v4373 = vpack.c.b16 %v3140, %v3139
    %v4374 = vpack.c.b16 %v3142, %v3141
    %v4375 = vpack.c.b16 %v3144, %v3143
    %v4376 = vpack.c.b16 %v3146, %v3145
    %v4377 = vpack.c.b16 %v3148, %v3147
    %v4378 = vpack.c.b16 %v3150, %v3149
    %v4379 = vpack.c.b16 %v3152, %v3151
    %v4380 = vpack.c.b16 %v3154, %v3153
    %v4381 = vpack.c.b16 %v3156, %v3155
    %v4382 = vpack.c.b16 %v3158, %v3157
    %v4383 = vpack.c.b16 %v3160, %v3159
    %v4384 = vpack.c.b16 %v3162, %v3161
    %v4385 = vpack.c.b16 %v3164, %v3163
    %v4386 = vpack.c.b16 %v3166, %v3165
    %v4387 = vpack.c.b16 %v3168, %v3167
    %v4388 = vpack.c.b16 %v3170, %v3169
    %v4389 = vpack.c.b16 %v3172, %v3171
    %v4390 = vpack.c.b16 %v3174, %v3173
    %v4391 = vpack.c.b16 %v3176, %v3175
    %v4392 = vpack.c.b16 %v3178, %v3177
    %v4393 = vpack.c.b16 %v3180, %v3179
    %v4394 = vpack.c.b16 %v3182, %v3181
    %v4395 = vpack.c.b16 %v3184, %v3183
    %v4396 = vpack.c.b16 %v3186, %v3185
    %v4397 = vpack.c.b16 %v3188, %v3187
    %v4398 = vpack.c.b16 %v3190, %v3189
    %v4399 = vpack.c.b16 %v3192, %v3191
    %v4400 = vpack.c.b16 %v3194, %v3193
    %v4401 = vpack.c.b16 %v3196, %v3195
    %v4402 = vpack.c.b16 %v3198, %v3197
    %v4403 = vpack.c.b16 %v3200, %v3199
    %v4404 = vpack.c.b16 %v3202, %v3201
    %v4405 = vpack.c.b16 %v3204, %v3203
    %v4406 = vpack.c.b16 %v3206, %v3205
    %v4407 = vpack.c.b16 %v3208, %v3207
    %v4408 = vpack.c.b16 %v3210, %v3209
    %v4409 = vpack.c.b16 %v3212, %v3211
    %v4410 = vpack.c.b16 %v3214, %v3213
    %v4411 = vpack.c.b16 %v3216, %v3215
    %v4412 = vpack.c.b16 %v3218, %v3217
    %v4413 = vpack.c.b16 %v3220, %v3219
    %v4414 = vpack.c.b16 %v3222, %v3221
    %v4415 = vpack.c.b16 %v3224, %v3223
    %v4416 = vpack.c.b16 %v3226, %v3225
    %v4417 = vpack.c.b16 %v3228, %v3227
    %v4418 = vpack.c.b16 %v3230, %v3229
    %v4419 = vpack.c.b16 %v3232, %v3231
    %v4420 = vpack.c.b16 %v3234, %v3233
    %v4421 = vpack.c.b16 %v3236, %v3235
    %v4422 = vpack.c.b16 %v3238, %v3237
    %v4423 = vpack.c.b16 %v3240, %v3239
    %v4424 = vpack.c.b16 %v3242, %v3241
    %v4425 = vpack.c.b16 %v3244, %v3243
    %v4426 = vpack.c.b16 %v3246, %v3245
    %v4427 = vpack.c.b16 %v3248, %v3247
    %v4428 = vpack.c.b16 %v3250, %v3249
    %v4429 = vpack.c.b16 %v3252, %v3251
    %v4430 = vpack.c.b16 %v3254, %v3253
    %v4431 = vpack.c.b16 %v3256, %v3255
    %v4432 = vpack.c.b16 %v3258, %v3257
    %v4433 = vpack.c.b16 %v3260, %v3259
    %v4434 = vpack.c.b16 %v3262, %v3261
    %v4435 = vpack.c.b16 %v3264, %v3263
    %v4436 = vpack.c.b16 %v3266, %v3265
    %v4437 = vpack.c.b16 %v3268, %v3267
    %v4438 = vpack.c.b16 %v3270, %v3269
    %v4439 = vpack.c.b16 %v3272, %v3271
    %v4440 = vpack.c.b16 %v3274, %v3273
    %v4441 = vpack.c.b16 %v3276, %v3275
    %v4442 = vpack.c.b16 %v3278, %v3277
    %v4443 = vpack.c.b16 %v3280, %v3279
    %v4444 = vpack.c.b16 %v3282, %v3281
    %v4445 = vpack.c.b16 %v3284, %v3283
    %v4446 = vpack.c.b16 %v3286, %v3285
    %v4447 = vpack.c.b16 %v3288, %v3287
    %v4448 = vpack.c.b16 %v3290, %v3289
    %v4449 = vpack.c.b16 %v3292, %v3291
    %v4450 = vpack.c.b16 %v3294, %v3293
    %v4451 = vpack.c.b16 %v3296, %v3295
    %v4452 = vpack.c.b16 %v3298, %v3297
    %v4453 = vpack.c.b16 %v3300, %v3299
    %v4454 = vpack.c.b16 %v3302, %v3301
    %v4455 = vpack.c.b16 %v3304, %v3303
    %v4456 = vpack.c.b16 %v3306, %v3305
    %v4457 = vpack.c.b16 %v3308, %v3307
    %v4458 = vpack.c.b16 %v3310, %v3309
    %v4459 = vpack.c.b16 %v3312, %v3311
    %v4460 = vpack.c.b16 %v3314, %v3313
    %v4461 = vpack.c.b16 %v3316, %v3315
    %v4462 = vpack.c.b16 %v3318, %v3317
    %v4463 = vpack.c.b16 %v3320, %v3319
    %v4464 = vpack.c.b16 %v3322, %v3321
    %v4465 = vpack.c.b16 %v3324, %v3323
    %v4466 = vpack.c.b16 %v3326, %v3325
    %v4467 = vpack.c.b16 %v3328, %v3327
    %v4468 = vpack.c.b16 %v3330, %v3329
    %v4469 = vpack.c.b16 %v3332, %v3331
    %v4470 = vpack.c.b16 %v3334, %v3333
    %v4471 = vpack.c.b16 %v3336, %v3335
    %v4472 = vpack.c.b16 %v3338, %v3337
    %v4473 = vpack.c.b16 %v3340, %v3339
    %v4474 = vpack.c.b16 %v3342, %v3341
    %v4475 = vpack.c.b16 %v3344, %v3343
    %v4476 = vpack.c.b16 %v3346, %v3345
    %v4477 = vpack.c.b16 %v3348, %v3347
    %v4478 = vpack.c.b16 %v3350, %v3349
    %v4479 = vpack.c.b16 %v3352, %v3351
    %v4480 = vpack.c.b16 %v3354, %v3353
    %v4481 = vpack.c.b16 %v3356, %v3355
    %v4482 = vpack.c.b16 %v3358, %v3357
    %v4483 = vpack.c.b16 %v3360, %v3359
    %v4484 = vpack.c.b16 %v3362, %v3361
    %v4485 = vpack.c.b16 %v3364, %v3363
    %v4486 = vpack.c.b16 %v3366, %v3365
    %v4487 = vpack.c.b16 %v3368, %v3367
    %v4488 = vpack.c.b16 %v3370, %v3369
    %v4489 = vpack.c.b16 %v3372, %v3371
    %v4490 = vpack.c.b16 %v3374, %v3373
    %v4491 = vpack.c.b16 %v3376, %v3375
    %v4492 = vpack.c.b16 %v3378, %v3377
    %v4493 = vpack.c.b16 %v3380, %v3379
    %v4494 = vpack.c.b16 %v3382, %v3381
    %v4495 = vpack.c.b16 %v3384, %v3383
    %v4496 = vpack.c.b16 %v3386, %v3385
    %v4497 = vpack.c.b16 %v3388, %v3387
    %v4498 = vpack.c.b16 %v3390, %v3389
    %v4499 = vpack.c.b16 %v3392, %v3391
    %v4500 = vpack.c.b16 %v3394, %v3393
    %v4501 = vpack.c.b16 %v3396, %v3395
    %v4502 = vpack.c.b16 %v3398, %v3397
    %v4503 = vpack.c.b16 %v3400, %v3399
    %v4504 = vpack.c.b16 %v3402, %v3401
    %v4505 = vpack.c.b16 %v3404, %v3403
    %v4506 = vpack.c.b16 %v3406, %v3405
    %v4507 = vpack.c.b16 %v3408, %v3407
    %v4508 = vpack.c.b16 %v3410, %v3409
    %v4509 = vpack.c.b16 %v3412, %v3411
    %v4510 = vpack.c.b16 %v3414, %v3413
    %v4511 = vpack.c.b16 %v3416, %v3415
    %v4512 = vpack.c.b16 %v3418, %v3417
    %v4513 = vpack.c.b16 %v3420, %v3419
    %v4514 = vpack.c.b16 %v3422, %v3421
    %v4515 = vpack.c.b16 %v3424, %v3423
    %v4516 = vpack.c.b16 %v3426, %v3425
    %v4517 = vpack.c.b16 %v3428, %v3427
    %v4518 = vpack.c.b16 %v3430, %v3429
    %v4519 = vpack.c.b16 %v3432, %v3431
    %v4520 = vpack.c.b16 %v3434, %v3433
    %v4521 = vpack.c.b16 %v3436, %v3435
    %v4522 = vpack.c.b16 %v3438, %v3437
    %v4523 = vpack.c.b16 %v3440, %v3439
    %v4524 = vpack.c.b16 %v3442, %v3441
    %v4525 = vpack.c.b16 %v3444, %v3443
    %v4526 = vpack.c.b16 %v3446, %v3445
    %v4527 = vpack.c.b16 %v3448, %v3447
    %v4528 = vpack.c.b16 %v3450, %v3449
    %v4529 = vpack.c.b16 %v3452, %v3451
    %v4530 = vpack.c.b16 %v3454, %v3453
    %v4531 = vpack.c.b16 %v3456, %v3455
    %v4532 = vpack.c.b16 %v3458, %v3457
    %v4533 = vpack.c.b16 %v3460, %v3459
    %v4534 = vpack.c.b16 %v3462, %v3461
    %v4535 = vpack.c.b16 %v3464, %v3463
    %v4536 = vpack.c.b16 %v3466, %v3465
    %v4537 = vpack.c.b16 %v3468, %v3467
    %v4538 = vpack.c.b16 %v3470, %v3469
    %v4539 = vpack.c.b16 %v3472, %v3471
    %v4540 = vpack.c.b16 %v3474, %v3473
    %v4541 = vpack.c.b16 %v3476, %v3475
    %v4542 = vpack.c.b16 %v3478, %v3477
    %v4543 = vpack.c.b16 %v3480, %v3479
    %v4544 = vpack.c.b16 %v3482, %v3481
    %v4545 = vpack.c.b16 %v3484, %v3483
    %v4546 = vpack.c.b16 %v3486, %v3485
    %v4547 = vpack.c.b16 %v3488, %v3487
    %v4548 = vpack.c.b16 %v3490, %v3489
    %v4549 = vpack.c.b16 %v3492, %v3491
    %v4550 = vpack.c.b16 %v3494, %v3493
    %v4551 = vpack.c.b16 %v3496, %v3495
    %v4552 = vpack.c.b16 %v3498, %v3497
    %v4553 = vpack.c.b16 %v3500, %v3499
    %v4554 = vpack.c.b16 %v3502, %v3501
    %v4555 = vpack.c.b16 %v3504, %v3503
    %v4556 = vpack.c.b16 %v3506, %v3505
    %v4557 = vpack.c.b16 %v3508, %v3507
    %v4558 = vpack.c.b16 %v3510, %v3509
    %v4559 = vpack.c.b16 %v3512, %v3511
    %v4560 = vpack.c.b16 %v3514, %v3513
    %v4561 = vpack.c.b16 %v3516, %v3515
    %v4562 = vpack.c.b16 %v3518, %v3517
    %v4563 = vpack.c.b16 %v3520, %v3519
    %v4564 = vpack.c.b16 %v3522, %v3521
    %v4565 = vpack.c.b16 %v3524, %v3523
    %v4566 = vpack.c.b16 %v3526, %v3525
    %v4567 = vpack.c.b16 %v3528, %v3527
    %v4568 = vpack.c.b16 %v3530, %v3529
    %v4569 = vpack.c.b16 %v3532, %v3531
    %v4570 = vpack.c.b16 %v3534, %v3533
    %v4571 = vpack.c.b16 %v3536, %v3535
    %v4572 = vpack.c.b16 %v3538, %v3537
    %v4573 = vpack.c.b16 %v3540, %v3539
    %v4574 = vpack.c.b16 %v3542, %v3541
    %v4575 = vpack.c.b16 %v3544, %v3543
    %v4576 = vpack.c.b16 %v3546, %v3545
    %v4577 = vpack.c.b16 %v3548, %v3547
    %v4578 = vpack.c.b16 %v3550, %v3549
    %v4579 = vpack.c.b16 %v3552, %v3551
    %v4580 = vpack.c.b16 %v3554, %v3553
    %v4581 = vpack.c.b16 %v3556, %v3555
    %v4582 = vpack.c.b16 %v3558, %v3557
    %v4583 = vpack.c.b16 %v3560, %v3559
    %v4584 = vpack.c.b16 %v3562, %v3561
    %v4585 = vpack.c.b16 %v3564, %v3563
    %v4586 = vpack.c.b16 %v3566, %v3565
    %v4587 = vpack.c.b16 %v3568, %v3567
    %v4588 = vpack.c.b16 %v3570, %v3569
    %v4589 = vpack.c.b16 %v3572, %v3571
    %v4590 = vpack.c.b16 %v3574, %v3573
    %v4591 = vpack.c.b16 %v3576, %v3575
    %v4592 = vpack.c.b16 %v3578, %v3577
    %v4593 = vpack.c.b16 %v3580, %v3579
    %v4594 = vpack.c.b16 %v3582, %v3581
    %v4595 = vpack.c.b16 %v3584, %v3583
    %v4596 = vpack.c.b16 %v3586, %v3585
    %v4597 = vpack.c.b16 %v3588, %v3587
    %v4598 = vpack.c.b16 %v3590, %v3589
    %v4599 = vpack.c.b16 %v3592, %v3591
    %v4600 = vpack.c.b16 %v3594, %v3593
    %v4601 = vpack.c.b16 %v3596, %v3595
    %v4602 = vpack.c.b16 %v3598, %v3597
    %v4603 = vpack.c.b16 %v3600, %v3599
    %v4604 = vpack.c.b16 %v3602, %v3601
    %v4605 = vpack.c.b16 %v3604, %v3603
    %v4606 = vpack.c.b16 %v3606, %v3605
    %v4607 = vpack.c.b16 %v3608, %v3607
    %v4608 = vpack.c.b16 %v3610, %v3609
    %v4609 = vpack.c.b16 %v3612, %v3611
    %v4610 = vpack.c.b16 %v3614, %v3613
    %v4611 = vpack.c.b16 %v3616, %v3615
    %v4612 = vpack.c.b16 %v3618, %v3617
    %v4613 = vpack.c.b16 %v3620, %v3619
    %v4614 = vpack.c.b16 %v3622, %v3621
    %v4615 = vpack.c.b16 %v3624, %v3623
    %v4616 = vpack.c.b16 %v3626, %v3625
    %v4617 = vpack.c.b16 %v3628, %v3627
    %v4618 = vpack.c.b16 %v3630, %v3629
    %v4619 = vpack.c.b16 %v3632, %v3631
    %v4620 = vpack.c.b16 %v3634, %v3633
    %v4621 = vpack.c.b16 %v3636, %v3635
    %v4622 = vpack.c.b16 %v3638, %v3637
    %v4623 = vpack.c.b16 %v3640, %v3639
    %v4624 = vpack.c.b16 %v3642, %v3641
    %v4625 = vpack.c.b16 %v3644, %v3643
    %v4626 = vpack.c.b16 %v3646, %v3645
    %v4627 = vpack.c.b16 %v3648, %v3647
    %v4628 = vpack.c.b16 %v3650, %v3649
    %v4629 = vpack.c.b16 %v3652, %v3651
    %v4630 = vpack.c.b16 %v3654, %v3653
    %v4631 = vpack.c.b16 %v3656, %v3655
    %v4632 = vpack.c.b16 %v3658, %v3657
    %v4633 = vpack.c.b16 %v3660, %v3659
    %v4634 = vpack.c.b16 %v3662, %v3661
    %v4635 = vpack.c.b16 %v3664, %v3663
    %v4636 = vpack.c.b16 %v3666, %v3665
    %v4637 = vpack.c.b16 %v3668, %v3667
    %v4638 = vpack.c.b16 %v3670, %v3669
    %v4639 = vpack.c.b16 %v3672, %v3671
    %v4640 = vpack.c.b16 %v3674, %v3673
    %v4641 = vpack.c.b16 %v3676, %v3675
    %v4642 = vpack.c.b16 %v3678, %v3677
    %v4643 = vpack.c.b16 %v3680, %v3679
    %v4644 = vpack.c.b16 %v3682, %v3681
    %v4645 = vpack.c.b16 %v3684, %v3683
    %v4646 = vpack.c.b16 %v3686, %v3685
    %v4647 = vpack.c.b16 %v3688, %v3687
    %v4648 = vpack.c.b16 %v3690, %v3689
    %v4649 = vpack.c.b16 %v3692, %v3691
    %v4650 = vpack.c.b16 %v3694, %v3693
    %v4651 = vpack.c.b16 %v3696, %v3695
    %v4652 = vpack.c.b16 %v3698, %v3697
    %v4653 = vpack.c.b16 %v3700, %v3699
    %v4654 = vpack.c.b16 %v3702, %v3701
    %v4655 = vpack.c.b16 %v3704, %v3703
    %v4656 = vpack.c.b16 %v3706, %v3705
    %v4657 = vpack.c.b16 %v3708, %v3707
    %v4658 = vpack.c.b16 %v3710, %v3709
    %v4659 = vpack.c.b16 %v3712, %v3711
    %v4660 = vpack.c.b16 %v3714, %v3713
    %v4661 = vpack.c.b16 %v3716, %v3715
    %v4662 = vpack.c.b16 %v3718, %v3717
    %v4663 = vpack.c.b16 %v3720, %v3719
    %v4664 = vpack.c.b16 %v3722, %v3721
    %v4665 = vpack.c.b16 %v3724, %v3723
    %v4666 = vpack.c.b16 %v3726, %v3725
    %v4667 = vpack.c.b16 %v3728, %v3727
    %v4668 = vpack.c.b16 %v3730, %v3729
    %v4669 = vpack.c.b16 %v3732, %v3731
    %v4670 = vpack.c.b16 %v3734, %v3733
    %v4671 = vpack.c.b16 %v3736, %v3735
    %v4672 = vpack.c.b16 %v3738, %v3737
    %v4673 = vpack.c.b16 %v3740, %v3739
    %v4674 = vpack.c.b16 %v3742, %v3741
    %v4675 = vpack.c.b16 %v3744, %v3743
    %v4676 = vpack.c.b16 %v3746, %v3745
    %v4677 = vpack.c.b16 %v3748, %v3747
    %v4678 = vpack.c.b16 %v3750, %v3749
    %v4679 = vpack.c.b16 %v3752, %v3751
    %v4680 = vpack.c.b16 %v3754, %v3753
    %v4681 = vpack.c.b16 %v3756, %v3755
    %v4682 = vpack.c.b16 %v3758, %v3757
    %v4683 = vpack.c.b16 %v3760, %v3759
    %v4684 = vpack.c.b16 %v3762, %v3761
    %v4685 = vpack.c.b16 %v3764, %v3763
    %v4686 = vpack.c.b16 %v3766, %v3765
    %v4687 = vpack.c.b16 %v3768, %v3767
    %v4688 = vpack.c.b16 %v3770, %v3769
    %v4689 = vpack.c.b16 %v3772, %v3771
    %v4690 = vpack.c.b16 %v3774, %v3773
    %v4691 = vpack.c.b16 %v3776, %v3775
    %v4692 = vpack.c.b16 %v3778, %v3777
    %v4693 = vpack.c.b16 %v3780, %v3779
    %v4694 = vpack.c.b16 %v3782, %v3781
    %v4695 = vpack.c.b16 %v3784, %v3783
    %v4696 = vpack.c.b16 %v3786, %v3785
    %v4697 = vpack.c.b16 %v3788, %v3787
    %v4698 = vpack.c.b16 %v3790, %v3789
    %v4699 = vpack.c.b16 %v3792, %v3791
    %v4700 = vpack.c.b16 %v3794, %v3793
    %v4701 = vpack.c.b16 %v3796, %v3795
    %v4702 = vpack.c.b16 %v3798, %v3797
    %v4703 = vpack.c.b16 %v3800, %v3799
    %v4704 = vpack.c.b16 %v3802, %v3801
    %v4705 = vpack.c.b16 %v3804, %v3803
    %v4706 = vpack.c.b16 %v3806, %v3805
    %v4707 = vpack.c.b16 %v3808, %v3807
    %v4708 = vpack.c.b16 %v3810, %v3809
    %v4709 = vpack.c.b16 %v3812, %v3811
    %v4710 = vpack.c.b16 %v3814, %v3813
    %v4711 = vpack.c.b16 %v3816, %v3815
    %v4712 = vpack.c.b16 %v3818, %v3817
    %v4713 = vpack.c.b16 %v3820, %v3819
    %v4714 = vpack.c.b16 %v3822, %v3821
    %v4715 = vpack.c.b16 %v3824, %v3823
    %v4716 = vpack.c.b16 %v3826, %v3825
    %v4717 = vpack.c.b16 %v3828, %v3827
    %v4718 = vpack.c.b16 %v3830, %v3829
    %v4719 = vpack.c.b16 %v3832, %v3831
    %v4720 = vpack.c.b16 %v3834, %v3833
    %v4721 = vpack.c.b16 %v3836, %v3835
    %v4722 = vpack.c.b16 %v3838, %v3837
    %v4723 = vpack.c.b16 %v3840, %v3839
    %v4724 = vpack.c.b16 %v3842, %v3841
    %v4725 = vpack.c.b16 %v3844, %v3843
    %v4726 = vpack.c.b16 %v3846, %v3845
    %v4727 = vpack.c.b16 %v3848, %v3847
    %v4728 = vpack.c.b16 %v3850, %v3849
    %v4729 = vpack.c.b16 %v3852, %v3851
    %v4730 = vpack.c.b16 %v3854, %v3853
    %v4731 = vpack.c.b16 %v3856, %v3855
    %v4732 = vpack.c.b16 %v3858, %v3857
    %v4733 = vpack.c.b16 %v3860, %v3859
    %v4734 = vpack.c.b16 %v3862, %v3861
    %v4735 = vpack.c.b16 %v3864, %v3863
    %v4736 = vpack.c.b16 %v3866, %v3865
    %v4737 = vpack.c.b16 %v3868, %v3867
    %v4738 = vpack.c.b16 %v3870, %v3869
    %v4739 = vpack.c.b16 %v3872, %v3871
    %v4740 = vpack.c.b16 %v3874, %v3873
    %v4741 = vpack.c.b16 %v3876, %v3875
    %v4742 = vpack.c.b16 %v3878, %v3877
    %v4743 = vpack.c.b16 %v3880, %v3879
    %v4744 = vpack.c.b16 %v3882, %v3881
    %v4745 = vpack.c.b16 %v3884, %v3883
    %v4746 = vpack.c.b16 %v3886, %v3885
    %v4747 = vpack.c.b16 %v3888, %v3887
    %v4748 = vpack.c.b16 %v3890, %v3889
    %v4749 = vpack.c.b16 %v3892, %v3891
    %v4750 = vpack.c.b16 %v3894, %v3893
    %v4751 = vpack.c.b16 %v3896, %v3895
    %v4752 = vpack.c.b16 %v3898, %v3897
    %v4753 = vpack.c.b16 %v3900, %v3899
    %v4754 = vpack.c.b16 %v3902, %v3901
    %v4755 = vpack.c.b16 %v3904, %v3903
    %v4756 = vpack.c.b16 %v3906, %v3905
    %v4757 = vpack.c.b16 %v3908, %v3907
    %v4758 = vpack.c.b16 %v3910, %v3909
    %v4759 = vpack.c.b16 %v3912, %v3911
    %v4760 = vpack.c.b16 %v3914, %v3913
    %v4761 = vpack.c.b16 %v3916, %v3915
    %v4762 = vpack.c.b16 %v3918, %v3917
    %v4763 = vpack.c.b16 %v3920, %v3919
    %v4764 = vpack.c.b16 %v3922, %v3921
    %v4765 = vpack.c.b16 %v3924, %v3923
    %v4766 = vpack.c.b16 %v3926, %v3925
    %v4767 = vpack.c.b16 %v3928, %v3927
    %v4768 = vpack.c.b16 %v3930, %v3929
    %v4769 = vpack.c.b16 %v3932, %v3931
    %v4770 = vpack.c.b16 %v3934, %v3933
    %v4771 = vpack.c.b16 %v3936, %v3935
    %v4772 = vpack.c.b16 %v3938, %v3937
    %v4773 = vpack.c.b16 %v3940, %v3939
    %v4774 = vpack.c.b16 %v3942, %v3941
    %v4775 = vpack.c.b16 %v3944, %v3943
    %v4776 = vpack.c.b16 %v3946, %v3945
    %v4777 = vpack.c.b16 %v3948, %v3947
    %v4778 = vpack.c.b16 %v3950, %v3949
    %v4779 = vpack.c.b16 %v3952, %v3951
    %v4780 = vpack.c.b16 %v3954, %v3953
    %v4781 = vpack.c.b16 %v3956, %v3955
    %v4782 = vpack.c.b16 %v3958, %v3957
    %v4783 = vpack.c.b16 %v3960, %v3959
    %v4784 = vpack.c.b16 %v3962, %v3961
    %v4785 = vpack.c.b16 %v3964, %v3963
    %v4786 = vpack.c.b16 %v3966, %v3965
    %v4787 = vpack.c.b16 %v3968, %v3967
    %v4788 = vpack.c.b16 %v3970, %v3969
    %v4789 = vpack.c.b16 %v3972, %v3971
    %v4790 = vpack.c.b16 %v3974, %v3973
    %v4791 = vpack.c.b16 %v3976, %v3975
    %v4792 = vpack.c.b16 %v3978, %v3977
    %v4793 = vpack.c.b16 %v3980, %v3979
    %v4794 = vpack.c.b16 %v3982, %v3981
    %v4795 = vpack.c.b16 %v3984, %v3983
    %v4796 = vpack.c.b16 %v3986, %v3985
    %v4797 = vpack.c.b16 %v3988, %v3987
    %v4798 = vpack.c.b16 %v3990, %v3989
    %v4799 = vpack.c.b16 %v3992, %v3991
    %v4800 = vpack.c.b16 %v3994, %v3993
    %v4801 = vpack.c.b16 %v3996, %v3995
    %v4802 = vpack.c.b16 %v3998, %v3997
    %v4803 = vpack.c.b16 %v4000, %v3999
    %v4804 = vpack.c.b16 %v4002, %v4001
    %v4805 = vpack.c.b16 %v4004, %v4003
    %v4806 = vpack.c.b16 %v4006, %v4005
    %v4807 = vpack.c.b16 %v4008, %v4007
    %v4808 = vpack.c.b16 %v4010, %v4009
    %v4809 = vpack.c.b16 %v4012, %v4011
    %v4810 = vpack.c.b16 %v4014, %v4013
    %v4811 = vpack.c.b16 %v4016, %v4015
    %v4812 = vpack.c.b16 %v4018, %v4017
    %v4813 = vpack.c.b16 %v4020, %v4019
    %v4814 = vpack.c.b16 %v4022, %v4021
    %v4815 = vpack.c.b16 %v4024, %v4023
    %v4816 = vpack.c.b16 %v4026, %v4025
    %v4817 = vpack.c.b16 %v4028, %v4027
    %v4818 = vpack.c.b16 %v4030, %v4029
    %v4819 = vpack.c.b16 %v4032, %v4031
    %v4820 = vpack.c.b16 %v4034, %v4033
    %v4821 = vpack.c.b16 %v4036, %v4035
    %v4822 = vpack.c.b16 %v4038, %v4037
    %v4823 = vpack.c.b16 %v4040, %v4039
    %v4824 = vpack.c.b16 %v4042, %v4041
    %v4825 = vpack.c.b16 %v4044, %v4043
    %v4826 = vpack.c.b16 %v4046, %v4045
    %v4827 = vpack.c.b16 %v4048, %v4047
    %v4828 = vpack.c.b16 %v4050, %v4049
    %v4829 = vpack.c.b16 %v4052, %v4051
    %v4830 = vpack.c.b16 %v4054, %v4053
    %v4831 = vpack.c.b16 %v4056, %v4055
    %v4832 = vpack.c.b16 %v4058, %v4057
    %v4833 = vpack.c.b16 %v4060, %v4059
    %v4834 = vpack.c.b16 %v4062, %v4061
    %v4835 = vpack.c.b16 %v4064, %v4063
    %v4836 = vpack.c.b16 %v4066, %v4065
    %v4837 = vpack.c.b16 %v4068, %v4067
    %v4838 = vpack.c.b16 %v4070, %v4069
    %v4839 = vpack.c.b16 %v4072, %v4071
    %v4840 = vpack.c.b16 %v4074, %v4073
    %v4841 = vpack.c.b16 %v4076, %v4075
    %v4842 = vpack.c.b16 %v4078, %v4077
    %v4843 = vpack.c.b16 %v4080, %v4079
    %v4844 = vpack.c.b16 %v4082, %v4081
    %v4845 = vpack.c.b16 %v4084, %v4083
    %v4846 = vpack.c.b16 %v4086, %v4085
    %v4847 = vpack.c.b16 %v4088, %v4087
    %v4848 = vpack.c.b16 %v4090, %v4089
    %v4849 = vpack.c.b16 %v4092, %v4091
    %v4850 = vpack.c.b16 %v4094, %v4093
    %v4851 = vpack.c.b16 %v4096, %v4095
    %v4852 = vpack.c.b16 %v4098, %v4097
    %v4853 = vpack.c.b16 %v4100, %v4099
    %v4854 = vpack.c.b16 %v4102, %v4101
    %v4855 = vpack.c.b16 %v4104, %v4103
    %v4856 = vpack.c.b16 %v4106, %v4105
    %v4857 = vpack.c.b16 %v4108, %v4107
    %v4858 = vpack.c.b16 %v4110, %v4109
    %v4859 = vpack.c.b16 %v4112, %v4111
    %v4860 = vpack.c.b16 %v4114, %v4113
    %v4861 = vpack.c.b16 %v4116, %v4115
    %v4862 = vpack.c.b16 %v4118, %v4117
    %v4863 = vpack.c.b16 %v4120, %v4119
    %v4864 = vpack.c.b16 %v4122, %v4121
    %v4865 = vpack.c.b16 %v4124, %v4123
    %v4866 = vpack.c.b16 %v4126, %v4125
    %v4867 = vpack.c.b16 %v4128, %v4127
    %v4868 = vpack.c.b16 %v4130, %v4129
    %v4869 = vpack.c.b16 %v4132, %v4131
    %v4870 = vpack.c.b16 %v4134, %v4133
    %v4871 = vpack.c.b16 %v4136, %v4135
    %v4872 = vpack.c.b16 %v4138, %v4137
    %v4873 = vpack.c.b16 %v4140, %v4139
    %v4874 = vpack.c.b16 %v4142, %v4141
    %v4875 = vpack.c.b16 %v4144, %v4143
    %v4876 = vpack.c.b16 %v4146, %v4145
    %v4877 = vpack.c.b16 %v4148, %v4147
    %v4878 = vpack.c.b16 %v4150, %v4149
    %v4879 = vpack.c.b16 %v4152, %v4151
    %v4880 = vpack.c.b16 %v4154, %v4153
    %v4881 = vpack.c.b16 %v4156, %v4155
    %v4882 = vpack.c.b16 %v4158, %v4157
    %v4883 = vpack.c.b16 %v4160, %v4159
    %v4884 = vpack.c.b16 %v4162, %v4161
    %v4885 = vpack.c.b16 %v4164, %v4163
    %v4886 = vpack.c.b16 %v4166, %v4165
    %v4887 = vpack.c.b16 %v4168, %v4167
    %v4888 = vpack.c.b16 %v4170, %v4169
    %v4889 = vpack.c.b16 %v4172, %v4171
    %v4890 = vpack.c.b16 %v4174, %v4173
    %v4891 = vpack.c.b16 %v4176, %v4175
    %v4892 = vpack.c.b16 %v4178, %v4177
    %v4893 = vpack.c.b16 %v4180, %v4179
    %v4894 = vpack.c.b16 %v4182, %v4181
    %v4895 = vpack.c.b16 %v4184, %v4183
    %v4896 = vpack.c.b16 %v4186, %v4185
    %v4897 = vpack.c.b16 %v4188, %v4187
    %v4898 = vpack.c.b16 %v4190, %v4189
    %v4899 = vpack.c.b16 %v4192, %v4191
    %v4900 = vpack.c.b16 %v4194, %v4193
    %v4901 = vpack.c.b16 %v4196, %v4195
    %v4902 = vpack.c.b16 %v4198, %v4197
    %v4903 = vpack.c.b16 %v4200, %v4199
    %v4904 = vpack.c.b16 %v4202, %v4201
    %v4905 = vpack.c.b16 %v4204, %v4203
    %v4906 = vpack.c.b16 %v4206, %v4205
    %v4907 = vpack.c.b16 %v4208, %v4207
    %v4908 = vpack.c.b16 %v4210, %v4209
    %v4909 = vpack.c.b16 %v4212, %v4211
    %v4910 = vpack.c.b16 %v4214, %v4213
    %v4911 = vpack.c.b16 %v4216, %v4215
    %v4912 = vpack.c.b16 %v4218, %v4217
    %v4913 = vpack.c.b16 %v4220, %v4219
    %v4914 = vpack.c.b16 %v4222, %v4221
    %v4915 = vpack.c.b16 %v4224, %v4223
    %v4916 = vpack.c.b16 %v4226, %v4225
    %v4917 = vpack.c.b16 %v4228, %v4227
    %v4918 = vpack.c.b16 %v4230, %v4229
    %v4919 = vpack.c.b16 %v4232, %v4231
    %v4920 = vpack.c.b16 %v4234, %v4233
    %v4921 = vpack.c.b16 %v4236, %v4235
    %v4922 = vpack.c.b16 %v4238, %v4237
    %v4923 = vpack.c.b16 %v4240, %v4239
    %v4924 = vpack.c.b16 %v4242, %v4241
    %v4925 = vpack.c.b16 %v4244, %v4243
    %v4926 = vpack.c.b16 %v4246, %v4245
    %v4927 = vpack.c.b16 %v4248, %v4247
    %v4928 = vpack.c.b16 %v4250, %v4249
    %v4929 = vpack.c.b16 %v4252, %v4251
    %v4930 = vpack.c.b16 %v4254, %v4253
    %v4931 = vpack.c.b16 %v4256, %v4255
    %v4932 = vpack.c.b16 %v4258, %v4257
    %v4933 = vpack.c.b16 %v4260, %v4259
    %v4934 = vpack.c.b16 %v4262, %v4261
    %v4935 = vpack.c.b16 %v4264, %v4263
    %v4936 = vpack.c.b16 %v4266, %v4265
    %v4937 = vpack.c.b16 %v4268, %v4267
    %v4938 = vpack.c.b16 %v4270, %v4269
    %v4939 = vpack.c.b16 %v4272, %v4271
    %v4940 = vpack.c.b16 %v4274, %v4273
    %v4941 = vpack.c.b16 %v4276, %v4275
    %v4942 = vpack.c.b16 %v4278, %v4277
    %v4943 = vpack.c.b16 %v4280, %v4279
    %v4944 = vpack.c.b16 %v4282, %v4281
    %v4945 = vpack.c.b16 %v4284, %v4283
    %v4946 = vpack.c.b16 %v4286, %v4285
    %v4947 = vpack.c.b16 %v4288, %v4287
    %v4948 = vpack.c.b16 %v4290, %v4289
    %v4949 = vpack.c.b16 %v4292, %v4291
    %v4950 = vpack.c.b16 %v4294, %v4293
    %v4951 = vpack.c.b16 %v4296, %v4295
    %v4952 = vpack.c.b16 %v4298, %v4297
    %v4953 = vpack.c.b16 %v4300, %v4299
    %v4954 = vpack.c.b16 %v4302, %v4301
    %v4955 = vpack.c.b16 %v4304, %v4303
    %v4956 = vpack.c.b16 %v4306, %v4305
    %v4957 = vpack.c.b16 %v4308, %v4307
    %v4958 = vpack.c.b16 %v4310, %v4309
    %v4959 = vpack.c.b16 %v4312, %v4311
    %v4960 = vpack.c.b16 %v4314, %v4313
    %v4961 = vpack.c.b16 %v4316, %v4315
    %v4962 = vpack.c.b16 %v4318, %v4317
    %v4963 = vpack.c.b16 %v4320, %v4319
    %v4964 = vpack.c.b16 %v4322, %v4321
    %v4965 = vpack.c.b16 %v4324, %v4323
    %v4966 = vpack.c.b16 %v4326, %v4325
    %v4967 = vpack.c.b16 %v4328, %v4327
    %v4968 = vpack.c.b16 %v4330, %v4329
    %v4969 = vpack.c.b16 %v4332, %v4331
    %v4970 = vpack.c.b16 %v4334, %v4333
    %v4971 = vpack.c.b16 %v4336, %v4335
    %v4972 = vpack.c.b16 %v4338, %v4337
    %v4973 = vpack.c.b16 %v4340, %v4339
    %v4974 = vpack.c.b16 %v4342, %v4341
    %v4975 = vpack.c.b16 %v4344, %v4343
    %v4976 = vpack.c.b16 %v4346, %v4345
    %v4977 = vpack.c.b16 %v4348, %v4347
    %v4978 = vpack.c.b16 %v4350, %v4349
    %v4979 = vpack.c.b16 %v4352, %v4351
    %v4980 = vpack.c.b16 %v4354, %v4353
    %v4981 = vpack.c.b16 %v4356, %v4355
    %v4982 = vpack.c.b16 %v4358, %v4357
    %5607 = vmatprep.subr.bf16.mxu0 0
    %5608 = vmatpush1.bf16.msra.mxu0 %v4359
    %5609 = vmatprep.subr.bf16.mxu0 0
    %5610 = vmatpush1.bf16.msra.mxu0 %v4360
    %5611 = vmatprep.subr.bf16.mxu0 0
    %5612 = vmatpush1.bf16.msra.mxu0 %v4361
    %5613 = vmatprep.subr.bf16.mxu0 0
    %5614 = vmatpush1.bf16.msra.mxu0 %v4362
    %5615 = vmatprep.subr.bf16.mxu0 0
    %5616 = vmatpush1.bf16.msra.mxu0 %v4363
    %5617 = vmatprep.subr.bf16.mxu0 0
    %5618 = vmatpush1.bf16.msra.mxu0 %v4364
    %5619 = vmatprep.subr.bf16.mxu0 0
    %5620 = vmatpush1.bf16.msra.mxu0 %v4365
    %5621 = vmatprep.subr.bf16.mxu0 0
    %5622 = vmatpush1.bf16.msra.mxu0 %v4366
    %5623 = vmatprep.subr.bf16.mxu0 0
    %5624 = vmatpush1.bf16.msra.mxu0 %v4367
    %5625 = vmatprep.subr.bf16.mxu0 0
    %5626 = vmatpush1.bf16.msra.mxu0 %v4368
    %5627 = vmatprep.subr.bf16.mxu0 0
    %5628 = vmatpush1.bf16.msra.mxu0 %v4369
    %5629 = vmatprep.subr.bf16.mxu0 0
    %5630 = vmatpush1.bf16.msra.mxu0 %v4370
    %5631 = vmatprep.subr.bf16.mxu0 0
    %5632 = vmatpush1.bf16.msra.mxu0 %v4371
    %5633 = vmatprep.subr.bf16.mxu0 0
    %5634 = vmatpush1.bf16.msra.mxu0 %v4372
    %5635 = vmatprep.subr.bf16.mxu0 0
    %5636 = vmatpush1.bf16.msra.mxu0 %v4373
    %5637 = vmatprep.subr.bf16.mxu0 0
    %5638 = vmatpush1.bf16.msra.mxu0 %v4374
    %5639 = vmatprep.mubr.bf16.mxu0 %v1334
    %5640 = vmatmul.mubr.bf16.gmra.mrb[0].mxu0 %v1320
    %v5641 = vpop.f32.mrb[0].mxu0
    %v5642 = vadd.f32 %v1285, %v5641
    %v5643 = vpop.f32.mrb[0].mxu0
    %v5644 = vpop.f32.mrb[0].mxu0
    %v5645 = vpop.f32.mrb[0].mxu0
    %5646 = vdwg.mxu0
    %5647 = vmatprep.subr.bf16.mxu0 0
    %5648 = vmatpush1.bf16.msra.mxu0 %v4375
    %5649 = vmatprep.subr.bf16.mxu0 0
    %5650 = vmatpush1.bf16.msra.mxu0 %v4376
    %5651 = vmatprep.subr.bf16.mxu0 0
    %5652 = vmatpush1.bf16.msra.mxu0 %v4377
    %5653 = vmatprep.subr.bf16.mxu0 0
    %5654 = vmatpush1.bf16.msra.mxu0 %v4378
    %5655 = vmatprep.subr.bf16.mxu0 0
    %5656 = vmatpush1.bf16.msra.mxu0 %v4379
    %5657 = vmatprep.subr.bf16.mxu0 0
    %5658 = vmatpush1.bf16.msra.mxu0 %v4380
    %5659 = vmatprep.subr.bf16.mxu0 0
    %5660 = vmatpush1.bf16.msra.mxu0 %v4381
    %5661 = vmatprep.subr.bf16.mxu0 0
    %5662 = vmatpush1.bf16.msra.mxu0 %v4382
    %5663 = vmatprep.subr.bf16.mxu0 0
    %5664 = vmatpush1.bf16.msra.mxu0 %v4383
    %5665 = vmatprep.subr.bf16.mxu0 0
    %5666 = vmatpush1.bf16.msra.mxu0 %v4384
    %5667 = vmatprep.subr.bf16.mxu0 0
    %5668 = vmatpush1.bf16.msra.mxu0 %v4385
    %5669 = vmatprep.subr.bf16.mxu0 0
    %5670 = vmatpush1.bf16.msra.mxu0 %v4386
    %5671 = vmatprep.subr.bf16.mxu0 0
    %5672 = vmatpush1.bf16.msra.mxu0 %v4387
    %5673 = vmatprep.subr.bf16.mxu0 0
    %5674 = vmatpush1.bf16.msra.mxu0 %v4388
    %5675 = vmatprep.subr.bf16.mxu0 0
    %5676 = vmatpush1.bf16.msra.mxu0 %v4389
    %5677 = vmatprep.subr.bf16.mxu0 0
    %5678 = vmatpush1.bf16.msra.mxu0 %v4390
    %5679 = vmatprep.mubr.bf16.mxu0 %v1344
    %5680 = vmatmul.mubr.bf16.gmra.mrb[0].mxu0 %v1342
    %v5681 = vpop.f32.mrb[0].mxu0
    %v5682 = vadd.f32 %v5642, %v5681
    %v5683 = vpop.f32.mrb[0].mxu0
    %v5684 = vpop.f32.mrb[0].mxu0
    %v5685 = vpop.f32.mrb[0].mxu0
    %5686 = vdwg.mxu0
    %5687 = vmatprep.subr.bf16.mxu0 0
    %5688 = vmatpush1.bf16.msra.mxu0 %v4391
    %5689 = vmatprep.subr.bf16.mxu0 0
    %5690 = vmatpush1.bf16.msra.mxu0 %v4392
    %5691 = vmatprep.subr.bf16.mxu0 0
    %5692 = vmatpush1.bf16.msra.mxu0 %v4393
    %5693 = vmatprep.subr.bf16.mxu0 0
    %5694 = vmatpush1.bf16.msra.mxu0 %v4394
    %5695 = vmatprep.subr.bf16.mxu0 0
    %5696 = vmatpush1.bf16.msra.mxu0 %v4395
    %5697 = vmatprep.subr.bf16.mxu0 0
    %5698 = vmatpush1.bf16.msra.mxu0 %v4396
    %5699 = vmatprep.subr.bf16.mxu0 0
    %5700 = vmatpush1.bf16.msra.mxu0 %v4397
    %5701 = vmatprep.subr.bf16.mxu0 0
    %5702 = vmatpush1.bf16.msra.mxu0 %v4398
    %5703 = vmatprep.subr.bf16.mxu0 0
    %5704 = vmatpush1.bf16.msra.mxu0 %v4399
    %5705 = vmatprep.subr.bf16.mxu0 0
    %5706 = vmatpush1.bf16.msra.mxu0 %v4400
    %5707 = vmatprep.subr.bf16.mxu0 0
    %5708 = vmatpush1.bf16.msra.mxu0 %v4401
    %5709 = vmatprep.subr.bf16.mxu0 0
    %5710 = vmatpush1.bf16.msra.mxu0 %v4402
    %5711 = vmatprep.subr.bf16.mxu0 0
    %5712 = vmatpush1.bf16.msra.mxu0 %v4403
    %5713 = vmatprep.subr.bf16.mxu0 0
    %5714 = vmatpush1.bf16.msra.mxu0 %v4404
    %5715 = vmatprep.subr.bf16.mxu0 0
    %5716 = vmatpush1.bf16.msra.mxu0 %v4405
    %5717 = vmatprep.subr.bf16.mxu0 0
    %5718 = vmatpush1.bf16.msra.mxu0 %v4406
    %5719 = vmatprep.mubr.bf16.mxu0 %v1341
    %5720 = vmatmul.mubr.bf16.gmra.mrb[0].mxu0 %v1327
    %v5721 = vpop.f32.mrb[0].mxu0
    %v5722 = vadd.f32 %v5682, %v5721
    %v5723 = vpop.f32.mrb[0].mxu0
    %v5724 = vpop.f32.mrb[0].mxu0
    %v5725 = vpop.f32.mrb[0].mxu0
    %5726 = vdwg.mxu0
    %5727 = vmatprep.subr.bf16.mxu0 0
    %5728 = vmatpush1.bf16.msra.mxu0 %v4407
    %5729 = vmatprep.subr.bf16.mxu0 0
    %5730 = vmatpush1.bf16.msra.mxu0 %v4408
    %5731 = vmatprep.subr.bf16.mxu0 0
    %5732 = vmatpush1.bf16.msra.mxu0 %v4409
    %5733 = vmatprep.subr.bf16.mxu0 0
    %5734 = vmatpush1.bf16.msra.mxu0 %v4410
    %5735 = vmatprep.subr.bf16.mxu0 0
    %5736 = vmatpush1.bf16.msra.mxu0 %v4411
    %5737 = vmatprep.subr.bf16.mxu0 0
    %5738 = vmatpush1.bf16.msra.mxu0 %v4412
    %5739 = vmatprep.subr.bf16.mxu0 0
    %5740 = vmatpush1.bf16.msra.mxu0 %v4413
    %5741 = vmatprep.subr.bf16.mxu0 0
    %5742 = vmatpush1.bf16.msra.mxu0 %v4414
    %5743 = vmatprep.subr.bf16.mxu0 0
    %5744 = vmatpush1.bf16.msra.mxu0 %v4415
    %5745 = vmatprep.subr.bf16.mxu0 0
    %5746 = vmatpush1.bf16.msra.mxu0 %v4416
    %5747 = vmatprep.subr.bf16.mxu0 0
    %5748 = vmatpush1.bf16.msra.mxu0 %v4417
    %5749 = vmatprep.subr.bf16.mxu0 0
    %5750 = vmatpush1.bf16.msra.mxu0 %v4418
    %5751 = vmatprep.subr.bf16.mxu0 0
    %5752 = vmatpush1.bf16.msra.mxu0 %v4419
    %5753 = vmatprep.subr.bf16.mxu0 0
    %5754 = vmatpush1.bf16.msra.mxu0 %v4420
    %5755 = vmatprep.subr.bf16.mxu0 0
    %5756 = vmatpush1.bf16.msra.mxu0 %v4421
    %5757 = vmatprep.subr.bf16.mxu0 0
    %5758 = vmatpush1.bf16.msra.mxu0 %v4422
    %5759 = vmatprep.mubr.bf16.mxu0 %v1345
    %5760 = vmatmul.mubr.bf16.gmra.mrb[0].mxu0 %v1343
    %v5761 = vpop.f32.mrb[0].mxu0
    %v5762 = vadd.f32 %v5722, %v5761
    %v5763 = vpop.f32.mrb[0].mxu0
    %v5764 = vpop.f32.mrb[0].mxu0
    %v5765 = vpop.f32.mrb[0].mxu0
    %5766 = vdwg.mxu0
    %5767 = vmatprep.subr.bf16.mxu0 0
    %5768 = vmatpush1.bf16.msra.mxu0 %v4423
    %5769 = vmatprep.subr.bf16.mxu0 0
    %5770 = vmatpush1.bf16.msra.mxu0 %v4424
    %5771 = vmatprep.subr.bf16.mxu0 0
    %5772 = vmatpush1.bf16.msra.mxu0 %v4425
    %5773 = vmatprep.subr.bf16.mxu0 0
    %5774 = vmatpush1.bf16.msra.mxu0 %v4426
    %5775 = vmatprep.subr.bf16.mxu0 0
    %5776 = vmatpush1.bf16.msra.mxu0 %v4427
    %5777 = vmatprep.subr.bf16.mxu0 0
    %5778 = vmatpush1.bf16.msra.mxu0 %v4428
    %5779 = vmatprep.subr.bf16.mxu0 0
    %5780 = vmatpush1.bf16.msra.mxu0 %v4429
    %5781 = vmatprep.subr.bf16.mxu0 0
    %5782 = vmatpush1.bf16.msra.mxu0 %v4430
    %5783 = vmatprep.subr.bf16.mxu0 0
    %5784 = vmatpush1.bf16.msra.mxu0 %v4431
    %5785 = vmatprep.subr.bf16.mxu0 0
    %5786 = vmatpush1.bf16.msra.mxu0 %v4432
    %5787 = vmatprep.subr.bf16.mxu0 0
    %5788 = vmatpush1.bf16.msra.mxu0 %v4433
    %5789 = vmatprep.subr.bf16.mxu0 0
    %5790 = vmatpush1.bf16.msra.mxu0 %v4434
    %5791 = vmatprep.subr.bf16.mxu0 0
    %5792 = vmatpush1.bf16.msra.mxu0 %v4435
    %5793 = vmatprep.subr.bf16.mxu0 0
    %5794 = vmatpush1.bf16.msra.mxu0 %v4436
    %5795 = vmatprep.subr.bf16.mxu0 0
    %5796 = vmatpush1.bf16.msra.mxu0 %v4437
    %5797 = vmatprep.subr.bf16.mxu0 0
    %5798 = vmatpush1.bf16.msra.mxu0 %v4438
    %5799 = vmatprep.mubr.bf16.mxu0 %v1383
    %5800 = vmatmul.mubr.bf16.gmra.mrb[0].mxu0 %v1369
    %v5801 = vpop.f32.mrb[0].mxu0
    %v5802 = vadd.f32 %v5762, %v5801
    %v5803 = vpop.f32.mrb[0].mxu0
    %v5804 = vpop.f32.mrb[0].mxu0
    %v5805 = vpop.f32.mrb[0].mxu0
    %5806 = vdwg.mxu0
    %5807 = vmatprep.subr.bf16.mxu0 0
    %5808 = vmatpush1.bf16.msra.mxu0 %v4439
    %5809 = vmatprep.subr.bf16.mxu0 0
    %5810 = vmatpush1.bf16.msra.mxu0 %v4440
    %5811 = vmatprep.subr.bf16.mxu0 0
    %5812 = vmatpush1.bf16.msra.mxu0 %v4441
    %5813 = vmatprep.subr.bf16.mxu0 0
    %5814 = vmatpush1.bf16.msra.mxu0 %v4442
    %5815 = vmatprep.subr.bf16.mxu0 0
    %5816 = vmatpush1.bf16.msra.mxu0 %v4443
    %5817 = vmatprep.subr.bf16.mxu0 0
    %5818 = vmatpush1.bf16.msra.mxu0 %v4444
    %5819 = vmatprep.subr.bf16.mxu0 0
    %5820 = vmatpush1.bf16.msra.mxu0 %v4445
    %5821 = vmatprep.subr.bf16.mxu0 0
    %5822 = vmatpush1.bf16.msra.mxu0 %v4446
    %5823 = vmatprep.subr.bf16.mxu0 0
    %5824 = vmatpush1.bf16.msra.mxu0 %v4447
    %5825 = vmatprep.subr.bf16.mxu0 0
    %5826 = vmatpush1.bf16.msra.mxu0 %v4448
    %5827 = vmatprep.subr.bf16.mxu0 0
    %5828 = vmatpush1.bf16.msra.mxu0 %v4449
    %5829 = vmatprep.subr.bf16.mxu0 0
    %5830 = vmatpush1.bf16.msra.mxu0 %v4450
    %5831 = vmatprep.subr.bf16.mxu0 0
    %5832 = vmatpush1.bf16.msra.mxu0 %v4451
    %5833 = vmatprep.subr.bf16.mxu0 0
    %5834 = vmatpush1.bf16.msra.mxu0 %v4452
    %5835 = vmatprep.subr.bf16.mxu0 0
    %5836 = vmatpush1.bf16.msra.mxu0 %v4453
    %5837 = vmatprep.subr.bf16.mxu0 0
    %5838 = vmatpush1.bf16.msra.mxu0 %v4454
    %5839 = vmatprep.mubr.bf16.mxu0 %v1393
    %5840 = vmatmul.mubr.bf16.gmra.mrb[0].mxu0 %v1391
    %v5841 = vpop.f32.mrb[0].mxu0
    %v5842 = vadd.f32 %v5802, %v5841
    %v5843 = vpop.f32.mrb[0].mxu0
    %v5844 = vpop.f32.mrb[0].mxu0
    %v5845 = vpop.f32.mrb[0].mxu0
    %5846 = vdwg.mxu0
    %5847 = vmatprep.subr.bf16.mxu0 0
    %5848 = vmatpush1.bf16.msra.mxu0 %v4455
    %5849 = vmatprep.subr.bf16.mxu0 0
    %5850 = vmatpush1.bf16.msra.mxu0 %v4456
    %5851 = vmatprep.subr.bf16.mxu0 0
    %5852 = vmatpush1.bf16.msra.mxu0 %v4457
    %5853 = vmatprep.subr.bf16.mxu0 0
    %5854 = vmatpush1.bf16.msra.mxu0 %v4458
    %5855 = vmatprep.subr.bf16.mxu0 0
    %5856 = vmatpush1.bf16.msra.mxu0 %v4459
    %5857 = vmatprep.subr.bf16.mxu0 0
    %5858 = vmatpush1.bf16.msra.mxu0 %v4460
    %5859 = vmatprep.subr.bf16.mxu0 0
    %5860 = vmatpush1.bf16.msra.mxu0 %v4461
    %5861 = vmatprep.subr.bf16.mxu0 0
    %5862 = vmatpush1.bf16.msra.mxu0 %v4462
    %5863 = vmatprep.subr.bf16.mxu0 0
    %5864 = vmatpush1.bf16.msra.mxu0 %v4463
    %5865 = vmatprep.subr.bf16.mxu0 0
    %5866 = vmatpush1.bf16.msra.mxu0 %v4464
    %5867 = vmatprep.subr.bf16.mxu0 0
    %5868 = vmatpush1.bf16.msra.mxu0 %v4465
    %5869 = vmatprep.subr.bf16.mxu0 0
    %5870 = vmatpush1.bf16.msra.mxu0 %v4466
    %5871 = vmatprep.subr.bf16.mxu0 0
    %5872 = vmatpush1.bf16.msra.mxu0 %v4467
    %5873 = vmatprep.subr.bf16.mxu0 0
    %5874 = vmatpush1.bf16.msra.mxu0 %v4468
    %5875 = vmatprep.subr.bf16.mxu0 0
    %5876 = vmatpush1.bf16.msra.mxu0 %v4469
    %5877 = vmatprep.subr.bf16.mxu0 0
    %5878 = vmatpush1.bf16.msra.mxu0 %v4470
    %5879 = vmatprep.mubr.bf16.mxu0 %v1390
    %5880 = vmatmul.mubr.bf16.gmra.mrb[0].mxu0 %v1376
    %v5881 = vpop.f32.mrb[0].mxu0
    %v5882 = vadd.f32 %v5842, %v5881
    %v5883 = vpop.f32.mrb[0].mxu0
    %v5884 = vpop.f32.mrb[0].mxu0
    %v5885 = vpop.f32.mrb[0].mxu0
    %5886 = vdwg.mxu0
    %5887 = vmatprep.subr.bf16.mxu0 0
    %5888 = vmatpush1.bf16.msra.mxu0 %v4471
    %5889 = vmatprep.subr.bf16.mxu0 0
    %5890 = vmatpush1.bf16.msra.mxu0 %v4472
    %5891 = vmatprep.subr.bf16.mxu0 0
    %5892 = vmatpush1.bf16.msra.mxu0 %v4473
    %5893 = vmatprep.subr.bf16.mxu0 0
    %5894 = vmatpush1.bf16.msra.mxu0 %v4474
    %5895 = vmatprep.subr.bf16.mxu0 0
    %5896 = vmatpush1.bf16.msra.mxu0 %v4475
    %5897 = vmatprep.subr.bf16.mxu0 0
    %5898 = vmatpush1.bf16.msra.mxu0 %v4476
    %5899 = vmatprep.subr.bf16.mxu0 0
    %5900 = vmatpush1.bf16.msra.mxu0 %v4477
    %5901 = vmatprep.subr.bf16.mxu0 0
    %5902 = vmatpush1.bf16.msra.mxu0 %v4478
    %5903 = vmatprep.subr.bf16.mxu0 0
    %5904 = vmatpush1.bf16.msra.mxu0 %v4479
    %5905 = vmatprep.subr.bf16.mxu0 0
    %5906 = vmatpush1.bf16.msra.mxu0 %v4480
    %5907 = vmatprep.subr.bf16.mxu0 0
    %5908 = vmatpush1.bf16.msra.mxu0 %v4481
    %5909 = vmatprep.subr.bf16.mxu0 0
    %5910 = vmatpush1.bf16.msra.mxu0 %v4482
    %5911 = vmatprep.subr.bf16.mxu0 0
    %5912 = vmatpush1.bf16.msra.mxu0 %v4483
    %5913 = vmatprep.subr.bf16.mxu0 0
    %5914 = vmatpush1.bf16.msra.mxu0 %v4484
    %5915 = vmatprep.subr.bf16.mxu0 0
    %5916 = vmatpush1.bf16.msra.mxu0 %v4485
    %5917 = vmatprep.subr.bf16.mxu0 0
    %5918 = vmatpush1.bf16.msra.mxu0 %v4486
    %5919 = vmatprep.mubr.bf16.mxu0 %v1394
    %5920 = vmatmul.mubr.bf16.gmra.mrb[0].mxu0 %v1392
    %v5921 = vpop.f32.mrb[0].mxu0
    %v5922 = vadd.f32 %v5882, %v5921
    %v5923 = vpop.f32.mrb[0].mxu0
    %v5924 = vpop.f32.mrb[0].mxu0
    %v5925 = vpop.f32.mrb[0].mxu0
    %5926 = vdwg.mxu0
    %5927 = vmatprep.subr.bf16.mxu0 0
    %5928 = vmatpush1.bf16.msra.mxu0 %v4487
    %5929 = vmatprep.subr.bf16.mxu0 0
    %5930 = vmatpush1.bf16.msra.mxu0 %v4488
    %5931 = vmatprep.subr.bf16.mxu0 0
    %5932 = vmatpush1.bf16.msra.mxu0 %v4489
    %5933 = vmatprep.subr.bf16.mxu0 0
    %5934 = vmatpush1.bf16.msra.mxu0 %v4490
    %5935 = vmatprep.subr.bf16.mxu0 0
    %5936 = vmatpush1.bf16.msra.mxu0 %v4491
    %5937 = vmatprep.subr.bf16.mxu0 0
    %5938 = vmatpush1.bf16.msra.mxu0 %v4492
    %5939 = vmatprep.subr.bf16.mxu0 0
    %5940 = vmatpush1.bf16.msra.mxu0 %v4493
    %5941 = vmatprep.subr.bf16.mxu0 0
    %5942 = vmatpush1.bf16.msra.mxu0 %v4494
    %5943 = vmatprep.subr.bf16.mxu0 0
    %5944 = vmatpush1.bf16.msra.mxu0 %v4495
    %5945 = vmatprep.subr.bf16.mxu0 0
    %5946 = vmatpush1.bf16.msra.mxu0 %v4496
    %5947 = vmatprep.subr.bf16.mxu0 0
    %5948 = vmatpush1.bf16.msra.mxu0 %v4497
    %5949 = vmatprep.subr.bf16.mxu0 0
    %5950 = vmatpush1.bf16.msra.mxu0 %v4498
    %5951 = vmatprep.subr.bf16.mxu0 0
    %5952 = vmatpush1.bf16.msra.mxu0 %v4499
    %5953 = vmatprep.subr.bf16.mxu0 0
    %5954 = vmatpush1.bf16.msra.mxu0 %v4500
    %5955 = vmatprep.subr.bf16.mxu0 0
    %5956 = vmatpush1.bf16.msra.mxu0 %v4501
    %5957 = vmatprep.subr.bf16.mxu0 0
    %5958 = vmatpush1.bf16.msra.mxu0 %v4502
    %5959 = vmatprep.mubr.bf16.mxu0 %v1432
    %5960 = vmatmul.mubr.bf16.gmra.mrb[0].mxu0 %v1418
    %v5961 = vpop.f32.mrb[0].mxu0
    %v5962 = vadd.f32 %v5922, %v5961
    %v5963 = vpop.f32.mrb[0].mxu0
    %v5964 = vpop.f32.mrb[0].mxu0
    %v5965 = vpop.f32.mrb[0].mxu0
    %5966 = vdwg.mxu0
    %5967 = vmatprep.subr.bf16.mxu0 0
    %5968 = vmatpush1.bf16.msra.mxu0 %v4503
    %5969 = vmatprep.subr.bf16.mxu0 0
    %5970 = vmatpush1.bf16.msra.mxu0 %v4504
    %5971 = vmatprep.subr.bf16.mxu0 0
    %5972 = vmatpush1.bf16.msra.mxu0 %v4505
    %5973 = vmatprep.subr.bf16.mxu0 0
    %5974 = vmatpush1.bf16.msra.mxu0 %v4506
    %5975 = vmatprep.subr.bf16.mxu0 0
    %5976 = vmatpush1.bf16.msra.mxu0 %v4507
    %5977 = vmatprep.subr.bf16.mxu0 0
    %5978 = vmatpush1.bf16.msra.mxu0 %v4508
    %5979 = vmatprep.subr.bf16.mxu0 0
    %5980 = vmatpush1.bf16.msra.mxu0 %v4509
    %5981 = vmatprep.subr.bf16.mxu0 0
    %5982 = vmatpush1.bf16.msra.mxu0 %v4510
    %5983 = vmatprep.subr.bf16.mxu0 0
    %5984 = vmatpush1.bf16.msra.mxu0 %v4511
    %5985 = vmatprep.subr.bf16.mxu0 0
    %5986 = vmatpush1.bf16.msra.mxu0 %v4512
    %5987 = vmatprep.subr.bf16.mxu0 0
    %5988 = vmatpush1.bf16.msra.mxu0 %v4513
    %5989 = vmatprep.subr.bf16.mxu0 0
    %5990 = vmatpush1.bf16.msra.mxu0 %v4514
    %5991 = vmatprep.subr.bf16.mxu0 0
    %5992 = vmatpush1.bf16.msra.mxu0 %v4515
    %5993 = vmatprep.subr.bf16.mxu0 0
    %5994 = vmatpush1.bf16.msra.mxu0 %v4516
    %5995 = vmatprep.subr.bf16.mxu0 0
    %5996 = vmatpush1.bf16.msra.mxu0 %v4517
    %5997 = vmatprep.subr.bf16.mxu0 0
    %5998 = vmatpush1.bf16.msra.mxu0 %v4518
    %5999 = vmatprep.mubr.bf16.mxu0 %v1442
    %6000 = vmatmul.mubr.bf16.gmra.mrb[0].mxu0 %v1440
    %v6001 = vpop.f32.mrb[0].mxu0
    %v6002 = vadd.f32 %v5962, %v6001
    %v6003 = vpop.f32.mrb[0].mxu0
    %v6004 = vpop.f32.mrb[0].mxu0
    %v6005 = vpop.f32.mrb[0].mxu0
    %6006 = vdwg.mxu0
    %6007 = vmatprep.subr.bf16.mxu0 0
    %6008 = vmatpush1.bf16.msra.mxu0 %v4519
    %6009 = vmatprep.subr.bf16.mxu0 0
    %6010 = vmatpush1.bf16.msra.mxu0 %v4520
    %6011 = vmatprep.subr.bf16.mxu0 0
    %6012 = vmatpush1.bf16.msra.mxu0 %v4521
    %6013 = vmatprep.subr.bf16.mxu0 0
    %6014 = vmatpush1.bf16.msra.mxu0 %v4522
    %6015 = vmatprep.subr.bf16.mxu0 0
    %6016 = vmatpush1.bf16.msra.mxu0 %v4523
    %6017 = vmatprep.subr.bf16.mxu0 0
    %6018 = vmatpush1.bf16.msra.mxu0 %v4524
    %6019 = vmatprep.subr.bf16.mxu0 0
    %6020 = vmatpush1.bf16.msra.mxu0 %v4525
    %6021 = vmatprep.subr.bf16.mxu0 0
    %6022 = vmatpush1.bf16.msra.mxu0 %v4526
    %6023 = vmatprep.subr.bf16.mxu0 0
    %6024 = vmatpush1.bf16.msra.mxu0 %v4527
    %6025 = vmatprep.subr.bf16.mxu0 0
    %6026 = vmatpush1.bf16.msra.mxu0 %v4528
    %6027 = vmatprep.subr.bf16.mxu0 0
    %6028 = vmatpush1.bf16.msra.mxu0 %v4529
    %6029 = vmatprep.subr.bf16.mxu0 0
    %6030 = vmatpush1.bf16.msra.mxu0 %v4530
    %6031 = vmatprep.subr.bf16.mxu0 0
    %6032 = vmatpush1.bf16.msra.mxu0 %v4531
    %6033 = vmatprep.subr.bf16.mxu0 0
    %6034 = vmatpush1.bf16.msra.mxu0 %v4532
    %6035 = vmatprep.subr.bf16.mxu0 0
    %6036 = vmatpush1.bf16.msra.mxu0 %v4533
    %6037 = vmatprep.subr.bf16.mxu0 0
    %6038 = vmatpush1.bf16.msra.mxu0 %v4534
    %6039 = vmatprep.mubr.bf16.mxu0 %v1439
    %6040 = vmatmul.mubr.bf16.gmra.mrb[0].mxu0 %v1425
    %v6041 = vpop.f32.mrb[0].mxu0
    %v6042 = vadd.f32 %v6002, %v6041
    %v6043 = vpop.f32.mrb[0].mxu0
    %v6044 = vpop.f32.mrb[0].mxu0
    %v6045 = vpop.f32.mrb[0].mxu0
    %6046 = vdwg.mxu0
    %6047 = vmatprep.subr.bf16.mxu0 0
    %6048 = vmatpush1.bf16.msra.mxu0 %v4535
    %6049 = vmatprep.subr.bf16.mxu0 0
    %6050 = vmatpush1.bf16.msra.mxu0 %v4536
    %6051 = vmatprep.subr.bf16.mxu0 0
    %6052 = vmatpush1.bf16.msra.mxu0 %v4537
    %6053 = vmatprep.subr.bf16.mxu0 0
    %6054 = vmatpush1.bf16.msra.mxu0 %v4538
    %6055 = vmatprep.subr.bf16.mxu0 0
    %6056 = vmatpush1.bf16.msra.mxu0 %v4539
    %6057 = vmatprep.subr.bf16.mxu0 0
    %6058 = vmatpush1.bf16.msra.mxu0 %v4540
    %6059 = vmatprep.subr.bf16.mxu0 0
    %6060 = vmatpush1.bf16.msra.mxu0 %v4541
    %6061 = vmatprep.subr.bf16.mxu0 0
    %6062 = vmatpush1.bf16.msra.mxu0 %v4542
    %6063 = vmatprep.subr.bf16.mxu0 0
    %6064 = vmatpush1.bf16.msra.mxu0 %v4543
    %6065 = vmatprep.subr.bf16.mxu0 0
    %6066 = vmatpush1.bf16.msra.mxu0 %v4544
    %6067 = vmatprep.subr.bf16.mxu0 0
    %6068 = vmatpush1.bf16.msra.mxu0 %v4545
    %6069 = vmatprep.subr.bf16.mxu0 0
    %6070 = vmatpush1.bf16.msra.mxu0 %v4546
    %6071 = vmatprep.subr.bf16.mxu0 0
    %6072 = vmatpush1.bf16.msra.mxu0 %v4547
    %6073 = vmatprep.subr.bf16.mxu0 0
    %6074 = vmatpush1.bf16.msra.mxu0 %v4548
    %6075 = vmatprep.subr.bf16.mxu0 0
    %6076 = vmatpush1.bf16.msra.mxu0 %v4549
    %6077 = vmatprep.subr.bf16.mxu0 0
    %6078 = vmatpush1.bf16.msra.mxu0 %v4550
    %6079 = vmatprep.mubr.bf16.mxu0 %v1443
    %6080 = vmatmul.mubr.bf16.gmra.mrb[0].mxu0 %v1441
    %v6081 = vpop.f32.mrb[0].mxu0
    %v6082 = vadd.f32 %v6042, %v6081
    %v6083 = vpop.f32.mrb[0].mxu0
    %v6084 = vpop.f32.mrb[0].mxu0
    %v6085 = vpop.f32.mrb[0].mxu0
    %6086 = vdwg.mxu0
    %6087 = vmatprep.subr.bf16.mxu0 0
    %6088 = vmatpush1.bf16.msra.mxu0 %v4551
    %6089 = vmatprep.subr.bf16.mxu0 0
    %6090 = vmatpush1.bf16.msra.mxu0 %v4552
    %6091 = vmatprep.subr.bf16.mxu0 0
    %6092 = vmatpush1.bf16.msra.mxu0 %v4553
    %6093 = vmatprep.subr.bf16.mxu0 0
    %6094 = vmatpush1.bf16.msra.mxu0 %v4554
    %6095 = vmatprep.subr.bf16.mxu0 0
    %6096 = vmatpush1.bf16.msra.mxu0 %v4555
    %6097 = vmatprep.subr.bf16.mxu0 0
    %6098 = vmatpush1.bf16.msra.mxu0 %v4556
    %6099 = vmatprep.subr.bf16.mxu0 0
    %6100 = vmatpush1.bf16.msra.mxu0 %v4557
    %6101 = vmatprep.subr.bf16.mxu0 0
    %6102 = vmatpush1.bf16.msra.mxu0 %v4558
    %6103 = vmatprep.subr.bf16.mxu0 0
    %6104 = vmatpush1.bf16.msra.mxu0 %v4559
    %6105 = vmatprep.subr.bf16.mxu0 0
    %6106 = vmatpush1.bf16.msra.mxu0 %v4560
    %6107 = vmatprep.subr.bf16.mxu0 0
    %6108 = vmatpush1.bf16.msra.mxu0 %v4561
    %6109 = vmatprep.subr.bf16.mxu0 0
    %6110 = vmatpush1.bf16.msra.mxu0 %v4562
    %6111 = vmatprep.subr.bf16.mxu0 0
    %6112 = vmatpush1.bf16.msra.mxu0 %v4563
    %6113 = vmatprep.subr.bf16.mxu0 0
    %6114 = vmatpush1.bf16.msra.mxu0 %v4564
    %6115 = vmatprep.subr.bf16.mxu0 0
    %6116 = vmatpush1.bf16.msra.mxu0 %v4565
    %6117 = vmatprep.subr.bf16.mxu0 0
    %6118 = vmatpush1.bf16.msra.mxu0 %v4566
    %6119 = vmatprep.mubr.bf16.mxu0 %v1481
    %6120 = vmatmul.mubr.bf16.gmra.mrb[0].mxu0 %v1467
    %v6121 = vpop.f32.mrb[0].mxu0
    %v6122 = vadd.f32 %v6082, %v6121
    %v6123 = vpop.f32.mrb[0].mxu0
    %v6124 = vpop.f32.mrb[0].mxu0
    %v6125 = vpop.f32.mrb[0].mxu0
    %6126 = vdwg.mxu0
    %6127 = vmatprep.subr.bf16.mxu0 0
    %6128 = vmatpush1.bf16.msra.mxu0 %v4567
    %6129 = vmatprep.subr.bf16.mxu0 0
    %6130 = vmatpush1.bf16.msra.mxu0 %v4568
    %6131 = vmatprep.subr.bf16.mxu0 0
    %6132 = vmatpush1.bf16.msra.mxu0 %v4569
    %6133 = vmatprep.subr.bf16.mxu0 0
    %6134 = vmatpush1.bf16.msra.mxu0 %v4570
    %6135 = vmatprep.subr.bf16.mxu0 0
    %6136 = vmatpush1.bf16.msra.mxu0 %v4571
    %6137 = vmatprep.subr.bf16.mxu0 0
    %6138 = vmatpush1.bf16.msra.mxu0 %v4572
    %6139 = vmatprep.subr.bf16.mxu0 0
    %6140 = vmatpush1.bf16.msra.mxu0 %v4573
    %6141 = vmatprep.subr.bf16.mxu0 0
    %6142 = vmatpush1.bf16.msra.mxu0 %v4574
    %6143 = vmatprep.subr.bf16.mxu0 0
    %6144 = vmatpush1.bf16.msra.mxu0 %v4575
    %6145 = vmatprep.subr.bf16.mxu0 0
    %6146 = vmatpush1.bf16.msra.mxu0 %v4576
    %6147 = vmatprep.subr.bf16.mxu0 0
    %6148 = vmatpush1.bf16.msra.mxu0 %v4577
    %6149 = vmatprep.subr.bf16.mxu0 0
    %6150 = vmatpush1.bf16.msra.mxu0 %v4578
    %6151 = vmatprep.subr.bf16.mxu0 0
    %6152 = vmatpush1.bf16.msra.mxu0 %v4579
    %6153 = vmatprep.subr.bf16.mxu0 0
    %6154 = vmatpush1.bf16.msra.mxu0 %v4580
    %6155 = vmatprep.subr.bf16.mxu0 0
    %6156 = vmatpush1.bf16.msra.mxu0 %v4581
    %6157 = vmatprep.subr.bf16.mxu0 0
    %6158 = vmatpush1.bf16.msra.mxu0 %v4582
    %6159 = vmatprep.mubr.bf16.mxu0 %v1491
    %6160 = vmatmul.mubr.bf16.gmra.mrb[0].mxu0 %v1489
    %v6161 = vpop.f32.mrb[0].mxu0
    %v6162 = vadd.f32 %v6122, %v6161
    %v6163 = vpop.f32.mrb[0].mxu0
    %v6164 = vpop.f32.mrb[0].mxu0
    %v6165 = vpop.f32.mrb[0].mxu0
    %6166 = vdwg.mxu0
    %6167 = vmatprep.subr.bf16.mxu0 0
    %6168 = vmatpush1.bf16.msra.mxu0 %v4583
    %6169 = vmatprep.subr.bf16.mxu0 0
    %6170 = vmatpush1.bf16.msra.mxu0 %v4584
    %6171 = vmatprep.subr.bf16.mxu0 0
    %6172 = vmatpush1.bf16.msra.mxu0 %v4585
    %6173 = vmatprep.subr.bf16.mxu0 0
    %6174 = vmatpush1.bf16.msra.mxu0 %v4586
    %6175 = vmatprep.subr.bf16.mxu0 0
    %6176 = vmatpush1.bf16.msra.mxu0 %v4587
    %6177 = vmatprep.subr.bf16.mxu0 0
    %6178 = vmatpush1.bf16.msra.mxu0 %v4588
    %6179 = vmatprep.subr.bf16.mxu0 0
    %6180 = vmatpush1.bf16.msra.mxu0 %v4589
    %6181 = vmatprep.subr.bf16.mxu0 0
    %6182 = vmatpush1.bf16.msra.mxu0 %v4590
    %6183 = vmatprep.subr.bf16.mxu0 0
    %6184 = vmatpush1.bf16.msra.mxu0 %v4591
    %6185 = vmatprep.subr.bf16.mxu0 0
    %6186 = vmatpush1.bf16.msra.mxu0 %v4592
    %6187 = vmatprep.subr.bf16.mxu0 0
    %6188 = vmatpush1.bf16.msra.mxu0 %v4593
    %6189 = vmatprep.subr.bf16.mxu0 0
    %6190 = vmatpush1.bf16.msra.mxu0 %v4594
    %6191 = vmatprep.subr.bf16.mxu0 0
    %6192 = vmatpush1.bf16.msra.mxu0 %v4595
    %6193 = vmatprep.subr.bf16.mxu0 0
    %6194 = vmatpush1.bf16.msra.mxu0 %v4596
    %6195 = vmatprep.subr.bf16.mxu0 0
    %6196 = vmatpush1.bf16.msra.mxu0 %v4597
    %6197 = vmatprep.subr.bf16.mxu0 0
    %6198 = vmatpush1.bf16.msra.mxu0 %v4598
    %6199 = vmatprep.mubr.bf16.mxu0 %v1488
    %6200 = vmatmul.mubr.bf16.gmra.mrb[0].mxu0 %v1474
    %v6201 = vpop.f32.mrb[0].mxu0
    %v6202 = vadd.f32 %v6162, %v6201
    %v6203 = vpop.f32.mrb[0].mxu0
    %v6204 = vpop.f32.mrb[0].mxu0
    %v6205 = vpop.f32.mrb[0].mxu0
    %6206 = vdwg.mxu0
    %6207 = vmatprep.subr.bf16.mxu0 0
    %6208 = vmatpush1.bf16.msra.mxu0 %v4599
    %6209 = vmatprep.subr.bf16.mxu0 0
    %6210 = vmatpush1.bf16.msra.mxu0 %v4600
    %6211 = vmatprep.subr.bf16.mxu0 0
    %6212 = vmatpush1.bf16.msra.mxu0 %v4601
    %6213 = vmatprep.subr.bf16.mxu0 0
    %6214 = vmatpush1.bf16.msra.mxu0 %v4602
    %6215 = vmatprep.subr.bf16.mxu0 0
    %6216 = vmatpush1.bf16.msra.mxu0 %v4603
    %6217 = vmatprep.subr.bf16.mxu0 0
    %6218 = vmatpush1.bf16.msra.mxu0 %v4604
    %6219 = vmatprep.subr.bf16.mxu0 0
    %6220 = vmatpush1.bf16.msra.mxu0 %v4605
    %6221 = vmatprep.subr.bf16.mxu0 0
    %6222 = vmatpush1.bf16.msra.mxu0 %v4606
    %6223 = vmatprep.subr.bf16.mxu0 0
    %6224 = vmatpush1.bf16.msra.mxu0 %v4607
    %6225 = vmatprep.subr.bf16.mxu0 0
    %6226 = vmatpush1.bf16.msra.mxu0 %v4608
    %6227 = vmatprep.subr.bf16.mxu0 0
    %6228 = vmatpush1.bf16.msra.mxu0 %v4609
    %6229 = vmatprep.subr.bf16.mxu0 0
    %6230 = vmatpush1.bf16.msra.mxu0 %v4610
    %6231 = vmatprep.subr.bf16.mxu0 0
    %6232 = vmatpush1.bf16.msra.mxu0 %v4611
    %6233 = vmatprep.subr.bf16.mxu0 0
    %6234 = vmatpush1.bf16.msra.mxu0 %v4612
    %6235 = vmatprep.subr.bf16.mxu0 0
    %6236 = vmatpush1.bf16.msra.mxu0 %v4613
    %6237 = vmatprep.subr.bf16.mxu0 0
    %6238 = vmatpush1.bf16.msra.mxu0 %v4614
    %6239 = vmatprep.mubr.bf16.mxu0 %v1492
    %6240 = vmatmul.mubr.bf16.gmra.mrb[0].mxu0 %v1490
    %v6241 = vpop.f32.mrb[0].mxu0
    %v6242 = vadd.f32 %v6202, %v6241
    %v6243 = vpop.f32.mrb[0].mxu0
    %v6244 = vpop.f32.mrb[0].mxu0
    %v6245 = vpop.f32.mrb[0].mxu0
    %6246 = vdwg.mxu0
    %6247 = vmatprep.subr.bf16.mxu0 0
    %6248 = vmatpush1.bf16.msra.mxu0 %v4615
    %6249 = vmatprep.subr.bf16.mxu0 0
    %6250 = vmatpush1.bf16.msra.mxu0 %v4616
    %6251 = vmatprep.subr.bf16.mxu0 0
    %6252 = vmatpush1.bf16.msra.mxu0 %v4617
    %6253 = vmatprep.subr.bf16.mxu0 0
    %6254 = vmatpush1.bf16.msra.mxu0 %v4618
    %6255 = vmatprep.subr.bf16.mxu0 0
    %6256 = vmatpush1.bf16.msra.mxu0 %v4619
    %6257 = vmatprep.subr.bf16.mxu0 0
    %6258 = vmatpush1.bf16.msra.mxu0 %v4620
    %6259 = vmatprep.subr.bf16.mxu0 0
    %6260 = vmatpush1.bf16.msra.mxu0 %v4621
    %6261 = vmatprep.subr.bf16.mxu0 0
    %6262 = vmatpush1.bf16.msra.mxu0 %v4622
    %6263 = vmatprep.subr.bf16.mxu0 0
    %6264 = vmatpush1.bf16.msra.mxu0 %v4623
    %6265 = vmatprep.subr.bf16.mxu0 0
    %6266 = vmatpush1.bf16.msra.mxu0 %v4624
    %6267 = vmatprep.subr.bf16.mxu0 0
    %6268 = vmatpush1.bf16.msra.mxu0 %v4625
    %6269 = vmatprep.subr.bf16.mxu0 0
    %6270 = vmatpush1.bf16.msra.mxu0 %v4626
    %6271 = vmatprep.subr.bf16.mxu0 0
    %6272 = vmatpush1.bf16.msra.mxu0 %v4627
    %6273 = vmatprep.subr.bf16.mxu0 0
    %6274 = vmatpush1.bf16.msra.mxu0 %v4628
    %6275 = vmatprep.subr.bf16.mxu0 0
    %6276 = vmatpush1.bf16.msra.mxu0 %v4629
    %6277 = vmatprep.subr.bf16.mxu0 0
    %6278 = vmatpush1.bf16.msra.mxu0 %v4630
    %6279 = vmatprep.mubr.bf16.mxu0 %v1530
    %6280 = vmatmul.mubr.bf16.gmra.mrb[0].mxu0 %v1516
    %v6281 = vpop.f32.mrb[0].mxu0
    %v6282 = vadd.f32 %v6242, %v6281
    %v6283 = vpop.f32.mrb[0].mxu0
    %v6284 = vpop.f32.mrb[0].mxu0
    %v6285 = vpop.f32.mrb[0].mxu0
    %6286 = vdwg.mxu0
    %6287 = vmatprep.subr.bf16.mxu0 0
    %6288 = vmatpush1.bf16.msra.mxu0 %v4631
    %6289 = vmatprep.subr.bf16.mxu0 0
    %6290 = vmatpush1.bf16.msra.mxu0 %v4632
    %6291 = vmatprep.subr.bf16.mxu0 0
    %6292 = vmatpush1.bf16.msra.mxu0 %v4633
    %6293 = vmatprep.subr.bf16.mxu0 0
    %6294 = vmatpush1.bf16.msra.mxu0 %v4634
    %6295 = vmatprep.subr.bf16.mxu0 0
    %6296 = vmatpush1.bf16.msra.mxu0 %v4635
    %6297 = vmatprep.subr.bf16.mxu0 0
    %6298 = vmatpush1.bf16.msra.mxu0 %v4636
    %6299 = vmatprep.subr.bf16.mxu0 0
    %6300 = vmatpush1.bf16.msra.mxu0 %v4637
    %6301 = vmatprep.subr.bf16.mxu0 0
    %6302 = vmatpush1.bf16.msra.mxu0 %v4638
    %6303 = vmatprep.subr.bf16.mxu0 0
    %6304 = vmatpush1.bf16.msra.mxu0 %v4639
    %6305 = vmatprep.subr.bf16.mxu0 0
    %6306 = vmatpush1.bf16.msra.mxu0 %v4640
    %6307 = vmatprep.subr.bf16.mxu0 0
    %6308 = vmatpush1.bf16.msra.mxu0 %v4641
    %6309 = vmatprep.subr.bf16.mxu0 0
    %6310 = vmatpush1.bf16.msra.mxu0 %v4642
    %6311 = vmatprep.subr.bf16.mxu0 0
    %6312 = vmatpush1.bf16.msra.mxu0 %v4643
    %6313 = vmatprep.subr.bf16.mxu0 0
    %6314 = vmatpush1.bf16.msra.mxu0 %v4644
    %6315 = vmatprep.subr.bf16.mxu0 0
    %6316 = vmatpush1.bf16.msra.mxu0 %v4645
    %6317 = vmatprep.subr.bf16.mxu0 0
    %6318 = vmatpush1.bf16.msra.mxu0 %v4646
    %6319 = vmatprep.mubr.bf16.mxu0 %v1540
    %6320 = vmatmul.mubr.bf16.gmra.mrb[0].mxu0 %v1538
    %v6321 = vpop.f32.mrb[0].mxu0
    %v6322 = vadd.f32 %v6282, %v6321
    %v6323 = vpop.f32.mrb[0].mxu0
    %v6324 = vpop.f32.mrb[0].mxu0
    %v6325 = vpop.f32.mrb[0].mxu0
    %6326 = vdwg.mxu0
    %6327 = vmatprep.subr.bf16.mxu0 0
    %6328 = vmatpush1.bf16.msra.mxu0 %v4647
    %6329 = vmatprep.subr.bf16.mxu0 0
    %6330 = vmatpush1.bf16.msra.mxu0 %v4648
    %6331 = vmatprep.subr.bf16.mxu0 0
    %6332 = vmatpush1.bf16.msra.mxu0 %v4649
    %6333 = vmatprep.subr.bf16.mxu0 0
    %6334 = vmatpush1.bf16.msra.mxu0 %v4650
    %6335 = vmatprep.subr.bf16.mxu0 0
    %6336 = vmatpush1.bf16.msra.mxu0 %v4651
    %6337 = vmatprep.subr.bf16.mxu0 0
    %6338 = vmatpush1.bf16.msra.mxu0 %v4652
    %6339 = vmatprep.subr.bf16.mxu0 0
    %6340 = vmatpush1.bf16.msra.mxu0 %v4653
    %6341 = vmatprep.subr.bf16.mxu0 0
    %6342 = vmatpush1.bf16.msra.mxu0 %v4654
    %6343 = vmatprep.subr.bf16.mxu0 0
    %6344 = vmatpush1.bf16.msra.mxu0 %v4655
    %6345 = vmatprep.subr.bf16.mxu0 0
    %6346 = vmatpush1.bf16.msra.mxu0 %v4656
    %6347 = vmatprep.subr.bf16.mxu0 0
    %6348 = vmatpush1.bf16.msra.mxu0 %v4657
    %6349 = vmatprep.subr.bf16.mxu0 0
    %6350 = vmatpush1.bf16.msra.mxu0 %v4658
    %6351 = vmatprep.subr.bf16.mxu0 0
    %6352 = vmatpush1.bf16.msra.mxu0 %v4659
    %6353 = vmatprep.subr.bf16.mxu0 0
    %6354 = vmatpush1.bf16.msra.mxu0 %v4660
    %6355 = vmatprep.subr.bf16.mxu0 0
    %6356 = vmatpush1.bf16.msra.mxu0 %v4661
    %6357 = vmatprep.subr.bf16.mxu0 0
    %6358 = vmatpush1.bf16.msra.mxu0 %v4662
    %6359 = vmatprep.mubr.bf16.mxu0 %v1537
    %6360 = vmatmul.mubr.bf16.gmra.mrb[0].mxu0 %v1523
    %v6361 = vpop.f32.mrb[0].mxu0
    %v6362 = vadd.f32 %v6322, %v6361
    %v6363 = vpop.f32.mrb[0].mxu0
    %v6364 = vpop.f32.mrb[0].mxu0
    %v6365 = vpop.f32.mrb[0].mxu0
    %6366 = vdwg.mxu0
    %6367 = vmatprep.subr.bf16.mxu0 0
    %6368 = vmatpush1.bf16.msra.mxu0 %v4663
    %6369 = vmatprep.subr.bf16.mxu0 0
    %6370 = vmatpush1.bf16.msra.mxu0 %v4664
    %6371 = vmatprep.subr.bf16.mxu0 0
    %6372 = vmatpush1.bf16.msra.mxu0 %v4665
    %6373 = vmatprep.subr.bf16.mxu0 0
    %6374 = vmatpush1.bf16.msra.mxu0 %v4666
    %6375 = vmatprep.subr.bf16.mxu0 0
    %6376 = vmatpush1.bf16.msra.mxu0 %v4667
    %6377 = vmatprep.subr.bf16.mxu0 0
    %6378 = vmatpush1.bf16.msra.mxu0 %v4668
    %6379 = vmatprep.subr.bf16.mxu0 0
    %6380 = vmatpush1.bf16.msra.mxu0 %v4669
    %6381 = vmatprep.subr.bf16.mxu0 0
    %6382 = vmatpush1.bf16.msra.mxu0 %v4670
    %6383 = vmatprep.subr.bf16.mxu0 0
    %6384 = vmatpush1.bf16.msra.mxu0 %v4671
    %6385 = vmatprep.subr.bf16.mxu0 0
    %6386 = vmatpush1.bf16.msra.mxu0 %v4672
    %6387 = vmatprep.subr.bf16.mxu0 0
    %6388 = vmatpush1.bf16.msra.mxu0 %v4673
    %6389 = vmatprep.subr.bf16.mxu0 0
    %6390 = vmatpush1.bf16.msra.mxu0 %v4674
    %6391 = vmatprep.subr.bf16.mxu0 0
    %6392 = vmatpush1.bf16.msra.mxu0 %v4675
    %6393 = vmatprep.subr.bf16.mxu0 0
    %6394 = vmatpush1.bf16.msra.mxu0 %v4676
    %6395 = vmatprep.subr.bf16.mxu0 0
    %6396 = vmatpush1.bf16.msra.mxu0 %v4677
    %6397 = vmatprep.subr.bf16.mxu0 0
    %6398 = vmatpush1.bf16.msra.mxu0 %v4678
    %6399 = vmatprep.mubr.bf16.mxu0 %v1541
    %6400 = vmatmul.mubr.bf16.gmra.mrb[0].mxu0 %v1539
    %v6401 = vpop.f32.mrb[0].mxu0
    %v6402 = vadd.f32 %v6362, %v6401
    %v6403 = vpop.f32.mrb[0].mxu0
    %v6404 = vpop.f32.mrb[0].mxu0
    %v6405 = vpop.f32.mrb[0].mxu0
    %6406 = vdwg.mxu0
    %6407 = vmatprep.subr.bf16.mxu0 0
    %6408 = vmatpush1.bf16.msra.mxu0 %v4679
    %6409 = vmatprep.subr.bf16.mxu0 0
    %6410 = vmatpush1.bf16.msra.mxu0 %v4680
    %6411 = vmatprep.subr.bf16.mxu0 0
    %6412 = vmatpush1.bf16.msra.mxu0 %v4681
    %6413 = vmatprep.subr.bf16.mxu0 0
    %6414 = vmatpush1.bf16.msra.mxu0 %v4682
    %6415 = vmatprep.subr.bf16.mxu0 0
    %6416 = vmatpush1.bf16.msra.mxu0 %v4683
    %6417 = vmatprep.subr.bf16.mxu0 0
    %6418 = vmatpush1.bf16.msra.mxu0 %v4684
    %6419 = vmatprep.subr.bf16.mxu0 0
    %6420 = vmatpush1.bf16.msra.mxu0 %v4685
    %6421 = vmatprep.subr.bf16.mxu0 0
    %6422 = vmatpush1.bf16.msra.mxu0 %v4686
    %6423 = vmatprep.subr.bf16.mxu0 0
    %6424 = vmatpush1.bf16.msra.mxu0 %v4687
    %6425 = vmatprep.subr.bf16.mxu0 0
    %6426 = vmatpush1.bf16.msra.mxu0 %v4688
    %6427 = vmatprep.subr.bf16.mxu0 0
    %6428 = vmatpush1.bf16.msra.mxu0 %v4689
    %6429 = vmatprep.subr.bf16.mxu0 0
    %6430 = vmatpush1.bf16.msra.mxu0 %v4690
    %6431 = vmatprep.subr.bf16.mxu0 0
    %6432 = vmatpush1.bf16.msra.mxu0 %v4691
    %6433 = vmatprep.subr.bf16.mxu0 0
    %6434 = vmatpush1.bf16.msra.mxu0 %v4692
    %6435 = vmatprep.subr.bf16.mxu0 0
    %6436 = vmatpush1.bf16.msra.mxu0 %v4693
    %6437 = vmatprep.subr.bf16.mxu0 0
    %6438 = vmatpush1.bf16.msra.mxu0 %v4694
    %6439 = vmatprep.mubr.bf16.mxu0 %v1579
    %6440 = vmatmul.mubr.bf16.gmra.mrb[0].mxu0 %v1565
    %v6441 = vpop.f32.mrb[0].mxu0
    %v6442 = vadd.f32 %v6402, %v6441
    %v6443 = vpop.f32.mrb[0].mxu0
    %v6444 = vpop.f32.mrb[0].mxu0
    %v6445 = vpop.f32.mrb[0].mxu0
    %6446 = vdwg.mxu0
    %6447 = vmatprep.subr.bf16.mxu0 0
    %6448 = vmatpush1.bf16.msra.mxu0 %v4695
    %6449 = vmatprep.subr.bf16.mxu0 0
    %6450 = vmatpush1.bf16.msra.mxu0 %v4696
    %6451 = vmatprep.subr.bf16.mxu0 0
    %6452 = vmatpush1.bf16.msra.mxu0 %v4697
    %6453 = vmatprep.subr.bf16.mxu0 0
    %6454 = vmatpush1.bf16.msra.mxu0 %v4698
    %6455 = vmatprep.subr.bf16.mxu0 0
    %6456 = vmatpush1.bf16.msra.mxu0 %v4699
    %6457 = vmatprep.subr.bf16.mxu0 0
    %6458 = vmatpush1.bf16.msra.mxu0 %v4700
    %6459 = vmatprep.subr.bf16.mxu0 0
    %6460 = vmatpush1.bf16.msra.mxu0 %v4701
    %6461 = vmatprep.subr.bf16.mxu0 0
    %6462 = vmatpush1.bf16.msra.mxu0 %v4702
    %6463 = vmatprep.subr.bf16.mxu0 0
    %6464 = vmatpush1.bf16.msra.mxu0 %v4703
    %6465 = vmatprep.subr.bf16.mxu0 0
    %6466 = vmatpush1.bf16.msra.mxu0 %v4704
    %6467 = vmatprep.subr.bf16.mxu0 0
    %6468 = vmatpush1.bf16.msra.mxu0 %v4705
    %6469 = vmatprep.subr.bf16.mxu0 0
    %6470 = vmatpush1.bf16.msra.mxu0 %v4706
    %6471 = vmatprep.subr.bf16.mxu0 0
    %6472 = vmatpush1.bf16.msra.mxu0 %v4707
    %6473 = vmatprep.subr.bf16.mxu0 0
    %6474 = vmatpush1.bf16.msra.mxu0 %v4708
    %6475 = vmatprep.subr.bf16.mxu0 0
    %6476 = vmatpush1.bf16.msra.mxu0 %v4709
    %6477 = vmatprep.subr.bf16.mxu0 0
    %6478 = vmatpush1.bf16.msra.mxu0 %v4710
    %6479 = vmatprep.mubr.bf16.mxu0 %v1589
    %6480 = vmatmul.mubr.bf16.gmra.mrb[0].mxu0 %v1587
    %v6481 = vpop.f32.mrb[0].mxu0
    %v6482 = vadd.f32 %v6442, %v6481
    %v6483 = vpop.f32.mrb[0].mxu0
    %v6484 = vpop.f32.mrb[0].mxu0
    %v6485 = vpop.f32.mrb[0].mxu0
    %6486 = vdwg.mxu0
    %6487 = vmatprep.subr.bf16.mxu0 0
    %6488 = vmatpush1.bf16.msra.mxu0 %v4711
    %6489 = vmatprep.subr.bf16.mxu0 0
    %6490 = vmatpush1.bf16.msra.mxu0 %v4712
    %6491 = vmatprep.subr.bf16.mxu0 0
    %6492 = vmatpush1.bf16.msra.mxu0 %v4713
    %6493 = vmatprep.subr.bf16.mxu0 0
    %6494 = vmatpush1.bf16.msra.mxu0 %v4714
    %6495 = vmatprep.subr.bf16.mxu0 0
    %6496 = vmatpush1.bf16.msra.mxu0 %v4715
    %6497 = vmatprep.subr.bf16.mxu0 0
    %6498 = vmatpush1.bf16.msra.mxu0 %v4716
    %6499 = vmatprep.subr.bf16.mxu0 0
    %6500 = vmatpush1.bf16.msra.mxu0 %v4717
    %6501 = vmatprep.subr.bf16.mxu0 0
    %6502 = vmatpush1.bf16.msra.mxu0 %v4718
    %6503 = vmatprep.subr.bf16.mxu0 0
    %6504 = vmatpush1.bf16.msra.mxu0 %v4719
    %6505 = vmatprep.subr.bf16.mxu0 0
    %6506 = vmatpush1.bf16.msra.mxu0 %v4720
    %6507 = vmatprep.subr.bf16.mxu0 0
    %6508 = vmatpush1.bf16.msra.mxu0 %v4721
    %6509 = vmatprep.subr.bf16.mxu0 0
    %6510 = vmatpush1.bf16.msra.mxu0 %v4722
    %6511 = vmatprep.subr.bf16.mxu0 0
    %6512 = vmatpush1.bf16.msra.mxu0 %v4723
    %6513 = vmatprep.subr.bf16.mxu0 0
    %6514 = vmatpush1.bf16.msra.mxu0 %v4724
    %6515 = vmatprep.subr.bf16.mxu0 0
    %6516 = vmatpush1.bf16.msra.mxu0 %v4725
    %6517 = vmatprep.subr.bf16.mxu0 0
    %6518 = vmatpush1.bf16.msra.mxu0 %v4726
    %6519 = vmatprep.mubr.bf16.mxu0 %v1586
    %6520 = vmatmul.mubr.bf16.gmra.mrb[0].mxu0 %v1572
    %v6521 = vpop.f32.mrb[0].mxu0
    %v6522 = vadd.f32 %v6482, %v6521
    %v6523 = vpop.f32.mrb[0].mxu0
    %v6524 = vpop.f32.mrb[0].mxu0
    %v6525 = vpop.f32.mrb[0].mxu0
    %6526 = vdwg.mxu0
    %6527 = vmatprep.subr.bf16.mxu0 0
    %6528 = vmatpush1.bf16.msra.mxu0 %v4727
    %6529 = vmatprep.subr.bf16.mxu0 0
    %6530 = vmatpush1.bf16.msra.mxu0 %v4728
    %6531 = vmatprep.subr.bf16.mxu0 0
    %6532 = vmatpush1.bf16.msra.mxu0 %v4729
    %6533 = vmatprep.subr.bf16.mxu0 0
    %6534 = vmatpush1.bf16.msra.mxu0 %v4730
    %6535 = vmatprep.subr.bf16.mxu0 0
    %6536 = vmatpush1.bf16.msra.mxu0 %v4731
    %6537 = vmatprep.subr.bf16.mxu0 0
    %6538 = vmatpush1.bf16.msra.mxu0 %v4732
    %6539 = vmatprep.subr.bf16.mxu0 0
    %6540 = vmatpush1.bf16.msra.mxu0 %v4733
    %6541 = vmatprep.subr.bf16.mxu0 0
    %6542 = vmatpush1.bf16.msra.mxu0 %v4734
    %6543 = vmatprep.subr.bf16.mxu0 0
    %6544 = vmatpush1.bf16.msra.mxu0 %v4735
    %6545 = vmatprep.subr.bf16.mxu0 0
    %6546 = vmatpush1.bf16.msra.mxu0 %v4736
    %6547 = vmatprep.subr.bf16.mxu0 0
    %6548 = vmatpush1.bf16.msra.mxu0 %v4737
    %6549 = vmatprep.subr.bf16.mxu0 0
    %6550 = vmatpush1.bf16.msra.mxu0 %v4738
    %6551 = vmatprep.subr.bf16.mxu0 0
    %6552 = vmatpush1.bf16.msra.mxu0 %v4739
    %6553 = vmatprep.subr.bf16.mxu0 0
    %6554 = vmatpush1.bf16.msra.mxu0 %v4740
    %6555 = vmatprep.subr.bf16.mxu0 0
    %6556 = vmatpush1.bf16.msra.mxu0 %v4741
    %6557 = vmatprep.subr.bf16.mxu0 0
    %6558 = vmatpush1.bf16.msra.mxu0 %v4742
    %6559 = vmatprep.mubr.bf16.mxu0 %v1590
    %6560 = vmatmul.mubr.bf16.gmra.mrb[0].mxu0 %v1588
    %v6561 = vpop.f32.mrb[0].mxu0
    %v6562 = vadd.f32 %v6522, %v6561
    %v6563 = vpop.f32.mrb[0].mxu0
    %v6564 = vpop.f32.mrb[0].mxu0
    %v6565 = vpop.f32.mrb[0].mxu0
    %6566 = vdwg.mxu0
    %6567 = vmatprep.subr.bf16.mxu0 0
    %6568 = vmatpush1.bf16.msra.mxu0 %v4743
    %6569 = vmatprep.subr.bf16.mxu0 0
    %6570 = vmatpush1.bf16.msra.mxu0 %v4744
    %6571 = vmatprep.subr.bf16.mxu0 0
    %6572 = vmatpush1.bf16.msra.mxu0 %v4745
    %6573 = vmatprep.subr.bf16.mxu0 0
    %6574 = vmatpush1.bf16.msra.mxu0 %v4746
    %6575 = vmatprep.subr.bf16.mxu0 0
    %6576 = vmatpush1.bf16.msra.mxu0 %v4747
    %6577 = vmatprep.subr.bf16.mxu0 0
    %6578 = vmatpush1.bf16.msra.mxu0 %v4748
    %6579 = vmatprep.subr.bf16.mxu0 0
    %6580 = vmatpush1.bf16.msra.mxu0 %v4749
    %6581 = vmatprep.subr.bf16.mxu0 0
    %6582 = vmatpush1.bf16.msra.mxu0 %v4750
    %6583 = vmatprep.subr.bf16.mxu0 0
    %6584 = vmatpush1.bf16.msra.mxu0 %v4751
    %6585 = vmatprep.subr.bf16.mxu0 0
    %6586 = vmatpush1.bf16.msra.mxu0 %v4752
    %6587 = vmatprep.subr.bf16.mxu0 0
    %6588 = vmatpush1.bf16.msra.mxu0 %v4753
    %6589 = vmatprep.subr.bf16.mxu0 0
    %6590 = vmatpush1.bf16.msra.mxu0 %v4754
    %6591 = vmatprep.subr.bf16.mxu0 0
    %6592 = vmatpush1.bf16.msra.mxu0 %v4755
    %6593 = vmatprep.subr.bf16.mxu0 0
    %6594 = vmatpush1.bf16.msra.mxu0 %v4756
    %6595 = vmatprep.subr.bf16.mxu0 0
    %6596 = vmatpush1.bf16.msra.mxu0 %v4757
    %6597 = vmatprep.subr.bf16.mxu0 0
    %6598 = vmatpush1.bf16.msra.mxu0 %v4758
    %6599 = vmatprep.mubr.bf16.mxu0 %v1628
    %6600 = vmatmul.mubr.bf16.gmra.mrb[0].mxu0 %v1614
    %v6601 = vpop.f32.mrb[0].mxu0
    %v6602 = vadd.f32 %v6562, %v6601
    %v6603 = vpop.f32.mrb[0].mxu0
    %v6604 = vpop.f32.mrb[0].mxu0
    %v6605 = vpop.f32.mrb[0].mxu0
    %6606 = vdwg.mxu0
    %6607 = vmatprep.subr.bf16.mxu0 0
    %6608 = vmatpush1.bf16.msra.mxu0 %v4759
    %6609 = vmatprep.subr.bf16.mxu0 0
    %6610 = vmatpush1.bf16.msra.mxu0 %v4760
    %6611 = vmatprep.subr.bf16.mxu0 0
    %6612 = vmatpush1.bf16.msra.mxu0 %v4761
    %6613 = vmatprep.subr.bf16.mxu0 0
    %6614 = vmatpush1.bf16.msra.mxu0 %v4762
    %6615 = vmatprep.subr.bf16.mxu0 0
    %6616 = vmatpush1.bf16.msra.mxu0 %v4763
    %6617 = vmatprep.subr.bf16.mxu0 0
    %6618 = vmatpush1.bf16.msra.mxu0 %v4764
    %6619 = vmatprep.subr.bf16.mxu0 0
    %6620 = vmatpush1.bf16.msra.mxu0 %v4765
    %6621 = vmatprep.subr.bf16.mxu0 0
    %6622 = vmatpush1.bf16.msra.mxu0 %v4766
    %6623 = vmatprep.subr.bf16.mxu0 0
    %6624 = vmatpush1.bf16.msra.mxu0 %v4767
    %6625 = vmatprep.subr.bf16.mxu0 0
    %6626 = vmatpush1.bf16.msra.mxu0 %v4768
    %6627 = vmatprep.subr.bf16.mxu0 0
    %6628 = vmatpush1.bf16.msra.mxu0 %v4769
    %6629 = vmatprep.subr.bf16.mxu0 0
    %6630 = vmatpush1.bf16.msra.mxu0 %v4770
    %6631 = vmatprep.subr.bf16.mxu0 0
    %6632 = vmatpush1.bf16.msra.mxu0 %v4771
    %6633 = vmatprep.subr.bf16.mxu0 0
    %6634 = vmatpush1.bf16.msra.mxu0 %v4772
    %6635 = vmatprep.subr.bf16.mxu0 0
    %6636 = vmatpush1.bf16.msra.mxu0 %v4773
    %6637 = vmatprep.subr.bf16.mxu0 0
    %6638 = vmatpush1.bf16.msra.mxu0 %v4774
    %6639 = vmatprep.mubr.bf16.mxu0 %v1638
    %6640 = vmatmul.mubr.bf16.gmra.mrb[0].mxu0 %v1636
    %v6641 = vpop.f32.mrb[0].mxu0
    %v6642 = vadd.f32 %v6602, %v6641
    %v6643 = vpop.f32.mrb[0].mxu0
    %v6644 = vpop.f32.mrb[0].mxu0
    %v6645 = vpop.f32.mrb[0].mxu0
    %6646 = vdwg.mxu0
    %6647 = vmatprep.subr.bf16.mxu0 0
    %6648 = vmatpush1.bf16.msra.mxu0 %v4775
    %6649 = vmatprep.subr.bf16.mxu0 0
    %6650 = vmatpush1.bf16.msra.mxu0 %v4776
    %6651 = vmatprep.subr.bf16.mxu0 0
    %6652 = vmatpush1.bf16.msra.mxu0 %v4777
    %6653 = vmatprep.subr.bf16.mxu0 0
    %6654 = vmatpush1.bf16.msra.mxu0 %v4778
    %6655 = vmatprep.subr.bf16.mxu0 0
    %6656 = vmatpush1.bf16.msra.mxu0 %v4779
    %6657 = vmatprep.subr.bf16.mxu0 0
    %6658 = vmatpush1.bf16.msra.mxu0 %v4780
    %6659 = vmatprep.subr.bf16.mxu0 0
    %6660 = vmatpush1.bf16.msra.mxu0 %v4781
    %6661 = vmatprep.subr.bf16.mxu0 0
    %6662 = vmatpush1.bf16.msra.mxu0 %v4782
    %6663 = vmatprep.subr.bf16.mxu0 0
    %6664 = vmatpush1.bf16.msra.mxu0 %v4783
    %6665 = vmatprep.subr.bf16.mxu0 0
    %6666 = vmatpush1.bf16.msra.mxu0 %v4784
    %6667 = vmatprep.subr.bf16.mxu0 0
    %6668 = vmatpush1.bf16.msra.mxu0 %v4785
    %6669 = vmatprep.subr.bf16.mxu0 0
    %6670 = vmatpush1.bf16.msra.mxu0 %v4786
    %6671 = vmatprep.subr.bf16.mxu0 0
    %6672 = vmatpush1.bf16.msra.mxu0 %v4787
    %6673 = vmatprep.subr.bf16.mxu0 0
    %6674 = vmatpush1.bf16.msra.mxu0 %v4788
    %6675 = vmatprep.subr.bf16.mxu0 0
    %6676 = vmatpush1.bf16.msra.mxu0 %v4789
    %6677 = vmatprep.subr.bf16.mxu0 0
    %6678 = vmatpush1.bf16.msra.mxu0 %v4790
    %6679 = vmatprep.mubr.bf16.mxu0 %v1635
    %6680 = vmatmul.mubr.bf16.gmra.mrb[0].mxu0 %v1621
    %v6681 = vpop.f32.mrb[0].mxu0
    %v6682 = vadd.f32 %v6642, %v6681
    %v6683 = vpop.f32.mrb[0].mxu0
    %v6684 = vpop.f32.mrb[0].mxu0
    %v6685 = vpop.f32.mrb[0].mxu0
    %6686 = vdwg.mxu0
    %6687 = vmatprep.subr.bf16.mxu0 0
    %6688 = vmatpush1.bf16.msra.mxu0 %v4791
    %6689 = vmatprep.subr.bf16.mxu0 0
    %6690 = vmatpush1.bf16.msra.mxu0 %v4792
    %6691 = vmatprep.subr.bf16.mxu0 0
    %6692 = vmatpush1.bf16.msra.mxu0 %v4793
    %6693 = vmatprep.subr.bf16.mxu0 0
    %6694 = vmatpush1.bf16.msra.mxu0 %v4794
    %6695 = vmatprep.subr.bf16.mxu0 0
    %6696 = vmatpush1.bf16.msra.mxu0 %v4795
    %6697 = vmatprep.subr.bf16.mxu0 0
    %6698 = vmatpush1.bf16.msra.mxu0 %v4796
    %6699 = vmatprep.subr.bf16.mxu0 0
    %6700 = vmatpush1.bf16.msra.mxu0 %v4797
    %6701 = vmatprep.subr.bf16.mxu0 0
    %6702 = vmatpush1.bf16.msra.mxu0 %v4798
    %6703 = vmatprep.subr.bf16.mxu0 0
    %6704 = vmatpush1.bf16.msra.mxu0 %v4799
    %6705 = vmatprep.subr.bf16.mxu0 0
    %6706 = vmatpush1.bf16.msra.mxu0 %v4800
    %6707 = vmatprep.subr.bf16.mxu0 0
    %6708 = vmatpush1.bf16.msra.mxu0 %v4801
    %6709 = vmatprep.subr.bf16.mxu0 0
    %6710 = vmatpush1.bf16.msra.mxu0 %v4802
    %6711 = vmatprep.subr.bf16.mxu0 0
    %6712 = vmatpush1.bf16.msra.mxu0 %v4803
    %6713 = vmatprep.subr.bf16.mxu0 0
    %6714 = vmatpush1.bf16.msra.mxu0 %v4804
    %6715 = vmatprep.subr.bf16.mxu0 0
    %6716 = vmatpush1.bf16.msra.mxu0 %v4805
    %6717 = vmatprep.subr.bf16.mxu0 0
    %6718 = vmatpush1.bf16.msra.mxu0 %v4806
    %6719 = vmatprep.mubr.bf16.mxu0 %v1639
    %6720 = vmatmul.mubr.bf16.gmra.mrb[0].mxu0 %v1637
    %v6721 = vpop.f32.mrb[0].mxu0
    %v6722 = vadd.f32 %v6682, %v6721
    %v6723 = vpop.f32.mrb[0].mxu0
    %v6724 = vpop.f32.mrb[0].mxu0
    %v6725 = vpop.f32.mrb[0].mxu0
    %6726 = vdwg.mxu0
    %6727 = vmatprep.subr.bf16.mxu0 0
    %6728 = vmatpush1.bf16.msra.mxu0 %v4807
    %6729 = vmatprep.subr.bf16.mxu0 0
    %6730 = vmatpush1.bf16.msra.mxu0 %v4808
    %6731 = vmatprep.subr.bf16.mxu0 0
    %6732 = vmatpush1.bf16.msra.mxu0 %v4809
    %6733 = vmatprep.subr.bf16.mxu0 0
    %6734 = vmatpush1.bf16.msra.mxu0 %v4810
    %6735 = vmatprep.subr.bf16.mxu0 0
    %6736 = vmatpush1.bf16.msra.mxu0 %v4811
    %6737 = vmatprep.subr.bf16.mxu0 0
    %6738 = vmatpush1.bf16.msra.mxu0 %v4812
    %6739 = vmatprep.subr.bf16.mxu0 0
    %6740 = vmatpush1.bf16.msra.mxu0 %v4813
    %6741 = vmatprep.subr.bf16.mxu0 0
    %6742 = vmatpush1.bf16.msra.mxu0 %v4814
    %6743 = vmatprep.subr.bf16.mxu0 0
    %6744 = vmatpush1.bf16.msra.mxu0 %v4815
    %6745 = vmatprep.subr.bf16.mxu0 0
    %6746 = vmatpush1.bf16.msra.mxu0 %v4816
    %6747 = vmatprep.subr.bf16.mxu0 0
    %6748 = vmatpush1.bf16.msra.mxu0 %v4817
    %6749 = vmatprep.subr.bf16.mxu0 0
    %6750 = vmatpush1.bf16.msra.mxu0 %v4818
    %6751 = vmatprep.subr.bf16.mxu0 0
    %6752 = vmatpush1.bf16.msra.mxu0 %v4819
    %6753 = vmatprep.subr.bf16.mxu0 0
    %6754 = vmatpush1.bf16.msra.mxu0 %v4820
    %6755 = vmatprep.subr.bf16.mxu0 0
    %6756 = vmatpush1.bf16.msra.mxu0 %v4821
    %6757 = vmatprep.subr.bf16.mxu0 0
    %6758 = vmatpush1.bf16.msra.mxu0 %v4822
    %6759 = vmatprep.mubr.bf16.mxu0 %v1677
    %6760 = vmatmul.mubr.bf16.gmra.mrb[0].mxu0 %v1663
    %v6761 = vpop.f32.mrb[0].mxu0
    %v6762 = vadd.f32 %v6722, %v6761
    %v6763 = vpop.f32.mrb[0].mxu0
    %v6764 = vpop.f32.mrb[0].mxu0
    %v6765 = vpop.f32.mrb[0].mxu0
    %6766 = vdwg.mxu0
    %6767 = vmatprep.subr.bf16.mxu0 0
    %6768 = vmatpush1.bf16.msra.mxu0 %v4823
    %6769 = vmatprep.subr.bf16.mxu0 0
    %6770 = vmatpush1.bf16.msra.mxu0 %v4824
    %6771 = vmatprep.subr.bf16.mxu0 0
    %6772 = vmatpush1.bf16.msra.mxu0 %v4825
    %6773 = vmatprep.subr.bf16.mxu0 0
    %6774 = vmatpush1.bf16.msra.mxu0 %v4826
    %6775 = vmatprep.subr.bf16.mxu0 0
    %6776 = vmatpush1.bf16.msra.mxu0 %v4827
    %6777 = vmatprep.subr.bf16.mxu0 0
    %6778 = vmatpush1.bf16.msra.mxu0 %v4828
    %6779 = vmatprep.subr.bf16.mxu0 0
    %6780 = vmatpush1.bf16.msra.mxu0 %v4829
    %6781 = vmatprep.subr.bf16.mxu0 0
    %6782 = vmatpush1.bf16.msra.mxu0 %v4830
    %6783 = vmatprep.subr.bf16.mxu0 0
    %6784 = vmatpush1.bf16.msra.mxu0 %v4831
    %6785 = vmatprep.subr.bf16.mxu0 0
    %6786 = vmatpush1.bf16.msra.mxu0 %v4832
    %6787 = vmatprep.subr.bf16.mxu0 0
    %6788 = vmatpush1.bf16.msra.mxu0 %v4833
    %6789 = vmatprep.subr.bf16.mxu0 0
    %6790 = vmatpush1.bf16.msra.mxu0 %v4834
    %6791 = vmatprep.subr.bf16.mxu0 0
    %6792 = vmatpush1.bf16.msra.mxu0 %v4835
    %6793 = vmatprep.subr.bf16.mxu0 0
    %6794 = vmatpush1.bf16.msra.mxu0 %v4836
    %6795 = vmatprep.subr.bf16.mxu0 0
    %6796 = vmatpush1.bf16.msra.mxu0 %v4837
    %6797 = vmatprep.subr.bf16.mxu0 0
    %6798 = vmatpush1.bf16.msra.mxu0 %v4838
    %6799 = vmatprep.mubr.bf16.mxu0 %v1687
    %6800 = vmatmul.mubr.bf16.gmra.mrb[0].mxu0 %v1685
    %v6801 = vpop.f32.mrb[0].mxu0
    %v6802 = vadd.f32 %v6762, %v6801
    %v6803 = vpop.f32.mrb[0].mxu0
    %v6804 = vpop.f32.mrb[0].mxu0
    %v6805 = vpop.f32.mrb[0].mxu0
    %6806 = vdwg.mxu0
    %6807 = vmatprep.subr.bf16.mxu0 0
    %6808 = vmatpush1.bf16.msra.mxu0 %v4839
    %6809 = vmatprep.subr.bf16.mxu0 0
    %6810 = vmatpush1.bf16.msra.mxu0 %v4840
    %6811 = vmatprep.subr.bf16.mxu0 0
    %6812 = vmatpush1.bf16.msra.mxu0 %v4841
    %6813 = vmatprep.subr.bf16.mxu0 0
    %6814 = vmatpush1.bf16.msra.mxu0 %v4842
    %6815 = vmatprep.subr.bf16.mxu0 0
    %6816 = vmatpush1.bf16.msra.mxu0 %v4843
    %6817 = vmatprep.subr.bf16.mxu0 0
    %6818 = vmatpush1.bf16.msra.mxu0 %v4844
    %6819 = vmatprep.subr.bf16.mxu0 0
    %6820 = vmatpush1.bf16.msra.mxu0 %v4845
    %6821 = vmatprep.subr.bf16.mxu0 0
    %6822 = vmatpush1.bf16.msra.mxu0 %v4846
    %6823 = vmatprep.subr.bf16.mxu0 0
    %6824 = vmatpush1.bf16.msra.mxu0 %v4847
    %6825 = vmatprep.subr.bf16.mxu0 0
    %6826 = vmatpush1.bf16.msra.mxu0 %v4848
    %6827 = vmatprep.subr.bf16.mxu0 0
    %6828 = vmatpush1.bf16.msra.mxu0 %v4849
    %6829 = vmatprep.subr.bf16.mxu0 0
    %6830 = vmatpush1.bf16.msra.mxu0 %v4850
    %6831 = vmatprep.subr.bf16.mxu0 0
    %6832 = vmatpush1.bf16.msra.mxu0 %v4851
    %6833 = vmatprep.subr.bf16.mxu0 0
    %6834 = vmatpush1.bf16.msra.mxu0 %v4852
    %6835 = vmatprep.subr.bf16.mxu0 0
    %6836 = vmatpush1.bf16.msra.mxu0 %v4853
    %6837 = vmatprep.subr.bf16.mxu0 0
    %6838 = vmatpush1.bf16.msra.mxu0 %v4854
    %6839 = vmatprep.mubr.bf16.mxu0 %v1684
    %6840 = vmatmul.mubr.bf16.gmra.mrb[0].mxu0 %v1670
    %v6841 = vpop.f32.mrb[0].mxu0
    %v6842 = vadd.f32 %v6802, %v6841
    %v6843 = vpop.f32.mrb[0].mxu0
    %v6844 = vpop.f32.mrb[0].mxu0
    %v6845 = vpop.f32.mrb[0].mxu0
    %6846 = vdwg.mxu0
    %6847 = vmatprep.subr.bf16.mxu0 0
    %6848 = vmatpush1.bf16.msra.mxu0 %v4855
    %6849 = vmatprep.subr.bf16.mxu0 0
    %6850 = vmatpush1.bf16.msra.mxu0 %v4856
    %6851 = vmatprep.subr.bf16.mxu0 0
    %6852 = vmatpush1.bf16.msra.mxu0 %v4857
    %6853 = vmatprep.subr.bf16.mxu0 0
    %6854 = vmatpush1.bf16.msra.mxu0 %v4858
    %6855 = vmatprep.subr.bf16.mxu0 0
    %6856 = vmatpush1.bf16.msra.mxu0 %v4859
    %6857 = vmatprep.subr.bf16.mxu0 0
    %6858 = vmatpush1.bf16.msra.mxu0 %v4860
    %6859 = vmatprep.subr.bf16.mxu0 0
    %6860 = vmatpush1.bf16.msra.mxu0 %v4861
    %6861 = vmatprep.subr.bf16.mxu0 0
    %6862 = vmatpush1.bf16.msra.mxu0 %v4862
    %6863 = vmatprep.subr.bf16.mxu0 0
    %6864 = vmatpush1.bf16.msra.mxu0 %v4863
    %6865 = vmatprep.subr.bf16.mxu0 0
    %6866 = vmatpush1.bf16.msra.mxu0 %v4864
    %6867 = vmatprep.subr.bf16.mxu0 0
    %6868 = vmatpush1.bf16.msra.mxu0 %v4865
    %6869 = vmatprep.subr.bf16.mxu0 0
    %6870 = vmatpush1.bf16.msra.mxu0 %v4866
    %6871 = vmatprep.subr.bf16.mxu0 0
    %6872 = vmatpush1.bf16.msra.mxu0 %v4867
    %6873 = vmatprep.subr.bf16.mxu0 0
    %6874 = vmatpush1.bf16.msra.mxu0 %v4868
    %6875 = vmatprep.subr.bf16.mxu0 0
    %6876 = vmatpush1.bf16.msra.mxu0 %v4869
    %6877 = vmatprep.subr.bf16.mxu0 0
    %6878 = vmatpush1.bf16.msra.mxu0 %v4870
    %6879 = vmatprep.mubr.bf16.mxu0 %v1688
    %6880 = vmatmul.mubr.bf16.gmra.mrb[0].mxu0 %v1686
    %v6881 = vpop.f32.mrb[0].mxu0
    %v6882 = vadd.f32 %v6842, %v6881
    %v6883 = vpop.f32.mrb[0].mxu0
    %v6884 = vpop.f32.mrb[0].mxu0
    %v6885 = vpop.f32.mrb[0].mxu0
    %6886 = vdwg.mxu0
    %6887 = vmatprep.subr.bf16.mxu0 0
    %6888 = vmatpush1.bf16.msra.mxu0 %v4871
    %6889 = vmatprep.subr.bf16.mxu0 0
    %6890 = vmatpush1.bf16.msra.mxu0 %v4872
    %6891 = vmatprep.subr.bf16.mxu0 0
    %6892 = vmatpush1.bf16.msra.mxu0 %v4873
    %6893 = vmatprep.subr.bf16.mxu0 0
    %6894 = vmatpush1.bf16.msra.mxu0 %v4874
    %6895 = vmatprep.subr.bf16.mxu0 0
    %6896 = vmatpush1.bf16.msra.mxu0 %v4875
    %6897 = vmatprep.subr.bf16.mxu0 0
    %6898 = vmatpush1.bf16.msra.mxu0 %v4876
    %6899 = vmatprep.subr.bf16.mxu0 0
    %6900 = vmatpush1.bf16.msra.mxu0 %v4877
    %6901 = vmatprep.subr.bf16.mxu0 0
    %6902 = vmatpush1.bf16.msra.mxu0 %v4878
    %6903 = vmatprep.subr.bf16.mxu0 0
    %6904 = vmatpush1.bf16.msra.mxu0 %v4879
    %6905 = vmatprep.subr.bf16.mxu0 0
    %6906 = vmatpush1.bf16.msra.mxu0 %v4880
    %6907 = vmatprep.subr.bf16.mxu0 0
    %6908 = vmatpush1.bf16.msra.mxu0 %v4881
    %6909 = vmatprep.subr.bf16.mxu0 0
    %6910 = vmatpush1.bf16.msra.mxu0 %v4882
    %6911 = vmatprep.subr.bf16.mxu0 0
    %6912 = vmatpush1.bf16.msra.mxu0 %v4883
    %6913 = vmatprep.subr.bf16.mxu0 0
    %6914 = vmatpush1.bf16.msra.mxu0 %v4884
    %6915 = vmatprep.subr.bf16.mxu0 0
    %6916 = vmatpush1.bf16.msra.mxu0 %v4885
    %6917 = vmatprep.subr.bf16.mxu0 0
    %6918 = vmatpush1.bf16.msra.mxu0 %v4886
    %6919 = vmatprep.mubr.bf16.mxu0 %v1726
    %6920 = vmatmul.mubr.bf16.gmra.mrb[0].mxu0 %v1712
    %v6921 = vpop.f32.mrb[0].mxu0
    %v6922 = vadd.f32 %v6882, %v6921
    %v6923 = vpop.f32.mrb[0].mxu0
    %v6924 = vpop.f32.mrb[0].mxu0
    %v6925 = vpop.f32.mrb[0].mxu0
    %6926 = vdwg.mxu0
    %6927 = vmatprep.subr.bf16.mxu0 0
    %6928 = vmatpush1.bf16.msra.mxu0 %v4887
    %6929 = vmatprep.subr.bf16.mxu0 0
    %6930 = vmatpush1.bf16.msra.mxu0 %v4888
    %6931 = vmatprep.subr.bf16.mxu0 0
    %6932 = vmatpush1.bf16.msra.mxu0 %v4889
    %6933 = vmatprep.subr.bf16.mxu0 0
    %6934 = vmatpush1.bf16.msra.mxu0 %v4890
    %6935 = vmatprep.subr.bf16.mxu0 0
    %6936 = vmatpush1.bf16.msra.mxu0 %v4891
    %6937 = vmatprep.subr.bf16.mxu0 0
    %6938 = vmatpush1.bf16.msra.mxu0 %v4892
    %6939 = vmatprep.subr.bf16.mxu0 0
    %6940 = vmatpush1.bf16.msra.mxu0 %v4893
    %6941 = vmatprep.subr.bf16.mxu0 0
    %6942 = vmatpush1.bf16.msra.mxu0 %v4894
    %6943 = vmatprep.subr.bf16.mxu0 0
    %6944 = vmatpush1.bf16.msra.mxu0 %v4895
    %6945 = vmatprep.subr.bf16.mxu0 0
    %6946 = vmatpush1.bf16.msra.mxu0 %v4896
    %6947 = vmatprep.subr.bf16.mxu0 0
    %6948 = vmatpush1.bf16.msra.mxu0 %v4897
    %6949 = vmatprep.subr.bf16.mxu0 0
    %6950 = vmatpush1.bf16.msra.mxu0 %v4898
    %6951 = vmatprep.subr.bf16.mxu0 0
    %6952 = vmatpush1.bf16.msra.mxu0 %v4899
    %6953 = vmatprep.subr.bf16.mxu0 0
    %6954 = vmatpush1.bf16.msra.mxu0 %v4900
    %6955 = vmatprep.subr.bf16.mxu0 0
    %6956 = vmatpush1.bf16.msra.mxu0 %v4901
    %6957 = vmatprep.subr.bf16.mxu0 0
    %6958 = vmatpush1.bf16.msra.mxu0 %v4902
    %6959 = vmatprep.mubr.bf16.mxu0 %v1736
    %6960 = vmatmul.mubr.bf16.gmra.mrb[0].mxu0 %v1734
    %v6961 = vpop.f32.mrb[0].mxu0
    %v6962 = vadd.f32 %v6922, %v6961
    %v6963 = vpop.f32.mrb[0].mxu0
    %v6964 = vpop.f32.mrb[0].mxu0
    %v6965 = vpop.f32.mrb[0].mxu0
    %6966 = vdwg.mxu0
    %6967 = vmatprep.subr.bf16.mxu0 0
    %6968 = vmatpush1.bf16.msra.mxu0 %v4903
    %6969 = vmatprep.subr.bf16.mxu0 0
    %6970 = vmatpush1.bf16.msra.mxu0 %v4904
    %6971 = vmatprep.subr.bf16.mxu0 0
    %6972 = vmatpush1.bf16.msra.mxu0 %v4905
    %6973 = vmatprep.subr.bf16.mxu0 0
    %6974 = vmatpush1.bf16.msra.mxu0 %v4906
    %6975 = vmatprep.subr.bf16.mxu0 0
    %6976 = vmatpush1.bf16.msra.mxu0 %v4907
    %6977 = vmatprep.subr.bf16.mxu0 0
    %6978 = vmatpush1.bf16.msra.mxu0 %v4908
    %6979 = vmatprep.subr.bf16.mxu0 0
    %6980 = vmatpush1.bf16.msra.mxu0 %v4909
    %6981 = vmatprep.subr.bf16.mxu0 0
    %6982 = vmatpush1.bf16.msra.mxu0 %v4910
    %6983 = vmatprep.subr.bf16.mxu0 0
    %6984 = vmatpush1.bf16.msra.mxu0 %v4911
    %6985 = vmatprep.subr.bf16.mxu0 0
    %6986 = vmatpush1.bf16.msra.mxu0 %v4912
    %6987 = vmatprep.subr.bf16.mxu0 0
    %6988 = vmatpush1.bf16.msra.mxu0 %v4913
    %6989 = vmatprep.subr.bf16.mxu0 0
    %6990 = vmatpush1.bf16.msra.mxu0 %v4914
    %6991 = vmatprep.subr.bf16.mxu0 0
    %6992 = vmatpush1.bf16.msra.mxu0 %v4915
    %6993 = vmatprep.subr.bf16.mxu0 0
    %6994 = vmatpush1.bf16.msra.mxu0 %v4916
    %6995 = vmatprep.subr.bf16.mxu0 0
    %6996 = vmatpush1.bf16.msra.mxu0 %v4917
    %6997 = vmatprep.subr.bf16.mxu0 0
    %6998 = vmatpush1.bf16.msra.mxu0 %v4918
    %6999 = vmatprep.mubr.bf16.mxu0 %v1733
    %7000 = vmatmul.mubr.bf16.gmra.mrb[0].mxu0 %v1719
    %v7001 = vpop.f32.mrb[0].mxu0
    %v7002 = vadd.f32 %v6962, %v7001
    %v7003 = vpop.f32.mrb[0].mxu0
    %v7004 = vpop.f32.mrb[0].mxu0
    %v7005 = vpop.f32.mrb[0].mxu0
    %7006 = vdwg.mxu0
    %7007 = vmatprep.subr.bf16.mxu0 0
    %7008 = vmatpush1.bf16.msra.mxu0 %v4919
    %7009 = vmatprep.subr.bf16.mxu0 0
    %7010 = vmatpush1.bf16.msra.mxu0 %v4920
    %7011 = vmatprep.subr.bf16.mxu0 0
    %7012 = vmatpush1.bf16.msra.mxu0 %v4921
    %7013 = vmatprep.subr.bf16.mxu0 0
    %7014 = vmatpush1.bf16.msra.mxu0 %v4922
    %7015 = vmatprep.subr.bf16.mxu0 0
    %7016 = vmatpush1.bf16.msra.mxu0 %v4923
    %7017 = vmatprep.subr.bf16.mxu0 0
    %7018 = vmatpush1.bf16.msra.mxu0 %v4924
    %7019 = vmatprep.subr.bf16.mxu0 0
    %7020 = vmatpush1.bf16.msra.mxu0 %v4925
    %7021 = vmatprep.subr.bf16.mxu0 0
    %7022 = vmatpush1.bf16.msra.mxu0 %v4926
    %7023 = vmatprep.subr.bf16.mxu0 0
    %7024 = vmatpush1.bf16.msra.mxu0 %v4927
    %7025 = vmatprep.subr.bf16.mxu0 0
    %7026 = vmatpush1.bf16.msra.mxu0 %v4928
    %7027 = vmatprep.subr.bf16.mxu0 0
    %7028 = vmatpush1.bf16.msra.mxu0 %v4929
    %7029 = vmatprep.subr.bf16.mxu0 0
    %7030 = vmatpush1.bf16.msra.mxu0 %v4930
    %7031 = vmatprep.subr.bf16.mxu0 0
    %7032 = vmatpush1.bf16.msra.mxu0 %v4931
    %7033 = vmatprep.subr.bf16.mxu0 0
    %7034 = vmatpush1.bf16.msra.mxu0 %v4932
    %7035 = vmatprep.subr.bf16.mxu0 0
    %7036 = vmatpush1.bf16.msra.mxu0 %v4933
    %7037 = vmatprep.subr.bf16.mxu0 0
    %7038 = vmatpush1.bf16.msra.mxu0 %v4934
    %7039 = vmatprep.mubr.bf16.mxu0 %v1737
    %7040 = vmatmul.mubr.bf16.gmra.mrb[0].mxu0 %v1735
    %v7041 = vpop.f32.mrb[0].mxu0
    %v7042 = vadd.f32 %v7002, %v7041
    %v7043 = vpop.f32.mrb[0].mxu0
    %v7044 = vpop.f32.mrb[0].mxu0
    %v7045 = vpop.f32.mrb[0].mxu0
    %7046 = vdwg.mxu0
    %7047 = vmatprep.subr.bf16.mxu0 0
    %7048 = vmatpush1.bf16.msra.mxu0 %v4935
    %7049 = vmatprep.subr.bf16.mxu0 0
    %7050 = vmatpush1.bf16.msra.mxu0 %v4936
    %7051 = vmatprep.subr.bf16.mxu0 0
    %7052 = vmatpush1.bf16.msra.mxu0 %v4937
    %7053 = vmatprep.subr.bf16.mxu0 0
    %7054 = vmatpush1.bf16.msra.mxu0 %v4938
    %7055 = vmatprep.subr.bf16.mxu0 0
    %7056 = vmatpush1.bf16.msra.mxu0 %v4939
    %7057 = vmatprep.subr.bf16.mxu0 0
    %7058 = vmatpush1.bf16.msra.mxu0 %v4940
    %7059 = vmatprep.subr.bf16.mxu0 0
    %7060 = vmatpush1.bf16.msra.mxu0 %v4941
    %7061 = vmatprep.subr.bf16.mxu0 0
    %7062 = vmatpush1.bf16.msra.mxu0 %v4942
    %7063 = vmatprep.subr.bf16.mxu0 0
    %7064 = vmatpush1.bf16.msra.mxu0 %v4943
    %7065 = vmatprep.subr.bf16.mxu0 0
    %7066 = vmatpush1.bf16.msra.mxu0 %v4944
    %7067 = vmatprep.subr.bf16.mxu0 0
    %7068 = vmatpush1.bf16.msra.mxu0 %v4945
    %7069 = vmatprep.subr.bf16.mxu0 0
    %7070 = vmatpush1.bf16.msra.mxu0 %v4946
    %7071 = vmatprep.subr.bf16.mxu0 0
    %7072 = vmatpush1.bf16.msra.mxu0 %v4947
    %7073 = vmatprep.subr.bf16.mxu0 0
    %7074 = vmatpush1.bf16.msra.mxu0 %v4948
    %7075 = vmatprep.subr.bf16.mxu0 0
    %7076 = vmatpush1.bf16.msra.mxu0 %v4949
    %7077 = vmatprep.subr.bf16.mxu0 0
    %7078 = vmatpush1.bf16.msra.mxu0 %v4950
    %7079 = vmatprep.mubr.bf16.mxu0 %v1775
    %7080 = vmatmul.mubr.bf16.gmra.mrb[0].mxu0 %v1761
    %v7081 = vpop.f32.mrb[0].mxu0
    %v7082 = vadd.f32 %v7042, %v7081
    %v7083 = vpop.f32.mrb[0].mxu0
    %v7084 = vpop.f32.mrb[0].mxu0
    %v7085 = vpop.f32.mrb[0].mxu0
    %7086 = vdwg.mxu0
    %7087 = vmatprep.subr.bf16.mxu0 0
    %7088 = vmatpush1.bf16.msra.mxu0 %v4951
    %7089 = vmatprep.subr.bf16.mxu0 0
    %7090 = vmatpush1.bf16.msra.mxu0 %v4952
    %7091 = vmatprep.subr.bf16.mxu0 0
    %7092 = vmatpush1.bf16.msra.mxu0 %v4953
    %7093 = vmatprep.subr.bf16.mxu0 0
    %7094 = vmatpush1.bf16.msra.mxu0 %v4954
    %7095 = vmatprep.subr.bf16.mxu0 0
    %7096 = vmatpush1.bf16.msra.mxu0 %v4955
    %7097 = vmatprep.subr.bf16.mxu0 0
    %7098 = vmatpush1.bf16.msra.mxu0 %v4956
    %7099 = vmatprep.subr.bf16.mxu0 0
    %7100 = vmatpush1.bf16.msra.mxu0 %v4957
    %7101 = vmatprep.subr.bf16.mxu0 0
    %7102 = vmatpush1.bf16.msra.mxu0 %v4958
    %7103 = vmatprep.subr.bf16.mxu0 0
    %7104 = vmatpush1.bf16.msra.mxu0 %v4959
    %7105 = vmatprep.subr.bf16.mxu0 0
    %7106 = vmatpush1.bf16.msra.mxu0 %v4960
    %7107 = vmatprep.subr.bf16.mxu0 0
    %7108 = vmatpush1.bf16.msra.mxu0 %v4961
    %7109 = vmatprep.subr.bf16.mxu0 0
    %7110 = vmatpush1.bf16.msra.mxu0 %v4962
    %7111 = vmatprep.subr.bf16.mxu0 0
    %7112 = vmatpush1.bf16.msra.mxu0 %v4963
    %7113 = vmatprep.subr.bf16.mxu0 0
    %7114 = vmatpush1.bf16.msra.mxu0 %v4964
    %7115 = vmatprep.subr.bf16.mxu0 0
    %7116 = vmatpush1.bf16.msra.mxu0 %v4965
    %7117 = vmatprep.subr.bf16.mxu0 0
    %7118 = vmatpush1.bf16.msra.mxu0 %v4966
    %7119 = vmatprep.mubr.bf16.mxu0 %v1784
    %7120 = vmatmul.mubr.bf16.gmra.mrb[0].mxu0 %v1783
    %v7121 = vpop.f32.mrb[0].mxu0
    %v7122 = vadd.f32 %v7082, %v7121
    %v7123 = vpop.f32.mrb[0].mxu0
    %v7124 = vpop.f32.mrb[0].mxu0
    %v7125 = vpop.f32.mrb[0].mxu0
    %7126 = vdwg.mxu0
    %7127 = vmatprep.subr.bf16.mxu0 0
    %7128 = vmatpush1.bf16.msra.mxu0 %v4967
    %7129 = vmatprep.subr.bf16.mxu0 0
    %7130 = vmatpush1.bf16.msra.mxu0 %v4968
    %7131 = vmatprep.subr.bf16.mxu0 0
    %7132 = vmatpush1.bf16.msra.mxu0 %v4969
    %7133 = vmatprep.subr.bf16.mxu0 0
    %7134 = vmatpush1.bf16.msra.mxu0 %v4970
    %7135 = vmatprep.subr.bf16.mxu0 0
    %7136 = vmatpush1.bf16.msra.mxu0 %v4971
    %7137 = vmatprep.subr.bf16.mxu0 0
    %7138 = vmatpush1.bf16.msra.mxu0 %v4972
    %7139 = vmatprep.subr.bf16.mxu0 0
    %7140 = vmatpush1.bf16.msra.mxu0 %v4973
    %7141 = vmatprep.subr.bf16.mxu0 0
    %7142 = vmatpush1.bf16.msra.mxu0 %v4974
    %7143 = vmatprep.subr.bf16.mxu0 0
    %7144 = vmatpush1.bf16.msra.mxu0 %v4975
    %7145 = vmatprep.subr.bf16.mxu0 0
    %7146 = vmatpush1.bf16.msra.mxu0 %v4976
    %7147 = vmatprep.subr.bf16.mxu0 0
    %7148 = vmatpush1.bf16.msra.mxu0 %v4977
    %7149 = vmatprep.subr.bf16.mxu0 0
    %7150 = vmatpush1.bf16.msra.mxu0 %v4978
    %7151 = vmatprep.subr.bf16.mxu0 0
    %7152 = vmatpush1.bf16.msra.mxu0 %v4979
    %7153 = vmatprep.subr.bf16.mxu0 0
    %7154 = vmatpush1.bf16.msra.mxu0 %v4980
    %7155 = vmatprep.subr.bf16.mxu0 0
    %7156 = vmatpush1.bf16.msra.mxu0 %v4981
    %7157 = vmatprep.subr.bf16.mxu0 0
    %7158 = vmatpush1.bf16.msra.mxu0 %v4982
    %7159 = vmatprep.mubr.bf16.mxu0 %v1782
    %7160 = vmatmul.mubr.bf16.gmra.mrb[0].mxu0 %v1768
    %v7161 = vpop.f32.mrb[0].mxu0
    %v7162 = vadd.f32 %v7122, %v7161
    %v7163 = vpop.f32.mrb[0].mxu0
    %v7164 = vpop.f32.mrb[0].mxu0
    %v7165 = vpop.f32.mrb[0].mxu0
    %7166 = vdwg.mxu0
    %v7167 = vmax.f32 %v7162, 0.0
    %v7168 = vld [vmem:[%s3] sm:$0xff]
    %v7169 = vld [vmem:[%s3 + $0x8] sm:$0xff]
    %v7170 = vld [vmem:[%s3 + $0x10] sm:$0xff]
    %v7171 = vld [vmem:[%s3 + $0x18] sm:$0xff]
    %v7172 = vld [vmem:[%s3 + $0x20] sm:$0xff]
    %v7173 = vld [vmem:[%s3 + $0x28] sm:$0xff]
    %v7174 = vld [vmem:[%s3 + $0x30] sm:$0xff]
    %v7175 = vld [vmem:[%s3 + $0x38] sm:$0xff]
    %v7176 = vld [vmem:[%s3 + $0x40] sm:$0xff]
    %v7177 = vld [vmem:[%s3 + $0x48] sm:$0xff]
    %v7178 = vld [vmem:[%s3 + $0x50] sm:$0xff]
    %v7179 = vld [vmem:[%s3 + $0x58] sm:$0xff]
    %v7180 = vld [vmem:[%s3 + $0x60] sm:$0xff]
    %v7181 = vld [vmem:[%s3 + $0x68] sm:$0xff]
    %v7182 = vld [vmem:[%s3 + $0x70] sm:$0xff]
    %v7183 = vld [vmem:[%s3 + $0x78] sm:$0xff]
    %v7184 = vld [vmem:[%s4] sm:$0x1]
    %v7186 = vlaneseq
    %v7187 = vshrl.u32 %v7186, 7
    %v7188 = vsub.s32 0, %v7187
    %v7189 = vrot.slane %v7184, %v7188
    %7191 = vmatprep.subr.mxu0 0.0
    %7192 = vmatpush1.msra.mxu0 %v7168
    %7193 = vmatprep.subr.mxu0 0.0
    %7194 = vmatpush1.msra.mxu0 %v7169
    %7195 = vmatprep.subr.mxu0 0.0
    %7196 = vmatpush1.msra.mxu0 %v7170
    %7197 = vmatprep.subr.mxu0 0.0
    %7198 = vmatpush1.msra.mxu0 %v7171
    %7199 = vmatprep.subr.mxu0 0.0
    %7200 = vmatpush1.msra.mxu0 %v7172
    %7201 = vmatprep.subr.mxu0 0.0
    %7202 = vmatpush1.msra.mxu0 %v7173
    %7203 = vmatprep.subr.mxu0 0.0
    %7204 = vmatpush1.msra.mxu0 %v7174
    %7205 = vmatprep.subr.mxu0 0.0
    %7206 = vmatpush1.msra.mxu0 %v7175
    %7207 = vmatprep.subr.mxu0 0.0
    %7208 = vmatpush1.msra.mxu0 %v7176
    %7209 = vmatprep.subr.mxu0 0.0
    %7210 = vmatpush1.msra.mxu0 %v7177
    %7211 = vmatprep.subr.mxu0 0.0
    %7212 = vmatpush1.msra.mxu0 %v7178
    %7213 = vmatprep.subr.mxu0 0.0
    %7214 = vmatpush1.msra.mxu0 %v7179
    %7215 = vmatprep.subr.mxu0 0.0
    %7216 = vmatpush1.msra.mxu0 %v7180
    %7217 = vmatprep.subr.mxu0 0.0
    %7218 = vmatpush1.msra.mxu0 %v7181
    %7219 = vmatprep.subr.mxu0 0.0
    %7220 = vmatpush1.msra.mxu0 %v7182
    %7221 = vmatprep.subr.mxu0 0.0
    %7222 = vmatpush1.msra.mxu0 %v7183
    %7223 = vmatprep.subr.mxu0 0.0
    %7224 = vmatpush1.msra.mxu0 0.0
    %7225 = vmatprep.subr.mxu0 0.0
    %7226 = vmatpush1.msra.mxu0 0.0
    %7227 = vmatprep.subr.mxu0 0.0
    %7228 = vmatpush1.msra.mxu0 0.0
    %7229 = vmatprep.subr.mxu0 0.0
    %7230 = vmatpush1.msra.mxu0 0.0
    %7231 = vmatprep.subr.mxu0 0.0
    %7232 = vmatpush1.msra.mxu0 0.0
    %7233 = vmatprep.subr.mxu0 0.0
    %7234 = vmatpush1.msra.mxu0 0.0
    %7235 = vmatprep.subr.mxu0 0.0
    %7236 = vmatpush1.msra.mxu0 0.0
    %7237 = vmatprep.subr.mxu0 0.0
    %7238 = vmatpush1.msra.mxu0 0.0
    %7239 = vmatprep.subr.mxu0 0.0
    %7240 = vmatpush1.msra.mxu0 0.0
    %7241 = vmatprep.subr.mxu0 0.0
    %7242 = vmatpush1.msra.mxu0 0.0
    %7243 = vmatprep.subr.mxu0 0.0
    %7244 = vmatpush1.msra.mxu0 0.0
    %7245 = vmatprep.subr.mxu0 0.0
    %7246 = vmatpush1.msra.mxu0 0.0
    %7247 = vmatprep.subr.mxu0 0.0
    %7248 = vmatpush1.msra.mxu0 0.0
    %7249 = vmatprep.subr.mxu0 0.0
    %7250 = vmatpush1.msra.mxu0 0.0
    %7251 = vmatprep.subr.mxu0 0.0
    %7252 = vmatpush1.msra.mxu0 0.0
    %7253 = vmatprep.subr.mxu0 0.0
    %7254 = vmatpush1.msra.mxu0 0.0
    %7255 = vmatprep.mubr.f32.mxu0 0.0
    %7256 = vmatmul.mubr.f32.gmra.mrb[0].mxu0 %v7167
    %v7257 = vpop.f32.mrb[0].mxu0
    %v7258 = vadd.f32 %v7189, %v7257
    %v7259 = vpop.f32.mrb[0].mxu0
    %7260 = vdwg.mxu0
    %vm7261 = vcmask 74752
    %v7262 = vsel %vm7261, %v7258, -inf
    %7263 = vmax.xlane.f32.xlu0 %v7262
    %v7264 = vpop.xlane.xlu0 %7263
    %v7265 = vsub.f32 %v7258, %v7264
    %v7266 = vmul.f32 %v7265, 1.442695
    %v7267 = vpow.pop %v7266
    %v7268 = vsel %vm7261, %v7267, 0.0
    %7269 = vadd.xlane.f32.xlu0 %v7268
    %v7270 = vpop.xlane.xlu0 %7269
    %v7271 = vlog2.pop %v7270
    %v7272 = vmul.f32 %v7271, 0.6931472
    %v7273 = vsub.f32 %v7265, %v7272
    %7274 = vst.msk [vmem:[#allocation2] sm:$0x3] %vm7261, %v7273
    // Predicated region
    $region22: #{forward.3} parent=1 // pred_check
      _
    $region23: #{forward.3} parent=1 // pred_check_branch
      %7276 = sbr.rel (0) target = $region25
    $region24: #{forward.3} parent=1 // pred_region
      %s7278 = ssub.s32 32, 32
      %7279 = vsyncadd [#allocation3], %s7278
      %s7281 = sshll.u32 [#allocation2], 4
      %s7282 = int_to_ptr.vmem [resolvable:$true] %s7281
      %7284 = dma.vmem_to_hbm [thread:$0]  %s7282, 32, %s5, [#allocation3]
    $region25: #{forward.3} parent=1 // pred_fallthru
      _
    // Predicated region
    $region26: #{forward.3} parent=1 // pred_check
      _
    $region27: #{forward.3} parent=1 // pred_check_branch
      %7286 = sbr.rel (0) target = $region29
    $region28: #{forward.3} parent=1 // pred_region
      %7287 = dma.done [#allocation3], 32
    $region29: #{forward.3} parent=1 // pred_fallthru
      _
    %7288 = vsyncpa [#allocation3], 1

</llo_original>
